<compile_context>
chip_gen: v5e
topology: v5e:2x2
jax: 0.10.0
libtpu: 0.0.40
codegen_flags: <defaults>
</compile_context>

<pallas_src>
import math

import jax
import jax.numpy as jnp
from jax.experimental import pallas as pl
from jax.experimental.pallas import tpu as pltpu

EPS = 0.8  # nn.BatchNorm2d(in_features, 0.8) -> eps = 0.8


def _residual_block_kernel(xpad_ref, w1_ref, g1_ref, be1_ref,
                           w2_ref, g2_ref, be2_ref, alpha_ref,
                           o_ref, mid_ref):
    N, Hp, Wp, C = xpad_ref.shape
    H, W = Hp - 2, Wp - 2
    R = N * H * W
    inv_r = 1.0 / R

    # Zero ONLY the 1-pixel halo of the (uninitialized) padded intermediate.
    # Top/bottom rows are wide slabs; the two width-1 column strips are small
    # masked/strided stores (kept: removing them via a (row, W*C) mid layout
    # would cost nine lane-split relayouts on the conv2 reads instead).
    mid_ref[:, 0:1, :, :] = jnp.zeros((N, 1, Wp, C), jnp.bfloat16)
    mid_ref[:, H + 1:H + 2, :, :] = jnp.zeros((N, 1, Wp, C), jnp.bfloat16)
    mid_ref[:, 1:H + 1, 0:1, :] = jnp.zeros((N, H, 1, C), jnp.bfloat16)
    mid_ref[:, 1:H + 1, W + 1:W + 2, :] = jnp.zeros((N, H, 1, C), jnp.bfloat16)

    def conv3x3(patch_fn, w_ref):
        # 9 shifted (R, C) @ (C, C) matmuls accumulated in f32.  Trades the
        # old im2col stores for reads (3 vld slots vs 1 vst slot).
        acc = None
        for k in range(9):
            dh, dw = k // 3, k % 3
            t = jnp.dot(patch_fn(dh, dw), w_ref[k],
                        preferred_element_type=jnp.float32)
            acc = t if acc is None else acc + t
        return acc

    def batchnorm(y, g_ref, be_ref):
        # Training-mode BatchNorm2d, ONE-PASS batch statistics over (N,H,W)
        # per channel: var = E[y^2] - E[y]^2 (f32; eps=0.8 keeps it safe).
        s = jnp.sum(y, axis=0, keepdims=True)
        ss = jnp.sum(y * y, axis=0, keepdims=True)
        mean = s * inv_r
        var = ss * inv_r - mean * mean
        scale = g_ref[...] * jax.lax.rsqrt(var + EPS)
        shift = be_ref[...] - mean * scale
        return y * scale + shift

    # ---- Conv1 (bf16 MXU operands, f32 accumulation) + BN1 + PReLU ---------
    def x_patch(dh, dw):
        return (xpad_ref[:, dh:dh + H, dw:dw + W, :]
                .reshape(R, C).astype(jnp.bfloat16))

    y = conv3x3(x_patch, w1_ref)
    # (conv bias omitted: exactly cancelled by the training-mode BN mean)
    y = batchnorm(y, g1_ref, be1_ref)
    a = alpha_ref[0]                                  # PReLU alpha from SMEM
    y = jnp.where(y > 0, y, a * y)

    # ---- Re-pad the intermediate (interior store only; halo zeroed above) --
    mid_ref[:, 1:H + 1, 1:W + 1, :] = y.reshape(N, H, W, C).astype(jnp.bfloat16)

    # ---- Conv2 (reads mid slices directly — no second im2col) + BN2 --------
    def mid_patch(dh, dw):
        return mid_ref[:, dh:dh + H, dw:dw + W, :].reshape(R, C)

    z = conv3x3(mid_patch, w2_ref)
    z = batchnorm(z, g2_ref, be2_ref)

    # ---- Residual add: re-slice the padded input (not kept live) -----------
    resid = xpad_ref[:, 1:H + 1, 1:W + 1, :].reshape(R, C)
    out = (resid + z).reshape(N * H, W, C)

    # Lane-dense (N*H, W*C) output slab, assembled per output column.
    # TODO(synk): replace with a single wide store once Mosaic reliably
    # supports the (R, C) -> (N*H, W*C) minor-dim reshape / unaligned concat.
    for w in range(W):
        o_ref[:, w * C:(w + 1) * C] = out[:, w, :]


def residual_block(x_nchw, params):
    """params = (w1, b1, g1, be1, alpha, w2, b2, g2, be2); x_nchw is NCHW f32."""
    (w1, b1, g1, be1, alpha, w2, b2, g2, be2) = params
    del b1, b2  # per-channel conv bias is exactly removed by training-mode BN
    N, C, H, W = x_nchw.shape
    Hp, Wp = H + 2, W + 2

    # NCHW -> NHWC + spatial zero-pad of 1 (plain-JAX glue).  Input stays f32
    # so the residual path is exact; MXU operands become bf16 in the kernel.
    x_nhwc = jnp.transpose(x_nchw, (0, 2, 3, 1)).astype(jnp.float32)
    xpad = jnp.pad(x_nhwc, ((0, 0), (1, 1), (1, 1), (0, 0)))

    def prep_w(w):
        # PyTorch (Cout, Cin, 3, 3) -> (9, Cin, Cout); tap index k = kh*3 + kw.
        return jnp.transpose(w, (2, 3, 1, 0)).reshape(9, C, C).astype(jnp.bfloat16)

    args = (
        xpad,
        prep_w(w1),
        g1.reshape(1, C).astype(jnp.float32), be1.reshape(1, C).astype(jnp.float32),
        prep_w(w2),
        g2.reshape(1, C).astype(jnp.float32), be2.reshape(1, C).astype(jnp.float32),
        alpha.reshape(1).astype(jnp.float32),
    )

    vmem = pl.BlockSpec(memory_space=pltpu.MemorySpace.VMEM)
    smem = pl.BlockSpec(memory_space=pltpu.MemorySpace.SMEM)
    in_specs = [vmem] * (len(args) - 1) + [smem]       # alpha goes to SMEM

    def _nbytes(shape, dtype):
        return math.prod(shape) * jnp.dtype(dtype).itemsize

    # VMEM budget: padded f32 input + padded bf16 intermediate + lane-dense
    # output + weights + headroom for the f32 (R,C) working values that the
    # compiler may spill around the 9-tap accumulations.
    vmem_est = (_nbytes((N, Hp, Wp, C), jnp.float32)
                + _nbytes((N, Hp, Wp, C), jnp.bfloat16)
                + _nbytes((N * H, W * C), jnp.float32)
                + 2 * _nbytes((9, C, C), jnp.bfloat16)
                + 4 * _nbytes((N * H * W, C), jnp.float32))
    try:   # leave ~25% headroom vs. physical VMEM (64 MiB on v7x) — item 5
        phys = getattr(pltpu.get_tpu_info(), "vmem_capacity_bytes", 128 * 2**20)
    except Exception:
        phys = 64 * 2**20
    vmem_limit = int(min(max(2 * vmem_est, 16 * 2**20), 0.75 * phys))

    flops = 2 * 2 * (N * H * W) * (9 * C) * C          # two 3x3 convs
    bytes_accessed = (_nbytes((N, Hp, Wp, C), jnp.float32)
                      + _nbytes((N * H, W * C), jnp.float32)
                      + 2 * _nbytes((9, C, C), jnp.bfloat16))

    out2d = pl.pallas_call(
        _residual_block_kernel,
        out_shape=jax.ShapeDtypeStruct((N * H, W * C), jnp.float32),
        in_specs=in_specs,
        out_specs=vmem,
        scratch_shapes=[pltpu.VMEM((N, Hp, Wp, C), jnp.bfloat16)],   # padded mid
        compiler_params=pltpu.CompilerParams(vmem_limit_bytes=vmem_limit),
        cost_estimate=pl.CostEstimate(flops=flops, transcendentals=0,
                                      bytes_accessed=bytes_accessed),
    )(*args)

    # (N*H, W*C) -> NHWC -> NCHW
    return jnp.transpose(out2d.reshape(N, H, W, C), (0, 3, 1, 2))


def _reference(x, params, matmul_dtype=jnp.float32):
    """Plain-JAX mirror of the PyTorch module.  `matmul_dtype=jnp.bfloat16`
    mirrors the kernel's MXU precision (f32 accumulation) for a tight check."""
    (w1, b1, g1, be1, alpha, w2, b2, g2, be2) = params

    def conv(x, w, b):
        y = jax.lax.conv_general_dilated(
            x.astype(matmul_dtype), w.astype(matmul_dtype),
            window_strides=(1, 1), padding=((1, 1), (1, 1)),
            dimension_numbers=("NCHW", "OIHW", "NCHW"),
            preferred_element_type=jnp.float32)
        return y + b[None, :, None, None]

    def bn(y, g, be):
        mean = jnp.mean(y, axis=(0, 2, 3), keepdims=True)
        var = jnp.mean((y - mean) ** 2, axis=(0, 2, 3), keepdims=True)
        return ((y - mean) / jnp.sqrt(var + EPS)) * g[None, :, None, None] \
            + be[None, :, None, None]

    y = conv(x, w1, b1)
    y = bn(y, g1, be1)
    y = jnp.where(y > 0, y, alpha[0] * y)
    y = conv(y, w2, b2)
    y = bn(y, g2, be2)
    return x + y


if __name__ == "__main__":
    N, C, H, W = 2, 4, 16, 16
    key = jax.random.PRNGKey(0)
    keys = jax.random.split(key, 9)

    x = jax.random.normal(keys[0], (N, C, H, W), jnp.float32)

    # Deterministic synthetic parameters (shapes from the module's __init__).
    w1 = 0.1 * jax.random.normal(keys[1], (C, C, 3, 3), jnp.float32)
    b1 = 0.1 * jax.random.normal(keys[2], (C,), jnp.float32)
    g1 = 1.0 + 0.1 * jax.random.normal(keys[3], (C,), jnp.float32)
    be1 = 0.1 * jax.random.normal(keys[4], (C,), jnp.float32)
    alpha = jnp.array([0.25], jnp.float32)   # nn.PReLU() default init
    w2 = 0.1 * jax.random.normal(keys[5], (C, C, 3, 3), jnp.float32)
    b2 = 0.1 * jax.random.normal(keys[6], (C,), jnp.float32)
    g2 = 1.0 + 0.1 * jax.random.normal(keys[7], (C,), jnp.float32)
    be2 = 0.1 * jax.random.normal(keys[8], (C,), jnp.float32)

    params = (w1, b1, g1, be1, alpha, w2, b2, g2, be2)

    out = jax.block_until_ready(jax.jit(residual_block)(x, params))
    ref_bf = jax.block_until_ready(_reference(x, params, jnp.bfloat16))
    ref_32 = jax.block_until_ready(_reference(x, params, jnp.float32))

    assert out.shape == x.shape and out.dtype == jnp.float32
    err_bf = float(jnp.max(jnp.abs(out - ref_bf)))   # same MXU precision -> tight
    err_32 = float(jnp.max(jnp.abs(out - ref_32)))   # full-f32 semantics -> loose
    assert err_bf < 2e-2, f"mismatch vs bf16-matmul reference: max abs err = {err_bf}"
    assert err_32 < 1.5e-1, f"mismatch vs f32 reference: max abs err = {err_32}"
    print("KERNEL_OK")
</pallas_src>

<mosaic_0001>
module attributes {stable_mosaic.version = 11 : i64} {
  func.func @_residual_block_kernel(%arg0: memref<2x18x18x4xf32, #tpu.memory_space<vmem>>, %arg1: memref<9x4x4xbf16, #tpu.memory_space<vmem>>, %arg2: memref<1x4xf32, #tpu.memory_space<vmem>>, %arg3: memref<1x4xf32, #tpu.memory_space<vmem>>, %arg4: memref<9x4x4xbf16, #tpu.memory_space<vmem>>, %arg5: memref<1x4xf32, #tpu.memory_space<vmem>>, %arg6: memref<1x4xf32, #tpu.memory_space<vmem>>, %arg7: memref<1xf32, #tpu.memory_space<smem>>, %arg8: memref<32x64xf32, #tpu.memory_space<vmem>>, %arg9: memref<2x18x18x4xbf16, #tpu.memory_space<vmem>>) attributes {dimension_semantics = [], scalar_prefetch = 0 : i64, scratch_operands = 1 : i64, tpu.core_type = #tpu.core_type<tc>} {
    %cst = arith.constant 0.000000e+00 : bf16
    %0 = vector.broadcast %cst : bf16 to vector<2x1x18x4xbf16>
    %c0 = arith.constant 0 : index
    %c0_0 = arith.constant 0 : index
    %c0_1 = arith.constant 0 : index
    %c0_2 = arith.constant 0 : index
    %1 = vector.load %arg9[%c0, %c0_0, %c0_1, %c0_2] : memref<2x18x18x4xbf16, #tpu.memory_space<vmem>>, vector<2x1x18x4xbf16>
    tpu.vector_store %arg9[%c0, %c0_0, %c0_1, %c0_2], %0 {strides = array<i32>} : memref<2x18x18x4xbf16, #tpu.memory_space<vmem>>, vector<2x1x18x4xbf16>,
    %cst_3 = arith.constant 0.000000e+00 : bf16
    %2 = vector.broadcast %cst_3 : bf16 to vector<2x1x18x4xbf16>
    %c0_4 = arith.constant 0 : index
    %c17 = arith.constant 17 : index
    %c0_5 = arith.constant 0 : index
    %c0_6 = arith.constant 0 : index
    %3 = vector.load %arg9[%c0_4, %c17, %c0_5, %c0_6] : memref<2x18x18x4xbf16, #tpu.memory_space<vmem>>, vector<2x1x18x4xbf16>
    tpu.vector_store %arg9[%c0_4, %c17, %c0_5, %c0_6], %2 {strides = array<i32>} : memref<2x18x18x4xbf16, #tpu.memory_space<vmem>>, vector<2x1x18x4xbf16>,
    %cst_7 = arith.constant 0.000000e+00 : bf16
    %4 = vector.broadcast %cst_7 : bf16 to vector<2x16x1x4xbf16>
    %c0_8 = arith.constant 0 : index
    %c1 = arith.constant 1 : index
    %c0_9 = arith.constant 0 : index
    %c0_10 = arith.constant 0 : index
    %5 = vector.load %arg9[%c0_8, %c1, %c0_9, %c0_10] : memref<2x18x18x4xbf16, #tpu.memory_space<vmem>>, vector<2x16x1x4xbf16>
    tpu.vector_store %arg9[%c0_8, %c1, %c0_9, %c0_10], %4 {strides = array<i32>} : memref<2x18x18x4xbf16, #tpu.memory_space<vmem>>, vector<2x16x1x4xbf16>,
    %cst_11 = arith.constant 0.000000e+00 : bf16
    %6 = vector.broadcast %cst_11 : bf16 to vector<2x16x1x4xbf16>
    %c0_12 = arith.constant 0 : index
    %c1_13 = arith.constant 1 : index
    %c17_14 = arith.constant 17 : index
    %c0_15 = arith.constant 0 : index
    %7 = vector.load %arg9[%c0_12, %c1_13, %c17_14, %c0_15] : memref<2x18x18x4xbf16, #tpu.memory_space<vmem>>, vector<2x16x1x4xbf16>
    tpu.vector_store %arg9[%c0_12, %c1_13, %c17_14, %c0_15], %6 {strides = array<i32>} : memref<2x18x18x4xbf16, #tpu.memory_space<vmem>>, vector<2x16x1x4xbf16>,
    %c0_16 = arith.constant 0 : index
    %c0_17 = arith.constant 0 : index
    %c0_18 = arith.constant 0 : index
    %c0_19 = arith.constant 0 : index
    %8 = vector.load %arg0[%c0_16, %c0_17, %c0_18, %c0_19] : memref<2x18x18x4xf32, #tpu.memory_space<vmem>>, vector<2x16x16x4xf32>
    %9 = vector.shape_cast %8 : vector<2x16x16x4xf32> to vector<512x4xf32>
    %10 = arith.truncf %9 : vector<512x4xf32> to vector<512x4xbf16>
    %c0_20 = arith.constant 0 : index
    %c0_21 = arith.constant 0 : index
    %c0_22 = arith.constant 0 : index
    %11 = vector.load %arg1[%c0_20, %c0_21, %c0_22] : memref<9x4x4xbf16, #tpu.memory_space<vmem>>, vector<1x4x4xbf16>
    %12 = vector.shape_cast %11 : vector<1x4x4xbf16> to vector<4x4xbf16>
    %cst_23 = arith.constant dense<0.000000e+00> : vector<512x4xf32>
    %13 = tpu.matmul %10, %12, %cst_23 {dimension_numbers = #tpu.dot_dimension_numbers<[1], [0], [0], [1], [0, 0, 1, 1], [], []>} : vector<512x4xbf16>, vector<4x4xbf16>, vector<512x4xf32> -> vector<512x4xf32>
    %c0_24 = arith.constant 0 : index
    %c0_25 = arith.constant 0 : index
    %c1_26 = arith.constant 1 : index
    %c0_27 = arith.constant 0 : index
    %14 = vector.load %arg0[%c0_24, %c0_25, %c1_26, %c0_27] : memref<2x18x18x4xf32, #tpu.memory_space<vmem>>, vector<2x16x16x4xf32>
    %15 = vector.shape_cast %14 : vector<2x16x16x4xf32> to vector<512x4xf32>
    %16 = arith.truncf %15 : vector<512x4xf32> to vector<512x4xbf16>
    %c1_28 = arith.constant 1 : index
    %c0_29 = arith.constant 0 : index
    %c0_30 = arith.constant 0 : index
    %17 = vector.load %arg1[%c1_28, %c0_29, %c0_30] : memref<9x4x4xbf16, #tpu.memory_space<vmem>>, vector<1x4x4xbf16>
    %18 = vector.shape_cast %17 : vector<1x4x4xbf16> to vector<4x4xbf16>
    %cst_31 = arith.constant dense<0.000000e+00> : vector<512x4xf32>
    %19 = tpu.matmul %16, %18, %cst_31 {dimension_numbers = #tpu.dot_dimension_numbers<[1], [0], [0], [1], [0, 0, 1, 1], [], []>} : vector<512x4xbf16>, vector<4x4xbf16>, vector<512x4xf32> -> vector<512x4xf32>
    %20 = arith.addf %13, %19 : vector<512x4xf32>
    %c0_32 = arith.constant 0 : index
    %c0_33 = arith.constant 0 : index
    %c2 = arith.constant 2 : index
    %c0_34 = arith.constant 0 : index
    %21 = vector.load %arg0[%c0_32, %c0_33, %c2, %c0_34] : memref<2x18x18x4xf32, #tpu.memory_space<vmem>>, vector<2x16x16x4xf32>
    %22 = vector.shape_cast %21 : vector<2x16x16x4xf32> to vector<512x4xf32>
    %23 = arith.truncf %22 : vector<512x4xf32> to vector<512x4xbf16>
    %c2_35 = arith.constant 2 : index
    %c0_36 = arith.constant 0 : index
    %c0_37 = arith.constant 0 : index
    %24 = vector.load %arg1[%c2_35, %c0_36, %c0_37] : memref<9x4x4xbf16, #tpu.memory_space<vmem>>, vector<1x4x4xbf16>
    %25 = vector.shape_cast %24 : vector<1x4x4xbf16> to vector<4x4xbf16>
    %cst_38 = arith.constant dense<0.000000e+00> : vector<512x4xf32>
    %26 = tpu.matmul %23, %25, %cst_38 {dimension_numbers = #tpu.dot_dimension_numbers<[1], [0], [0], [1], [0, 0, 1, 1], [], []>} : vector<512x4xbf16>, vector<4x4xbf16>, vector<512x4xf32> -> vector<512x4xf32>
    %27 = arith.addf %20, %26 : vector<512x4xf32>
    %c0_39 = arith.constant 0 : index
    %c1_40 = arith.constant 1 : index
    %c0_41 = arith.constant 0 : index
    %c0_42 = arith.constant 0 : index
    %28 = vector.load %arg0[%c0_39, %c1_40, %c0_41, %c0_42] : memref<2x18x18x4xf32, #tpu.memory_space<vmem>>, vector<2x16x16x4xf32>
    %29 = vector.shape_cast %28 : vector<2x16x16x4xf32> to vector<512x4xf32>
    %30 = arith.truncf %29 : vector<512x4xf32> to vector<512x4xbf16>
    %c3 = arith.constant 3 : index
    %c0_43 = arith.constant 0 : index
    %c0_44 = arith.constant 0 : index
    %31 = vector.load %arg1[%c3, %c0_43, %c0_44] : memref<9x4x4xbf16, #tpu.memory_space<vmem>>, vector<1x4x4xbf16>
    %32 = vector.shape_cast %31 : vector<1x4x4xbf16> to vector<4x4xbf16>
    %cst_45 = arith.constant dense<0.000000e+00> : vector<512x4xf32>
    %33 = tpu.matmul %30, %32, %cst_45 {dimension_numbers = #tpu.dot_dimension_numbers<[1], [0], [0], [1], [0, 0, 1, 1], [], []>} : vector<512x4xbf16>, vector<4x4xbf16>, vector<512x4xf32> -> vector<512x4xf32>
    %34 = arith.addf %27, %33 : vector<512x4xf32>
    %c0_46 = arith.constant 0 : index
    %c1_47 = arith.constant 1 : index
    %c1_48 = arith.constant 1 : index
    %c0_49 = arith.constant 0 : index
    %35 = vector.load %arg0[%c0_46, %c1_47, %c1_48, %c0_49] : memref<2x18x18x4xf32, #tpu.memory_space<vmem>>, vector<2x16x16x4xf32>
    %36 = vector.shape_cast %35 : vector<2x16x16x4xf32> to vector<512x4xf32>
    %37 = arith.truncf %36 : vector<512x4xf32> to vector<512x4xbf16>
    %c4 = arith.constant 4 : index
    %c0_50 = arith.constant 0 : index
    %c0_51 = arith.constant 0 : index
    %38 = vector.load %arg1[%c4, %c0_50, %c0_51] : memref<9x4x4xbf16, #tpu.memory_space<vmem>>, vector<1x4x4xbf16>
    %39 = vector.shape_cast %38 : vector<1x4x4xbf16> to vector<4x4xbf16>
    %cst_52 = arith.constant dense<0.000000e+00> : vector<512x4xf32>
    %40 = tpu.matmul %37, %39, %cst_52 {dimension_numbers = #tpu.dot_dimension_numbers<[1], [0], [0], [1], [0, 0, 1, 1], [], []>} : vector<512x4xbf16>, vector<4x4xbf16>, vector<512x4xf32> -> vector<512x4xf32>
    %41 = arith.addf %34, %40 : vector<512x4xf32>
    %c0_53 = arith.constant 0 : index
    %c1_54 = arith.constant 1 : index
    %c2_55 = arith.constant 2 : index
    %c0_56 = arith.constant 0 : index
    %42 = vector.load %arg0[%c0_53, %c1_54, %c2_55, %c0_56] : memref<2x18x18x4xf32, #tpu.memory_space<vmem>>, vector<2x16x16x4xf32>
    %43 = vector.shape_cast %42 : vector<2x16x16x4xf32> to vector<512x4xf32>
    %44 = arith.truncf %43 : vector<512x4xf32> to vector<512x4xbf16>
    %c5 = arith.constant 5 : index
    %c0_57 = arith.constant 0 : index
    %c0_58 = arith.constant 0 : index
    %45 = vector.load %arg1[%c5, %c0_57, %c0_58] : memref<9x4x4xbf16, #tpu.memory_space<vmem>>, vector<1x4x4xbf16>
    %46 = vector.shape_cast %45 : vector<1x4x4xbf16> to vector<4x4xbf16>
    %cst_59 = arith.constant dense<0.000000e+00> : vector<512x4xf32>
    %47 = tpu.matmul %44, %46, %cst_59 {dimension_numbers = #tpu.dot_dimension_numbers<[1], [0], [0], [1], [0, 0, 1, 1], [], []>} : vector<512x4xbf16>, vector<4x4xbf16>, vector<512x4xf32> -> vector<512x4xf32>
    %48 = arith.addf %41, %47 : vector<512x4xf32>
    %c0_60 = arith.constant 0 : index
    %c2_61 = arith.constant 2 : index
    %c0_62 = arith.constant 0 : index
    %c0_63 = arith.constant 0 : index
    %49 = vector.load %arg0[%c0_60, %c2_61, %c0_62, %c0_63] : memref<2x18x18x4xf32, #tpu.memory_space<vmem>>, vector<2x16x16x4xf32>
    %50 = vector.shape_cast %49 : vector<2x16x16x4xf32> to vector<512x4xf32>
    %51 = arith.truncf %50 : vector<512x4xf32> to vector<512x4xbf16>
    %c6 = arith.constant 6 : index
    %c0_64 = arith.constant 0 : index
    %c0_65 = arith.constant 0 : index
    %52 = vector.load %arg1[%c6, %c0_64, %c0_65] : memref<9x4x4xbf16, #tpu.memory_space<vmem>>, vector<1x4x4xbf16>
    %53 = vector.shape_cast %52 : vector<1x4x4xbf16> to vector<4x4xbf16>
    %cst_66 = arith.constant dense<0.000000e+00> : vector<512x4xf32>
    %54 = tpu.matmul %51, %53, %cst_66 {dimension_numbers = #tpu.dot_dimension_numbers<[1], [0], [0], [1], [0, 0, 1, 1], [], []>} : vector<512x4xbf16>, vector<4x4xbf16>, vector<512x4xf32> -> vector<512x4xf32>
    %55 = arith.addf %48, %54 : vector<512x4xf32>
    %c0_67 = arith.constant 0 : index
    %c2_68 = arith.constant 2 : index
    %c1_69 = arith.constant 1 : index
    %c0_70 = arith.constant 0 : index
    %56 = vector.load %arg0[%c0_67, %c2_68, %c1_69, %c0_70] : memref<2x18x18x4xf32, #tpu.memory_space<vmem>>, vector<2x16x16x4xf32>
    %57 = vector.shape_cast %56 : vector<2x16x16x4xf32> to vector<512x4xf32>
    %58 = arith.truncf %57 : vector<512x4xf32> to vector<512x4xbf16>
    %c7 = arith.constant 7 : index
    %c0_71 = arith.constant 0 : index
    %c0_72 = arith.constant 0 : index
    %59 = vector.load %arg1[%c7, %c0_71, %c0_72] : memref<9x4x4xbf16, #tpu.memory_space<vmem>>, vector<1x4x4xbf16>
    %60 = vector.shape_cast %59 : vector<1x4x4xbf16> to vector<4x4xbf16>
    %cst_73 = arith.constant dense<0.000000e+00> : vector<512x4xf32>
    %61 = tpu.matmul %58, %60, %cst_73 {dimension_numbers = #tpu.dot_dimension_numbers<[1], [0], [0], [1], [0, 0, 1, 1], [], []>} : vector<512x4xbf16>, vector<4x4xbf16>, vector<512x4xf32> -> vector<512x4xf32>
    %62 = arith.addf %55, %61 : vector<512x4xf32>
    %c0_74 = arith.constant 0 : index
    %c2_75 = arith.constant 2 : index
    %c2_76 = arith.constant 2 : index
    %c0_77 = arith.constant 0 : index
    %63 = vector.load %arg0[%c0_74, %c2_75, %c2_76, %c0_77] : memref<2x18x18x4xf32, #tpu.memory_space<vmem>>, vector<2x16x16x4xf32>
    %64 = vector.shape_cast %63 : vector<2x16x16x4xf32> to vector<512x4xf32>
    %65 = arith.truncf %64 : vector<512x4xf32> to vector<512x4xbf16>
    %c8 = arith.constant 8 : index
    %c0_78 = arith.constant 0 : index
    %c0_79 = arith.constant 0 : index
    %66 = vector.load %arg1[%c8, %c0_78, %c0_79] : memref<9x4x4xbf16, #tpu.memory_space<vmem>>, vector<1x4x4xbf16>
    %67 = vector.shape_cast %66 : vector<1x4x4xbf16> to vector<4x4xbf16>
    %cst_80 = arith.constant dense<0.000000e+00> : vector<512x4xf32>
    %68 = tpu.matmul %65, %67, %cst_80 {dimension_numbers = #tpu.dot_dimension_numbers<[1], [0], [0], [1], [0, 0, 1, 1], [], []>} : vector<512x4xbf16>, vector<4x4xbf16>, vector<512x4xf32> -> vector<512x4xf32>
    %69 = arith.addf %62, %68 : vector<512x4xf32>
    %cst_81 = arith.constant dense<0.000000e+00> : vector<4xf32>
    %70 = vector.multi_reduction <add>, %69, %cst_81 [0] : vector<512x4xf32> to vector<4xf32>
    %71 = vector.shape_cast %70 : vector<4xf32> to vector<1x4xf32>
    %72 = arith.mulf %69, %69 : vector<512x4xf32>
    %cst_82 = arith.constant dense<0.000000e+00> : vector<4xf32>
    %73 = vector.multi_reduction <add>, %72, %cst_82 [0] : vector<512x4xf32> to vector<4xf32>
    %74 = vector.shape_cast %73 : vector<4xf32> to vector<1x4xf32>
    %cst_83 = arith.constant 0.001953125 : f32
    %75 = vector.broadcast %cst_83 : f32 to vector<1x4xf32>
    %76 = arith.mulf %71, %75 : vector<1x4xf32>
    %cst_84 = arith.constant 0.001953125 : f32
    %77 = vector.broadcast %cst_84 : f32 to vector<1x4xf32>
    %78 = arith.mulf %74, %77 : vector<1x4xf32>
    %79 = arith.mulf %76, %76 : vector<1x4xf32>
    %80 = arith.subf %78, %79 : vector<1x4xf32>
    %c0_85 = arith.constant 0 : index
    %c0_86 = arith.constant 0 : index
    %81 = vector.load %arg2[%c0_85, %c0_86] : memref<1x4xf32, #tpu.memory_space<vmem>>, vector<1x4xf32>
    %cst_87 = arith.constant 8.000000e-01 : f32
    %82 = vector.broadcast %cst_87 : f32 to vector<1x4xf32>
    %83 = arith.addf %80, %82 : vector<1x4xf32>
    %84 = math.rsqrt %83 : vector<1x4xf32>
    %85 = arith.mulf %81, %84 : vector<1x4xf32>
    %c0_88 = arith.constant 0 : index
    %c0_89 = arith.constant 0 : index
    %86 = vector.load %arg3[%c0_88, %c0_89] : memref<1x4xf32, #tpu.memory_space<vmem>>, vector<1x4xf32>
    %87 = arith.mulf %76, %85 : vector<1x4xf32>
    %88 = arith.subf %86, %87 : vector<1x4xf32>
    %89 = vector.broadcast %85 : vector<1x4xf32> to vector<512x4xf32>
    %90 = arith.mulf %69, %89 : vector<512x4xf32>
    %91 = vector.broadcast %88 : vector<1x4xf32> to vector<512x4xf32>
    %92 = arith.addf %90, %91 : vector<512x4xf32>
    %c0_90 = arith.constant 0 : index
    %93 = memref.load %arg7[%c0_90] : memref<1xf32, #tpu.memory_space<smem>>
    %cst_91 = arith.constant 0.000000e+00 : f32
    %94 = vector.broadcast %cst_91 : f32 to vector<512x4xf32>
    %95 = arith.cmpf ogt, %92, %94 : vector<512x4xf32>
    %96 = vector.broadcast %93 : f32 to vector<512x4xf32>
    %97 = arith.mulf %96, %92 : vector<512x4xf32>
    %98 = arith.select %95, %92, %97 : vector<512x4xi1>, vector<512x4xf32>
    %99 = vector.shape_cast %98 : vector<512x4xf32> to vector<2x16x16x4xf32>
    %100 = arith.truncf %99 : vector<2x16x16x4xf32> to vector<2x16x16x4xbf16>
    %c0_92 = arith.constant 0 : index
    %c1_93 = arith.constant 1 : index
    %c1_94 = arith.constant 1 : index
    %c0_95 = arith.constant 0 : index
    %101 = vector.load %arg9[%c0_92, %c1_93, %c1_94, %c0_95] : memref<2x18x18x4xbf16, #tpu.memory_space<vmem>>, vector<2x16x16x4xbf16>
    tpu.vector_store %arg9[%c0_92, %c1_93, %c1_94, %c0_95], %100 {strides = array<i32>} : memref<2x18x18x4xbf16, #tpu.memory_space<vmem>>, vector<2x16x16x4xbf16>,
    %c0_96 = arith.constant 0 : index
    %c0_97 = arith.constant 0 : index
    %c0_98 = arith.constant 0 : index
    %c0_99 = arith.constant 0 : index
    %102 = vector.load %arg9[%c0_96, %c0_97, %c0_98, %c0_99] : memref<2x18x18x4xbf16, #tpu.memory_space<vmem>>, vector<2x16x16x4xbf16>
    %103 = vector.shape_cast %102 : vector<2x16x16x4xbf16> to vector<512x4xbf16>
    %c0_100 = arith.constant 0 : index
    %c0_101 = arith.constant 0 : index
    %c0_102 = arith.constant 0 : index
    %104 = vector.load %arg4[%c0_100, %c0_101, %c0_102] : memref<9x4x4xbf16, #tpu.memory_space<vmem>>, vector<1x4x4xbf16>
    %105 = vector.shape_cast %104 : vector<1x4x4xbf16> to vector<4x4xbf16>
    %cst_103 = arith.constant dense<0.000000e+00> : vector<512x4xf32>
    %106 = tpu.matmul %103, %105, %cst_103 {dimension_numbers = #tpu.dot_dimension_numbers<[1], [0], [0], [1], [0, 0, 1, 1], [], []>} : vector<512x4xbf16>, vector<4x4xbf16>, vector<512x4xf32> -> vector<512x4xf32>
    %c0_104 = arith.constant 0 : index
    %c0_105 = arith.constant 0 : index
    %c1_106 = arith.constant 1 : index
    %c0_107 = arith.constant 0 : index
    %107 = vector.load %arg9[%c0_104, %c0_105, %c1_106, %c0_107] : memref<2x18x18x4xbf16, #tpu.memory_space<vmem>>, vector<2x16x16x4xbf16>
    %108 = vector.shape_cast %107 : vector<2x16x16x4xbf16> to vector<512x4xbf16>
    %c1_108 = arith.constant 1 : index
    %c0_109 = arith.constant 0 : index
    %c0_110 = arith.constant 0 : index
    %109 = vector.load %arg4[%c1_108, %c0_109, %c0_110] : memref<9x4x4xbf16, #tpu.memory_space<vmem>>, vector<1x4x4xbf16>
    %110 = vector.shape_cast %109 : vector<1x4x4xbf16> to vector<4x4xbf16>
    %cst_111 = arith.constant dense<0.000000e+00> : vector<512x4xf32>
    %111 = tpu.matmul %108, %110, %cst_111 {dimension_numbers = #tpu.dot_dimension_numbers<[1], [0], [0], [1], [0, 0, 1, 1], [], []>} : vector<512x4xbf16>, vector<4x4xbf16>, vector<512x4xf32> -> vector<512x4xf32>
    %112 = arith.addf %106, %111 : vector<512x4xf32>
    %c0_112 = arith.constant 0 : index
    %c0_113 = arith.constant 0 : index
    %c2_114 = arith.constant 2 : index
    %c0_115 = arith.constant 0 : index
    %113 = vector.load %arg9[%c0_112, %c0_113, %c2_114, %c0_115] : memref<2x18x18x4xbf16, #tpu.memory_space<vmem>>, vector<2x16x16x4xbf16>
    %114 = vector.shape_cast %113 : vector<2x16x16x4xbf16> to vector<512x4xbf16>
    %c2_116 = arith.constant 2 : index
    %c0_117 = arith.constant 0 : index
    %c0_118 = arith.constant 0 : index
    %115 = vector.load %arg4[%c2_116, %c0_117, %c0_118] : memref<9x4x4xbf16, #tpu.memory_space<vmem>>, vector<1x4x4xbf16>
    %116 = vector.shape_cast %115 : vector<1x4x4xbf16> to vector<4x4xbf16>
    %cst_119 = arith.constant dense<0.000000e+00> : vector<512x4xf32>
    %117 = tpu.matmul %114, %116, %cst_119 {dimension_numbers = #tpu.dot_dimension_numbers<[1], [0], [0], [1], [0, 0, 1, 1], [], []>} : vector<512x4xbf16>, vector<4x4xbf16>, vector<512x4xf32> -> vector<512x4xf32>
    %118 = arith.addf %112, %117 : vector<512x4xf32>
    %c0_120 = arith.constant 0 : index
    %c1_121 = arith.constant 1 : index
    %c0_122 = arith.constant 0 : index
    %c0_123 = arith.constant 0 : index
    %119 = vector.load %arg9[%c0_120, %c1_121, %c0_122, %c0_123] : memref<2x18x18x4xbf16, #tpu.memory_space<vmem>>, vector<2x16x16x4xbf16>
    %120 = vector.shape_cast %119 : vector<2x16x16x4xbf16> to vector<512x4xbf16>
    %c3_124 = arith.constant 3 : index
    %c0_125 = arith.constant 0 : index
    %c0_126 = arith.constant 0 : index
    %121 = vector.load %arg4[%c3_124, %c0_125, %c0_126] : memref<9x4x4xbf16, #tpu.memory_space<vmem>>, vector<1x4x4xbf16>
    %122 = vector.shape_cast %121 : vector<1x4x4xbf16> to vector<4x4xbf16>
    %cst_127 = arith.constant dense<0.000000e+00> : vector<512x4xf32>
    %123 = tpu.matmul %120, %122, %cst_127 {dimension_numbers = #tpu.dot_dimension_numbers<[1], [0], [0], [1], [0, 0, 1, 1], [], []>} : vector<512x4xbf16>, vector<4x4xbf16>, vector<512x4xf32> -> vector<512x4xf32>
    %124 = arith.addf %118, %123 : vector<512x4xf32>
    %c0_128 = arith.constant 0 : index
    %c1_129 = arith.constant 1 : index
    %c1_130 = arith.constant 1 : index
    %c0_131 = arith.constant 0 : index
    %125 = vector.load %arg9[%c0_128, %c1_129, %c1_130, %c0_131] : memref<2x18x18x4xbf16, #tpu.memory_space<vmem>>, vector<2x16x16x4xbf16>
    %126 = vector.shape_cast %125 : vector<2x16x16x4xbf16> to vector<512x4xbf16>
    %c4_132 = arith.constant 4 : index
    %c0_133 = arith.constant 0 : index
    %c0_134 = arith.constant 0 : index
    %127 = vector.load %arg4[%c4_132, %c0_133, %c0_134] : memref<9x4x4xbf16, #tpu.memory_space<vmem>>, vector<1x4x4xbf16>
    %128 = vector.shape_cast %127 : vector<1x4x4xbf16> to vector<4x4xbf16>
    %cst_135 = arith.constant dense<0.000000e+00> : vector<512x4xf32>
    %129 = tpu.matmul %126, %128, %cst_135 {dimension_numbers = #tpu.dot_dimension_numbers<[1], [0], [0], [1], [0, 0, 1, 1], [], []>} : vector<512x4xbf16>, vector<4x4xbf16>, vector<512x4xf32> -> vector<512x4xf32>
    %130 = arith.addf %124, %129 : vector<512x4xf32>
    %c0_136 = arith.constant 0 : index
    %c1_137 = arith.constant 1 : index
    %c2_138 = arith.constant 2 : index
    %c0_139 = arith.constant 0 : index
    %131 = vector.load %arg9[%c0_136, %c1_137, %c2_138, %c0_139] : memref<2x18x18x4xbf16, #tpu.memory_space<vmem>>, vector<2x16x16x4xbf16>
    %132 = vector.shape_cast %131 : vector<2x16x16x4xbf16> to vector<512x4xbf16>
    %c5_140 = arith.constant 5 : index
    %c0_141 = arith.constant 0 : index
    %c0_142 = arith.constant 0 : index
    %133 = vector.load %arg4[%c5_140, %c0_141, %c0_142] : memref<9x4x4xbf16, #tpu.memory_space<vmem>>, vector<1x4x4xbf16>
    %134 = vector.shape_cast %133 : vector<1x4x4xbf16> to vector<4x4xbf16>
    %cst_143 = arith.constant dense<0.000000e+00> : vector<512x4xf32>
    %135 = tpu.matmul %132, %134, %cst_143 {dimension_numbers = #tpu.dot_dimension_numbers<[1], [0], [0], [1], [0, 0, 1, 1], [], []>} : vector<512x4xbf16>, vector<4x4xbf16>, vector<512x4xf32> -> vector<512x4xf32>
    %136 = arith.addf %130, %135 : vector<512x4xf32>
    %c0_144 = arith.constant 0 : index
    %c2_145 = arith.constant 2 : index
    %c0_146 = arith.constant 0 : index
    %c0_147 = arith.constant 0 : index
    %137 = vector.load %arg9[%c0_144, %c2_145, %c0_146, %c0_147] : memref<2x18x18x4xbf16, #tpu.memory_space<vmem>>, vector<2x16x16x4xbf16>
    %138 = vector.shape_cast %137 : vector<2x16x16x4xbf16> to vector<512x4xbf16>
    %c6_148 = arith.constant 6 : index
    %c0_149 = arith.constant 0 : index
    %c0_150 = arith.constant 0 : index
    %139 = vector.load %arg4[%c6_148, %c0_149, %c0_150] : memref<9x4x4xbf16, #tpu.memory_space<vmem>>, vector<1x4x4xbf16>
    %140 = vector.shape_cast %139 : vector<1x4x4xbf16> to vector<4x4xbf16>
    %cst_151 = arith.constant dense<0.000000e+00> : vector<512x4xf32>
    %141 = tpu.matmul %138, %140, %cst_151 {dimension_numbers = #tpu.dot_dimension_numbers<[1], [0], [0], [1], [0, 0, 1, 1], [], []>} : vector<512x4xbf16>, vector<4x4xbf16>, vector<512x4xf32> -> vector<512x4xf32>
    %142 = arith.addf %136, %141 : vector<512x4xf32>
    %c0_152 = arith.constant 0 : index
    %c2_153 = arith.constant 2 : index
    %c1_154 = arith.constant 1 : index
    %c0_155 = arith.constant 0 : index
    %143 = vector.load %arg9[%c0_152, %c2_153, %c1_154, %c0_155] : memref<2x18x18x4xbf16, #tpu.memory_space<vmem>>, vector<2x16x16x4xbf16>
    %144 = vector.shape_cast %143 : vector<2x16x16x4xbf16> to vector<512x4xbf16>
    %c7_156 = arith.constant 7 : index
    %c0_157 = arith.constant 0 : index
    %c0_158 = arith.constant 0 : index
    %145 = vector.load %arg4[%c7_156, %c0_157, %c0_158] : memref<9x4x4xbf16, #tpu.memory_space<vmem>>, vector<1x4x4xbf16>
    %146 = vector.shape_cast %145 : vector<1x4x4xbf16> to vector<4x4xbf16>
    %cst_159 = arith.constant dense<0.000000e+00> : vector<512x4xf32>
    %147 = tpu.matmul %144, %146, %cst_159 {dimension_numbers = #tpu.dot_dimension_numbers<[1], [0], [0], [1], [0, 0, 1, 1], [], []>} : vector<512x4xbf16>, vector<4x4xbf16>, vector<512x4xf32> -> vector<512x4xf32>
    %148 = arith.addf %142, %147 : vector<512x4xf32>
    %c0_160 = arith.constant 0 : index
    %c2_161 = arith.constant 2 : index
    %c2_162 = arith.constant 2 : index
    %c0_163 = arith.constant 0 : index
    %149 = vector.load %arg9[%c0_160, %c2_161, %c2_162, %c0_163] : memref<2x18x18x4xbf16, #tpu.memory_space<vmem>>, vector<2x16x16x4xbf16>
    %150 = vector.shape_cast %149 : vector<2x16x16x4xbf16> to vector<512x4xbf16>
    %c8_164 = arith.constant 8 : index
    %c0_165 = arith.constant 0 : index
    %c0_166 = arith.constant 0 : index
    %151 = vector.load %arg4[%c8_164, %c0_165, %c0_166] : memref<9x4x4xbf16, #tpu.memory_space<vmem>>, vector<1x4x4xbf16>
    %152 = vector.shape_cast %151 : vector<1x4x4xbf16> to vector<4x4xbf16>
    %cst_167 = arith.constant dense<0.000000e+00> : vector<512x4xf32>
    %153 = tpu.matmul %150, %152, %cst_167 {dimension_numbers = #tpu.dot_dimension_numbers<[1], [0], [0], [1], [0, 0, 1, 1], [], []>} : vector<512x4xbf16>, vector<4x4xbf16>, vector<512x4xf32> -> vector<512x4xf32>
    %154 = arith.addf %148, %153 : vector<512x4xf32>
    %cst_168 = arith.constant dense<0.000000e+00> : vector<4xf32>
    %155 = vector.multi_reduction <add>, %154, %cst_168 [0] : vector<512x4xf32> to vector<4xf32>
    %156 = vector.shape_cast %155 : vector<4xf32> to vector<1x4xf32>
    %157 = arith.mulf %154, %154 : vector<512x4xf32>
    %cst_169 = arith.constant dense<0.000000e+00> : vector<4xf32>
    %158 = vector.multi_reduction <add>, %157, %cst_169 [0] : vector<512x4xf32> to vector<4xf32>
    %159 = vector.shape_cast %158 : vector<4xf32> to vector<1x4xf32>
    %cst_170 = arith.constant 0.001953125 : f32
    %160 = vector.broadcast %cst_170 : f32 to vector<1x4xf32>
    %161 = arith.mulf %156, %160 : vector<1x4xf32>
    %cst_171 = arith.constant 0.001953125 : f32
    %162 = vector.broadcast %cst_171 : f32 to vector<1x4xf32>
    %163 = arith.mulf %159, %162 : vector<1x4xf32>
    %164 = arith.mulf %161, %161 : vector<1x4xf32>
    %165 = arith.subf %163, %164 : vector<1x4xf32>
    %c0_172 = arith.constant 0 : index
    %c0_173 = arith.constant 0 : index
    %166 = vector.load %arg5[%c0_172, %c0_173] : memref<1x4xf32, #tpu.memory_space<vmem>>, vector<1x4xf32>
    %cst_174 = arith.constant 8.000000e-01 : f32
    %167 = vector.broadcast %cst_174 : f32 to vector<1x4xf32>
    %168 = arith.addf %165, %167 : vector<1x4xf32>
    %169 = math.rsqrt %168 : vector<1x4xf32>
    %170 = arith.mulf %166, %169 : vector<1x4xf32>
    %c0_175 = arith.constant 0 : index
    %c0_176 = arith.constant 0 : index
    %171 = vector.load %arg6[%c0_175, %c0_176] : memref<1x4xf32, #tpu.memory_space<vmem>>, vector<1x4xf32>
    %172 = arith.mulf %161, %170 : vector<1x4xf32>
    %173 = arith.subf %171, %172 : vector<1x4xf32>
    %174 = vector.broadcast %170 : vector<1x4xf32> to vector<512x4xf32>
    %175 = arith.mulf %154, %174 : vector<512x4xf32>
    %176 = vector.broadcast %173 : vector<1x4xf32> to vector<512x4xf32>
    %177 = arith.addf %175, %176 : vector<512x4xf32>
    %c0_177 = arith.constant 0 : index
    %c1_178 = arith.constant 1 : index
    %c1_179 = arith.constant 1 : index
    %c0_180 = arith.constant 0 : index
    %178 = vector.load %arg0[%c0_177, %c1_178, %c1_179, %c0_180] : memref<2x18x18x4xf32, #tpu.memory_space<vmem>>, vector<2x16x16x4xf32>
    %179 = vector.shape_cast %178 : vector<2x16x16x4xf32> to vector<512x4xf32>
    %180 = arith.addf %179, %177 : vector<512x4xf32>
    %181 = vector.shape_cast %180 : vector<512x4xf32> to vector<32x16x4xf32>
    %182 = vector.extract_strided_slice %181 {offsets = [0, 0, 0], sizes = [32, 1, 4], strides = [1, 1, 1]} : vector<32x16x4xf32> to vector<32x1x4xf32>
    %183 = vector.shape_cast %182 : vector<32x1x4xf32> to vector<32x4xf32>
    %c0_181 = arith.constant 0 : index
    %c0_182 = arith.constant 0 : index
    %184 = vector.load %arg8[%c0_181, %c0_182] : memref<32x64xf32, #tpu.memory_space<vmem>>, vector<32x4xf32>
    tpu.vector_store %arg8[%c0_181, %c0_182], %183 {strides = array<i32>} : memref<32x64xf32, #tpu.memory_space<vmem>>, vector<32x4xf32>,
    %185 = vector.extract_strided_slice %181 {offsets = [0, 1, 0], sizes = [32, 1, 4], strides = [1, 1, 1]} : vector<32x16x4xf32> to vector<32x1x4xf32>
    %186 = vector.shape_cast %185 : vector<32x1x4xf32> to vector<32x4xf32>
    %c0_183 = arith.constant 0 : index
    %c4_184 = arith.constant 4 : index
    %187 = vector.load %arg8[%c0_183, %c4_184] : memref<32x64xf32, #tpu.memory_space<vmem>>, vector<32x4xf32>
    tpu.vector_store %arg8[%c0_183, %c4_184], %186 {strides = array<i32>} : memref<32x64xf32, #tpu.memory_space<vmem>>, vector<32x4xf32>,
    %188 = vector.extract_strided_slice %181 {offsets = [0, 2, 0], sizes = [32, 1, 4], strides = [1, 1, 1]} : vector<32x16x4xf32> to vector<32x1x4xf32>
    %189 = vector.shape_cast %188 : vector<32x1x4xf32> to vector<32x4xf32>
    %c0_185 = arith.constant 0 : index
    %c8_186 = arith.constant 8 : index
    %190 = vector.load %arg8[%c0_185, %c8_186] : memref<32x64xf32, #tpu.memory_space<vmem>>, vector<32x4xf32>
    tpu.vector_store %arg8[%c0_185, %c8_186], %189 {strides = array<i32>} : memref<32x64xf32, #tpu.memory_space<vmem>>, vector<32x4xf32>,
    %191 = vector.extract_strided_slice %181 {offsets = [0, 3, 0], sizes = [32, 1, 4], strides = [1, 1, 1]} : vector<32x16x4xf32> to vector<32x1x4xf32>
    %192 = vector.shape_cast %191 : vector<32x1x4xf32> to vector<32x4xf32>
    %c0_187 = arith.constant 0 : index
    %c12 = arith.constant 12 : index
    %193 = vector.load %arg8[%c0_187, %c12] : memref<32x64xf32, #tpu.memory_space<vmem>>, vector<32x4xf32>
    tpu.vector_store %arg8[%c0_187, %c12], %192 {strides = array<i32>} : memref<32x64xf32, #tpu.memory_space<vmem>>, vector<32x4xf32>,
    %194 = vector.extract_strided_slice %181 {offsets = [0, 4, 0], sizes = [32, 1, 4], strides = [1, 1, 1]} : vector<32x16x4xf32> to vector<32x1x4xf32>
    %195 = vector.shape_cast %194 : vector<32x1x4xf32> to vector<32x4xf32>
    %c0_188 = arith.constant 0 : index
    %c16 = arith.constant 16 : index
    %196 = vector.load %arg8[%c0_188, %c16] : memref<32x64xf32, #tpu.memory_space<vmem>>, vector<32x4xf32>
    tpu.vector_store %arg8[%c0_188, %c16], %195 {strides = array<i32>} : memref<32x64xf32, #tpu.memory_space<vmem>>, vector<32x4xf32>,
    %197 = vector.extract_strided_slice %181 {offsets = [0, 5, 0], sizes = [32, 1, 4], strides = [1, 1, 1]} : vector<32x16x4xf32> to vector<32x1x4xf32>
    %198 = vector.shape_cast %197 : vector<32x1x4xf32> to vector<32x4xf32>
    %c0_189 = arith.constant 0 : index
    %c20 = arith.constant 20 : index
    %199 = vector.load %arg8[%c0_189, %c20] : memref<32x64xf32, #tpu.memory_space<vmem>>, vector<32x4xf32>
    tpu.vector_store %arg8[%c0_189, %c20], %198 {strides = array<i32>} : memref<32x64xf32, #tpu.memory_space<vmem>>, vector<32x4xf32>,
    %200 = vector.extract_strided_slice %181 {offsets = [0, 6, 0], sizes = [32, 1, 4], strides = [1, 1, 1]} : vector<32x16x4xf32> to vector<32x1x4xf32>
    %201 = vector.shape_cast %200 : vector<32x1x4xf32> to vector<32x4xf32>
    %c0_190 = arith.constant 0 : index
    %c24 = arith.constant 24 : index
    %202 = vector.load %arg8[%c0_190, %c24] : memref<32x64xf32, #tpu.memory_space<vmem>>, vector<32x4xf32>
    tpu.vector_store %arg8[%c0_190, %c24], %201 {strides = array<i32>} : memref<32x64xf32, #tpu.memory_space<vmem>>, vector<32x4xf32>,
    %203 = vector.extract_strided_slice %181 {offsets = [0, 7, 0], sizes = [32, 1, 4], strides = [1, 1, 1]} : vector<32x16x4xf32> to vector<32x1x4xf32>
    %204 = vector.shape_cast %203 : vector<32x1x4xf32> to vector<32x4xf32>
    %c0_191 = arith.constant 0 : index
    %c28 = arith.constant 28 : index
    %205 = vector.load %arg8[%c0_191, %c28] : memref<32x64xf32, #tpu.memory_space<vmem>>, vector<32x4xf32>
    tpu.vector_store %arg8[%c0_191, %c28], %204 {strides = array<i32>} : memref<32x64xf32, #tpu.memory_space<vmem>>, vector<32x4xf32>,
    %206 = vector.extract_strided_slice %181 {offsets = [0, 8, 0], sizes = [32, 1, 4], strides = [1, 1, 1]} : vector<32x16x4xf32> to vector<32x1x4xf32>
    %207 = vector.shape_cast %206 : vector<32x1x4xf32> to vector<32x4xf32>
    %c0_192 = arith.constant 0 : index
    %c32 = arith.constant 32 : index
    %208 = vector.load %arg8[%c0_192, %c32] : memref<32x64xf32, #tpu.memory_space<vmem>>, vector<32x4xf32>
    tpu.vector_store %arg8[%c0_192, %c32], %207 {strides = array<i32>} : memref<32x64xf32, #tpu.memory_space<vmem>>, vector<32x4xf32>,
    %209 = vector.extract_strided_slice %181 {offsets = [0, 9, 0], sizes = [32, 1, 4], strides = [1, 1, 1]} : vector<32x16x4xf32> to vector<32x1x4xf32>
    %210 = vector.shape_cast %209 : vector<32x1x4xf32> to vector<32x4xf32>
    %c0_193 = arith.constant 0 : index
    %c36 = arith.constant 36 : index
    %211 = vector.load %arg8[%c0_193, %c36] : memref<32x64xf32, #tpu.memory_space<vmem>>, vector<32x4xf32>
    tpu.vector_store %arg8[%c0_193, %c36], %210 {strides = array<i32>} : memref<32x64xf32, #tpu.memory_space<vmem>>, vector<32x4xf32>,
    %212 = vector.extract_strided_slice %181 {offsets = [0, 10, 0], sizes = [32, 1, 4], strides = [1, 1, 1]} : vector<32x16x4xf32> to vector<32x1x4xf32>
    %213 = vector.shape_cast %212 : vector<32x1x4xf32> to vector<32x4xf32>
    %c0_194 = arith.constant 0 : index
    %c40 = arith.constant 40 : index
    %214 = vector.load %arg8[%c0_194, %c40] : memref<32x64xf32, #tpu.memory_space<vmem>>, vector<32x4xf32>
    tpu.vector_store %arg8[%c0_194, %c40], %213 {strides = array<i32>} : memref<32x64xf32, #tpu.memory_space<vmem>>, vector<32x4xf32>,
    %215 = vector.extract_strided_slice %181 {offsets = [0, 11, 0], sizes = [32, 1, 4], strides = [1, 1, 1]} : vector<32x16x4xf32> to vector<32x1x4xf32>
    %216 = vector.shape_cast %215 : vector<32x1x4xf32> to vector<32x4xf32>
    %c0_195 = arith.constant 0 : index
    %c44 = arith.constant 44 : index
    %217 = vector.load %arg8[%c0_195, %c44] : memref<32x64xf32, #tpu.memory_space<vmem>>, vector<32x4xf32>
    tpu.vector_store %arg8[%c0_195, %c44], %216 {strides = array<i32>} : memref<32x64xf32, #tpu.memory_space<vmem>>, vector<32x4xf32>,
    %218 = vector.extract_strided_slice %181 {offsets = [0, 12, 0], sizes = [32, 1, 4], strides = [1, 1, 1]} : vector<32x16x4xf32> to vector<32x1x4xf32>
    %219 = vector.shape_cast %218 : vector<32x1x4xf32> to vector<32x4xf32>
    %c0_196 = arith.constant 0 : index
    %c48 = arith.constant 48 : index
    %220 = vector.load %arg8[%c0_196, %c48] : memref<32x64xf32, #tpu.memory_space<vmem>>, vector<32x4xf32>
    tpu.vector_store %arg8[%c0_196, %c48], %219 {strides = array<i32>} : memref<32x64xf32, #tpu.memory_space<vmem>>, vector<32x4xf32>,
    %221 = vector.extract_strided_slice %181 {offsets = [0, 13, 0], sizes = [32, 1, 4], strides = [1, 1, 1]} : vector<32x16x4xf32> to vector<32x1x4xf32>
    %222 = vector.shape_cast %221 : vector<32x1x4xf32> to vector<32x4xf32>
    %c0_197 = arith.constant 0 : index
    %c52 = arith.constant 52 : index
    %223 = vector.load %arg8[%c0_197, %c52] : memref<32x64xf32, #tpu.memory_space<vmem>>, vector<32x4xf32>
    tpu.vector_store %arg8[%c0_197, %c52], %222 {strides = array<i32>} : memref<32x64xf32, #tpu.memory_space<vmem>>, vector<32x4xf32>,
    %224 = vector.extract_strided_slice %181 {offsets = [0, 14, 0], sizes = [32, 1, 4], strides = [1, 1, 1]} : vector<32x16x4xf32> to vector<32x1x4xf32>
    %225 = vector.shape_cast %224 : vector<32x1x4xf32> to vector<32x4xf32>
    %c0_198 = arith.constant 0 : index
    %c56 = arith.constant 56 : index
    %226 = vector.load %arg8[%c0_198, %c56] : memref<32x64xf32, #tpu.memory_space<vmem>>, vector<32x4xf32>
    tpu.vector_store %arg8[%c0_198, %c56], %225 {strides = array<i32>} : memref<32x64xf32, #tpu.memory_space<vmem>>, vector<32x4xf32>,
    %227 = vector.extract_strided_slice %181 {offsets = [0, 15, 0], sizes = [32, 1, 4], strides = [1, 1, 1]} : vector<32x16x4xf32> to vector<32x1x4xf32>
    %228 = vector.shape_cast %227 : vector<32x1x4xf32> to vector<32x4xf32>
    %c0_199 = arith.constant 0 : index
    %c60 = arith.constant 60 : index
    %229 = vector.load %arg8[%c0_199, %c60] : memref<32x64xf32, #tpu.memory_space<vmem>>, vector<32x4xf32>
    tpu.vector_store %arg8[%c0_199, %c60], %228 {strides = array<i32>} : memref<32x64xf32, #tpu.memory_space<vmem>>, vector<32x4xf32>,
    return
  }
}

</mosaic_0001>

<llo_original>
// kernel: residual_block.1
$region0: #{residual_block.1}
  #allocation0 [shape = 'u32[]', space=smem, size = 0x4, offset = 0x4, fixed_abs, tag = 'smem constant byte address 0x4 - core index']
  #allocation1 [shape = 'u32[72,128]{1,0:T(1,128)}', space=vmem, size = 0x9000, scoped, tag = 'internal scratch']
  #allocation2 [shape = 'bf16[2,18,18,4]{3,2,1,0:T(8,128)(2,1)}', space=vmem, size = 0x36000, scoped, tag = 'scratch operand']
  #allocation3 [shape = 'f32[1]{0:T(128)S(6)}', space=smem, size = 0x200, scoped, tag = 'scoped memory for residual_block.1']
  %s0 = inlined_call_operand.vmem [shape: f32[2,18,18,4], index: 0, kind: input, shape index: {}]
  %s1 = inlined_call_operand.vmem [shape: bf16[9,4,4], index: 1, kind: input, shape index: {}]
  %s2 = inlined_call_operand.vmem [shape: f32[1,4], index: 2, kind: input, shape index: {}]
  %s3 = inlined_call_operand.vmem [shape: f32[1,4], index: 3, kind: input, shape index: {}]
  %s4 = inlined_call_operand.vmem [shape: bf16[9,4,4], index: 4, kind: input, shape index: {}]
  %s5 = inlined_call_operand.vmem [shape: f32[1,4], index: 5, kind: input, shape index: {}]
  %s6 = inlined_call_operand.vmem [shape: f32[1,4], index: 6, kind: input, shape index: {}]
  %s7 = inlined_call_operand.<no memory space> [shape: f32[1], index: 7, kind: input, shape index: {}]
  %s8 = inlined_call_operand.vmem [shape: f32[32,64], index: 8, kind: output, shape index: {}]
  %s9 = sld [smem:[#allocation0]]
  $region42: #{residual_block.1} parent=0
    _
  %s11 = ssub.s32 1, %s9
  %s12 = scalar_select 0, %s11, %s9
  %13 = sst [smem:[#allocation3]] %s7
  // Predicated region
  $region2: #{residual_block.1} parent=0 // pred_check
    _
  $region3: #{residual_block.1} parent=0 // pred_check_branch
    %15 = sbr.rel (0) target = $region5
  $region4: #{residual_block.1} parent=0 // pred_region
    _
  $region5: #{residual_block.1} parent=0 // pred_fallthru
    _
  // Predicated region
  $region6: #{residual_block.1} parent=0 // pred_check
    _
  $region7: #{residual_block.1} parent=0 // pred_check_branch
    %17 = sbr.rel (0) target = $region9
  $region8: #{residual_block.1} parent=0 // pred_region
    _
  $region9: #{residual_block.1} parent=0 // pred_fallthru
    _
  // Predicated region
  $region10: #{residual_block.1} parent=0 // pred_check
    _
  $region11: #{residual_block.1} parent=0 // pred_check_branch
    %19 = sbr.rel (0) target = $region13
  $region12: #{residual_block.1} parent=0 // pred_region
    _
  $region13: #{residual_block.1} parent=0 // pred_fallthru
    _
  // Predicated region
  $region14: #{residual_block.1} parent=0 // pred_check
    _
  $region15: #{residual_block.1} parent=0 // pred_check_branch
    %21 = sbr.rel (0) target = $region17
  $region16: #{residual_block.1} parent=0 // pred_region
    _
  $region17: #{residual_block.1} parent=0 // pred_fallthru
    _
  // Predicated region
  $region18: #{residual_block.1} parent=0 // pred_check
    _
  $region19: #{residual_block.1} parent=0 // pred_check_branch
    %23 = sbr.rel (0) target = $region21
  $region20: #{residual_block.1} parent=0 // pred_region
    _
  $region21: #{residual_block.1} parent=0 // pred_fallthru
    _
  // Predicated region
  $region22: #{residual_block.1} parent=0 // pred_check
    _
  $region23: #{residual_block.1} parent=0 // pred_check_branch
    %25 = sbr.rel (0) target = $region25
  $region24: #{residual_block.1} parent=0 // pred_region
    _
  $region25: #{residual_block.1} parent=0 // pred_fallthru
    _
  // Predicated region
  $region26: #{residual_block.1} parent=0 // pred_check
    _
  $region27: #{residual_block.1} parent=0 // pred_check_branch
    %27 = sbr.rel (0) target = $region29
  $region28: #{residual_block.1} parent=0 // pred_region
    _
  $region29: #{residual_block.1} parent=0 // pred_fallthru
    _
  // Predicated region
  $region30: #{residual_block.1} parent=0 // pred_check
    _
  $region31: #{residual_block.1} parent=0 // pred_check_branch
    %29 = sbr.rel (0) target = $region33
  $region32: #{residual_block.1} parent=0 // pred_region
    _
  $region33: #{residual_block.1} parent=0 // pred_fallthru
    _
  %vm31 = vcmask 27648
  %32 = vst.msk [vmem:[#allocation2] sm:$0xf] %vm31, 0
  %33 = vst.msk [vmem:[#allocation2 + $0x4] sm:$0xf] %vm31, 0
  %vm34 = vcmask 24576
  %35 = vst.msk [vmem:[#allocation2 + $0x8] sm:$0x1] %vm34, 0
  %36 = vst.msk [vmem:[#allocation2 + $0xd8] sm:$0xf] %vm31, 0
  %37 = vst.msk [vmem:[#allocation2 + $0xdc] sm:$0xf] %vm31, 0
  %38 = vst.msk [vmem:[#allocation2 + $0xe0] sm:$0x1] %vm34, 0
  %s39 = scalar_lea.vmem [#allocation2], 204
  %40 = vst.msk [vmem:[%s39] sm:$0xf] %vm31, 0
  %41 = vst.msk [vmem:[%s39 + $0x4] sm:$0xf] %vm31, 0
  %42 = vst.msk [vmem:[%s39 + $0x8] sm:$0x1] %vm34, 0
  %43 = vst.msk [vmem:[%s39 + $0xd8] sm:$0xf] %vm31, 0
  %44 = vst.msk [vmem:[%s39 + $0xdc] sm:$0xf] %vm31, 0
  %45 = vst.msk [vmem:[%s39 + $0xe0] sm:$0x1] %vm34, 0
  %s46 = scalar_lea.vmem [#allocation2], 12
  %vm47 = vcmask 24576
  %vm48 = vsmask.f32 256
  %vm49 = vmand %vm47, %vm48
  %v50 = vld [vmem:[%s46] sm:$0x1]
  %v51 = vsel %vm49, 0, %v50
  %52 = vst [vmem:[%s46] sm:$0x1] %v51
  %v53 = vld [vmem:[%s46 + $0xc] sm:$0x1]
  %v54 = vsel %vm49, 0, %v53
  %55 = vst [vmem:[%s46 + $0xc] sm:$0x1] %v54
  %v56 = vld [vmem:[%s46 + $0x18] sm:$0x1]
  %v57 = vsel %vm49, 0, %v56
  %58 = vst [vmem:[%s46 + $0x18] sm:$0x1] %v57
  %v59 = vld [vmem:[%s46 + $0x24] sm:$0x1]
  %v60 = vsel %vm49, 0, %v59
  %61 = vst [vmem:[%s46 + $0x24] sm:$0x1] %v60
  %v62 = vld [vmem:[%s46 + $0x30] sm:$0x1]
  %v63 = vsel %vm49, 0, %v62
  %64 = vst [vmem:[%s46 + $0x30] sm:$0x1] %v63
  %v65 = vld [vmem:[%s46 + $0x3c] sm:$0x1]
  %v66 = vsel %vm49, 0, %v65
  %67 = vst [vmem:[%s46 + $0x3c] sm:$0x1] %v66
  %v68 = vld [vmem:[%s46 + $0x48] sm:$0x1]
  %v69 = vsel %vm49, 0, %v68
  %70 = vst [vmem:[%s46 + $0x48] sm:$0x1] %v69
  %v71 = vld [vmem:[%s46 + $0x54] sm:$0x1]
  %v72 = vsel %vm49, 0, %v71
  %73 = vst [vmem:[%s46 + $0x54] sm:$0x1] %v72
  %v74 = vld [vmem:[%s46 + $0x60] sm:$0x1]
  %v75 = vsel %vm49, 0, %v74
  %76 = vst [vmem:[%s46 + $0x60] sm:$0x1] %v75
  %v77 = vld [vmem:[%s46 + $0x6c] sm:$0x1]
  %v78 = vsel %vm49, 0, %v77
  %79 = vst [vmem:[%s46 + $0x6c] sm:$0x1] %v78
  %v80 = vld [vmem:[%s46 + $0x78] sm:$0x1]
  %v81 = vsel %vm49, 0, %v80
  %82 = vst [vmem:[%s46 + $0x78] sm:$0x1] %v81
  %v83 = vld [vmem:[%s46 + $0x84] sm:$0x1]
  %v84 = vsel %vm49, 0, %v83
  %85 = vst [vmem:[%s46 + $0x84] sm:$0x1] %v84
  %v86 = vld [vmem:[%s46 + $0x90] sm:$0x1]
  %v87 = vsel %vm49, 0, %v86
  %88 = vst [vmem:[%s46 + $0x90] sm:$0x1] %v87
  %v89 = vld [vmem:[%s46 + $0x9c] sm:$0x1]
  %v90 = vsel %vm49, 0, %v89
  %91 = vst [vmem:[%s46 + $0x9c] sm:$0x1] %v90
  %v92 = vld [vmem:[%s46 + $0xa8] sm:$0x1]
  %v93 = vsel %vm49, 0, %v92
  %94 = vst [vmem:[%s46 + $0xa8] sm:$0x1] %v93
  %v95 = vld [vmem:[%s46 + $0xb4] sm:$0x1]
  %v96 = vsel %vm49, 0, %v95
  %97 = vst [vmem:[%s46 + $0xb4] sm:$0x1] %v96
  %v98 = vld [vmem:[%s46 + $0xd8] sm:$0x1]
  %v99 = vsel %vm49, 0, %v98
  %100 = vst [vmem:[%s46 + $0xd8] sm:$0x1] %v99
  %v101 = vld [vmem:[%s46 + $0xe4] sm:$0x1]
  %v102 = vsel %vm49, 0, %v101
  %103 = vst [vmem:[%s46 + $0xe4] sm:$0x1] %v102
  %v104 = vld [vmem:[%s46 + $0xf0] sm:$0x1]
  %v105 = vsel %vm49, 0, %v104
  %106 = vst [vmem:[%s46 + $0xf0] sm:$0x1] %v105
  %v107 = vld [vmem:[%s46 + $0xfc] sm:$0x1]
  %v108 = vsel %vm49, 0, %v107
  %109 = vst [vmem:[%s46 + $0xfc] sm:$0x1] %v108
  %v110 = vld [vmem:[%s46 + $0x108] sm:$0x1]
  %v111 = vsel %vm49, 0, %v110
  %112 = vst [vmem:[%s46 + $0x108] sm:$0x1] %v111
  %v113 = vld [vmem:[%s46 + $0x114] sm:$0x1]
  %v114 = vsel %vm49, 0, %v113
  %115 = vst [vmem:[%s46 + $0x114] sm:$0x1] %v114
  %v116 = vld [vmem:[%s46 + $0x120] sm:$0x1]
  %v117 = vsel %vm49, 0, %v116
  %118 = vst [vmem:[%s46 + $0x120] sm:$0x1] %v117
  %v119 = vld [vmem:[%s46 + $0x12c] sm:$0x1]
  %v120 = vsel %vm49, 0, %v119
  %121 = vst [vmem:[%s46 + $0x12c] sm:$0x1] %v120
  %v122 = vld [vmem:[%s46 + $0x138] sm:$0x1]
  %v123 = vsel %vm49, 0, %v122
  %124 = vst [vmem:[%s46 + $0x138] sm:$0x1] %v123
  %v125 = vld [vmem:[%s46 + $0x144] sm:$0x1]
  %v126 = vsel %vm49, 0, %v125
  %127 = vst [vmem:[%s46 + $0x144] sm:$0x1] %v126
  %v128 = vld [vmem:[%s46 + $0x150] sm:$0x1]
  %v129 = vsel %vm49, 0, %v128
  %130 = vst [vmem:[%s46 + $0x150] sm:$0x1] %v129
  %v131 = vld [vmem:[%s46 + $0x15c] sm:$0x1]
  %v132 = vsel %vm49, 0, %v131
  %133 = vst [vmem:[%s46 + $0x15c] sm:$0x1] %v132
  %v134 = vld [vmem:[%s46 + $0x168] sm:$0x1]
  %v135 = vsel %vm49, 0, %v134
  %136 = vst [vmem:[%s46 + $0x168] sm:$0x1] %v135
  %v137 = vld [vmem:[%s46 + $0x174] sm:$0x1]
  %v138 = vsel %vm49, 0, %v137
  %139 = vst [vmem:[%s46 + $0x174] sm:$0x1] %v138
  %v140 = vld [vmem:[%s46 + $0x180] sm:$0x1]
  %v141 = vsel %vm49, 0, %v140
  %142 = vst [vmem:[%s46 + $0x180] sm:$0x1] %v141
  %v143 = vld [vmem:[%s46 + $0x18c] sm:$0x1]
  %v144 = vsel %vm49, 0, %v143
  %145 = vst [vmem:[%s46 + $0x18c] sm:$0x1] %v144
  %vm146 = vsmask.f32 7938
  %vm147 = vmand %vm47, %vm146
  %v148 = vld [vmem:[%s46 + $0x8] sm:$0x1]
  %v149 = vsel %vm147, 0, %v148
  %150 = vst [vmem:[%s46 + $0x8] sm:$0x1] %v149
  %v151 = vld [vmem:[%s46 + $0x14] sm:$0x1]
  %v152 = vsel %vm147, 0, %v151
  %153 = vst [vmem:[%s46 + $0x14] sm:$0x1] %v152
  %v154 = vld [vmem:[%s46 + $0x20] sm:$0x1]
  %v155 = vsel %vm147, 0, %v154
  %156 = vst [vmem:[%s46 + $0x20] sm:$0x1] %v155
  %v157 = vld [vmem:[%s46 + $0x2c] sm:$0x1]
  %v158 = vsel %vm147, 0, %v157
  %159 = vst [vmem:[%s46 + $0x2c] sm:$0x1] %v158
  %v160 = vld [vmem:[%s46 + $0x38] sm:$0x1]
  %v161 = vsel %vm147, 0, %v160
  %162 = vst [vmem:[%s46 + $0x38] sm:$0x1] %v161
  %v163 = vld [vmem:[%s46 + $0x44] sm:$0x1]
  %v164 = vsel %vm147, 0, %v163
  %165 = vst [vmem:[%s46 + $0x44] sm:$0x1] %v164
  %v166 = vld [vmem:[%s46 + $0x50] sm:$0x1]
  %v167 = vsel %vm147, 0, %v166
  %168 = vst [vmem:[%s46 + $0x50] sm:$0x1] %v167
  %v169 = vld [vmem:[%s46 + $0x5c] sm:$0x1]
  %v170 = vsel %vm147, 0, %v169
  %171 = vst [vmem:[%s46 + $0x5c] sm:$0x1] %v170
  %v172 = vld [vmem:[%s46 + $0x68] sm:$0x1]
  %v173 = vsel %vm147, 0, %v172
  %174 = vst [vmem:[%s46 + $0x68] sm:$0x1] %v173
  %v175 = vld [vmem:[%s46 + $0x74] sm:$0x1]
  %v176 = vsel %vm147, 0, %v175
  %177 = vst [vmem:[%s46 + $0x74] sm:$0x1] %v176
  %v178 = vld [vmem:[%s46 + $0x80] sm:$0x1]
  %v179 = vsel %vm147, 0, %v178
  %180 = vst [vmem:[%s46 + $0x80] sm:$0x1] %v179
  %v181 = vld [vmem:[%s46 + $0x8c] sm:$0x1]
  %v182 = vsel %vm147, 0, %v181
  %183 = vst [vmem:[%s46 + $0x8c] sm:$0x1] %v182
  %v184 = vld [vmem:[%s46 + $0x98] sm:$0x1]
  %v185 = vsel %vm147, 0, %v184
  %186 = vst [vmem:[%s46 + $0x98] sm:$0x1] %v185
  %v187 = vld [vmem:[%s46 + $0xa4] sm:$0x1]
  %v188 = vsel %vm147, 0, %v187
  %189 = vst [vmem:[%s46 + $0xa4] sm:$0x1] %v188
  %v190 = vld [vmem:[%s46 + $0xb0] sm:$0x1]
  %v191 = vsel %vm147, 0, %v190
  %192 = vst [vmem:[%s46 + $0xb0] sm:$0x1] %v191
  %v193 = vld [vmem:[%s46 + $0xbc] sm:$0x1]
  %v194 = vsel %vm147, 0, %v193
  %195 = vst [vmem:[%s46 + $0xbc] sm:$0x1] %v194
  %v196 = vld [vmem:[%s46 + $0xe0] sm:$0x1]
  %v197 = vsel %vm147, 0, %v196
  %198 = vst [vmem:[%s46 + $0xe0] sm:$0x1] %v197
  %v199 = vld [vmem:[%s46 + $0xec] sm:$0x1]
  %v200 = vsel %vm147, 0, %v199
  %201 = vst [vmem:[%s46 + $0xec] sm:$0x1] %v200
  %v202 = vld [vmem:[%s46 + $0xf8] sm:$0x1]
  %v203 = vsel %vm147, 0, %v202
  %204 = vst [vmem:[%s46 + $0xf8] sm:$0x1] %v203
  %v205 = vld [vmem:[%s46 + $0x104] sm:$0x1]
  %v206 = vsel %vm147, 0, %v205
  %207 = vst [vmem:[%s46 + $0x104] sm:$0x1] %v206
  %v208 = vld [vmem:[%s46 + $0x110] sm:$0x1]
  %v209 = vsel %vm147, 0, %v208
  %210 = vst [vmem:[%s46 + $0x110] sm:$0x1] %v209
  %v211 = vld [vmem:[%s46 + $0x11c] sm:$0x1]
  %v212 = vsel %vm147, 0, %v211
  %213 = vst [vmem:[%s46 + $0x11c] sm:$0x1] %v212
  %v214 = vld [vmem:[%s46 + $0x128] sm:$0x1]
  %v215 = vsel %vm147, 0, %v214
  %216 = vst [vmem:[%s46 + $0x128] sm:$0x1] %v215
  %v217 = vld [vmem:[%s46 + $0x134] sm:$0x1]
  %v218 = vsel %vm147, 0, %v217
  %219 = vst [vmem:[%s46 + $0x134] sm:$0x1] %v218
  %v220 = vld [vmem:[%s46 + $0x140] sm:$0x1]
  %v221 = vsel %vm147, 0, %v220
  %222 = vst [vmem:[%s46 + $0x140] sm:$0x1] %v221
  %v223 = vld [vmem:[%s46 + $0x14c] sm:$0x1]
  %v224 = vsel %vm147, 0, %v223
  %225 = vst [vmem:[%s46 + $0x14c] sm:$0x1] %v224
  %v226 = vld [vmem:[%s46 + $0x158] sm:$0x1]
  %v227 = vsel %vm147, 0, %v226
  %228 = vst [vmem:[%s46 + $0x158] sm:$0x1] %v227
  %v229 = vld [vmem:[%s46 + $0x164] sm:$0x1]
  %v230 = vsel %vm147, 0, %v229
  %231 = vst [vmem:[%s46 + $0x164] sm:$0x1] %v230
  %v232 = vld [vmem:[%s46 + $0x170] sm:$0x1]
  %v233 = vsel %vm147, 0, %v232
  %234 = vst [vmem:[%s46 + $0x170] sm:$0x1] %v233
  %v235 = vld [vmem:[%s46 + $0x17c] sm:$0x1]
  %v236 = vsel %vm147, 0, %v235
  %237 = vst [vmem:[%s46 + $0x17c] sm:$0x1] %v236
  %v238 = vld [vmem:[%s46 + $0x188] sm:$0x1]
  %v239 = vsel %vm147, 0, %v238
  %240 = vst [vmem:[%s46 + $0x188] sm:$0x1] %v239
  %v241 = vld [vmem:[%s46 + $0x194] sm:$0x1]
  %v242 = vsel %vm147, 0, %v241
  %243 = vst [vmem:[%s46 + $0x194] sm:$0x1] %v242
  %v244 = vld [vmem:[%s0] sm:$0xff]
  %v245 = vld [vmem:[%s0 + $0x8] sm:$0xff]
  %v246 = vld [vmem:[%s0 + $0x18] sm:$0xff]
  %v247 = vld [vmem:[%s0 + $0x20] sm:$0xff]
  %v248 = vld [vmem:[%s0 + $0x30] sm:$0xff]
  %v249 = vld [vmem:[%s0 + $0x38] sm:$0xff]
  %v250 = vld [vmem:[%s0 + $0x48] sm:$0xff]
  %v251 = vld [vmem:[%s0 + $0x50] sm:$0xff]
  %v252 = vld [vmem:[%s0 + $0x60] sm:$0xff]
  %v253 = vld [vmem:[%s0 + $0x68] sm:$0xff]
  %v254 = vld [vmem:[%s0 + $0x78] sm:$0xff]
  %v255 = vld [vmem:[%s0 + $0x80] sm:$0xff]
  %v256 = vld [vmem:[%s0 + $0x90] sm:$0xff]
  %v257 = vld [vmem:[%s0 + $0x98] sm:$0xff]
  %v258 = vld [vmem:[%s0 + $0xa8] sm:$0xff]
  %v259 = vld [vmem:[%s0 + $0xb0] sm:$0xff]
  %v260 = vld [vmem:[%s0 + $0xc0] sm:$0xff]
  %v261 = vld [vmem:[%s0 + $0xc8] sm:$0xff]
  %v262 = vld [vmem:[%s0 + $0xd8] sm:$0xff]
  %v263 = vld [vmem:[%s0 + $0xe0] sm:$0xff]
  %v264 = vld [vmem:[%s0 + $0xf0] sm:$0xff]
  %v265 = vld [vmem:[%s0 + $0xf8] sm:$0xff]
  %v266 = vld [vmem:[%s0 + $0x108] sm:$0xff]
  %v267 = vld [vmem:[%s0 + $0x110] sm:$0xff]
  %v268 = vld [vmem:[%s0 + $0x120] sm:$0xff]
  %v269 = vld [vmem:[%s0 + $0x128] sm:$0xff]
  %v270 = vld [vmem:[%s0 + $0x138] sm:$0xff]
  %v271 = vld [vmem:[%s0 + $0x140] sm:$0xff]
  %v272 = vld [vmem:[%s0 + $0x150] sm:$0xff]
  %v273 = vld [vmem:[%s0 + $0x158] sm:$0xff]
  %v274 = vld [vmem:[%s0 + $0x168] sm:$0xff]
  %v275 = vld [vmem:[%s0 + $0x170] sm:$0xff]
  %v276 = vld [vmem:[%s0 + $0x1b0] sm:$0xff]
  %v277 = vld [vmem:[%s0 + $0x1b8] sm:$0xff]
  %v278 = vld [vmem:[%s0 + $0x1c8] sm:$0xff]
  %v279 = vld [vmem:[%s0 + $0x1d0] sm:$0xff]
  %v280 = vld [vmem:[%s0 + $0x1e0] sm:$0xff]
  %v281 = vld [vmem:[%s0 + $0x1e8] sm:$0xff]
  %v282 = vld [vmem:[%s0 + $0x1f8] sm:$0xff]
  %v283 = vld [vmem:[%s0 + $0x200] sm:$0xff]
  %v284 = vld [vmem:[%s0 + $0x210] sm:$0xff]
  %v285 = vld [vmem:[%s0 + $0x218] sm:$0xff]
  %v286 = vld [vmem:[%s0 + $0x228] sm:$0xff]
  %v287 = vld [vmem:[%s0 + $0x230] sm:$0xff]
  %v288 = vld [vmem:[%s0 + $0x240] sm:$0xff]
  %v289 = vld [vmem:[%s0 + $0x248] sm:$0xff]
  %v290 = vld [vmem:[%s0 + $0x258] sm:$0xff]
  %v291 = vld [vmem:[%s0 + $0x260] sm:$0xff]
  %v292 = vld [vmem:[%s0 + $0x270] sm:$0xff]
  %v293 = vld [vmem:[%s0 + $0x278] sm:$0xff]
  %v294 = vld [vmem:[%s0 + $0x288] sm:$0xff]
  %v295 = vld [vmem:[%s0 + $0x290] sm:$0xff]
  %v296 = vld [vmem:[%s0 + $0x2a0] sm:$0xff]
  %v297 = vld [vmem:[%s0 + $0x2a8] sm:$0xff]
  %v298 = vld [vmem:[%s0 + $0x2b8] sm:$0xff]
  %v299 = vld [vmem:[%s0 + $0x2c0] sm:$0xff]
  %v300 = vld [vmem:[%s0 + $0x2d0] sm:$0xff]
  %v301 = vld [vmem:[%s0 + $0x2d8] sm:$0xff]
  %v302 = vld [vmem:[%s0 + $0x2e8] sm:$0xff]
  %v303 = vld [vmem:[%s0 + $0x2f0] sm:$0xff]
  %v304 = vld [vmem:[%s0 + $0x300] sm:$0xff]
  %v305 = vld [vmem:[%s0 + $0x308] sm:$0xff]
  %v306 = vld [vmem:[%s0 + $0x318] sm:$0xff]
  %v307 = vld [vmem:[%s0 + $0x320] sm:$0xff]
  %v308 = vpack.c.bf16 %v245, %v244
  %v309 = vpack.c.bf16 %v247, %v246
  %v310 = vpack.c.bf16 %v249, %v248
  %v311 = vpack.c.bf16 %v251, %v250
  %v312 = vpack.c.bf16 %v253, %v252
  %v313 = vpack.c.bf16 %v255, %v254
  %v314 = vpack.c.bf16 %v257, %v256
  %v315 = vpack.c.bf16 %v259, %v258
  %v316 = vpack.c.bf16 %v261, %v260
  %v317 = vpack.c.bf16 %v263, %v262
  %v318 = vpack.c.bf16 %v265, %v264
  %v319 = vpack.c.bf16 %v267, %v266
  %v320 = vpack.c.bf16 %v269, %v268
  %v321 = vpack.c.bf16 %v271, %v270
  %v322 = vpack.c.bf16 %v273, %v272
  %v323 = vpack.c.bf16 %v275, %v274
  %v324 = vpack.c.bf16 %v277, %v276
  %v325 = vpack.c.bf16 %v279, %v278
  %v326 = vpack.c.bf16 %v281, %v280
  %v327 = vpack.c.bf16 %v283, %v282
  %v328 = vpack.c.bf16 %v285, %v284
  %v329 = vpack.c.bf16 %v287, %v286
  %v330 = vpack.c.bf16 %v289, %v288
  %v331 = vpack.c.bf16 %v291, %v290
  %v332 = vpack.c.bf16 %v293, %v292
  %v333 = vpack.c.bf16 %v295, %v294
  %v334 = vpack.c.bf16 %v297, %v296
  %v335 = vpack.c.bf16 %v299, %v298
  %v336 = vpack.c.bf16 %v301, %v300
  %v337 = vpack.c.bf16 %v303, %v302
  %v338 = vpack.c.bf16 %v305, %v304
  %v339 = vpack.c.bf16 %v307, %v306
  %v340 = vld [vmem:[%s1] sm:$0x3]
  %v341 = vld [vmem:[%s0 + $0x1] sm:$0xff]
  %v342 = vld [vmem:[%s0 + $0x9] sm:$0xff]
  %v343 = vld [vmem:[%s0 + $0x19] sm:$0xff]
  %v344 = vld [vmem:[%s0 + $0x21] sm:$0xff]
  %v345 = vld [vmem:[%s0 + $0x31] sm:$0xff]
  %v346 = vld [vmem:[%s0 + $0x39] sm:$0xff]
  %v347 = vld [vmem:[%s0 + $0x49] sm:$0xff]
  %v348 = vld [vmem:[%s0 + $0x51] sm:$0xff]
  %v349 = vld [vmem:[%s0 + $0x61] sm:$0xff]
  %v350 = vld [vmem:[%s0 + $0x69] sm:$0xff]
  %v351 = vld [vmem:[%s0 + $0x79] sm:$0xff]
  %v352 = vld [vmem:[%s0 + $0x81] sm:$0xff]
  %v353 = vld [vmem:[%s0 + $0x91] sm:$0xff]
  %v354 = vld [vmem:[%s0 + $0x99] sm:$0xff]
  %v355 = vld [vmem:[%s0 + $0xa9] sm:$0xff]
  %v356 = vld [vmem:[%s0 + $0xb1] sm:$0xff]
  %v357 = vld [vmem:[%s0 + $0xc1] sm:$0xff]
  %v358 = vld [vmem:[%s0 + $0xc9] sm:$0xff]
  %v359 = vld [vmem:[%s0 + $0xd9] sm:$0xff]
  %v360 = vld [vmem:[%s0 + $0xe1] sm:$0xff]
  %v361 = vld [vmem:[%s0 + $0xf1] sm:$0xff]
  %v362 = vld [vmem:[%s0 + $0xf9] sm:$0xff]
  %v363 = vld [vmem:[%s0 + $0x109] sm:$0xff]
  %v364 = vld [vmem:[%s0 + $0x111] sm:$0xff]
  %v365 = vld [vmem:[%s0 + $0x121] sm:$0xff]
  %v366 = vld [vmem:[%s0 + $0x129] sm:$0xff]
  %v367 = vld [vmem:[%s0 + $0x139] sm:$0xff]
  %v368 = vld [vmem:[%s0 + $0x141] sm:$0xff]
  %v369 = vld [vmem:[%s0 + $0x151] sm:$0xff]
  %v370 = vld [vmem:[%s0 + $0x159] sm:$0xff]
  %v371 = vld [vmem:[%s0 + $0x169] sm:$0xff]
  %v372 = vld [vmem:[%s0 + $0x171] sm:$0xff]
  %v373 = vld [vmem:[%s0 + $0x1b1] sm:$0xff]
  %v374 = vld [vmem:[%s0 + $0x1b9] sm:$0xff]
  %v375 = vld [vmem:[%s0 + $0x1c9] sm:$0xff]
  %v376 = vld [vmem:[%s0 + $0x1d1] sm:$0xff]
  %v377 = vld [vmem:[%s0 + $0x1e1] sm:$0xff]
  %v378 = vld [vmem:[%s0 + $0x1e9] sm:$0xff]
  %v379 = vld [vmem:[%s0 + $0x1f9] sm:$0xff]
  %v380 = vld [vmem:[%s0 + $0x201] sm:$0xff]
  %v381 = vld [vmem:[%s0 + $0x211] sm:$0xff]
  %v382 = vld [vmem:[%s0 + $0x219] sm:$0xff]
  %v383 = vld [vmem:[%s0 + $0x229] sm:$0xff]
  %v384 = vld [vmem:[%s0 + $0x231] sm:$0xff]
  %v385 = vld [vmem:[%s0 + $0x241] sm:$0xff]
  %v386 = vld [vmem:[%s0 + $0x249] sm:$0xff]
  %v387 = vld [vmem:[%s0 + $0x259] sm:$0xff]
  %v388 = vld [vmem:[%s0 + $0x261] sm:$0xff]
  %v389 = vld [vmem:[%s0 + $0x271] sm:$0xff]
  %v390 = vld [vmem:[%s0 + $0x279] sm:$0xff]
  %v391 = vld [vmem:[%s0 + $0x289] sm:$0xff]
  %v392 = vld [vmem:[%s0 + $0x291] sm:$0xff]
  %v393 = vld [vmem:[%s0 + $0x2a1] sm:$0xff]
  %v394 = vld [vmem:[%s0 + $0x2a9] sm:$0xff]
  %v395 = vld [vmem:[%s0 + $0x2b9] sm:$0xff]
  %v396 = vld [vmem:[%s0 + $0x2c1] sm:$0xff]
  %v397 = vld [vmem:[%s0 + $0x2d1] sm:$0xff]
  %v398 = vld [vmem:[%s0 + $0x2d9] sm:$0xff]
  %v399 = vld [vmem:[%s0 + $0x2e9] sm:$0xff]
  %v400 = vld [vmem:[%s0 + $0x2f1] sm:$0xff]
  %v401 = vld [vmem:[%s0 + $0x301] sm:$0xff]
  %v402 = vld [vmem:[%s0 + $0x309] sm:$0xff]
  %v403 = vld [vmem:[%s0 + $0x319] sm:$0xff]
  %v404 = vld [vmem:[%s0 + $0x321] sm:$0xff]
  %v405 = vpack.c.bf16 %v342, %v341
  %v406 = vpack.c.bf16 %v344, %v343
  %v407 = vpack.c.bf16 %v346, %v345
  %v408 = vpack.c.bf16 %v348, %v347
  %v409 = vpack.c.bf16 %v350, %v349
  %v410 = vpack.c.bf16 %v352, %v351
  %v411 = vpack.c.bf16 %v354, %v353
  %v412 = vpack.c.bf16 %v356, %v355
  %v413 = vpack.c.bf16 %v358, %v357
  %v414 = vpack.c.bf16 %v360, %v359
  %v415 = vpack.c.bf16 %v362, %v361
  %v416 = vpack.c.bf16 %v364, %v363
  %v417 = vpack.c.bf16 %v366, %v365
  %v418 = vpack.c.bf16 %v368, %v367
  %v419 = vpack.c.bf16 %v370, %v369
  %v420 = vpack.c.bf16 %v372, %v371
  %v421 = vpack.c.bf16 %v374, %v373
  %v422 = vpack.c.bf16 %v376, %v375
  %v423 = vpack.c.bf16 %v378, %v377
  %v424 = vpack.c.bf16 %v380, %v379
  %v425 = vpack.c.bf16 %v382, %v381
  %v426 = vpack.c.bf16 %v384, %v383
  %v427 = vpack.c.bf16 %v386, %v385
  %v428 = vpack.c.bf16 %v388, %v387
  %v429 = vpack.c.bf16 %v390, %v389
  %v430 = vpack.c.bf16 %v392, %v391
  %v431 = vpack.c.bf16 %v394, %v393
  %v432 = vpack.c.bf16 %v396, %v395
  %v433 = vpack.c.bf16 %v398, %v397
  %v434 = vpack.c.bf16 %v400, %v399
  %v435 = vpack.c.bf16 %v402, %v401
  %v436 = vpack.c.bf16 %v404, %v403
  %s437 = scalar_lea.vmem %s1, 2
  %v438 = vld [vmem:[%s437] sm:$0x3]
  %vm439 = vcmask 31744
  %v441 = vsel %vm439, %v405, 0
  %v444 = vsel %vm439, %v406, 0
  %v447 = vsel %vm439, %v407, 0
  %v450 = vsel %vm439, %v408, 0
  %v453 = vsel %vm439, %v409, 0
  %v456 = vsel %vm439, %v410, 0
  %v459 = vsel %vm439, %v411, 0
  %v462 = vsel %vm439, %v412, 0
  %v465 = vsel %vm439, %v413, 0
  %v468 = vsel %vm439, %v414, 0
  %v471 = vsel %vm439, %v415, 0
  %v474 = vsel %vm439, %v416, 0
  %v477 = vsel %vm439, %v417, 0
  %v480 = vsel %vm439, %v418, 0
  %v483 = vsel %vm439, %v419, 0
  %v486 = vsel %vm439, %v420, 0
  %v489 = vsel %vm439, %v421, 0
  %v492 = vsel %vm439, %v422, 0
  %v495 = vsel %vm439, %v423, 0
  %v498 = vsel %vm439, %v424, 0
  %v501 = vsel %vm439, %v425, 0
  %v504 = vsel %vm439, %v426, 0
  %v507 = vsel %vm439, %v427, 0
  %v510 = vsel %vm439, %v428, 0
  %v513 = vsel %vm439, %v429, 0
  %v516 = vsel %vm439, %v430, 0
  %v519 = vsel %vm439, %v431, 0
  %v522 = vsel %vm439, %v432, 0
  %v525 = vsel %vm439, %v433, 0
  %v528 = vsel %vm439, %v434, 0
  %v531 = vsel %vm439, %v435, 0
  %v534 = vsel %vm439, %v436, 0
  %vm536 = vcmask 1041408
  %v538 = vsel %vm536, %v438, 0
  %540 = vmatpush.bf16.msra.mxu0 0
  %541 = vmatpush.bf16.msra.mxu0 0
  %542 = vmatpush.bf16.msra.mxu0 0
  %543 = vmatpush.bf16.msra.mxu0 0
  %544 = vmatpush.bf16.msra.mxu0 0
  %545 = vmatpush.bf16.msra.mxu0 0
  %546 = vmatpush.bf16.msra.mxu0 0
  %547 = vmatpush.bf16.msra.mxu0 %v538
  %548 = vmatmul.bf16.gmra.mxu0 %v441
  %v549 = vpop.f32.mrf.mxu0
  %v550 = vadd.f32 0.0, %v549
  %v551 = vpop.f32.mrf.mxu0
  %v552 = vadd.f32 0.0, %v551
  %553 = vmatmul.bf16.gmra.mxu0 %v444
  %v554 = vpop.f32.mrf.mxu0
  %v555 = vadd.f32 0.0, %v554
  %v556 = vpop.f32.mrf.mxu0
  %v557 = vadd.f32 0.0, %v556
  %558 = vmatmul.bf16.gmra.mxu0 %v447
  %v559 = vpop.f32.mrf.mxu0
  %v560 = vadd.f32 0.0, %v559
  %v561 = vpop.f32.mrf.mxu0
  %v562 = vadd.f32 0.0, %v561
  %563 = vmatmul.bf16.gmra.mxu0 %v450
  %v564 = vpop.f32.mrf.mxu0
  %v565 = vadd.f32 0.0, %v564
  %v566 = vpop.f32.mrf.mxu0
  %v567 = vadd.f32 0.0, %v566
  %568 = vmatmul.bf16.gmra.mxu0 %v453
  %v569 = vpop.f32.mrf.mxu0
  %v570 = vadd.f32 0.0, %v569
  %v571 = vpop.f32.mrf.mxu0
  %v572 = vadd.f32 0.0, %v571
  %573 = vmatmul.bf16.gmra.mxu0 %v456
  %v574 = vpop.f32.mrf.mxu0
  %v575 = vadd.f32 0.0, %v574
  %v576 = vpop.f32.mrf.mxu0
  %v577 = vadd.f32 0.0, %v576
  %578 = vmatmul.bf16.gmra.mxu0 %v459
  %v579 = vpop.f32.mrf.mxu0
  %v580 = vadd.f32 0.0, %v579
  %v581 = vpop.f32.mrf.mxu0
  %v582 = vadd.f32 0.0, %v581
  %583 = vmatmul.bf16.gmra.mxu0 %v462
  %v584 = vpop.f32.mrf.mxu0
  %v585 = vadd.f32 0.0, %v584
  %v586 = vpop.f32.mrf.mxu0
  %v587 = vadd.f32 0.0, %v586
  %588 = vmatmul.bf16.gmra.mxu0 %v465
  %v589 = vpop.f32.mrf.mxu0
  %v590 = vadd.f32 0.0, %v589
  %v591 = vpop.f32.mrf.mxu0
  %v592 = vadd.f32 0.0, %v591
  %593 = vmatmul.bf16.gmra.mxu0 %v468
  %v594 = vpop.f32.mrf.mxu0
  %v595 = vadd.f32 0.0, %v594
  %v596 = vpop.f32.mrf.mxu0
  %v597 = vadd.f32 0.0, %v596
  %598 = vmatmul.bf16.gmra.mxu0 %v471
  %v599 = vpop.f32.mrf.mxu0
  %v600 = vadd.f32 0.0, %v599
  %v601 = vpop.f32.mrf.mxu0
  %v602 = vadd.f32 0.0, %v601
  %603 = vmatmul.bf16.gmra.mxu0 %v474
  %v604 = vpop.f32.mrf.mxu0
  %v605 = vadd.f32 0.0, %v604
  %v606 = vpop.f32.mrf.mxu0
  %v607 = vadd.f32 0.0, %v606
  %608 = vmatmul.bf16.gmra.mxu0 %v477
  %v609 = vpop.f32.mrf.mxu0
  %v610 = vadd.f32 0.0, %v609
  %v611 = vpop.f32.mrf.mxu0
  %v612 = vadd.f32 0.0, %v611
  %613 = vmatmul.bf16.gmra.mxu0 %v480
  %v614 = vpop.f32.mrf.mxu0
  %v615 = vadd.f32 0.0, %v614
  %v616 = vpop.f32.mrf.mxu0
  %v617 = vadd.f32 0.0, %v616
  %618 = vmatmul.bf16.gmra.mxu0 %v483
  %v619 = vpop.f32.mrf.mxu0
  %v620 = vadd.f32 0.0, %v619
  %v621 = vpop.f32.mrf.mxu0
  %v622 = vadd.f32 0.0, %v621
  %623 = vmatmul.bf16.gmra.mxu0 %v486
  %v624 = vpop.f32.mrf.mxu0
  %v625 = vadd.f32 0.0, %v624
  %v626 = vpop.f32.mrf.mxu0
  %v627 = vadd.f32 0.0, %v626
  %628 = vmatmul.bf16.gmra.mxu0 %v489
  %v629 = vpop.f32.mrf.mxu0
  %v630 = vadd.f32 0.0, %v629
  %v631 = vpop.f32.mrf.mxu0
  %v632 = vadd.f32 0.0, %v631
  %633 = vmatmul.bf16.gmra.mxu0 %v492
  %v634 = vpop.f32.mrf.mxu0
  %v635 = vadd.f32 0.0, %v634
  %v636 = vpop.f32.mrf.mxu0
  %v637 = vadd.f32 0.0, %v636
  %638 = vmatmul.bf16.gmra.mxu0 %v495
  %v639 = vpop.f32.mrf.mxu0
  %v640 = vadd.f32 0.0, %v639
  %v641 = vpop.f32.mrf.mxu0
  %v642 = vadd.f32 0.0, %v641
  %643 = vmatmul.bf16.gmra.mxu0 %v498
  %v644 = vpop.f32.mrf.mxu0
  %v645 = vadd.f32 0.0, %v644
  %v646 = vpop.f32.mrf.mxu0
  %v647 = vadd.f32 0.0, %v646
  %648 = vmatmul.bf16.gmra.mxu0 %v501
  %v649 = vpop.f32.mrf.mxu0
  %v650 = vadd.f32 0.0, %v649
  %v651 = vpop.f32.mrf.mxu0
  %v652 = vadd.f32 0.0, %v651
  %653 = vmatmul.bf16.gmra.mxu0 %v504
  %v654 = vpop.f32.mrf.mxu0
  %v655 = vadd.f32 0.0, %v654
  %v656 = vpop.f32.mrf.mxu0
  %v657 = vadd.f32 0.0, %v656
  %658 = vmatmul.bf16.gmra.mxu0 %v507
  %v659 = vpop.f32.mrf.mxu0
  %v660 = vadd.f32 0.0, %v659
  %v661 = vpop.f32.mrf.mxu0
  %v662 = vadd.f32 0.0, %v661
  %663 = vmatmul.bf16.gmra.mxu0 %v510
  %v664 = vpop.f32.mrf.mxu0
  %v665 = vadd.f32 0.0, %v664
  %v666 = vpop.f32.mrf.mxu0
  %v667 = vadd.f32 0.0, %v666
  %668 = vmatmul.bf16.gmra.mxu0 %v513
  %v669 = vpop.f32.mrf.mxu0
  %v670 = vadd.f32 0.0, %v669
  %v671 = vpop.f32.mrf.mxu0
  %v672 = vadd.f32 0.0, %v671
  %673 = vmatmul.bf16.gmra.mxu0 %v516
  %v674 = vpop.f32.mrf.mxu0
  %v675 = vadd.f32 0.0, %v674
  %v676 = vpop.f32.mrf.mxu0
  %v677 = vadd.f32 0.0, %v676
  %678 = vmatmul.bf16.gmra.mxu0 %v519
  %v679 = vpop.f32.mrf.mxu0
  %v680 = vadd.f32 0.0, %v679
  %v681 = vpop.f32.mrf.mxu0
  %v682 = vadd.f32 0.0, %v681
  %683 = vmatmul.bf16.gmra.mxu0 %v522
  %v684 = vpop.f32.mrf.mxu0
  %v685 = vadd.f32 0.0, %v684
  %v686 = vpop.f32.mrf.mxu0
  %v687 = vadd.f32 0.0, %v686
  %688 = vmatmul.bf16.gmra.mxu0 %v525
  %v689 = vpop.f32.mrf.mxu0
  %v690 = vadd.f32 0.0, %v689
  %v691 = vpop.f32.mrf.mxu0
  %v692 = vadd.f32 0.0, %v691
  %693 = vmatmul.bf16.gmra.mxu0 %v528
  %v694 = vpop.f32.mrf.mxu0
  %v695 = vadd.f32 0.0, %v694
  %v696 = vpop.f32.mrf.mxu0
  %v697 = vadd.f32 0.0, %v696
  %698 = vmatmul.bf16.gmra.mxu0 %v531
  %v699 = vpop.f32.mrf.mxu0
  %v700 = vadd.f32 0.0, %v699
  %v701 = vpop.f32.mrf.mxu0
  %v702 = vadd.f32 0.0, %v701
  %703 = vmatmul.bf16.gmra.mxu0 %v534
  %v704 = vpop.f32.mrf.mxu0
  %v705 = vadd.f32 0.0, %v704
  %v706 = vpop.f32.mrf.mxu0
  %v707 = vadd.f32 0.0, %v706
  %708 = vdwg.mxu0
  %v710 = vsel %vm439, %v308, 0
  %v713 = vsel %vm439, %v309, 0
  %v716 = vsel %vm439, %v310, 0
  %v719 = vsel %vm439, %v311, 0
  %v722 = vsel %vm439, %v312, 0
  %v725 = vsel %vm439, %v313, 0
  %v728 = vsel %vm439, %v314, 0
  %v731 = vsel %vm439, %v315, 0
  %v734 = vsel %vm439, %v316, 0
  %v737 = vsel %vm439, %v317, 0
  %v740 = vsel %vm439, %v318, 0
  %v743 = vsel %vm439, %v319, 0
  %v746 = vsel %vm439, %v320, 0
  %v749 = vsel %vm439, %v321, 0
  %v752 = vsel %vm439, %v322, 0
  %v755 = vsel %vm439, %v323, 0
  %v758 = vsel %vm439, %v324, 0
  %v761 = vsel %vm439, %v325, 0
  %v764 = vsel %vm439, %v326, 0
  %v767 = vsel %vm439, %v327, 0
  %v770 = vsel %vm439, %v328, 0
  %v773 = vsel %vm439, %v329, 0
  %v776 = vsel %vm439, %v330, 0
  %v779 = vsel %vm439, %v331, 0
  %v782 = vsel %vm439, %v332, 0
  %v785 = vsel %vm439, %v333, 0
  %v788 = vsel %vm439, %v334, 0
  %v791 = vsel %vm439, %v335, 0
  %v794 = vsel %vm439, %v336, 0
  %v797 = vsel %vm439, %v337, 0
  %v800 = vsel %vm439, %v338, 0
  %v803 = vsel %vm439, %v339, 0
  %v806 = vsel %vm536, %v340, 0
  %808 = vmatpush.bf16.msra.mxu0 0
  %809 = vmatpush.bf16.msra.mxu0 0
  %810 = vmatpush.bf16.msra.mxu0 0
  %811 = vmatpush.bf16.msra.mxu0 0
  %812 = vmatpush.bf16.msra.mxu0 0
  %813 = vmatpush.bf16.msra.mxu0 0
  %814 = vmatpush.bf16.msra.mxu0 0
  %815 = vmatpush.bf16.msra.mxu0 %v806
  %816 = vmatmul.bf16.gmra.mxu0 %v710
  %v817 = vpop.f32.mrf.mxu0
  %v818 = vadd.f32 %v550, %v817
  %v819 = vpop.f32.mrf.mxu0
  %v820 = vadd.f32 %v552, %v819
  %821 = vmatmul.bf16.gmra.mxu0 %v713
  %v822 = vpop.f32.mrf.mxu0
  %v823 = vadd.f32 %v555, %v822
  %v824 = vpop.f32.mrf.mxu0
  %v825 = vadd.f32 %v557, %v824
  %826 = vmatmul.bf16.gmra.mxu0 %v716
  %v827 = vpop.f32.mrf.mxu0
  %v828 = vadd.f32 %v560, %v827
  %v829 = vpop.f32.mrf.mxu0
  %v830 = vadd.f32 %v562, %v829
  %831 = vmatmul.bf16.gmra.mxu0 %v719
  %v832 = vpop.f32.mrf.mxu0
  %v833 = vadd.f32 %v565, %v832
  %v834 = vpop.f32.mrf.mxu0
  %v835 = vadd.f32 %v567, %v834
  %836 = vmatmul.bf16.gmra.mxu0 %v722
  %v837 = vpop.f32.mrf.mxu0
  %v838 = vadd.f32 %v570, %v837
  %v839 = vpop.f32.mrf.mxu0
  %v840 = vadd.f32 %v572, %v839
  %841 = vmatmul.bf16.gmra.mxu0 %v725
  %v842 = vpop.f32.mrf.mxu0
  %v843 = vadd.f32 %v575, %v842
  %v844 = vpop.f32.mrf.mxu0
  %v845 = vadd.f32 %v577, %v844
  %846 = vmatmul.bf16.gmra.mxu0 %v728
  %v847 = vpop.f32.mrf.mxu0
  %v848 = vadd.f32 %v580, %v847
  %v849 = vpop.f32.mrf.mxu0
  %v850 = vadd.f32 %v582, %v849
  %851 = vmatmul.bf16.gmra.mxu0 %v731
  %v852 = vpop.f32.mrf.mxu0
  %v853 = vadd.f32 %v585, %v852
  %v854 = vpop.f32.mrf.mxu0
  %v855 = vadd.f32 %v587, %v854
  %856 = vmatmul.bf16.gmra.mxu0 %v734
  %v857 = vpop.f32.mrf.mxu0
  %v858 = vadd.f32 %v590, %v857
  %v859 = vpop.f32.mrf.mxu0
  %v860 = vadd.f32 %v592, %v859
  %861 = vmatmul.bf16.gmra.mxu0 %v737
  %v862 = vpop.f32.mrf.mxu0
  %v863 = vadd.f32 %v595, %v862
  %v864 = vpop.f32.mrf.mxu0
  %v865 = vadd.f32 %v597, %v864
  %866 = vmatmul.bf16.gmra.mxu0 %v740
  %v867 = vpop.f32.mrf.mxu0
  %v868 = vadd.f32 %v600, %v867
  %v869 = vpop.f32.mrf.mxu0
  %v870 = vadd.f32 %v602, %v869
  %871 = vmatmul.bf16.gmra.mxu0 %v743
  %v872 = vpop.f32.mrf.mxu0
  %v873 = vadd.f32 %v605, %v872
  %v874 = vpop.f32.mrf.mxu0
  %v875 = vadd.f32 %v607, %v874
  %876 = vmatmul.bf16.gmra.mxu0 %v746
  %v877 = vpop.f32.mrf.mxu0
  %v878 = vadd.f32 %v610, %v877
  %v879 = vpop.f32.mrf.mxu0
  %v880 = vadd.f32 %v612, %v879
  %881 = vmatmul.bf16.gmra.mxu0 %v749
  %v882 = vpop.f32.mrf.mxu0
  %v883 = vadd.f32 %v615, %v882
  %v884 = vpop.f32.mrf.mxu0
  %v885 = vadd.f32 %v617, %v884
  %886 = vmatmul.bf16.gmra.mxu0 %v752
  %v887 = vpop.f32.mrf.mxu0
  %v888 = vadd.f32 %v620, %v887
  %v889 = vpop.f32.mrf.mxu0
  %v890 = vadd.f32 %v622, %v889
  %891 = vmatmul.bf16.gmra.mxu0 %v755
  %v892 = vpop.f32.mrf.mxu0
  %v893 = vadd.f32 %v625, %v892
  %v894 = vpop.f32.mrf.mxu0
  %v895 = vadd.f32 %v627, %v894
  %896 = vmatmul.bf16.gmra.mxu0 %v758
  %v897 = vpop.f32.mrf.mxu0
  %v898 = vadd.f32 %v630, %v897
  %v899 = vpop.f32.mrf.mxu0
  %v900 = vadd.f32 %v632, %v899
  %901 = vmatmul.bf16.gmra.mxu0 %v761
  %v902 = vpop.f32.mrf.mxu0
  %v903 = vadd.f32 %v635, %v902
  %v904 = vpop.f32.mrf.mxu0
  %v905 = vadd.f32 %v637, %v904
  %906 = vmatmul.bf16.gmra.mxu0 %v764
  %v907 = vpop.f32.mrf.mxu0
  %v908 = vadd.f32 %v640, %v907
  %v909 = vpop.f32.mrf.mxu0
  %v910 = vadd.f32 %v642, %v909
  %911 = vmatmul.bf16.gmra.mxu0 %v767
  %v912 = vpop.f32.mrf.mxu0
  %v913 = vadd.f32 %v645, %v912
  %v914 = vpop.f32.mrf.mxu0
  %v915 = vadd.f32 %v647, %v914
  %916 = vmatmul.bf16.gmra.mxu0 %v770
  %v917 = vpop.f32.mrf.mxu0
  %v918 = vadd.f32 %v650, %v917
  %v919 = vpop.f32.mrf.mxu0
  %v920 = vadd.f32 %v652, %v919
  %921 = vmatmul.bf16.gmra.mxu0 %v773
  %v922 = vpop.f32.mrf.mxu0
  %v923 = vadd.f32 %v655, %v922
  %v924 = vpop.f32.mrf.mxu0
  %v925 = vadd.f32 %v657, %v924
  %926 = vmatmul.bf16.gmra.mxu0 %v776
  %v927 = vpop.f32.mrf.mxu0
  %v928 = vadd.f32 %v660, %v927
  %v929 = vpop.f32.mrf.mxu0
  %v930 = vadd.f32 %v662, %v929
  %931 = vmatmul.bf16.gmra.mxu0 %v779
  %v932 = vpop.f32.mrf.mxu0
  %v933 = vadd.f32 %v665, %v932
  %v934 = vpop.f32.mrf.mxu0
  %v935 = vadd.f32 %v667, %v934
  %936 = vmatmul.bf16.gmra.mxu0 %v782
  %v937 = vpop.f32.mrf.mxu0
  %v938 = vadd.f32 %v670, %v937
  %v939 = vpop.f32.mrf.mxu0
  %v940 = vadd.f32 %v672, %v939
  %941 = vmatmul.bf16.gmra.mxu0 %v785
  %v942 = vpop.f32.mrf.mxu0
  %v943 = vadd.f32 %v675, %v942
  %v944 = vpop.f32.mrf.mxu0
  %v945 = vadd.f32 %v677, %v944
  %946 = vmatmul.bf16.gmra.mxu0 %v788
  %v947 = vpop.f32.mrf.mxu0
  %v948 = vadd.f32 %v680, %v947
  %v949 = vpop.f32.mrf.mxu0
  %v950 = vadd.f32 %v682, %v949
  %951 = vmatmul.bf16.gmra.mxu0 %v791
  %v952 = vpop.f32.mrf.mxu0
  %v953 = vadd.f32 %v685, %v952
  %v954 = vpop.f32.mrf.mxu0
  %v955 = vadd.f32 %v687, %v954
  %956 = vmatmul.bf16.gmra.mxu0 %v794
  %v957 = vpop.f32.mrf.mxu0
  %v958 = vadd.f32 %v690, %v957
  %v959 = vpop.f32.mrf.mxu0
  %v960 = vadd.f32 %v692, %v959
  %961 = vmatmul.bf16.gmra.mxu0 %v797
  %v962 = vpop.f32.mrf.mxu0
  %v963 = vadd.f32 %v695, %v962
  %v964 = vpop.f32.mrf.mxu0
  %v965 = vadd.f32 %v697, %v964
  %966 = vmatmul.bf16.gmra.mxu0 %v800
  %v967 = vpop.f32.mrf.mxu0
  %v968 = vadd.f32 %v700, %v967
  %v969 = vpop.f32.mrf.mxu0
  %v970 = vadd.f32 %v702, %v969
  %971 = vmatmul.bf16.gmra.mxu0 %v803
  %v972 = vpop.f32.mrf.mxu0
  %v973 = vadd.f32 %v705, %v972
  %v974 = vpop.f32.mrf.mxu0
  %v975 = vadd.f32 %v707, %v974
  %976 = vdwg.mxu0
  %v977 = vld [vmem:[%s0 + $0x2] sm:$0xff]
  %v978 = vld [vmem:[%s0 + $0xa] sm:$0xff]
  %v979 = vld [vmem:[%s0 + $0x1a] sm:$0xff]
  %v980 = vld [vmem:[%s0 + $0x22] sm:$0xff]
  %v981 = vld [vmem:[%s0 + $0x32] sm:$0xff]
  %v982 = vld [vmem:[%s0 + $0x3a] sm:$0xff]
  %v983 = vld [vmem:[%s0 + $0x4a] sm:$0xff]
  %v984 = vld [vmem:[%s0 + $0x52] sm:$0xff]
  %v985 = vld [vmem:[%s0 + $0x62] sm:$0xff]
  %v986 = vld [vmem:[%s0 + $0x6a] sm:$0xff]
  %v987 = vld [vmem:[%s0 + $0x7a] sm:$0xff]
  %v988 = vld [vmem:[%s0 + $0x82] sm:$0xff]
  %v989 = vld [vmem:[%s0 + $0x92] sm:$0xff]
  %v990 = vld [vmem:[%s0 + $0x9a] sm:$0xff]
  %v991 = vld [vmem:[%s0 + $0xaa] sm:$0xff]
  %v992 = vld [vmem:[%s0 + $0xb2] sm:$0xff]
  %v993 = vld [vmem:[%s0 + $0xc2] sm:$0xff]
  %v994 = vld [vmem:[%s0 + $0xca] sm:$0xff]
  %v995 = vld [vmem:[%s0 + $0xda] sm:$0xff]
  %v996 = vld [vmem:[%s0 + $0xe2] sm:$0xff]
  %v997 = vld [vmem:[%s0 + $0xf2] sm:$0xff]
  %v998 = vld [vmem:[%s0 + $0xfa] sm:$0xff]
  %v999 = vld [vmem:[%s0 + $0x10a] sm:$0xff]
  %v1000 = vld [vmem:[%s0 + $0x112] sm:$0xff]
  %v1001 = vld [vmem:[%s0 + $0x122] sm:$0xff]
  %v1002 = vld [vmem:[%s0 + $0x12a] sm:$0xff]
  %v1003 = vld [vmem:[%s0 + $0x13a] sm:$0xff]
  %v1004 = vld [vmem:[%s0 + $0x142] sm:$0xff]
  %v1005 = vld [vmem:[%s0 + $0x152] sm:$0xff]
  %v1006 = vld [vmem:[%s0 + $0x15a] sm:$0xff]
  %v1007 = vld [vmem:[%s0 + $0x16a] sm:$0xff]
  %v1008 = vld [vmem:[%s0 + $0x172] sm:$0xff]
  %v1009 = vld [vmem:[%s0 + $0x1b2] sm:$0xff]
  %v1010 = vld [vmem:[%s0 + $0x1ba] sm:$0xff]
  %v1011 = vld [vmem:[%s0 + $0x1ca] sm:$0xff]
  %v1012 = vld [vmem:[%s0 + $0x1d2] sm:$0xff]
  %v1013 = vld [vmem:[%s0 + $0x1e2] sm:$0xff]
  %v1014 = vld [vmem:[%s0 + $0x1ea] sm:$0xff]
  %v1015 = vld [vmem:[%s0 + $0x1fa] sm:$0xff]
  %v1016 = vld [vmem:[%s0 + $0x202] sm:$0xff]
  %v1017 = vld [vmem:[%s0 + $0x212] sm:$0xff]
  %v1018 = vld [vmem:[%s0 + $0x21a] sm:$0xff]
  %v1019 = vld [vmem:[%s0 + $0x22a] sm:$0xff]
  %v1020 = vld [vmem:[%s0 + $0x232] sm:$0xff]
  %v1021 = vld [vmem:[%s0 + $0x242] sm:$0xff]
  %v1022 = vld [vmem:[%s0 + $0x24a] sm:$0xff]
  %v1023 = vld [vmem:[%s0 + $0x25a] sm:$0xff]
  %v1024 = vld [vmem:[%s0 + $0x262] sm:$0xff]
  %v1025 = vld [vmem:[%s0 + $0x272] sm:$0xff]
  %v1026 = vld [vmem:[%s0 + $0x27a] sm:$0xff]
  %v1027 = vld [vmem:[%s0 + $0x28a] sm:$0xff]
  %v1028 = vld [vmem:[%s0 + $0x292] sm:$0xff]
  %v1029 = vld [vmem:[%s0 + $0x2a2] sm:$0xff]
  %v1030 = vld [vmem:[%s0 + $0x2aa] sm:$0xff]
  %v1031 = vld [vmem:[%s0 + $0x2ba] sm:$0xff]
  %v1032 = vld [vmem:[%s0 + $0x2c2] sm:$0xff]
  %v1033 = vld [vmem:[%s0 + $0x2d2] sm:$0xff]
  %v1034 = vld [vmem:[%s0 + $0x2da] sm:$0xff]
  %v1035 = vld [vmem:[%s0 + $0x2ea] sm:$0xff]
  %v1036 = vld [vmem:[%s0 + $0x2f2] sm:$0xff]
  %v1037 = vld [vmem:[%s0 + $0x302] sm:$0xff]
  %v1038 = vld [vmem:[%s0 + $0x30a] sm:$0xff]
  %v1039 = vld [vmem:[%s0 + $0x31a] sm:$0xff]
  %v1040 = vld [vmem:[%s0 + $0x322] sm:$0xff]
  %v1041 = vpack.c.bf16 %v978, %v977
  %v1042 = vpack.c.bf16 %v980, %v979
  %v1043 = vpack.c.bf16 %v982, %v981
  %v1044 = vpack.c.bf16 %v984, %v983
  %v1045 = vpack.c.bf16 %v986, %v985
  %v1046 = vpack.c.bf16 %v988, %v987
  %v1047 = vpack.c.bf16 %v990, %v989
  %v1048 = vpack.c.bf16 %v992, %v991
  %v1049 = vpack.c.bf16 %v994, %v993
  %v1050 = vpack.c.bf16 %v996, %v995
  %v1051 = vpack.c.bf16 %v998, %v997
  %v1052 = vpack.c.bf16 %v1000, %v999
  %v1053 = vpack.c.bf16 %v1002, %v1001
  %v1054 = vpack.c.bf16 %v1004, %v1003
  %v1055 = vpack.c.bf16 %v1006, %v1005
  %v1056 = vpack.c.bf16 %v1008, %v1007
  %v1057 = vpack.c.bf16 %v1010, %v1009
  %v1058 = vpack.c.bf16 %v1012, %v1011
  %v1059 = vpack.c.bf16 %v1014, %v1013
  %v1060 = vpack.c.bf16 %v1016, %v1015
  %v1061 = vpack.c.bf16 %v1018, %v1017
  %v1062 = vpack.c.bf16 %v1020, %v1019
  %v1063 = vpack.c.bf16 %v1022, %v1021
  %v1064 = vpack.c.bf16 %v1024, %v1023
  %v1065 = vpack.c.bf16 %v1026, %v1025
  %v1066 = vpack.c.bf16 %v1028, %v1027
  %v1067 = vpack.c.bf16 %v1030, %v1029
  %v1068 = vpack.c.bf16 %v1032, %v1031
  %v1069 = vpack.c.bf16 %v1034, %v1033
  %v1070 = vpack.c.bf16 %v1036, %v1035
  %v1071 = vpack.c.bf16 %v1038, %v1037
  %v1072 = vpack.c.bf16 %v1040, %v1039
  %s1073 = scalar_lea.vmem %s1, 4
  %v1074 = vld [vmem:[%s1073] sm:$0x3]
  %v1076 = vsel %vm439, %v1041, 0
  %v1079 = vsel %vm439, %v1042, 0
  %v1082 = vsel %vm439, %v1043, 0
  %v1085 = vsel %vm439, %v1044, 0
  %v1088 = vsel %vm439, %v1045, 0
  %v1091 = vsel %vm439, %v1046, 0
  %v1094 = vsel %vm439, %v1047, 0
  %v1097 = vsel %vm439, %v1048, 0
  %v1100 = vsel %vm439, %v1049, 0
  %v1103 = vsel %vm439, %v1050, 0
  %v1106 = vsel %vm439, %v1051, 0
  %v1109 = vsel %vm439, %v1052, 0
  %v1112 = vsel %vm439, %v1053, 0
  %v1115 = vsel %vm439, %v1054, 0
  %v1118 = vsel %vm439, %v1055, 0
  %v1121 = vsel %vm439, %v1056, 0
  %v1124 = vsel %vm439, %v1057, 0
  %v1127 = vsel %vm439, %v1058, 0
  %v1130 = vsel %vm439, %v1059, 0
  %v1133 = vsel %vm439, %v1060, 0
  %v1136 = vsel %vm439, %v1061, 0
  %v1139 = vsel %vm439, %v1062, 0
  %v1142 = vsel %vm439, %v1063, 0
  %v1145 = vsel %vm439, %v1064, 0
  %v1148 = vsel %vm439, %v1065, 0
  %v1151 = vsel %vm439, %v1066, 0
  %v1154 = vsel %vm439, %v1067, 0
  %v1157 = vsel %vm439, %v1068, 0
  %v1160 = vsel %vm439, %v1069, 0
  %v1163 = vsel %vm439, %v1070, 0
  %v1166 = vsel %vm439, %v1071, 0
  %v1169 = vsel %vm439, %v1072, 0
  %v1172 = vsel %vm536, %v1074, 0
  %1174 = vmatpush.bf16.msra.mxu0 0
  %1175 = vmatpush.bf16.msra.mxu0 0
  %1176 = vmatpush.bf16.msra.mxu0 0
  %1177 = vmatpush.bf16.msra.mxu0 0
  %1178 = vmatpush.bf16.msra.mxu0 0
  %1179 = vmatpush.bf16.msra.mxu0 0
  %1180 = vmatpush.bf16.msra.mxu0 0
  %1181 = vmatpush.bf16.msra.mxu0 %v1172
  %1182 = vmatmul.bf16.gmra.mxu0 %v1076
  %v1183 = vpop.f32.mrf.mxu0
  %v1184 = vadd.f32 0.0, %v1183
  %v1185 = vpop.f32.mrf.mxu0
  %v1186 = vadd.f32 0.0, %v1185
  %1187 = vmatmul.bf16.gmra.mxu0 %v1079
  %v1188 = vpop.f32.mrf.mxu0
  %v1189 = vadd.f32 0.0, %v1188
  %v1190 = vpop.f32.mrf.mxu0
  %v1191 = vadd.f32 0.0, %v1190
  %1192 = vmatmul.bf16.gmra.mxu0 %v1082
  %v1193 = vpop.f32.mrf.mxu0
  %v1194 = vadd.f32 0.0, %v1193
  %v1195 = vpop.f32.mrf.mxu0
  %v1196 = vadd.f32 0.0, %v1195
  %1197 = vmatmul.bf16.gmra.mxu0 %v1085
  %v1198 = vpop.f32.mrf.mxu0
  %v1199 = vadd.f32 0.0, %v1198
  %v1200 = vpop.f32.mrf.mxu0
  %v1201 = vadd.f32 0.0, %v1200
  %1202 = vmatmul.bf16.gmra.mxu0 %v1088
  %v1203 = vpop.f32.mrf.mxu0
  %v1204 = vadd.f32 0.0, %v1203
  %v1205 = vpop.f32.mrf.mxu0
  %v1206 = vadd.f32 0.0, %v1205
  %1207 = vmatmul.bf16.gmra.mxu0 %v1091
  %v1208 = vpop.f32.mrf.mxu0
  %v1209 = vadd.f32 0.0, %v1208
  %v1210 = vpop.f32.mrf.mxu0
  %v1211 = vadd.f32 0.0, %v1210
  %1212 = vmatmul.bf16.gmra.mxu0 %v1094
  %v1213 = vpop.f32.mrf.mxu0
  %v1214 = vadd.f32 0.0, %v1213
  %v1215 = vpop.f32.mrf.mxu0
  %v1216 = vadd.f32 0.0, %v1215
  %1217 = vmatmul.bf16.gmra.mxu0 %v1097
  %v1218 = vpop.f32.mrf.mxu0
  %v1219 = vadd.f32 0.0, %v1218
  %v1220 = vpop.f32.mrf.mxu0
  %v1221 = vadd.f32 0.0, %v1220
  %1222 = vmatmul.bf16.gmra.mxu0 %v1100
  %v1223 = vpop.f32.mrf.mxu0
  %v1224 = vadd.f32 0.0, %v1223
  %v1225 = vpop.f32.mrf.mxu0
  %v1226 = vadd.f32 0.0, %v1225
  %1227 = vmatmul.bf16.gmra.mxu0 %v1103
  %v1228 = vpop.f32.mrf.mxu0
  %v1229 = vadd.f32 0.0, %v1228
  %v1230 = vpop.f32.mrf.mxu0
  %v1231 = vadd.f32 0.0, %v1230
  %1232 = vmatmul.bf16.gmra.mxu0 %v1106
  %v1233 = vpop.f32.mrf.mxu0
  %v1234 = vadd.f32 0.0, %v1233
  %v1235 = vpop.f32.mrf.mxu0
  %v1236 = vadd.f32 0.0, %v1235
  %1237 = vmatmul.bf16.gmra.mxu0 %v1109
  %v1238 = vpop.f32.mrf.mxu0
  %v1239 = vadd.f32 0.0, %v1238
  %v1240 = vpop.f32.mrf.mxu0
  %v1241 = vadd.f32 0.0, %v1240
  %1242 = vmatmul.bf16.gmra.mxu0 %v1112
  %v1243 = vpop.f32.mrf.mxu0
  %v1244 = vadd.f32 0.0, %v1243
  %v1245 = vpop.f32.mrf.mxu0
  %v1246 = vadd.f32 0.0, %v1245
  %1247 = vmatmul.bf16.gmra.mxu0 %v1115
  %v1248 = vpop.f32.mrf.mxu0
  %v1249 = vadd.f32 0.0, %v1248
  %v1250 = vpop.f32.mrf.mxu0
  %v1251 = vadd.f32 0.0, %v1250
  %1252 = vmatmul.bf16.gmra.mxu0 %v1118
  %v1253 = vpop.f32.mrf.mxu0
  %v1254 = vadd.f32 0.0, %v1253
  %v1255 = vpop.f32.mrf.mxu0
  %v1256 = vadd.f32 0.0, %v1255
  %1257 = vmatmul.bf16.gmra.mxu0 %v1121
  %v1258 = vpop.f32.mrf.mxu0
  %v1259 = vadd.f32 0.0, %v1258
  %v1260 = vpop.f32.mrf.mxu0
  %v1261 = vadd.f32 0.0, %v1260
  %1262 = vmatmul.bf16.gmra.mxu0 %v1124
  %v1263 = vpop.f32.mrf.mxu0
  %v1264 = vadd.f32 0.0, %v1263
  %v1265 = vpop.f32.mrf.mxu0
  %v1266 = vadd.f32 0.0, %v1265
  %1267 = vmatmul.bf16.gmra.mxu0 %v1127
  %v1268 = vpop.f32.mrf.mxu0
  %v1269 = vadd.f32 0.0, %v1268
  %v1270 = vpop.f32.mrf.mxu0
  %v1271 = vadd.f32 0.0, %v1270
  %1272 = vmatmul.bf16.gmra.mxu0 %v1130
  %v1273 = vpop.f32.mrf.mxu0
  %v1274 = vadd.f32 0.0, %v1273
  %v1275 = vpop.f32.mrf.mxu0
  %v1276 = vadd.f32 0.0, %v1275
  %1277 = vmatmul.bf16.gmra.mxu0 %v1133
  %v1278 = vpop.f32.mrf.mxu0
  %v1279 = vadd.f32 0.0, %v1278
  %v1280 = vpop.f32.mrf.mxu0
  %v1281 = vadd.f32 0.0, %v1280
  %1282 = vmatmul.bf16.gmra.mxu0 %v1136
  %v1283 = vpop.f32.mrf.mxu0
  %v1284 = vadd.f32 0.0, %v1283
  %v1285 = vpop.f32.mrf.mxu0
  %v1286 = vadd.f32 0.0, %v1285
  %1287 = vmatmul.bf16.gmra.mxu0 %v1139
  %v1288 = vpop.f32.mrf.mxu0
  %v1289 = vadd.f32 0.0, %v1288
  %v1290 = vpop.f32.mrf.mxu0
  %v1291 = vadd.f32 0.0, %v1290
  %1292 = vmatmul.bf16.gmra.mxu0 %v1142
  %v1293 = vpop.f32.mrf.mxu0
  %v1294 = vadd.f32 0.0, %v1293
  %v1295 = vpop.f32.mrf.mxu0
  %v1296 = vadd.f32 0.0, %v1295
  %1297 = vmatmul.bf16.gmra.mxu0 %v1145
  %v1298 = vpop.f32.mrf.mxu0
  %v1299 = vadd.f32 0.0, %v1298
  %v1300 = vpop.f32.mrf.mxu0
  %v1301 = vadd.f32 0.0, %v1300
  %1302 = vmatmul.bf16.gmra.mxu0 %v1148
  %v1303 = vpop.f32.mrf.mxu0
  %v1304 = vadd.f32 0.0, %v1303
  %v1305 = vpop.f32.mrf.mxu0
  %v1306 = vadd.f32 0.0, %v1305
  %1307 = vmatmul.bf16.gmra.mxu0 %v1151
  %v1308 = vpop.f32.mrf.mxu0
  %v1309 = vadd.f32 0.0, %v1308
  %v1310 = vpop.f32.mrf.mxu0
  %v1311 = vadd.f32 0.0, %v1310
  %1312 = vmatmul.bf16.gmra.mxu0 %v1154
  %v1313 = vpop.f32.mrf.mxu0
  %v1314 = vadd.f32 0.0, %v1313
  %v1315 = vpop.f32.mrf.mxu0
  %v1316 = vadd.f32 0.0, %v1315
  %1317 = vmatmul.bf16.gmra.mxu0 %v1157
  %v1318 = vpop.f32.mrf.mxu0
  %v1319 = vadd.f32 0.0, %v1318
  %v1320 = vpop.f32.mrf.mxu0
  %v1321 = vadd.f32 0.0, %v1320
  %1322 = vmatmul.bf16.gmra.mxu0 %v1160
  %v1323 = vpop.f32.mrf.mxu0
  %v1324 = vadd.f32 0.0, %v1323
  %v1325 = vpop.f32.mrf.mxu0
  %v1326 = vadd.f32 0.0, %v1325
  %1327 = vmatmul.bf16.gmra.mxu0 %v1163
  %v1328 = vpop.f32.mrf.mxu0
  %v1329 = vadd.f32 0.0, %v1328
  %v1330 = vpop.f32.mrf.mxu0
  %v1331 = vadd.f32 0.0, %v1330
  %1332 = vmatmul.bf16.gmra.mxu0 %v1166
  %v1333 = vpop.f32.mrf.mxu0
  %v1334 = vadd.f32 0.0, %v1333
  %v1335 = vpop.f32.mrf.mxu0
  %v1336 = vadd.f32 0.0, %v1335
  %1337 = vmatmul.bf16.gmra.mxu0 %v1169
  %v1338 = vpop.f32.mrf.mxu0
  %v1339 = vadd.f32 0.0, %v1338
  %v1340 = vpop.f32.mrf.mxu0
  %v1341 = vadd.f32 0.0, %v1340
  %1342 = vdwg.mxu0
  %v1343 = vadd.f32 %v818, %v1184
  %v1344 = vadd.f32 %v820, %v1186
  %v1345 = vadd.f32 %v823, %v1189
  %v1346 = vadd.f32 %v825, %v1191
  %v1347 = vadd.f32 %v828, %v1194
  %v1348 = vadd.f32 %v830, %v1196
  %v1349 = vadd.f32 %v833, %v1199
  %v1350 = vadd.f32 %v835, %v1201
  %v1351 = vadd.f32 %v838, %v1204
  %v1352 = vadd.f32 %v840, %v1206
  %v1353 = vadd.f32 %v843, %v1209
  %v1354 = vadd.f32 %v845, %v1211
  %v1355 = vadd.f32 %v848, %v1214
  %v1356 = vadd.f32 %v850, %v1216
  %v1357 = vadd.f32 %v853, %v1219
  %v1358 = vadd.f32 %v855, %v1221
  %v1359 = vadd.f32 %v858, %v1224
  %v1360 = vadd.f32 %v860, %v1226
  %v1361 = vadd.f32 %v863, %v1229
  %v1362 = vadd.f32 %v865, %v1231
  %v1363 = vadd.f32 %v868, %v1234
  %v1364 = vadd.f32 %v870, %v1236
  %v1365 = vadd.f32 %v873, %v1239
  %v1366 = vadd.f32 %v875, %v1241
  %v1367 = vadd.f32 %v878, %v1244
  %v1368 = vadd.f32 %v880, %v1246
  %v1369 = vadd.f32 %v883, %v1249
  %v1370 = vadd.f32 %v885, %v1251
  %v1371 = vadd.f32 %v888, %v1254
  %v1372 = vadd.f32 %v890, %v1256
  %v1373 = vadd.f32 %v893, %v1259
  %v1374 = vadd.f32 %v895, %v1261
  %v1375 = vadd.f32 %v898, %v1264
  %v1376 = vadd.f32 %v900, %v1266
  %v1377 = vadd.f32 %v903, %v1269
  %v1378 = vadd.f32 %v905, %v1271
  %v1379 = vadd.f32 %v908, %v1274
  %v1380 = vadd.f32 %v910, %v1276
  %v1381 = vadd.f32 %v913, %v1279
  %v1382 = vadd.f32 %v915, %v1281
  %v1383 = vadd.f32 %v918, %v1284
  %v1384 = vadd.f32 %v920, %v1286
  %v1385 = vadd.f32 %v923, %v1289
  %v1386 = vadd.f32 %v925, %v1291
  %v1387 = vadd.f32 %v928, %v1294
  %v1388 = vadd.f32 %v930, %v1296
  %v1389 = vadd.f32 %v933, %v1299
  %v1390 = vadd.f32 %v935, %v1301
  %v1391 = vadd.f32 %v938, %v1304
  %v1392 = vadd.f32 %v940, %v1306
  %v1393 = vadd.f32 %v943, %v1309
  %v1394 = vadd.f32 %v945, %v1311
  %v1395 = vadd.f32 %v948, %v1314
  %v1396 = vadd.f32 %v950, %v1316
  %v1397 = vadd.f32 %v953, %v1319
  %v1398 = vadd.f32 %v955, %v1321
  %v1399 = vadd.f32 %v958, %v1324
  %v1400 = vadd.f32 %v960, %v1326
  %v1401 = vadd.f32 %v963, %v1329
  %v1402 = vadd.f32 %v965, %v1331
  %v1403 = vadd.f32 %v968, %v1334
  %v1404 = vadd.f32 %v970, %v1336
  %v1405 = vadd.f32 %v973, %v1339
  %v1406 = vadd.f32 %v975, %v1341
  %s1407 = scalar_lea.vmem %s0, 24
  %v1408 = vld [vmem:[%s1407] sm:$0xff]
  %v1409 = vld [vmem:[%s1407 + $0x8] sm:$0xff]
  %v1410 = vld [vmem:[%s1407 + $0x18] sm:$0xff]
  %v1411 = vld [vmem:[%s1407 + $0x20] sm:$0xff]
  %v1412 = vld [vmem:[%s1407 + $0x30] sm:$0xff]
  %v1413 = vld [vmem:[%s1407 + $0x38] sm:$0xff]
  %v1414 = vld [vmem:[%s1407 + $0x48] sm:$0xff]
  %v1415 = vld [vmem:[%s1407 + $0x50] sm:$0xff]
  %v1416 = vld [vmem:[%s1407 + $0x60] sm:$0xff]
  %v1417 = vld [vmem:[%s1407 + $0x68] sm:$0xff]
  %v1418 = vld [vmem:[%s1407 + $0x78] sm:$0xff]
  %v1419 = vld [vmem:[%s1407 + $0x80] sm:$0xff]
  %v1420 = vld [vmem:[%s1407 + $0x90] sm:$0xff]
  %v1421 = vld [vmem:[%s1407 + $0x98] sm:$0xff]
  %v1422 = vld [vmem:[%s1407 + $0xa8] sm:$0xff]
  %v1423 = vld [vmem:[%s1407 + $0xb0] sm:$0xff]
  %v1424 = vld [vmem:[%s1407 + $0xc0] sm:$0xff]
  %v1425 = vld [vmem:[%s1407 + $0xc8] sm:$0xff]
  %v1426 = vld [vmem:[%s1407 + $0xd8] sm:$0xff]
  %v1427 = vld [vmem:[%s1407 + $0xe0] sm:$0xff]
  %v1428 = vld [vmem:[%s1407 + $0xf0] sm:$0xff]
  %v1429 = vld [vmem:[%s1407 + $0xf8] sm:$0xff]
  %v1430 = vld [vmem:[%s1407 + $0x108] sm:$0xff]
  %v1431 = vld [vmem:[%s1407 + $0x110] sm:$0xff]
  %v1432 = vld [vmem:[%s1407 + $0x120] sm:$0xff]
  %v1433 = vld [vmem:[%s1407 + $0x128] sm:$0xff]
  %v1434 = vld [vmem:[%s1407 + $0x138] sm:$0xff]
  %v1435 = vld [vmem:[%s1407 + $0x140] sm:$0xff]
  %v1436 = vld [vmem:[%s1407 + $0x150] sm:$0xff]
  %v1437 = vld [vmem:[%s1407 + $0x158] sm:$0xff]
  %v1438 = vld [vmem:[%s1407 + $0x168] sm:$0xff]
  %v1439 = vld [vmem:[%s1407 + $0x170] sm:$0xff]
  %v1440 = vld [vmem:[%s1407 + $0x1b0] sm:$0xff]
  %v1441 = vld [vmem:[%s1407 + $0x1b8] sm:$0xff]
  %v1442 = vld [vmem:[%s1407 + $0x1c8] sm:$0xff]
  %v1443 = vld [vmem:[%s1407 + $0x1d0] sm:$0xff]
  %v1444 = vld [vmem:[%s1407 + $0x1e0] sm:$0xff]
  %v1445 = vld [vmem:[%s1407 + $0x1e8] sm:$0xff]
  %v1446 = vld [vmem:[%s1407 + $0x1f8] sm:$0xff]
  %v1447 = vld [vmem:[%s1407 + $0x200] sm:$0xff]
  %v1448 = vld [vmem:[%s1407 + $0x210] sm:$0xff]
  %v1449 = vld [vmem:[%s1407 + $0x218] sm:$0xff]
  %v1450 = vld [vmem:[%s1407 + $0x228] sm:$0xff]
  %v1451 = vld [vmem:[%s1407 + $0x230] sm:$0xff]
  %v1452 = vld [vmem:[%s1407 + $0x240] sm:$0xff]
  %v1453 = vld [vmem:[%s1407 + $0x248] sm:$0xff]
  %v1454 = vld [vmem:[%s1407 + $0x258] sm:$0xff]
  %v1455 = vld [vmem:[%s1407 + $0x260] sm:$0xff]
  %v1456 = vld [vmem:[%s1407 + $0x270] sm:$0xff]
  %v1457 = vld [vmem:[%s1407 + $0x278] sm:$0xff]
  %v1458 = vld [vmem:[%s1407 + $0x288] sm:$0xff]
  %v1459 = vld [vmem:[%s1407 + $0x290] sm:$0xff]
  %v1460 = vld [vmem:[%s1407 + $0x2a0] sm:$0xff]
  %v1461 = vld [vmem:[%s1407 + $0x2a8] sm:$0xff]
  %v1462 = vld [vmem:[%s1407 + $0x2b8] sm:$0xff]
  %v1463 = vld [vmem:[%s1407 + $0x2c0] sm:$0xff]
  %v1464 = vld [vmem:[%s1407 + $0x2d0] sm:$0xff]
  %v1465 = vld [vmem:[%s1407 + $0x2d8] sm:$0xff]
  %v1466 = vld [vmem:[%s1407 + $0x2e8] sm:$0xff]
  %v1467 = vld [vmem:[%s1407 + $0x2f0] sm:$0xff]
  %v1468 = vld [vmem:[%s1407 + $0x300] sm:$0xff]
  %v1469 = vld [vmem:[%s1407 + $0x308] sm:$0xff]
  %v1470 = vld [vmem:[%s1407 + $0x318] sm:$0xff]
  %v1471 = vld [vmem:[%s1407 + $0x320] sm:$0xff]
  %v1472 = vpack.c.bf16 %v1409, %v1408
  %v1473 = vpack.c.bf16 %v1411, %v1410
  %v1474 = vpack.c.bf16 %v1413, %v1412
  %v1475 = vpack.c.bf16 %v1415, %v1414
  %v1476 = vpack.c.bf16 %v1417, %v1416
  %v1477 = vpack.c.bf16 %v1419, %v1418
  %v1478 = vpack.c.bf16 %v1421, %v1420
  %v1479 = vpack.c.bf16 %v1423, %v1422
  %v1480 = vpack.c.bf16 %v1425, %v1424
  %v1481 = vpack.c.bf16 %v1427, %v1426
  %v1482 = vpack.c.bf16 %v1429, %v1428
  %v1483 = vpack.c.bf16 %v1431, %v1430
  %v1484 = vpack.c.bf16 %v1433, %v1432
  %v1485 = vpack.c.bf16 %v1435, %v1434
  %v1486 = vpack.c.bf16 %v1437, %v1436
  %v1487 = vpack.c.bf16 %v1439, %v1438
  %v1488 = vpack.c.bf16 %v1441, %v1440
  %v1489 = vpack.c.bf16 %v1443, %v1442
  %v1490 = vpack.c.bf16 %v1445, %v1444
  %v1491 = vpack.c.bf16 %v1447, %v1446
  %v1492 = vpack.c.bf16 %v1449, %v1448
  %v1493 = vpack.c.bf16 %v1451, %v1450
  %v1494 = vpack.c.bf16 %v1453, %v1452
  %v1495 = vpack.c.bf16 %v1455, %v1454
  %v1496 = vpack.c.bf16 %v1457, %v1456
  %v1497 = vpack.c.bf16 %v1459, %v1458
  %v1498 = vpack.c.bf16 %v1461, %v1460
  %v1499 = vpack.c.bf16 %v1463, %v1462
  %v1500 = vpack.c.bf16 %v1465, %v1464
  %v1501 = vpack.c.bf16 %v1467, %v1466
  %v1502 = vpack.c.bf16 %v1469, %v1468
  %v1503 = vpack.c.bf16 %v1471, %v1470
  %s1504 = scalar_lea.vmem %s1, 6
  %v1505 = vld [vmem:[%s1504] sm:$0x3]
  %v1507 = vsel %vm439, %v1472, 0
  %v1510 = vsel %vm439, %v1473, 0
  %v1513 = vsel %vm439, %v1474, 0
  %v1516 = vsel %vm439, %v1475, 0
  %v1519 = vsel %vm439, %v1476, 0
  %v1522 = vsel %vm439, %v1477, 0
  %v1525 = vsel %vm439, %v1478, 0
  %v1528 = vsel %vm439, %v1479, 0
  %v1531 = vsel %vm439, %v1480, 0
  %v1534 = vsel %vm439, %v1481, 0
  %v1537 = vsel %vm439, %v1482, 0
  %v1540 = vsel %vm439, %v1483, 0
  %v1543 = vsel %vm439, %v1484, 0
  %v1546 = vsel %vm439, %v1485, 0
  %v1549 = vsel %vm439, %v1486, 0
  %v1552 = vsel %vm439, %v1487, 0
  %v1555 = vsel %vm439, %v1488, 0
  %v1558 = vsel %vm439, %v1489, 0
  %v1561 = vsel %vm439, %v1490, 0
  %v1564 = vsel %vm439, %v1491, 0
  %v1567 = vsel %vm439, %v1492, 0
  %v1570 = vsel %vm439, %v1493, 0
  %v1573 = vsel %vm439, %v1494, 0
  %v1576 = vsel %vm439, %v1495, 0
  %v1579 = vsel %vm439, %v1496, 0
  %v1582 = vsel %vm439, %v1497, 0
  %v1585 = vsel %vm439, %v1498, 0
  %v1588 = vsel %vm439, %v1499, 0
  %v1591 = vsel %vm439, %v1500, 0
  %v1594 = vsel %vm439, %v1501, 0
  %v1597 = vsel %vm439, %v1502, 0
  %v1600 = vsel %vm439, %v1503, 0
  %v1603 = vsel %vm536, %v1505, 0
  %1605 = vmatpush.bf16.msra.mxu0 0
  %1606 = vmatpush.bf16.msra.mxu0 0
  %1607 = vmatpush.bf16.msra.mxu0 0
  %1608 = vmatpush.bf16.msra.mxu0 0
  %1609 = vmatpush.bf16.msra.mxu0 0
  %1610 = vmatpush.bf16.msra.mxu0 0
  %1611 = vmatpush.bf16.msra.mxu0 0
  %1612 = vmatpush.bf16.msra.mxu0 %v1603
  %1613 = vmatmul.bf16.gmra.mxu0 %v1507
  %v1614 = vpop.f32.mrf.mxu0
  %v1615 = vadd.f32 0.0, %v1614
  %v1616 = vpop.f32.mrf.mxu0
  %v1617 = vadd.f32 0.0, %v1616
  %1618 = vmatmul.bf16.gmra.mxu0 %v1510
  %v1619 = vpop.f32.mrf.mxu0
  %v1620 = vadd.f32 0.0, %v1619
  %v1621 = vpop.f32.mrf.mxu0
  %v1622 = vadd.f32 0.0, %v1621
  %1623 = vmatmul.bf16.gmra.mxu0 %v1513
  %v1624 = vpop.f32.mrf.mxu0
  %v1625 = vadd.f32 0.0, %v1624
  %v1626 = vpop.f32.mrf.mxu0
  %v1627 = vadd.f32 0.0, %v1626
  %1628 = vmatmul.bf16.gmra.mxu0 %v1516
  %v1629 = vpop.f32.mrf.mxu0
  %v1630 = vadd.f32 0.0, %v1629
  %v1631 = vpop.f32.mrf.mxu0
  %v1632 = vadd.f32 0.0, %v1631
  %1633 = vmatmul.bf16.gmra.mxu0 %v1519
  %v1634 = vpop.f32.mrf.mxu0
  %v1635 = vadd.f32 0.0, %v1634
  %v1636 = vpop.f32.mrf.mxu0
  %v1637 = vadd.f32 0.0, %v1636
  %1638 = vmatmul.bf16.gmra.mxu0 %v1522
  %v1639 = vpop.f32.mrf.mxu0
  %v1640 = vadd.f32 0.0, %v1639
  %v1641 = vpop.f32.mrf.mxu0
  %v1642 = vadd.f32 0.0, %v1641
  %1643 = vmatmul.bf16.gmra.mxu0 %v1525
  %v1644 = vpop.f32.mrf.mxu0
  %v1645 = vadd.f32 0.0, %v1644
  %v1646 = vpop.f32.mrf.mxu0
  %v1647 = vadd.f32 0.0, %v1646
  %1648 = vmatmul.bf16.gmra.mxu0 %v1528
  %v1649 = vpop.f32.mrf.mxu0
  %v1650 = vadd.f32 0.0, %v1649
  %v1651 = vpop.f32.mrf.mxu0
  %v1652 = vadd.f32 0.0, %v1651
  %1653 = vmatmul.bf16.gmra.mxu0 %v1531
  %v1654 = vpop.f32.mrf.mxu0
  %v1655 = vadd.f32 0.0, %v1654
  %v1656 = vpop.f32.mrf.mxu0
  %v1657 = vadd.f32 0.0, %v1656
  %1658 = vmatmul.bf16.gmra.mxu0 %v1534
  %v1659 = vpop.f32.mrf.mxu0
  %v1660 = vadd.f32 0.0, %v1659
  %v1661 = vpop.f32.mrf.mxu0
  %v1662 = vadd.f32 0.0, %v1661
  %1663 = vmatmul.bf16.gmra.mxu0 %v1537
  %v1664 = vpop.f32.mrf.mxu0
  %v1665 = vadd.f32 0.0, %v1664
  %v1666 = vpop.f32.mrf.mxu0
  %v1667 = vadd.f32 0.0, %v1666
  %1668 = vmatmul.bf16.gmra.mxu0 %v1540
  %v1669 = vpop.f32.mrf.mxu0
  %v1670 = vadd.f32 0.0, %v1669
  %v1671 = vpop.f32.mrf.mxu0
  %v1672 = vadd.f32 0.0, %v1671
  %1673 = vmatmul.bf16.gmra.mxu0 %v1543
  %v1674 = vpop.f32.mrf.mxu0
  %v1675 = vadd.f32 0.0, %v1674
  %v1676 = vpop.f32.mrf.mxu0
  %v1677 = vadd.f32 0.0, %v1676
  %1678 = vmatmul.bf16.gmra.mxu0 %v1546
  %v1679 = vpop.f32.mrf.mxu0
  %v1680 = vadd.f32 0.0, %v1679
  %v1681 = vpop.f32.mrf.mxu0
  %v1682 = vadd.f32 0.0, %v1681
  %1683 = vmatmul.bf16.gmra.mxu0 %v1549
  %v1684 = vpop.f32.mrf.mxu0
  %v1685 = vadd.f32 0.0, %v1684
  %v1686 = vpop.f32.mrf.mxu0
  %v1687 = vadd.f32 0.0, %v1686
  %1688 = vmatmul.bf16.gmra.mxu0 %v1552
  %v1689 = vpop.f32.mrf.mxu0
  %v1690 = vadd.f32 0.0, %v1689
  %v1691 = vpop.f32.mrf.mxu0
  %v1692 = vadd.f32 0.0, %v1691
  %1693 = vmatmul.bf16.gmra.mxu0 %v1555
  %v1694 = vpop.f32.mrf.mxu0
  %v1695 = vadd.f32 0.0, %v1694
  %v1696 = vpop.f32.mrf.mxu0
  %v1697 = vadd.f32 0.0, %v1696
  %1698 = vmatmul.bf16.gmra.mxu0 %v1558
  %v1699 = vpop.f32.mrf.mxu0
  %v1700 = vadd.f32 0.0, %v1699
  %v1701 = vpop.f32.mrf.mxu0
  %v1702 = vadd.f32 0.0, %v1701
  %1703 = vmatmul.bf16.gmra.mxu0 %v1561
  %v1704 = vpop.f32.mrf.mxu0
  %v1705 = vadd.f32 0.0, %v1704
  %v1706 = vpop.f32.mrf.mxu0
  %v1707 = vadd.f32 0.0, %v1706
  %1708 = vmatmul.bf16.gmra.mxu0 %v1564
  %v1709 = vpop.f32.mrf.mxu0
  %v1710 = vadd.f32 0.0, %v1709
  %v1711 = vpop.f32.mrf.mxu0
  %v1712 = vadd.f32 0.0, %v1711
  %1713 = vmatmul.bf16.gmra.mxu0 %v1567
  %v1714 = vpop.f32.mrf.mxu0
  %v1715 = vadd.f32 0.0, %v1714
  %v1716 = vpop.f32.mrf.mxu0
  %v1717 = vadd.f32 0.0, %v1716
  %1718 = vmatmul.bf16.gmra.mxu0 %v1570
  %v1719 = vpop.f32.mrf.mxu0
  %v1720 = vadd.f32 0.0, %v1719
  %v1721 = vpop.f32.mrf.mxu0
  %v1722 = vadd.f32 0.0, %v1721
  %1723 = vmatmul.bf16.gmra.mxu0 %v1573
  %v1724 = vpop.f32.mrf.mxu0
  %v1725 = vadd.f32 0.0, %v1724
  %v1726 = vpop.f32.mrf.mxu0
  %v1727 = vadd.f32 0.0, %v1726
  %1728 = vmatmul.bf16.gmra.mxu0 %v1576
  %v1729 = vpop.f32.mrf.mxu0
  %v1730 = vadd.f32 0.0, %v1729
  %v1731 = vpop.f32.mrf.mxu0
  %v1732 = vadd.f32 0.0, %v1731
  %1733 = vmatmul.bf16.gmra.mxu0 %v1579
  %v1734 = vpop.f32.mrf.mxu0
  %v1735 = vadd.f32 0.0, %v1734
  %v1736 = vpop.f32.mrf.mxu0
  %v1737 = vadd.f32 0.0, %v1736
  %1738 = vmatmul.bf16.gmra.mxu0 %v1582
  %v1739 = vpop.f32.mrf.mxu0
  %v1740 = vadd.f32 0.0, %v1739
  %v1741 = vpop.f32.mrf.mxu0
  %v1742 = vadd.f32 0.0, %v1741
  %1743 = vmatmul.bf16.gmra.mxu0 %v1585
  %v1744 = vpop.f32.mrf.mxu0
  %v1745 = vadd.f32 0.0, %v1744
  %v1746 = vpop.f32.mrf.mxu0
  %v1747 = vadd.f32 0.0, %v1746
  %1748 = vmatmul.bf16.gmra.mxu0 %v1588
  %v1749 = vpop.f32.mrf.mxu0
  %v1750 = vadd.f32 0.0, %v1749
  %v1751 = vpop.f32.mrf.mxu0
  %v1752 = vadd.f32 0.0, %v1751
  %1753 = vmatmul.bf16.gmra.mxu0 %v1591
  %v1754 = vpop.f32.mrf.mxu0
  %v1755 = vadd.f32 0.0, %v1754
  %v1756 = vpop.f32.mrf.mxu0
  %v1757 = vadd.f32 0.0, %v1756
  %1758 = vmatmul.bf16.gmra.mxu0 %v1594
  %v1759 = vpop.f32.mrf.mxu0
  %v1760 = vadd.f32 0.0, %v1759
  %v1761 = vpop.f32.mrf.mxu0
  %v1762 = vadd.f32 0.0, %v1761
  %1763 = vmatmul.bf16.gmra.mxu0 %v1597
  %v1764 = vpop.f32.mrf.mxu0
  %v1765 = vadd.f32 0.0, %v1764
  %v1766 = vpop.f32.mrf.mxu0
  %v1767 = vadd.f32 0.0, %v1766
  %1768 = vmatmul.bf16.gmra.mxu0 %v1600
  %v1769 = vpop.f32.mrf.mxu0
  %v1770 = vadd.f32 0.0, %v1769
  %v1771 = vpop.f32.mrf.mxu0
  %v1772 = vadd.f32 0.0, %v1771
  %1773 = vdwg.mxu0
  %v1774 = vadd.f32 %v1343, %v1615
  %v1775 = vadd.f32 %v1344, %v1617
  %v1776 = vadd.f32 %v1345, %v1620
  %v1777 = vadd.f32 %v1346, %v1622
  %v1778 = vadd.f32 %v1347, %v1625
  %v1779 = vadd.f32 %v1348, %v1627
  %v1780 = vadd.f32 %v1349, %v1630
  %v1781 = vadd.f32 %v1350, %v1632
  %v1782 = vadd.f32 %v1351, %v1635
  %v1783 = vadd.f32 %v1352, %v1637
  %v1784 = vadd.f32 %v1353, %v1640
  %v1785 = vadd.f32 %v1354, %v1642
  %v1786 = vadd.f32 %v1355, %v1645
  %v1787 = vadd.f32 %v1356, %v1647
  %v1788 = vadd.f32 %v1357, %v1650
  %v1789 = vadd.f32 %v1358, %v1652
  %v1790 = vadd.f32 %v1359, %v1655
  %v1791 = vadd.f32 %v1360, %v1657
  %v1792 = vadd.f32 %v1361, %v1660
  %v1793 = vadd.f32 %v1362, %v1662
  %v1794 = vadd.f32 %v1363, %v1665
  %v1795 = vadd.f32 %v1364, %v1667
  %v1796 = vadd.f32 %v1365, %v1670
  %v1797 = vadd.f32 %v1366, %v1672
  %v1798 = vadd.f32 %v1367, %v1675
  %v1799 = vadd.f32 %v1368, %v1677
  %v1800 = vadd.f32 %v1369, %v1680
  %v1801 = vadd.f32 %v1370, %v1682
  %v1802 = vadd.f32 %v1371, %v1685
  %v1803 = vadd.f32 %v1372, %v1687
  %v1804 = vadd.f32 %v1373, %v1690
  %v1805 = vadd.f32 %v1374, %v1692
  %v1806 = vadd.f32 %v1375, %v1695
  %v1807 = vadd.f32 %v1376, %v1697
  %v1808 = vadd.f32 %v1377, %v1700
  %v1809 = vadd.f32 %v1378, %v1702
  %v1810 = vadd.f32 %v1379, %v1705
  %v1811 = vadd.f32 %v1380, %v1707
  %v1812 = vadd.f32 %v1381, %v1710
  %v1813 = vadd.f32 %v1382, %v1712
  %v1814 = vadd.f32 %v1383, %v1715
  %v1815 = vadd.f32 %v1384, %v1717
  %v1816 = vadd.f32 %v1385, %v1720
  %v1817 = vadd.f32 %v1386, %v1722
  %v1818 = vadd.f32 %v1387, %v1725
  %v1819 = vadd.f32 %v1388, %v1727
  %v1820 = vadd.f32 %v1389, %v1730
  %v1821 = vadd.f32 %v1390, %v1732
  %v1822 = vadd.f32 %v1391, %v1735
  %v1823 = vadd.f32 %v1392, %v1737
  %v1824 = vadd.f32 %v1393, %v1740
  %v1825 = vadd.f32 %v1394, %v1742
  %v1826 = vadd.f32 %v1395, %v1745
  %v1827 = vadd.f32 %v1396, %v1747
  %v1828 = vadd.f32 %v1397, %v1750
  %v1829 = vadd.f32 %v1398, %v1752
  %v1830 = vadd.f32 %v1399, %v1755
  %v1831 = vadd.f32 %v1400, %v1757
  %v1832 = vadd.f32 %v1401, %v1760
  %v1833 = vadd.f32 %v1402, %v1762
  %v1834 = vadd.f32 %v1403, %v1765
  %v1835 = vadd.f32 %v1404, %v1767
  %v1836 = vadd.f32 %v1405, %v1770
  %v1837 = vadd.f32 %v1406, %v1772
  %v1838 = vld [vmem:[%s1407 + $0x1] sm:$0xff]
  %v1839 = vld [vmem:[%s1407 + $0x9] sm:$0xff]
  %v1840 = vld [vmem:[%s1407 + $0x19] sm:$0xff]
  %v1841 = vld [vmem:[%s1407 + $0x21] sm:$0xff]
  %v1842 = vld [vmem:[%s1407 + $0x31] sm:$0xff]
  %v1843 = vld [vmem:[%s1407 + $0x39] sm:$0xff]
  %v1844 = vld [vmem:[%s1407 + $0x49] sm:$0xff]
  %v1845 = vld [vmem:[%s1407 + $0x51] sm:$0xff]
  %v1846 = vld [vmem:[%s1407 + $0x61] sm:$0xff]
  %v1847 = vld [vmem:[%s1407 + $0x69] sm:$0xff]
  %v1848 = vld [vmem:[%s1407 + $0x79] sm:$0xff]
  %v1849 = vld [vmem:[%s1407 + $0x81] sm:$0xff]
  %v1850 = vld [vmem:[%s1407 + $0x91] sm:$0xff]
  %v1851 = vld [vmem:[%s1407 + $0x99] sm:$0xff]
  %v1852 = vld [vmem:[%s1407 + $0xa9] sm:$0xff]
  %v1853 = vld [vmem:[%s1407 + $0xb1] sm:$0xff]
  %v1854 = vld [vmem:[%s1407 + $0xc1] sm:$0xff]
  %v1855 = vld [vmem:[%s1407 + $0xc9] sm:$0xff]
  %v1856 = vld [vmem:[%s1407 + $0xd9] sm:$0xff]
  %v1857 = vld [vmem:[%s1407 + $0xe1] sm:$0xff]
  %v1858 = vld [vmem:[%s1407 + $0xf1] sm:$0xff]
  %v1859 = vld [vmem:[%s1407 + $0xf9] sm:$0xff]
  %v1860 = vld [vmem:[%s1407 + $0x109] sm:$0xff]
  %v1861 = vld [vmem:[%s1407 + $0x111] sm:$0xff]
  %v1862 = vld [vmem:[%s1407 + $0x121] sm:$0xff]
  %v1863 = vld [vmem:[%s1407 + $0x129] sm:$0xff]
  %v1864 = vld [vmem:[%s1407 + $0x139] sm:$0xff]
  %v1865 = vld [vmem:[%s1407 + $0x141] sm:$0xff]
  %v1866 = vld [vmem:[%s1407 + $0x151] sm:$0xff]
  %v1867 = vld [vmem:[%s1407 + $0x159] sm:$0xff]
  %v1868 = vld [vmem:[%s1407 + $0x169] sm:$0xff]
  %v1869 = vld [vmem:[%s1407 + $0x171] sm:$0xff]
  %v1870 = vld [vmem:[%s1407 + $0x1b1] sm:$0xff]
  %v1871 = vld [vmem:[%s1407 + $0x1b9] sm:$0xff]
  %v1872 = vld [vmem:[%s1407 + $0x1c9] sm:$0xff]
  %v1873 = vld [vmem:[%s1407 + $0x1d1] sm:$0xff]
  %v1874 = vld [vmem:[%s1407 + $0x1e1] sm:$0xff]
  %v1875 = vld [vmem:[%s1407 + $0x1e9] sm:$0xff]
  %v1876 = vld [vmem:[%s1407 + $0x1f9] sm:$0xff]
  %v1877 = vld [vmem:[%s1407 + $0x201] sm:$0xff]
  %v1878 = vld [vmem:[%s1407 + $0x211] sm:$0xff]
  %v1879 = vld [vmem:[%s1407 + $0x219] sm:$0xff]
  %v1880 = vld [vmem:[%s1407 + $0x229] sm:$0xff]
  %v1881 = vld [vmem:[%s1407 + $0x231] sm:$0xff]
  %v1882 = vld [vmem:[%s1407 + $0x241] sm:$0xff]
  %v1883 = vld [vmem:[%s1407 + $0x249] sm:$0xff]
  %v1884 = vld [vmem:[%s1407 + $0x259] sm:$0xff]
  %v1885 = vld [vmem:[%s1407 + $0x261] sm:$0xff]
  %v1886 = vld [vmem:[%s1407 + $0x271] sm:$0xff]
  %v1887 = vld [vmem:[%s1407 + $0x279] sm:$0xff]
  %v1888 = vld [vmem:[%s1407 + $0x289] sm:$0xff]
  %v1889 = vld [vmem:[%s1407 + $0x291] sm:$0xff]
  %v1890 = vld [vmem:[%s1407 + $0x2a1] sm:$0xff]
  %v1891 = vld [vmem:[%s1407 + $0x2a9] sm:$0xff]
  %v1892 = vld [vmem:[%s1407 + $0x2b9] sm:$0xff]
  %v1893 = vld [vmem:[%s1407 + $0x2c1] sm:$0xff]
  %v1894 = vld [vmem:[%s1407 + $0x2d1] sm:$0xff]
  %v1895 = vld [vmem:[%s1407 + $0x2d9] sm:$0xff]
  %v1896 = vld [vmem:[%s1407 + $0x2e9] sm:$0xff]
  %v1897 = vld [vmem:[%s1407 + $0x2f1] sm:$0xff]
  %v1898 = vld [vmem:[%s1407 + $0x301] sm:$0xff]
  %v1899 = vld [vmem:[%s1407 + $0x309] sm:$0xff]
  %v1900 = vld [vmem:[%s1407 + $0x319] sm:$0xff]
  %v1901 = vld [vmem:[%s1407 + $0x321] sm:$0xff]
  %v1902 = vpack.c.bf16 %v1839, %v1838
  %v1903 = vpack.c.bf16 %v1841, %v1840
  %v1904 = vpack.c.bf16 %v1843, %v1842
  %v1905 = vpack.c.bf16 %v1845, %v1844
  %v1906 = vpack.c.bf16 %v1847, %v1846
  %v1907 = vpack.c.bf16 %v1849, %v1848
  %v1908 = vpack.c.bf16 %v1851, %v1850
  %v1909 = vpack.c.bf16 %v1853, %v1852
  %v1910 = vpack.c.bf16 %v1855, %v1854
  %v1911 = vpack.c.bf16 %v1857, %v1856
  %v1912 = vpack.c.bf16 %v1859, %v1858
  %v1913 = vpack.c.bf16 %v1861, %v1860
  %v1914 = vpack.c.bf16 %v1863, %v1862
  %v1915 = vpack.c.bf16 %v1865, %v1864
  %v1916 = vpack.c.bf16 %v1867, %v1866
  %v1917 = vpack.c.bf16 %v1869, %v1868
  %v1918 = vpack.c.bf16 %v1871, %v1870
  %v1919 = vpack.c.bf16 %v1873, %v1872
  %v1920 = vpack.c.bf16 %v1875, %v1874
  %v1921 = vpack.c.bf16 %v1877, %v1876
  %v1922 = vpack.c.bf16 %v1879, %v1878
  %v1923 = vpack.c.bf16 %v1881, %v1880
  %v1924 = vpack.c.bf16 %v1883, %v1882
  %v1925 = vpack.c.bf16 %v1885, %v1884
  %v1926 = vpack.c.bf16 %v1887, %v1886
  %v1927 = vpack.c.bf16 %v1889, %v1888
  %v1928 = vpack.c.bf16 %v1891, %v1890
  %v1929 = vpack.c.bf16 %v1893, %v1892
  %v1930 = vpack.c.bf16 %v1895, %v1894
  %v1931 = vpack.c.bf16 %v1897, %v1896
  %v1932 = vpack.c.bf16 %v1899, %v1898
  %v1933 = vpack.c.bf16 %v1901, %v1900
  %s1934 = scalar_lea.vmem %s1, 8
  %v1935 = vld [vmem:[%s1934] sm:$0x3]
  %v1937 = vsel %vm439, %v1902, 0
  %v1940 = vsel %vm439, %v1903, 0
  %v1943 = vsel %vm439, %v1904, 0
  %v1946 = vsel %vm439, %v1905, 0
  %v1949 = vsel %vm439, %v1906, 0
  %v1952 = vsel %vm439, %v1907, 0
  %v1955 = vsel %vm439, %v1908, 0
  %v1958 = vsel %vm439, %v1909, 0
  %v1961 = vsel %vm439, %v1910, 0
  %v1964 = vsel %vm439, %v1911, 0
  %v1967 = vsel %vm439, %v1912, 0
  %v1970 = vsel %vm439, %v1913, 0
  %v1973 = vsel %vm439, %v1914, 0
  %v1976 = vsel %vm439, %v1915, 0
  %v1979 = vsel %vm439, %v1916, 0
  %v1982 = vsel %vm439, %v1917, 0
  %v1985 = vsel %vm439, %v1918, 0
  %v1988 = vsel %vm439, %v1919, 0
  %v1991 = vsel %vm439, %v1920, 0
  %v1994 = vsel %vm439, %v1921, 0
  %v1997 = vsel %vm439, %v1922, 0
  %v2000 = vsel %vm439, %v1923, 0
  %v2003 = vsel %vm439, %v1924, 0
  %v2006 = vsel %vm439, %v1925, 0
  %v2009 = vsel %vm439, %v1926, 0
  %v2012 = vsel %vm439, %v1927, 0
  %v2015 = vsel %vm439, %v1928, 0
  %v2018 = vsel %vm439, %v1929, 0
  %v2021 = vsel %vm439, %v1930, 0
  %v2024 = vsel %vm439, %v1931, 0
  %v2027 = vsel %vm439, %v1932, 0
  %v2030 = vsel %vm439, %v1933, 0
  %v2033 = vsel %vm536, %v1935, 0
  %2035 = vmatpush.bf16.msra.mxu0 0
  %2036 = vmatpush.bf16.msra.mxu0 0
  %2037 = vmatpush.bf16.msra.mxu0 0
  %2038 = vmatpush.bf16.msra.mxu0 0
  %2039 = vmatpush.bf16.msra.mxu0 0
  %2040 = vmatpush.bf16.msra.mxu0 0
  %2041 = vmatpush.bf16.msra.mxu0 0
  %2042 = vmatpush.bf16.msra.mxu0 %v2033
  %2043 = vmatmul.bf16.gmra.mxu0 %v1937
  %v2044 = vpop.f32.mrf.mxu0
  %v2045 = vadd.f32 0.0, %v2044
  %v2046 = vpop.f32.mrf.mxu0
  %v2047 = vadd.f32 0.0, %v2046
  %2048 = vmatmul.bf16.gmra.mxu0 %v1940
  %v2049 = vpop.f32.mrf.mxu0
  %v2050 = vadd.f32 0.0, %v2049
  %v2051 = vpop.f32.mrf.mxu0
  %v2052 = vadd.f32 0.0, %v2051
  %2053 = vmatmul.bf16.gmra.mxu0 %v1943
  %v2054 = vpop.f32.mrf.mxu0
  %v2055 = vadd.f32 0.0, %v2054
  %v2056 = vpop.f32.mrf.mxu0
  %v2057 = vadd.f32 0.0, %v2056
  %2058 = vmatmul.bf16.gmra.mxu0 %v1946
  %v2059 = vpop.f32.mrf.mxu0
  %v2060 = vadd.f32 0.0, %v2059
  %v2061 = vpop.f32.mrf.mxu0
  %v2062 = vadd.f32 0.0, %v2061
  %2063 = vmatmul.bf16.gmra.mxu0 %v1949
  %v2064 = vpop.f32.mrf.mxu0
  %v2065 = vadd.f32 0.0, %v2064
  %v2066 = vpop.f32.mrf.mxu0
  %v2067 = vadd.f32 0.0, %v2066
  %2068 = vmatmul.bf16.gmra.mxu0 %v1952
  %v2069 = vpop.f32.mrf.mxu0
  %v2070 = vadd.f32 0.0, %v2069
  %v2071 = vpop.f32.mrf.mxu0
  %v2072 = vadd.f32 0.0, %v2071
  %2073 = vmatmul.bf16.gmra.mxu0 %v1955
  %v2074 = vpop.f32.mrf.mxu0
  %v2075 = vadd.f32 0.0, %v2074
  %v2076 = vpop.f32.mrf.mxu0
  %v2077 = vadd.f32 0.0, %v2076
  %2078 = vmatmul.bf16.gmra.mxu0 %v1958
  %v2079 = vpop.f32.mrf.mxu0
  %v2080 = vadd.f32 0.0, %v2079
  %v2081 = vpop.f32.mrf.mxu0
  %v2082 = vadd.f32 0.0, %v2081
  %2083 = vmatmul.bf16.gmra.mxu0 %v1961
  %v2084 = vpop.f32.mrf.mxu0
  %v2085 = vadd.f32 0.0, %v2084
  %v2086 = vpop.f32.mrf.mxu0
  %v2087 = vadd.f32 0.0, %v2086
  %2088 = vmatmul.bf16.gmra.mxu0 %v1964
  %v2089 = vpop.f32.mrf.mxu0
  %v2090 = vadd.f32 0.0, %v2089
  %v2091 = vpop.f32.mrf.mxu0
  %v2092 = vadd.f32 0.0, %v2091
  %2093 = vmatmul.bf16.gmra.mxu0 %v1967
  %v2094 = vpop.f32.mrf.mxu0
  %v2095 = vadd.f32 0.0, %v2094
  %v2096 = vpop.f32.mrf.mxu0
  %v2097 = vadd.f32 0.0, %v2096
  %2098 = vmatmul.bf16.gmra.mxu0 %v1970
  %v2099 = vpop.f32.mrf.mxu0
  %v2100 = vadd.f32 0.0, %v2099
  %v2101 = vpop.f32.mrf.mxu0
  %v2102 = vadd.f32 0.0, %v2101
  %2103 = vmatmul.bf16.gmra.mxu0 %v1973
  %v2104 = vpop.f32.mrf.mxu0
  %v2105 = vadd.f32 0.0, %v2104
  %v2106 = vpop.f32.mrf.mxu0
  %v2107 = vadd.f32 0.0, %v2106
  %2108 = vmatmul.bf16.gmra.mxu0 %v1976
  %v2109 = vpop.f32.mrf.mxu0
  %v2110 = vadd.f32 0.0, %v2109
  %v2111 = vpop.f32.mrf.mxu0
  %v2112 = vadd.f32 0.0, %v2111
  %2113 = vmatmul.bf16.gmra.mxu0 %v1979
  %v2114 = vpop.f32.mrf.mxu0
  %v2115 = vadd.f32 0.0, %v2114
  %v2116 = vpop.f32.mrf.mxu0
  %v2117 = vadd.f32 0.0, %v2116
  %2118 = vmatmul.bf16.gmra.mxu0 %v1982
  %v2119 = vpop.f32.mrf.mxu0
  %v2120 = vadd.f32 0.0, %v2119
  %v2121 = vpop.f32.mrf.mxu0
  %v2122 = vadd.f32 0.0, %v2121
  %2123 = vmatmul.bf16.gmra.mxu0 %v1985
  %v2124 = vpop.f32.mrf.mxu0
  %v2125 = vadd.f32 0.0, %v2124
  %v2126 = vpop.f32.mrf.mxu0
  %v2127 = vadd.f32 0.0, %v2126
  %2128 = vmatmul.bf16.gmra.mxu0 %v1988
  %v2129 = vpop.f32.mrf.mxu0
  %v2130 = vadd.f32 0.0, %v2129
  %v2131 = vpop.f32.mrf.mxu0
  %v2132 = vadd.f32 0.0, %v2131
  %2133 = vmatmul.bf16.gmra.mxu0 %v1991
  %v2134 = vpop.f32.mrf.mxu0
  %v2135 = vadd.f32 0.0, %v2134
  %v2136 = vpop.f32.mrf.mxu0
  %v2137 = vadd.f32 0.0, %v2136
  %2138 = vmatmul.bf16.gmra.mxu0 %v1994
  %v2139 = vpop.f32.mrf.mxu0
  %v2140 = vadd.f32 0.0, %v2139
  %v2141 = vpop.f32.mrf.mxu0
  %v2142 = vadd.f32 0.0, %v2141
  %2143 = vmatmul.bf16.gmra.mxu0 %v1997
  %v2144 = vpop.f32.mrf.mxu0
  %v2145 = vadd.f32 0.0, %v2144
  %v2146 = vpop.f32.mrf.mxu0
  %v2147 = vadd.f32 0.0, %v2146
  %2148 = vmatmul.bf16.gmra.mxu0 %v2000
  %v2149 = vpop.f32.mrf.mxu0
  %v2150 = vadd.f32 0.0, %v2149
  %v2151 = vpop.f32.mrf.mxu0
  %v2152 = vadd.f32 0.0, %v2151
  %2153 = vmatmul.bf16.gmra.mxu0 %v2003
  %v2154 = vpop.f32.mrf.mxu0
  %v2155 = vadd.f32 0.0, %v2154
  %v2156 = vpop.f32.mrf.mxu0
  %v2157 = vadd.f32 0.0, %v2156
  %2158 = vmatmul.bf16.gmra.mxu0 %v2006
  %v2159 = vpop.f32.mrf.mxu0
  %v2160 = vadd.f32 0.0, %v2159
  %v2161 = vpop.f32.mrf.mxu0
  %v2162 = vadd.f32 0.0, %v2161
  %2163 = vmatmul.bf16.gmra.mxu0 %v2009
  %v2164 = vpop.f32.mrf.mxu0
  %v2165 = vadd.f32 0.0, %v2164
  %v2166 = vpop.f32.mrf.mxu0
  %v2167 = vadd.f32 0.0, %v2166
  %2168 = vmatmul.bf16.gmra.mxu0 %v2012
  %v2169 = vpop.f32.mrf.mxu0
  %v2170 = vadd.f32 0.0, %v2169
  %v2171 = vpop.f32.mrf.mxu0
  %v2172 = vadd.f32 0.0, %v2171
  %2173 = vmatmul.bf16.gmra.mxu0 %v2015
  %v2174 = vpop.f32.mrf.mxu0
  %v2175 = vadd.f32 0.0, %v2174
  %v2176 = vpop.f32.mrf.mxu0
  %v2177 = vadd.f32 0.0, %v2176
  %2178 = vmatmul.bf16.gmra.mxu0 %v2018
  %v2179 = vpop.f32.mrf.mxu0
  %v2180 = vadd.f32 0.0, %v2179
  %v2181 = vpop.f32.mrf.mxu0
  %v2182 = vadd.f32 0.0, %v2181
  %2183 = vmatmul.bf16.gmra.mxu0 %v2021
  %v2184 = vpop.f32.mrf.mxu0
  %v2185 = vadd.f32 0.0, %v2184
  %v2186 = vpop.f32.mrf.mxu0
  %v2187 = vadd.f32 0.0, %v2186
  %2188 = vmatmul.bf16.gmra.mxu0 %v2024
  %v2189 = vpop.f32.mrf.mxu0
  %v2190 = vadd.f32 0.0, %v2189
  %v2191 = vpop.f32.mrf.mxu0
  %v2192 = vadd.f32 0.0, %v2191
  %2193 = vmatmul.bf16.gmra.mxu0 %v2027
  %v2194 = vpop.f32.mrf.mxu0
  %v2195 = vadd.f32 0.0, %v2194
  %v2196 = vpop.f32.mrf.mxu0
  %v2197 = vadd.f32 0.0, %v2196
  %2198 = vmatmul.bf16.gmra.mxu0 %v2030
  %v2199 = vpop.f32.mrf.mxu0
  %v2200 = vadd.f32 0.0, %v2199
  %v2201 = vpop.f32.mrf.mxu0
  %v2202 = vadd.f32 0.0, %v2201
  %2203 = vdwg.mxu0
  %v2204 = vadd.f32 %v1774, %v2045
  %v2205 = vadd.f32 %v1775, %v2047
  %v2206 = vadd.f32 %v1776, %v2050
  %v2207 = vadd.f32 %v1777, %v2052
  %v2208 = vadd.f32 %v1778, %v2055
  %v2209 = vadd.f32 %v1779, %v2057
  %v2210 = vadd.f32 %v1780, %v2060
  %v2211 = vadd.f32 %v1781, %v2062
  %v2212 = vadd.f32 %v1782, %v2065
  %v2213 = vadd.f32 %v1783, %v2067
  %v2214 = vadd.f32 %v1784, %v2070
  %v2215 = vadd.f32 %v1785, %v2072
  %v2216 = vadd.f32 %v1786, %v2075
  %v2217 = vadd.f32 %v1787, %v2077
  %v2218 = vadd.f32 %v1788, %v2080
  %v2219 = vadd.f32 %v1789, %v2082
  %v2220 = vadd.f32 %v1790, %v2085
  %v2221 = vadd.f32 %v1791, %v2087
  %v2222 = vadd.f32 %v1792, %v2090
  %v2223 = vadd.f32 %v1793, %v2092
  %v2224 = vadd.f32 %v1794, %v2095
  %v2225 = vadd.f32 %v1795, %v2097
  %v2226 = vadd.f32 %v1796, %v2100
  %v2227 = vadd.f32 %v1797, %v2102
  %v2228 = vadd.f32 %v1798, %v2105
  %v2229 = vadd.f32 %v1799, %v2107
  %v2230 = vadd.f32 %v1800, %v2110
  %v2231 = vadd.f32 %v1801, %v2112
  %v2232 = vadd.f32 %v1802, %v2115
  %v2233 = vadd.f32 %v1803, %v2117
  %v2234 = vadd.f32 %v1804, %v2120
  %v2235 = vadd.f32 %v1805, %v2122
  %v2236 = vadd.f32 %v1806, %v2125
  %v2237 = vadd.f32 %v1807, %v2127
  %v2238 = vadd.f32 %v1808, %v2130
  %v2239 = vadd.f32 %v1809, %v2132
  %v2240 = vadd.f32 %v1810, %v2135
  %v2241 = vadd.f32 %v1811, %v2137
  %v2242 = vadd.f32 %v1812, %v2140
  %v2243 = vadd.f32 %v1813, %v2142
  %v2244 = vadd.f32 %v1814, %v2145
  %v2245 = vadd.f32 %v1815, %v2147
  %v2246 = vadd.f32 %v1816, %v2150
  %v2247 = vadd.f32 %v1817, %v2152
  %v2248 = vadd.f32 %v1818, %v2155
  %v2249 = vadd.f32 %v1819, %v2157
  %v2250 = vadd.f32 %v1820, %v2160
  %v2251 = vadd.f32 %v1821, %v2162
  %v2252 = vadd.f32 %v1822, %v2165
  %v2253 = vadd.f32 %v1823, %v2167
  %v2254 = vadd.f32 %v1824, %v2170
  %v2255 = vadd.f32 %v1825, %v2172
  %v2256 = vadd.f32 %v1826, %v2175
  %v2257 = vadd.f32 %v1827, %v2177
  %v2258 = vadd.f32 %v1828, %v2180
  %v2259 = vadd.f32 %v1829, %v2182
  %v2260 = vadd.f32 %v1830, %v2185
  %v2261 = vadd.f32 %v1831, %v2187
  %v2262 = vadd.f32 %v1832, %v2190
  %v2263 = vadd.f32 %v1833, %v2192
  %v2264 = vadd.f32 %v1834, %v2195
  %v2265 = vadd.f32 %v1835, %v2197
  %v2266 = vadd.f32 %v1836, %v2200
  %v2267 = vadd.f32 %v1837, %v2202
  %v2268 = vld [vmem:[%s1407 + $0x2] sm:$0xff]
  %v2269 = vld [vmem:[%s1407 + $0xa] sm:$0xff]
  %v2270 = vld [vmem:[%s1407 + $0x1a] sm:$0xff]
  %v2271 = vld [vmem:[%s1407 + $0x22] sm:$0xff]
  %v2272 = vld [vmem:[%s1407 + $0x32] sm:$0xff]
  %v2273 = vld [vmem:[%s1407 + $0x3a] sm:$0xff]
  %v2274 = vld [vmem:[%s1407 + $0x4a] sm:$0xff]
  %v2275 = vld [vmem:[%s1407 + $0x52] sm:$0xff]
  %v2276 = vld [vmem:[%s1407 + $0x62] sm:$0xff]
  %v2277 = vld [vmem:[%s1407 + $0x6a] sm:$0xff]
  %v2278 = vld [vmem:[%s1407 + $0x7a] sm:$0xff]
  %v2279 = vld [vmem:[%s1407 + $0x82] sm:$0xff]
  %v2280 = vld [vmem:[%s1407 + $0x92] sm:$0xff]
  %v2281 = vld [vmem:[%s1407 + $0x9a] sm:$0xff]
  %v2282 = vld [vmem:[%s1407 + $0xaa] sm:$0xff]
  %v2283 = vld [vmem:[%s1407 + $0xb2] sm:$0xff]
  %v2284 = vld [vmem:[%s1407 + $0xc2] sm:$0xff]
  %v2285 = vld [vmem:[%s1407 + $0xca] sm:$0xff]
  %v2286 = vld [vmem:[%s1407 + $0xda] sm:$0xff]
  %v2287 = vld [vmem:[%s1407 + $0xe2] sm:$0xff]
  %v2288 = vld [vmem:[%s1407 + $0xf2] sm:$0xff]
  %v2289 = vld [vmem:[%s1407 + $0xfa] sm:$0xff]
  %v2290 = vld [vmem:[%s1407 + $0x10a] sm:$0xff]
  %v2291 = vld [vmem:[%s1407 + $0x112] sm:$0xff]
  %v2292 = vld [vmem:[%s1407 + $0x122] sm:$0xff]
  %v2293 = vld [vmem:[%s1407 + $0x12a] sm:$0xff]
  %v2294 = vld [vmem:[%s1407 + $0x13a] sm:$0xff]
  %v2295 = vld [vmem:[%s1407 + $0x142] sm:$0xff]
  %v2296 = vld [vmem:[%s1407 + $0x152] sm:$0xff]
  %v2297 = vld [vmem:[%s1407 + $0x15a] sm:$0xff]
  %v2298 = vld [vmem:[%s1407 + $0x16a] sm:$0xff]
  %v2299 = vld [vmem:[%s1407 + $0x172] sm:$0xff]
  %v2300 = vld [vmem:[%s1407 + $0x1b2] sm:$0xff]
  %v2301 = vld [vmem:[%s1407 + $0x1ba] sm:$0xff]
  %v2302 = vld [vmem:[%s1407 + $0x1ca] sm:$0xff]
  %v2303 = vld [vmem:[%s1407 + $0x1d2] sm:$0xff]
  %v2304 = vld [vmem:[%s1407 + $0x1e2] sm:$0xff]
  %v2305 = vld [vmem:[%s1407 + $0x1ea] sm:$0xff]
  %v2306 = vld [vmem:[%s1407 + $0x1fa] sm:$0xff]
  %v2307 = vld [vmem:[%s1407 + $0x202] sm:$0xff]
  %v2308 = vld [vmem:[%s1407 + $0x212] sm:$0xff]
  %v2309 = vld [vmem:[%s1407 + $0x21a] sm:$0xff]
  %v2310 = vld [vmem:[%s1407 + $0x22a] sm:$0xff]
  %v2311 = vld [vmem:[%s1407 + $0x232] sm:$0xff]
  %v2312 = vld [vmem:[%s1407 + $0x242] sm:$0xff]
  %v2313 = vld [vmem:[%s1407 + $0x24a] sm:$0xff]
  %v2314 = vld [vmem:[%s1407 + $0x25a] sm:$0xff]
  %v2315 = vld [vmem:[%s1407 + $0x262] sm:$0xff]
  %v2316 = vld [vmem:[%s1407 + $0x272] sm:$0xff]
  %v2317 = vld [vmem:[%s1407 + $0x27a] sm:$0xff]
  %v2318 = vld [vmem:[%s1407 + $0x28a] sm:$0xff]
  %v2319 = vld [vmem:[%s1407 + $0x292] sm:$0xff]
  %v2320 = vld [vmem:[%s1407 + $0x2a2] sm:$0xff]
  %v2321 = vld [vmem:[%s1407 + $0x2aa] sm:$0xff]
  %v2322 = vld [vmem:[%s1407 + $0x2ba] sm:$0xff]
  %v2323 = vld [vmem:[%s1407 + $0x2c2] sm:$0xff]
  %v2324 = vld [vmem:[%s1407 + $0x2d2] sm:$0xff]
  %v2325 = vld [vmem:[%s1407 + $0x2da] sm:$0xff]
  %v2326 = vld [vmem:[%s1407 + $0x2ea] sm:$0xff]
  %v2327 = vld [vmem:[%s1407 + $0x2f2] sm:$0xff]
  %v2328 = vld [vmem:[%s1407 + $0x302] sm:$0xff]
  %v2329 = vld [vmem:[%s1407 + $0x30a] sm:$0xff]
  %v2330 = vld [vmem:[%s1407 + $0x31a] sm:$0xff]
  %v2331 = vld [vmem:[%s1407 + $0x322] sm:$0xff]
  %v2332 = vpack.c.bf16 %v2269, %v2268
  %v2333 = vpack.c.bf16 %v2271, %v2270
  %v2334 = vpack.c.bf16 %v2273, %v2272
  %v2335 = vpack.c.bf16 %v2275, %v2274
  %v2336 = vpack.c.bf16 %v2277, %v2276
  %v2337 = vpack.c.bf16 %v2279, %v2278
  %v2338 = vpack.c.bf16 %v2281, %v2280
  %v2339 = vpack.c.bf16 %v2283, %v2282
  %v2340 = vpack.c.bf16 %v2285, %v2284
  %v2341 = vpack.c.bf16 %v2287, %v2286
  %v2342 = vpack.c.bf16 %v2289, %v2288
  %v2343 = vpack.c.bf16 %v2291, %v2290
  %v2344 = vpack.c.bf16 %v2293, %v2292
  %v2345 = vpack.c.bf16 %v2295, %v2294
  %v2346 = vpack.c.bf16 %v2297, %v2296
  %v2347 = vpack.c.bf16 %v2299, %v2298
  %v2348 = vpack.c.bf16 %v2301, %v2300
  %v2349 = vpack.c.bf16 %v2303, %v2302
  %v2350 = vpack.c.bf16 %v2305, %v2304
  %v2351 = vpack.c.bf16 %v2307, %v2306
  %v2352 = vpack.c.bf16 %v2309, %v2308
  %v2353 = vpack.c.bf16 %v2311, %v2310
  %v2354 = vpack.c.bf16 %v2313, %v2312
  %v2355 = vpack.c.bf16 %v2315, %v2314
  %v2356 = vpack.c.bf16 %v2317, %v2316
  %v2357 = vpack.c.bf16 %v2319, %v2318
  %v2358 = vpack.c.bf16 %v2321, %v2320
  %v2359 = vpack.c.bf16 %v2323, %v2322
  %v2360 = vpack.c.bf16 %v2325, %v2324
  %v2361 = vpack.c.bf16 %v2327, %v2326
  %v2362 = vpack.c.bf16 %v2329, %v2328
  %v2363 = vpack.c.bf16 %v2331, %v2330
  %s2364 = scalar_lea.vmem %s1, 10
  %v2365 = vld [vmem:[%s2364] sm:$0x3]
  %v2367 = vsel %vm439, %v2332, 0
  %v2370 = vsel %vm439, %v2333, 0
  %v2373 = vsel %vm439, %v2334, 0
  %v2376 = vsel %vm439, %v2335, 0
  %v2379 = vsel %vm439, %v2336, 0
  %v2382 = vsel %vm439, %v2337, 0
  %v2385 = vsel %vm439, %v2338, 0
  %v2388 = vsel %vm439, %v2339, 0
  %v2391 = vsel %vm439, %v2340, 0
  %v2394 = vsel %vm439, %v2341, 0
  %v2397 = vsel %vm439, %v2342, 0
  %v2400 = vsel %vm439, %v2343, 0
  %v2403 = vsel %vm439, %v2344, 0
  %v2406 = vsel %vm439, %v2345, 0
  %v2409 = vsel %vm439, %v2346, 0
  %v2412 = vsel %vm439, %v2347, 0
  %v2415 = vsel %vm439, %v2348, 0
  %v2418 = vsel %vm439, %v2349, 0
  %v2421 = vsel %vm439, %v2350, 0
  %v2424 = vsel %vm439, %v2351, 0
  %v2427 = vsel %vm439, %v2352, 0
  %v2430 = vsel %vm439, %v2353, 0
  %v2433 = vsel %vm439, %v2354, 0
  %v2436 = vsel %vm439, %v2355, 0
  %v2439 = vsel %vm439, %v2356, 0
  %v2442 = vsel %vm439, %v2357, 0
  %v2445 = vsel %vm439, %v2358, 0
  %v2448 = vsel %vm439, %v2359, 0
  %v2451 = vsel %vm439, %v2360, 0
  %v2454 = vsel %vm439, %v2361, 0
  %v2457 = vsel %vm439, %v2362, 0
  %v2460 = vsel %vm439, %v2363, 0
  %v2463 = vsel %vm536, %v2365, 0
  %2465 = vmatpush.bf16.msra.mxu0 0
  %2466 = vmatpush.bf16.msra.mxu0 0
  %2467 = vmatpush.bf16.msra.mxu0 0
  %2468 = vmatpush.bf16.msra.mxu0 0
  %2469 = vmatpush.bf16.msra.mxu0 0
  %2470 = vmatpush.bf16.msra.mxu0 0
  %2471 = vmatpush.bf16.msra.mxu0 0
  %2472 = vmatpush.bf16.msra.mxu0 %v2463
  %2473 = vmatmul.bf16.gmra.mxu0 %v2367
  %v2474 = vpop.f32.mrf.mxu0
  %v2475 = vadd.f32 0.0, %v2474
  %v2476 = vpop.f32.mrf.mxu0
  %v2477 = vadd.f32 0.0, %v2476
  %2478 = vmatmul.bf16.gmra.mxu0 %v2370
  %v2479 = vpop.f32.mrf.mxu0
  %v2480 = vadd.f32 0.0, %v2479
  %v2481 = vpop.f32.mrf.mxu0
  %v2482 = vadd.f32 0.0, %v2481
  %2483 = vmatmul.bf16.gmra.mxu0 %v2373
  %v2484 = vpop.f32.mrf.mxu0
  %v2485 = vadd.f32 0.0, %v2484
  %v2486 = vpop.f32.mrf.mxu0
  %v2487 = vadd.f32 0.0, %v2486
  %2488 = vmatmul.bf16.gmra.mxu0 %v2376
  %v2489 = vpop.f32.mrf.mxu0
  %v2490 = vadd.f32 0.0, %v2489
  %v2491 = vpop.f32.mrf.mxu0
  %v2492 = vadd.f32 0.0, %v2491
  %2493 = vmatmul.bf16.gmra.mxu0 %v2379
  %v2494 = vpop.f32.mrf.mxu0
  %v2495 = vadd.f32 0.0, %v2494
  %v2496 = vpop.f32.mrf.mxu0
  %v2497 = vadd.f32 0.0, %v2496
  %2498 = vmatmul.bf16.gmra.mxu0 %v2382
  %v2499 = vpop.f32.mrf.mxu0
  %v2500 = vadd.f32 0.0, %v2499
  %v2501 = vpop.f32.mrf.mxu0
  %v2502 = vadd.f32 0.0, %v2501
  %2503 = vmatmul.bf16.gmra.mxu0 %v2385
  %v2504 = vpop.f32.mrf.mxu0
  %v2505 = vadd.f32 0.0, %v2504
  %v2506 = vpop.f32.mrf.mxu0
  %v2507 = vadd.f32 0.0, %v2506
  %2508 = vmatmul.bf16.gmra.mxu0 %v2388
  %v2509 = vpop.f32.mrf.mxu0
  %v2510 = vadd.f32 0.0, %v2509
  %v2511 = vpop.f32.mrf.mxu0
  %v2512 = vadd.f32 0.0, %v2511
  %2513 = vmatmul.bf16.gmra.mxu0 %v2391
  %v2514 = vpop.f32.mrf.mxu0
  %v2515 = vadd.f32 0.0, %v2514
  %v2516 = vpop.f32.mrf.mxu0
  %v2517 = vadd.f32 0.0, %v2516
  %2518 = vmatmul.bf16.gmra.mxu0 %v2394
  %v2519 = vpop.f32.mrf.mxu0
  %v2520 = vadd.f32 0.0, %v2519
  %v2521 = vpop.f32.mrf.mxu0
  %v2522 = vadd.f32 0.0, %v2521
  %2523 = vmatmul.bf16.gmra.mxu0 %v2397
  %v2524 = vpop.f32.mrf.mxu0
  %v2525 = vadd.f32 0.0, %v2524
  %v2526 = vpop.f32.mrf.mxu0
  %v2527 = vadd.f32 0.0, %v2526
  %2528 = vmatmul.bf16.gmra.mxu0 %v2400
  %v2529 = vpop.f32.mrf.mxu0
  %v2530 = vadd.f32 0.0, %v2529
  %v2531 = vpop.f32.mrf.mxu0
  %v2532 = vadd.f32 0.0, %v2531
  %2533 = vmatmul.bf16.gmra.mxu0 %v2403
  %v2534 = vpop.f32.mrf.mxu0
  %v2535 = vadd.f32 0.0, %v2534
  %v2536 = vpop.f32.mrf.mxu0
  %v2537 = vadd.f32 0.0, %v2536
  %2538 = vmatmul.bf16.gmra.mxu0 %v2406
  %v2539 = vpop.f32.mrf.mxu0
  %v2540 = vadd.f32 0.0, %v2539
  %v2541 = vpop.f32.mrf.mxu0
  %v2542 = vadd.f32 0.0, %v2541
  %2543 = vmatmul.bf16.gmra.mxu0 %v2409
  %v2544 = vpop.f32.mrf.mxu0
  %v2545 = vadd.f32 0.0, %v2544
  %v2546 = vpop.f32.mrf.mxu0
  %v2547 = vadd.f32 0.0, %v2546
  %2548 = vmatmul.bf16.gmra.mxu0 %v2412
  %v2549 = vpop.f32.mrf.mxu0
  %v2550 = vadd.f32 0.0, %v2549
  %v2551 = vpop.f32.mrf.mxu0
  %v2552 = vadd.f32 0.0, %v2551
  %2553 = vmatmul.bf16.gmra.mxu0 %v2415
  %v2554 = vpop.f32.mrf.mxu0
  %v2555 = vadd.f32 0.0, %v2554
  %v2556 = vpop.f32.mrf.mxu0
  %v2557 = vadd.f32 0.0, %v2556
  %2558 = vmatmul.bf16.gmra.mxu0 %v2418
  %v2559 = vpop.f32.mrf.mxu0
  %v2560 = vadd.f32 0.0, %v2559
  %v2561 = vpop.f32.mrf.mxu0
  %v2562 = vadd.f32 0.0, %v2561
  %2563 = vmatmul.bf16.gmra.mxu0 %v2421
  %v2564 = vpop.f32.mrf.mxu0
  %v2565 = vadd.f32 0.0, %v2564
  %v2566 = vpop.f32.mrf.mxu0
  %v2567 = vadd.f32 0.0, %v2566
  %2568 = vmatmul.bf16.gmra.mxu0 %v2424
  %v2569 = vpop.f32.mrf.mxu0
  %v2570 = vadd.f32 0.0, %v2569
  %v2571 = vpop.f32.mrf.mxu0
  %v2572 = vadd.f32 0.0, %v2571
  %2573 = vmatmul.bf16.gmra.mxu0 %v2427
  %v2574 = vpop.f32.mrf.mxu0
  %v2575 = vadd.f32 0.0, %v2574
  %v2576 = vpop.f32.mrf.mxu0
  %v2577 = vadd.f32 0.0, %v2576
  %2578 = vmatmul.bf16.gmra.mxu0 %v2430
  %v2579 = vpop.f32.mrf.mxu0
  %v2580 = vadd.f32 0.0, %v2579
  %v2581 = vpop.f32.mrf.mxu0
  %v2582 = vadd.f32 0.0, %v2581
  %2583 = vmatmul.bf16.gmra.mxu0 %v2433
  %v2584 = vpop.f32.mrf.mxu0
  %v2585 = vadd.f32 0.0, %v2584
  %v2586 = vpop.f32.mrf.mxu0
  %v2587 = vadd.f32 0.0, %v2586
  %2588 = vmatmul.bf16.gmra.mxu0 %v2436
  %v2589 = vpop.f32.mrf.mxu0
  %v2590 = vadd.f32 0.0, %v2589
  %v2591 = vpop.f32.mrf.mxu0
  %v2592 = vadd.f32 0.0, %v2591
  %2593 = vmatmul.bf16.gmra.mxu0 %v2439
  %v2594 = vpop.f32.mrf.mxu0
  %v2595 = vadd.f32 0.0, %v2594
  %v2596 = vpop.f32.mrf.mxu0
  %v2597 = vadd.f32 0.0, %v2596
  %2598 = vmatmul.bf16.gmra.mxu0 %v2442
  %v2599 = vpop.f32.mrf.mxu0
  %v2600 = vadd.f32 0.0, %v2599
  %v2601 = vpop.f32.mrf.mxu0
  %v2602 = vadd.f32 0.0, %v2601
  %2603 = vmatmul.bf16.gmra.mxu0 %v2445
  %v2604 = vpop.f32.mrf.mxu0
  %v2605 = vadd.f32 0.0, %v2604
  %v2606 = vpop.f32.mrf.mxu0
  %v2607 = vadd.f32 0.0, %v2606
  %2608 = vmatmul.bf16.gmra.mxu0 %v2448
  %v2609 = vpop.f32.mrf.mxu0
  %v2610 = vadd.f32 0.0, %v2609
  %v2611 = vpop.f32.mrf.mxu0
  %v2612 = vadd.f32 0.0, %v2611
  %2613 = vmatmul.bf16.gmra.mxu0 %v2451
  %v2614 = vpop.f32.mrf.mxu0
  %v2615 = vadd.f32 0.0, %v2614
  %v2616 = vpop.f32.mrf.mxu0
  %v2617 = vadd.f32 0.0, %v2616
  %2618 = vmatmul.bf16.gmra.mxu0 %v2454
  %v2619 = vpop.f32.mrf.mxu0
  %v2620 = vadd.f32 0.0, %v2619
  %v2621 = vpop.f32.mrf.mxu0
  %v2622 = vadd.f32 0.0, %v2621
  %2623 = vmatmul.bf16.gmra.mxu0 %v2457
  %v2624 = vpop.f32.mrf.mxu0
  %v2625 = vadd.f32 0.0, %v2624
  %v2626 = vpop.f32.mrf.mxu0
  %v2627 = vadd.f32 0.0, %v2626
  %2628 = vmatmul.bf16.gmra.mxu0 %v2460
  %v2629 = vpop.f32.mrf.mxu0
  %v2630 = vadd.f32 0.0, %v2629
  %v2631 = vpop.f32.mrf.mxu0
  %v2632 = vadd.f32 0.0, %v2631
  %2633 = vdwg.mxu0
  %v2634 = vadd.f32 %v2204, %v2475
  %v2635 = vadd.f32 %v2205, %v2477
  %v2636 = vadd.f32 %v2206, %v2480
  %v2637 = vadd.f32 %v2207, %v2482
  %v2638 = vadd.f32 %v2208, %v2485
  %v2639 = vadd.f32 %v2209, %v2487
  %v2640 = vadd.f32 %v2210, %v2490
  %v2641 = vadd.f32 %v2211, %v2492
  %v2642 = vadd.f32 %v2212, %v2495
  %v2643 = vadd.f32 %v2213, %v2497
  %v2644 = vadd.f32 %v2214, %v2500
  %v2645 = vadd.f32 %v2215, %v2502
  %v2646 = vadd.f32 %v2216, %v2505
  %v2647 = vadd.f32 %v2217, %v2507
  %v2648 = vadd.f32 %v2218, %v2510
  %v2649 = vadd.f32 %v2219, %v2512
  %v2650 = vadd.f32 %v2220, %v2515
  %v2651 = vadd.f32 %v2221, %v2517
  %v2652 = vadd.f32 %v2222, %v2520
  %v2653 = vadd.f32 %v2223, %v2522
  %v2654 = vadd.f32 %v2224, %v2525
  %v2655 = vadd.f32 %v2225, %v2527
  %v2656 = vadd.f32 %v2226, %v2530
  %v2657 = vadd.f32 %v2227, %v2532
  %v2658 = vadd.f32 %v2228, %v2535
  %v2659 = vadd.f32 %v2229, %v2537
  %v2660 = vadd.f32 %v2230, %v2540
  %v2661 = vadd.f32 %v2231, %v2542
  %v2662 = vadd.f32 %v2232, %v2545
  %v2663 = vadd.f32 %v2233, %v2547
  %v2664 = vadd.f32 %v2234, %v2550
  %v2665 = vadd.f32 %v2235, %v2552
  %v2666 = vadd.f32 %v2236, %v2555
  %v2667 = vadd.f32 %v2237, %v2557
  %v2668 = vadd.f32 %v2238, %v2560
  %v2669 = vadd.f32 %v2239, %v2562
  %v2670 = vadd.f32 %v2240, %v2565
  %v2671 = vadd.f32 %v2241, %v2567
  %v2672 = vadd.f32 %v2242, %v2570
  %v2673 = vadd.f32 %v2243, %v2572
  %v2674 = vadd.f32 %v2244, %v2575
  %v2675 = vadd.f32 %v2245, %v2577
  %v2676 = vadd.f32 %v2246, %v2580
  %v2677 = vadd.f32 %v2247, %v2582
  %v2678 = vadd.f32 %v2248, %v2585
  %v2679 = vadd.f32 %v2249, %v2587
  %v2680 = vadd.f32 %v2250, %v2590
  %v2681 = vadd.f32 %v2251, %v2592
  %v2682 = vadd.f32 %v2252, %v2595
  %v2683 = vadd.f32 %v2253, %v2597
  %v2684 = vadd.f32 %v2254, %v2600
  %v2685 = vadd.f32 %v2255, %v2602
  %v2686 = vadd.f32 %v2256, %v2605
  %v2687 = vadd.f32 %v2257, %v2607
  %v2688 = vadd.f32 %v2258, %v2610
  %v2689 = vadd.f32 %v2259, %v2612
  %v2690 = vadd.f32 %v2260, %v2615
  %v2691 = vadd.f32 %v2261, %v2617
  %v2692 = vadd.f32 %v2262, %v2620
  %v2693 = vadd.f32 %v2263, %v2622
  %v2694 = vadd.f32 %v2264, %v2625
  %v2695 = vadd.f32 %v2265, %v2627
  %v2696 = vadd.f32 %v2266, %v2630
  %v2697 = vadd.f32 %v2267, %v2632
  %s2698 = scalar_lea.vmem %s0, 48
  %v2699 = vld [vmem:[%s2698] sm:$0xff]
  %v2700 = vld [vmem:[%s2698 + $0x8] sm:$0xff]
  %v2701 = vld [vmem:[%s2698 + $0x18] sm:$0xff]
  %v2702 = vld [vmem:[%s2698 + $0x20] sm:$0xff]
  %v2703 = vld [vmem:[%s2698 + $0x30] sm:$0xff]
  %v2704 = vld [vmem:[%s2698 + $0x38] sm:$0xff]
  %v2705 = vld [vmem:[%s2698 + $0x48] sm:$0xff]
  %v2706 = vld [vmem:[%s2698 + $0x50] sm:$0xff]
  %v2707 = vld [vmem:[%s2698 + $0x60] sm:$0xff]
  %v2708 = vld [vmem:[%s2698 + $0x68] sm:$0xff]
  %v2709 = vld [vmem:[%s2698 + $0x78] sm:$0xff]
  %v2710 = vld [vmem:[%s2698 + $0x80] sm:$0xff]
  %v2711 = vld [vmem:[%s2698 + $0x90] sm:$0xff]
  %v2712 = vld [vmem:[%s2698 + $0x98] sm:$0xff]
  %v2713 = vld [vmem:[%s2698 + $0xa8] sm:$0xff]
  %v2714 = vld [vmem:[%s2698 + $0xb0] sm:$0xff]
  %v2715 = vld [vmem:[%s2698 + $0xc0] sm:$0xff]
  %v2716 = vld [vmem:[%s2698 + $0xc8] sm:$0xff]
  %v2717 = vld [vmem:[%s2698 + $0xd8] sm:$0xff]
  %v2718 = vld [vmem:[%s2698 + $0xe0] sm:$0xff]
  %v2719 = vld [vmem:[%s2698 + $0xf0] sm:$0xff]
  %v2720 = vld [vmem:[%s2698 + $0xf8] sm:$0xff]
  %v2721 = vld [vmem:[%s2698 + $0x108] sm:$0xff]
  %v2722 = vld [vmem:[%s2698 + $0x110] sm:$0xff]
  %v2723 = vld [vmem:[%s2698 + $0x120] sm:$0xff]
  %v2724 = vld [vmem:[%s2698 + $0x128] sm:$0xff]
  %v2725 = vld [vmem:[%s2698 + $0x138] sm:$0xff]
  %v2726 = vld [vmem:[%s2698 + $0x140] sm:$0xff]
  %v2727 = vld [vmem:[%s2698 + $0x150] sm:$0xff]
  %v2728 = vld [vmem:[%s2698 + $0x158] sm:$0xff]
  %v2729 = vld [vmem:[%s2698 + $0x168] sm:$0xff]
  %v2730 = vld [vmem:[%s2698 + $0x170] sm:$0xff]
  %v2731 = vld [vmem:[%s2698 + $0x1b0] sm:$0xff]
  %v2732 = vld [vmem:[%s2698 + $0x1b8] sm:$0xff]
  %v2733 = vld [vmem:[%s2698 + $0x1c8] sm:$0xff]
  %v2734 = vld [vmem:[%s2698 + $0x1d0] sm:$0xff]
  %v2735 = vld [vmem:[%s2698 + $0x1e0] sm:$0xff]
  %v2736 = vld [vmem:[%s2698 + $0x1e8] sm:$0xff]
  %v2737 = vld [vmem:[%s2698 + $0x1f8] sm:$0xff]
  %v2738 = vld [vmem:[%s2698 + $0x200] sm:$0xff]
  %v2739 = vld [vmem:[%s2698 + $0x210] sm:$0xff]
  %v2740 = vld [vmem:[%s2698 + $0x218] sm:$0xff]
  %v2741 = vld [vmem:[%s2698 + $0x228] sm:$0xff]
  %v2742 = vld [vmem:[%s2698 + $0x230] sm:$0xff]
  %v2743 = vld [vmem:[%s2698 + $0x240] sm:$0xff]
  %v2744 = vld [vmem:[%s2698 + $0x248] sm:$0xff]
  %v2745 = vld [vmem:[%s2698 + $0x258] sm:$0xff]
  %v2746 = vld [vmem:[%s2698 + $0x260] sm:$0xff]
  %v2747 = vld [vmem:[%s2698 + $0x270] sm:$0xff]
  %v2748 = vld [vmem:[%s2698 + $0x278] sm:$0xff]
  %v2749 = vld [vmem:[%s2698 + $0x288] sm:$0xff]
  %v2750 = vld [vmem:[%s2698 + $0x290] sm:$0xff]
  %v2751 = vld [vmem:[%s2698 + $0x2a0] sm:$0xff]
  %v2752 = vld [vmem:[%s2698 + $0x2a8] sm:$0xff]
  %v2753 = vld [vmem:[%s2698 + $0x2b8] sm:$0xff]
  %v2754 = vld [vmem:[%s2698 + $0x2c0] sm:$0xff]
  %v2755 = vld [vmem:[%s2698 + $0x2d0] sm:$0xff]
  %v2756 = vld [vmem:[%s2698 + $0x2d8] sm:$0xff]
  %v2757 = vld [vmem:[%s2698 + $0x2e8] sm:$0xff]
  %v2758 = vld [vmem:[%s2698 + $0x2f0] sm:$0xff]
  %v2759 = vld [vmem:[%s2698 + $0x300] sm:$0xff]
  %v2760 = vld [vmem:[%s2698 + $0x308] sm:$0xff]
  %v2761 = vld [vmem:[%s2698 + $0x318] sm:$0xff]
  %v2762 = vld [vmem:[%s2698 + $0x320] sm:$0xff]
  %v2763 = vpack.c.bf16 %v2700, %v2699
  %v2764 = vpack.c.bf16 %v2702, %v2701
  %v2765 = vpack.c.bf16 %v2704, %v2703
  %v2766 = vpack.c.bf16 %v2706, %v2705
  %v2767 = vpack.c.bf16 %v2708, %v2707
  %v2768 = vpack.c.bf16 %v2710, %v2709
  %v2769 = vpack.c.bf16 %v2712, %v2711
  %v2770 = vpack.c.bf16 %v2714, %v2713
  %v2771 = vpack.c.bf16 %v2716, %v2715
  %v2772 = vpack.c.bf16 %v2718, %v2717
  %v2773 = vpack.c.bf16 %v2720, %v2719
  %v2774 = vpack.c.bf16 %v2722, %v2721
  %v2775 = vpack.c.bf16 %v2724, %v2723
  %v2776 = vpack.c.bf16 %v2726, %v2725
  %v2777 = vpack.c.bf16 %v2728, %v2727
  %v2778 = vpack.c.bf16 %v2730, %v2729
  %v2779 = vpack.c.bf16 %v2732, %v2731
  %v2780 = vpack.c.bf16 %v2734, %v2733
  %v2781 = vpack.c.bf16 %v2736, %v2735
  %v2782 = vpack.c.bf16 %v2738, %v2737
  %v2783 = vpack.c.bf16 %v2740, %v2739
  %v2784 = vpack.c.bf16 %v2742, %v2741
  %v2785 = vpack.c.bf16 %v2744, %v2743
  %v2786 = vpack.c.bf16 %v2746, %v2745
  %v2787 = vpack.c.bf16 %v2748, %v2747
  %v2788 = vpack.c.bf16 %v2750, %v2749
  %v2789 = vpack.c.bf16 %v2752, %v2751
  %v2790 = vpack.c.bf16 %v2754, %v2753
  %v2791 = vpack.c.bf16 %v2756, %v2755
  %v2792 = vpack.c.bf16 %v2758, %v2757
  %v2793 = vpack.c.bf16 %v2760, %v2759
  %v2794 = vpack.c.bf16 %v2762, %v2761
  %s2795 = scalar_lea.vmem %s1, 12
  %v2796 = vld [vmem:[%s2795] sm:$0x3]
  %v2798 = vsel %vm439, %v2763, 0
  %v2801 = vsel %vm439, %v2764, 0
  %v2804 = vsel %vm439, %v2765, 0
  %v2807 = vsel %vm439, %v2766, 0
  %v2810 = vsel %vm439, %v2767, 0
  %v2813 = vsel %vm439, %v2768, 0
  %v2816 = vsel %vm439, %v2769, 0
  %v2819 = vsel %vm439, %v2770, 0
  %v2822 = vsel %vm439, %v2771, 0
  %v2825 = vsel %vm439, %v2772, 0
  %v2828 = vsel %vm439, %v2773, 0
  %v2831 = vsel %vm439, %v2774, 0
  %v2834 = vsel %vm439, %v2775, 0
  %v2837 = vsel %vm439, %v2776, 0
  %v2840 = vsel %vm439, %v2777, 0
  %v2843 = vsel %vm439, %v2778, 0
  %v2846 = vsel %vm439, %v2779, 0
  %v2849 = vsel %vm439, %v2780, 0
  %v2852 = vsel %vm439, %v2781, 0
  %v2855 = vsel %vm439, %v2782, 0
  %v2858 = vsel %vm439, %v2783, 0
  %v2861 = vsel %vm439, %v2784, 0
  %v2864 = vsel %vm439, %v2785, 0
  %v2867 = vsel %vm439, %v2786, 0
  %v2870 = vsel %vm439, %v2787, 0
  %v2873 = vsel %vm439, %v2788, 0
  %v2876 = vsel %vm439, %v2789, 0
  %v2879 = vsel %vm439, %v2790, 0
  %v2882 = vsel %vm439, %v2791, 0
  %v2885 = vsel %vm439, %v2792, 0
  %v2888 = vsel %vm439, %v2793, 0
  %v2891 = vsel %vm439, %v2794, 0
  %v2894 = vsel %vm536, %v2796, 0
  %2896 = vmatpush.bf16.msra.mxu0 0
  %2897 = vmatpush.bf16.msra.mxu0 0
  %2898 = vmatpush.bf16.msra.mxu0 0
  %2899 = vmatpush.bf16.msra.mxu0 0
  %2900 = vmatpush.bf16.msra.mxu0 0
  %2901 = vmatpush.bf16.msra.mxu0 0
  %2902 = vmatpush.bf16.msra.mxu0 0
  %2903 = vmatpush.bf16.msra.mxu0 %v2894
  %2904 = vmatmul.bf16.gmra.mxu0 %v2798
  %v2905 = vpop.f32.mrf.mxu0
  %v2906 = vadd.f32 0.0, %v2905
  %v2907 = vpop.f32.mrf.mxu0
  %v2908 = vadd.f32 0.0, %v2907
  %2909 = vmatmul.bf16.gmra.mxu0 %v2801
  %v2910 = vpop.f32.mrf.mxu0
  %v2911 = vadd.f32 0.0, %v2910
  %v2912 = vpop.f32.mrf.mxu0
  %v2913 = vadd.f32 0.0, %v2912
  %2914 = vmatmul.bf16.gmra.mxu0 %v2804
  %v2915 = vpop.f32.mrf.mxu0
  %v2916 = vadd.f32 0.0, %v2915
  %v2917 = vpop.f32.mrf.mxu0
  %v2918 = vadd.f32 0.0, %v2917
  %2919 = vmatmul.bf16.gmra.mxu0 %v2807
  %v2920 = vpop.f32.mrf.mxu0
  %v2921 = vadd.f32 0.0, %v2920
  %v2922 = vpop.f32.mrf.mxu0
  %v2923 = vadd.f32 0.0, %v2922
  %2924 = vmatmul.bf16.gmra.mxu0 %v2810
  %v2925 = vpop.f32.mrf.mxu0
  %v2926 = vadd.f32 0.0, %v2925
  %v2927 = vpop.f32.mrf.mxu0
  %v2928 = vadd.f32 0.0, %v2927
  %2929 = vmatmul.bf16.gmra.mxu0 %v2813
  %v2930 = vpop.f32.mrf.mxu0
  %v2931 = vadd.f32 0.0, %v2930
  %v2932 = vpop.f32.mrf.mxu0
  %v2933 = vadd.f32 0.0, %v2932
  %2934 = vmatmul.bf16.gmra.mxu0 %v2816
  %v2935 = vpop.f32.mrf.mxu0
  %v2936 = vadd.f32 0.0, %v2935
  %v2937 = vpop.f32.mrf.mxu0
  %v2938 = vadd.f32 0.0, %v2937
  %2939 = vmatmul.bf16.gmra.mxu0 %v2819
  %v2940 = vpop.f32.mrf.mxu0
  %v2941 = vadd.f32 0.0, %v2940
  %v2942 = vpop.f32.mrf.mxu0
  %v2943 = vadd.f32 0.0, %v2942
  %2944 = vmatmul.bf16.gmra.mxu0 %v2822
  %v2945 = vpop.f32.mrf.mxu0
  %v2946 = vadd.f32 0.0, %v2945
  %v2947 = vpop.f32.mrf.mxu0
  %v2948 = vadd.f32 0.0, %v2947
  %2949 = vmatmul.bf16.gmra.mxu0 %v2825
  %v2950 = vpop.f32.mrf.mxu0
  %v2951 = vadd.f32 0.0, %v2950
  %v2952 = vpop.f32.mrf.mxu0
  %v2953 = vadd.f32 0.0, %v2952
  %2954 = vmatmul.bf16.gmra.mxu0 %v2828
  %v2955 = vpop.f32.mrf.mxu0
  %v2956 = vadd.f32 0.0, %v2955
  %v2957 = vpop.f32.mrf.mxu0
  %v2958 = vadd.f32 0.0, %v2957
  %2959 = vmatmul.bf16.gmra.mxu0 %v2831
  %v2960 = vpop.f32.mrf.mxu0
  %v2961 = vadd.f32 0.0, %v2960
  %v2962 = vpop.f32.mrf.mxu0
  %v2963 = vadd.f32 0.0, %v2962
  %2964 = vmatmul.bf16.gmra.mxu0 %v2834
  %v2965 = vpop.f32.mrf.mxu0
  %v2966 = vadd.f32 0.0, %v2965
  %v2967 = vpop.f32.mrf.mxu0
  %v2968 = vadd.f32 0.0, %v2967
  %2969 = vmatmul.bf16.gmra.mxu0 %v2837
  %v2970 = vpop.f32.mrf.mxu0
  %v2971 = vadd.f32 0.0, %v2970
  %v2972 = vpop.f32.mrf.mxu0
  %v2973 = vadd.f32 0.0, %v2972
  %2974 = vmatmul.bf16.gmra.mxu0 %v2840
  %v2975 = vpop.f32.mrf.mxu0
  %v2976 = vadd.f32 0.0, %v2975
  %v2977 = vpop.f32.mrf.mxu0
  %v2978 = vadd.f32 0.0, %v2977
  %2979 = vmatmul.bf16.gmra.mxu0 %v2843
  %v2980 = vpop.f32.mrf.mxu0
  %v2981 = vadd.f32 0.0, %v2980
  %v2982 = vpop.f32.mrf.mxu0
  %v2983 = vadd.f32 0.0, %v2982
  %2984 = vmatmul.bf16.gmra.mxu0 %v2846
  %v2985 = vpop.f32.mrf.mxu0
  %v2986 = vadd.f32 0.0, %v2985
  %v2987 = vpop.f32.mrf.mxu0
  %v2988 = vadd.f32 0.0, %v2987
  %2989 = vmatmul.bf16.gmra.mxu0 %v2849
  %v2990 = vpop.f32.mrf.mxu0
  %v2991 = vadd.f32 0.0, %v2990
  %v2992 = vpop.f32.mrf.mxu0
  %v2993 = vadd.f32 0.0, %v2992
  %2994 = vmatmul.bf16.gmra.mxu0 %v2852
  %v2995 = vpop.f32.mrf.mxu0
  %v2996 = vadd.f32 0.0, %v2995
  %v2997 = vpop.f32.mrf.mxu0
  %v2998 = vadd.f32 0.0, %v2997
  %2999 = vmatmul.bf16.gmra.mxu0 %v2855
  %v3000 = vpop.f32.mrf.mxu0
  %v3001 = vadd.f32 0.0, %v3000
  %v3002 = vpop.f32.mrf.mxu0
  %v3003 = vadd.f32 0.0, %v3002
  %3004 = vmatmul.bf16.gmra.mxu0 %v2858
  %v3005 = vpop.f32.mrf.mxu0
  %v3006 = vadd.f32 0.0, %v3005
  %v3007 = vpop.f32.mrf.mxu0
  %v3008 = vadd.f32 0.0, %v3007
  %3009 = vmatmul.bf16.gmra.mxu0 %v2861
  %v3010 = vpop.f32.mrf.mxu0
  %v3011 = vadd.f32 0.0, %v3010
  %v3012 = vpop.f32.mrf.mxu0
  %v3013 = vadd.f32 0.0, %v3012
  %3014 = vmatmul.bf16.gmra.mxu0 %v2864
  %v3015 = vpop.f32.mrf.mxu0
  %v3016 = vadd.f32 0.0, %v3015
  %v3017 = vpop.f32.mrf.mxu0
  %v3018 = vadd.f32 0.0, %v3017
  %3019 = vmatmul.bf16.gmra.mxu0 %v2867
  %v3020 = vpop.f32.mrf.mxu0
  %v3021 = vadd.f32 0.0, %v3020
  %v3022 = vpop.f32.mrf.mxu0
  %v3023 = vadd.f32 0.0, %v3022
  %3024 = vmatmul.bf16.gmra.mxu0 %v2870
  %v3025 = vpop.f32.mrf.mxu0
  %v3026 = vadd.f32 0.0, %v3025
  %v3027 = vpop.f32.mrf.mxu0
  %v3028 = vadd.f32 0.0, %v3027
  %3029 = vmatmul.bf16.gmra.mxu0 %v2873
  %v3030 = vpop.f32.mrf.mxu0
  %v3031 = vadd.f32 0.0, %v3030
  %v3032 = vpop.f32.mrf.mxu0
  %v3033 = vadd.f32 0.0, %v3032
  %3034 = vmatmul.bf16.gmra.mxu0 %v2876
  %v3035 = vpop.f32.mrf.mxu0
  %v3036 = vadd.f32 0.0, %v3035
  %v3037 = vpop.f32.mrf.mxu0
  %v3038 = vadd.f32 0.0, %v3037
  %3039 = vmatmul.bf16.gmra.mxu0 %v2879
  %v3040 = vpop.f32.mrf.mxu0
  %v3041 = vadd.f32 0.0, %v3040
  %v3042 = vpop.f32.mrf.mxu0
  %v3043 = vadd.f32 0.0, %v3042
  %3044 = vmatmul.bf16.gmra.mxu0 %v2882
  %v3045 = vpop.f32.mrf.mxu0
  %v3046 = vadd.f32 0.0, %v3045
  %v3047 = vpop.f32.mrf.mxu0
  %v3048 = vadd.f32 0.0, %v3047
  %3049 = vmatmul.bf16.gmra.mxu0 %v2885
  %v3050 = vpop.f32.mrf.mxu0
  %v3051 = vadd.f32 0.0, %v3050
  %v3052 = vpop.f32.mrf.mxu0
  %v3053 = vadd.f32 0.0, %v3052
  %3054 = vmatmul.bf16.gmra.mxu0 %v2888
  %v3055 = vpop.f32.mrf.mxu0
  %v3056 = vadd.f32 0.0, %v3055
  %v3057 = vpop.f32.mrf.mxu0
  %v3058 = vadd.f32 0.0, %v3057
  %3059 = vmatmul.bf16.gmra.mxu0 %v2891
  %v3060 = vpop.f32.mrf.mxu0
  %v3061 = vadd.f32 0.0, %v3060
  %v3062 = vpop.f32.mrf.mxu0
  %v3063 = vadd.f32 0.0, %v3062
  %3064 = vdwg.mxu0
  %v3065 = vadd.f32 %v2634, %v2906
  %v3066 = vadd.f32 %v2635, %v2908
  %v3067 = vadd.f32 %v2636, %v2911
  %v3068 = vadd.f32 %v2637, %v2913
  %v3069 = vadd.f32 %v2638, %v2916
  %v3070 = vadd.f32 %v2639, %v2918
  %v3071 = vadd.f32 %v2640, %v2921
  %v3072 = vadd.f32 %v2641, %v2923
  %v3073 = vadd.f32 %v2642, %v2926
  %v3074 = vadd.f32 %v2643, %v2928
  %v3075 = vadd.f32 %v2644, %v2931
  %v3076 = vadd.f32 %v2645, %v2933
  %v3077 = vadd.f32 %v2646, %v2936
  %v3078 = vadd.f32 %v2647, %v2938
  %v3079 = vadd.f32 %v2648, %v2941
  %v3080 = vadd.f32 %v2649, %v2943
  %v3081 = vadd.f32 %v2650, %v2946
  %v3082 = vadd.f32 %v2651, %v2948
  %v3083 = vadd.f32 %v2652, %v2951
  %v3084 = vadd.f32 %v2653, %v2953
  %v3085 = vadd.f32 %v2654, %v2956
  %v3086 = vadd.f32 %v2655, %v2958
  %v3087 = vadd.f32 %v2656, %v2961
  %v3088 = vadd.f32 %v2657, %v2963
  %v3089 = vadd.f32 %v2658, %v2966
  %v3090 = vadd.f32 %v2659, %v2968
  %v3091 = vadd.f32 %v2660, %v2971
  %v3092 = vadd.f32 %v2661, %v2973
  %v3093 = vadd.f32 %v2662, %v2976
  %v3094 = vadd.f32 %v2663, %v2978
  %v3095 = vadd.f32 %v2664, %v2981
  %v3096 = vadd.f32 %v2665, %v2983
  %v3097 = vadd.f32 %v2666, %v2986
  %v3098 = vadd.f32 %v2667, %v2988
  %v3099 = vadd.f32 %v2668, %v2991
  %v3100 = vadd.f32 %v2669, %v2993
  %v3101 = vadd.f32 %v2670, %v2996
  %v3102 = vadd.f32 %v2671, %v2998
  %v3103 = vadd.f32 %v2672, %v3001
  %v3104 = vadd.f32 %v2673, %v3003
  %v3105 = vadd.f32 %v2674, %v3006
  %v3106 = vadd.f32 %v2675, %v3008
  %v3107 = vadd.f32 %v2676, %v3011
  %v3108 = vadd.f32 %v2677, %v3013
  %v3109 = vadd.f32 %v2678, %v3016
  %v3110 = vadd.f32 %v2679, %v3018
  %v3111 = vadd.f32 %v2680, %v3021
  %v3112 = vadd.f32 %v2681, %v3023
  %v3113 = vadd.f32 %v2682, %v3026
  %v3114 = vadd.f32 %v2683, %v3028
  %v3115 = vadd.f32 %v2684, %v3031
  %v3116 = vadd.f32 %v2685, %v3033
  %v3117 = vadd.f32 %v2686, %v3036
  %v3118 = vadd.f32 %v2687, %v3038
  %v3119 = vadd.f32 %v2688, %v3041
  %v3120 = vadd.f32 %v2689, %v3043
  %v3121 = vadd.f32 %v2690, %v3046
  %v3122 = vadd.f32 %v2691, %v3048
  %v3123 = vadd.f32 %v2692, %v3051
  %v3124 = vadd.f32 %v2693, %v3053
  %v3125 = vadd.f32 %v2694, %v3056
  %v3126 = vadd.f32 %v2695, %v3058
  %v3127 = vadd.f32 %v2696, %v3061
  %v3128 = vadd.f32 %v2697, %v3063
  %v3129 = vld [vmem:[%s2698 + $0x1] sm:$0xff]
  %v3130 = vld [vmem:[%s2698 + $0x9] sm:$0xff]
  %v3131 = vld [vmem:[%s2698 + $0x19] sm:$0xff]
  %v3132 = vld [vmem:[%s2698 + $0x21] sm:$0xff]
  %v3133 = vld [vmem:[%s2698 + $0x31] sm:$0xff]
  %v3134 = vld [vmem:[%s2698 + $0x39] sm:$0xff]
  %v3135 = vld [vmem:[%s2698 + $0x49] sm:$0xff]
  %v3136 = vld [vmem:[%s2698 + $0x51] sm:$0xff]
  %v3137 = vld [vmem:[%s2698 + $0x61] sm:$0xff]
  %v3138 = vld [vmem:[%s2698 + $0x69] sm:$0xff]
  %v3139 = vld [vmem:[%s2698 + $0x79] sm:$0xff]
  %v3140 = vld [vmem:[%s2698 + $0x81] sm:$0xff]
  %v3141 = vld [vmem:[%s2698 + $0x91] sm:$0xff]
  %v3142 = vld [vmem:[%s2698 + $0x99] sm:$0xff]
  %v3143 = vld [vmem:[%s2698 + $0xa9] sm:$0xff]
  %v3144 = vld [vmem:[%s2698 + $0xb1] sm:$0xff]
  %v3145 = vld [vmem:[%s2698 + $0xc1] sm:$0xff]
  %v3146 = vld [vmem:[%s2698 + $0xc9] sm:$0xff]
  %v3147 = vld [vmem:[%s2698 + $0xd9] sm:$0xff]
  %v3148 = vld [vmem:[%s2698 + $0xe1] sm:$0xff]
  %v3149 = vld [vmem:[%s2698 + $0xf1] sm:$0xff]
  %v3150 = vld [vmem:[%s2698 + $0xf9] sm:$0xff]
  %v3151 = vld [vmem:[%s2698 + $0x109] sm:$0xff]
  %v3152 = vld [vmem:[%s2698 + $0x111] sm:$0xff]
  %v3153 = vld [vmem:[%s2698 + $0x121] sm:$0xff]
  %v3154 = vld [vmem:[%s2698 + $0x129] sm:$0xff]
  %v3155 = vld [vmem:[%s2698 + $0x139] sm:$0xff]
  %v3156 = vld [vmem:[%s2698 + $0x141] sm:$0xff]
  %v3157 = vld [vmem:[%s2698 + $0x151] sm:$0xff]
  %v3158 = vld [vmem:[%s2698 + $0x159] sm:$0xff]
  %v3159 = vld [vmem:[%s2698 + $0x169] sm:$0xff]
  %v3160 = vld [vmem:[%s2698 + $0x171] sm:$0xff]
  %v3161 = vld [vmem:[%s2698 + $0x1b1] sm:$0xff]
  %v3162 = vld [vmem:[%s2698 + $0x1b9] sm:$0xff]
  %v3163 = vld [vmem:[%s2698 + $0x1c9] sm:$0xff]
  %v3164 = vld [vmem:[%s2698 + $0x1d1] sm:$0xff]
  %v3165 = vld [vmem:[%s2698 + $0x1e1] sm:$0xff]
  %v3166 = vld [vmem:[%s2698 + $0x1e9] sm:$0xff]
  %v3167 = vld [vmem:[%s2698 + $0x1f9] sm:$0xff]
  %v3168 = vld [vmem:[%s2698 + $0x201] sm:$0xff]
  %v3169 = vld [vmem:[%s2698 + $0x211] sm:$0xff]
  %v3170 = vld [vmem:[%s2698 + $0x219] sm:$0xff]
  %v3171 = vld [vmem:[%s2698 + $0x229] sm:$0xff]
  %v3172 = vld [vmem:[%s2698 + $0x231] sm:$0xff]
  %v3173 = vld [vmem:[%s2698 + $0x241] sm:$0xff]
  %v3174 = vld [vmem:[%s2698 + $0x249] sm:$0xff]
  %v3175 = vld [vmem:[%s2698 + $0x259] sm:$0xff]
  %v3176 = vld [vmem:[%s2698 + $0x261] sm:$0xff]
  %v3177 = vld [vmem:[%s2698 + $0x271] sm:$0xff]
  %v3178 = vld [vmem:[%s2698 + $0x279] sm:$0xff]
  %v3179 = vld [vmem:[%s2698 + $0x289] sm:$0xff]
  %v3180 = vld [vmem:[%s2698 + $0x291] sm:$0xff]
  %v3181 = vld [vmem:[%s2698 + $0x2a1] sm:$0xff]
  %v3182 = vld [vmem:[%s2698 + $0x2a9] sm:$0xff]
  %v3183 = vld [vmem:[%s2698 + $0x2b9] sm:$0xff]
  %v3184 = vld [vmem:[%s2698 + $0x2c1] sm:$0xff]
  %v3185 = vld [vmem:[%s2698 + $0x2d1] sm:$0xff]
  %v3186 = vld [vmem:[%s2698 + $0x2d9] sm:$0xff]
  %v3187 = vld [vmem:[%s2698 + $0x2e9] sm:$0xff]
  %v3188 = vld [vmem:[%s2698 + $0x2f1] sm:$0xff]
  %v3189 = vld [vmem:[%s2698 + $0x301] sm:$0xff]
  %v3190 = vld [vmem:[%s2698 + $0x309] sm:$0xff]
  %v3191 = vld [vmem:[%s2698 + $0x319] sm:$0xff]
  %v3192 = vld [vmem:[%s2698 + $0x321] sm:$0xff]
  %v3193 = vpack.c.bf16 %v3130, %v3129
  %v3194 = vpack.c.bf16 %v3132, %v3131
  %v3195 = vpack.c.bf16 %v3134, %v3133
  %v3196 = vpack.c.bf16 %v3136, %v3135
  %v3197 = vpack.c.bf16 %v3138, %v3137
  %v3198 = vpack.c.bf16 %v3140, %v3139
  %v3199 = vpack.c.bf16 %v3142, %v3141
  %v3200 = vpack.c.bf16 %v3144, %v3143
  %v3201 = vpack.c.bf16 %v3146, %v3145
  %v3202 = vpack.c.bf16 %v3148, %v3147
  %v3203 = vpack.c.bf16 %v3150, %v3149
  %v3204 = vpack.c.bf16 %v3152, %v3151
  %v3205 = vpack.c.bf16 %v3154, %v3153
  %v3206 = vpack.c.bf16 %v3156, %v3155
  %v3207 = vpack.c.bf16 %v3158, %v3157
  %v3208 = vpack.c.bf16 %v3160, %v3159
  %v3209 = vpack.c.bf16 %v3162, %v3161
  %v3210 = vpack.c.bf16 %v3164, %v3163
  %v3211 = vpack.c.bf16 %v3166, %v3165
  %v3212 = vpack.c.bf16 %v3168, %v3167
  %v3213 = vpack.c.bf16 %v3170, %v3169
  %v3214 = vpack.c.bf16 %v3172, %v3171
  %v3215 = vpack.c.bf16 %v3174, %v3173
  %v3216 = vpack.c.bf16 %v3176, %v3175
  %v3217 = vpack.c.bf16 %v3178, %v3177
  %v3218 = vpack.c.bf16 %v3180, %v3179
  %v3219 = vpack.c.bf16 %v3182, %v3181
  %v3220 = vpack.c.bf16 %v3184, %v3183
  %v3221 = vpack.c.bf16 %v3186, %v3185
  %v3222 = vpack.c.bf16 %v3188, %v3187
  %v3223 = vpack.c.bf16 %v3190, %v3189
  %v3224 = vpack.c.bf16 %v3192, %v3191
  %s3225 = scalar_lea.vmem %s1, 14
  %v3226 = vld [vmem:[%s3225] sm:$0x3]
  %v3228 = vsel %vm439, %v3193, 0
  %v3231 = vsel %vm439, %v3194, 0
  %v3234 = vsel %vm439, %v3195, 0
  %v3237 = vsel %vm439, %v3196, 0
  %v3240 = vsel %vm439, %v3197, 0
  %v3243 = vsel %vm439, %v3198, 0
  %v3246 = vsel %vm439, %v3199, 0
  %v3249 = vsel %vm439, %v3200, 0
  %v3252 = vsel %vm439, %v3201, 0
  %v3255 = vsel %vm439, %v3202, 0
  %v3258 = vsel %vm439, %v3203, 0
  %v3261 = vsel %vm439, %v3204, 0
  %v3264 = vsel %vm439, %v3205, 0
  %v3267 = vsel %vm439, %v3206, 0
  %v3270 = vsel %vm439, %v3207, 0
  %v3273 = vsel %vm439, %v3208, 0
  %v3276 = vsel %vm439, %v3209, 0
  %v3279 = vsel %vm439, %v3210, 0
  %v3282 = vsel %vm439, %v3211, 0
  %v3285 = vsel %vm439, %v3212, 0
  %v3288 = vsel %vm439, %v3213, 0
  %v3291 = vsel %vm439, %v3214, 0
  %v3294 = vsel %vm439, %v3215, 0
  %v3297 = vsel %vm439, %v3216, 0
  %v3300 = vsel %vm439, %v3217, 0
  %v3303 = vsel %vm439, %v3218, 0
  %v3306 = vsel %vm439, %v3219, 0
  %v3309 = vsel %vm439, %v3220, 0
  %v3312 = vsel %vm439, %v3221, 0
  %v3315 = vsel %vm439, %v3222, 0
  %v3318 = vsel %vm439, %v3223, 0
  %v3321 = vsel %vm439, %v3224, 0
  %v3324 = vsel %vm536, %v3226, 0
  %3326 = vmatpush.bf16.msra.mxu0 0
  %3327 = vmatpush.bf16.msra.mxu0 0
  %3328 = vmatpush.bf16.msra.mxu0 0
  %3329 = vmatpush.bf16.msra.mxu0 0
  %3330 = vmatpush.bf16.msra.mxu0 0
  %3331 = vmatpush.bf16.msra.mxu0 0
  %3332 = vmatpush.bf16.msra.mxu0 0
  %3333 = vmatpush.bf16.msra.mxu0 %v3324
  %3334 = vmatmul.bf16.gmra.mxu0 %v3228
  %v3335 = vpop.f32.mrf.mxu0
  %v3336 = vadd.f32 0.0, %v3335
  %v3337 = vpop.f32.mrf.mxu0
  %v3338 = vadd.f32 0.0, %v3337
  %3339 = vmatmul.bf16.gmra.mxu0 %v3231
  %v3340 = vpop.f32.mrf.mxu0
  %v3341 = vadd.f32 0.0, %v3340
  %v3342 = vpop.f32.mrf.mxu0
  %v3343 = vadd.f32 0.0, %v3342
  %3344 = vmatmul.bf16.gmra.mxu0 %v3234
  %v3345 = vpop.f32.mrf.mxu0
  %v3346 = vadd.f32 0.0, %v3345
  %v3347 = vpop.f32.mrf.mxu0
  %v3348 = vadd.f32 0.0, %v3347
  %3349 = vmatmul.bf16.gmra.mxu0 %v3237
  %v3350 = vpop.f32.mrf.mxu0
  %v3351 = vadd.f32 0.0, %v3350
  %v3352 = vpop.f32.mrf.mxu0
  %v3353 = vadd.f32 0.0, %v3352
  %3354 = vmatmul.bf16.gmra.mxu0 %v3240
  %v3355 = vpop.f32.mrf.mxu0
  %v3356 = vadd.f32 0.0, %v3355
  %v3357 = vpop.f32.mrf.mxu0
  %v3358 = vadd.f32 0.0, %v3357
  %3359 = vmatmul.bf16.gmra.mxu0 %v3243
  %v3360 = vpop.f32.mrf.mxu0
  %v3361 = vadd.f32 0.0, %v3360
  %v3362 = vpop.f32.mrf.mxu0
  %v3363 = vadd.f32 0.0, %v3362
  %3364 = vmatmul.bf16.gmra.mxu0 %v3246
  %v3365 = vpop.f32.mrf.mxu0
  %v3366 = vadd.f32 0.0, %v3365
  %v3367 = vpop.f32.mrf.mxu0
  %v3368 = vadd.f32 0.0, %v3367
  %3369 = vmatmul.bf16.gmra.mxu0 %v3249
  %v3370 = vpop.f32.mrf.mxu0
  %v3371 = vadd.f32 0.0, %v3370
  %v3372 = vpop.f32.mrf.mxu0
  %v3373 = vadd.f32 0.0, %v3372
  %3374 = vmatmul.bf16.gmra.mxu0 %v3252
  %v3375 = vpop.f32.mrf.mxu0
  %v3376 = vadd.f32 0.0, %v3375
  %v3377 = vpop.f32.mrf.mxu0
  %v3378 = vadd.f32 0.0, %v3377
  %3379 = vmatmul.bf16.gmra.mxu0 %v3255
  %v3380 = vpop.f32.mrf.mxu0
  %v3381 = vadd.f32 0.0, %v3380
  %v3382 = vpop.f32.mrf.mxu0
  %v3383 = vadd.f32 0.0, %v3382
  %3384 = vmatmul.bf16.gmra.mxu0 %v3258
  %v3385 = vpop.f32.mrf.mxu0
  %v3386 = vadd.f32 0.0, %v3385
  %v3387 = vpop.f32.mrf.mxu0
  %v3388 = vadd.f32 0.0, %v3387
  %3389 = vmatmul.bf16.gmra.mxu0 %v3261
  %v3390 = vpop.f32.mrf.mxu0
  %v3391 = vadd.f32 0.0, %v3390
  %v3392 = vpop.f32.mrf.mxu0
  %v3393 = vadd.f32 0.0, %v3392
  %3394 = vmatmul.bf16.gmra.mxu0 %v3264
  %v3395 = vpop.f32.mrf.mxu0
  %v3396 = vadd.f32 0.0, %v3395
  %v3397 = vpop.f32.mrf.mxu0
  %v3398 = vadd.f32 0.0, %v3397
  %3399 = vmatmul.bf16.gmra.mxu0 %v3267
  %v3400 = vpop.f32.mrf.mxu0
  %v3401 = vadd.f32 0.0, %v3400
  %v3402 = vpop.f32.mrf.mxu0
  %v3403 = vadd.f32 0.0, %v3402
  %3404 = vmatmul.bf16.gmra.mxu0 %v3270
  %v3405 = vpop.f32.mrf.mxu0
  %v3406 = vadd.f32 0.0, %v3405
  %v3407 = vpop.f32.mrf.mxu0
  %v3408 = vadd.f32 0.0, %v3407
  %3409 = vmatmul.bf16.gmra.mxu0 %v3273
  %v3410 = vpop.f32.mrf.mxu0
  %v3411 = vadd.f32 0.0, %v3410
  %v3412 = vpop.f32.mrf.mxu0
  %v3413 = vadd.f32 0.0, %v3412
  %3414 = vmatmul.bf16.gmra.mxu0 %v3276
  %v3415 = vpop.f32.mrf.mxu0
  %v3416 = vadd.f32 0.0, %v3415
  %v3417 = vpop.f32.mrf.mxu0
  %v3418 = vadd.f32 0.0, %v3417
  %3419 = vmatmul.bf16.gmra.mxu0 %v3279
  %v3420 = vpop.f32.mrf.mxu0
  %v3421 = vadd.f32 0.0, %v3420
  %v3422 = vpop.f32.mrf.mxu0
  %v3423 = vadd.f32 0.0, %v3422
  %3424 = vmatmul.bf16.gmra.mxu0 %v3282
  %v3425 = vpop.f32.mrf.mxu0
  %v3426 = vadd.f32 0.0, %v3425
  %v3427 = vpop.f32.mrf.mxu0
  %v3428 = vadd.f32 0.0, %v3427
  %3429 = vmatmul.bf16.gmra.mxu0 %v3285
  %v3430 = vpop.f32.mrf.mxu0
  %v3431 = vadd.f32 0.0, %v3430
  %v3432 = vpop.f32.mrf.mxu0
  %v3433 = vadd.f32 0.0, %v3432
  %3434 = vmatmul.bf16.gmra.mxu0 %v3288
  %v3435 = vpop.f32.mrf.mxu0
  %v3436 = vadd.f32 0.0, %v3435
  %v3437 = vpop.f32.mrf.mxu0
  %v3438 = vadd.f32 0.0, %v3437
  %3439 = vmatmul.bf16.gmra.mxu0 %v3291
  %v3440 = vpop.f32.mrf.mxu0
  %v3441 = vadd.f32 0.0, %v3440
  %v3442 = vpop.f32.mrf.mxu0
  %v3443 = vadd.f32 0.0, %v3442
  %3444 = vmatmul.bf16.gmra.mxu0 %v3294
  %v3445 = vpop.f32.mrf.mxu0
  %v3446 = vadd.f32 0.0, %v3445
  %v3447 = vpop.f32.mrf.mxu0
  %v3448 = vadd.f32 0.0, %v3447
  %3449 = vmatmul.bf16.gmra.mxu0 %v3297
  %v3450 = vpop.f32.mrf.mxu0
  %v3451 = vadd.f32 0.0, %v3450
  %v3452 = vpop.f32.mrf.mxu0
  %v3453 = vadd.f32 0.0, %v3452
  %3454 = vmatmul.bf16.gmra.mxu0 %v3300
  %v3455 = vpop.f32.mrf.mxu0
  %v3456 = vadd.f32 0.0, %v3455
  %v3457 = vpop.f32.mrf.mxu0
  %v3458 = vadd.f32 0.0, %v3457
  %3459 = vmatmul.bf16.gmra.mxu0 %v3303
  %v3460 = vpop.f32.mrf.mxu0
  %v3461 = vadd.f32 0.0, %v3460
  %v3462 = vpop.f32.mrf.mxu0
  %v3463 = vadd.f32 0.0, %v3462
  %3464 = vmatmul.bf16.gmra.mxu0 %v3306
  %v3465 = vpop.f32.mrf.mxu0
  %v3466 = vadd.f32 0.0, %v3465
  %v3467 = vpop.f32.mrf.mxu0
  %v3468 = vadd.f32 0.0, %v3467
  %3469 = vmatmul.bf16.gmra.mxu0 %v3309
  %v3470 = vpop.f32.mrf.mxu0
  %v3471 = vadd.f32 0.0, %v3470
  %v3472 = vpop.f32.mrf.mxu0
  %v3473 = vadd.f32 0.0, %v3472
  %3474 = vmatmul.bf16.gmra.mxu0 %v3312
  %v3475 = vpop.f32.mrf.mxu0
  %v3476 = vadd.f32 0.0, %v3475
  %v3477 = vpop.f32.mrf.mxu0
  %v3478 = vadd.f32 0.0, %v3477
  %3479 = vmatmul.bf16.gmra.mxu0 %v3315
  %v3480 = vpop.f32.mrf.mxu0
  %v3481 = vadd.f32 0.0, %v3480
  %v3482 = vpop.f32.mrf.mxu0
  %v3483 = vadd.f32 0.0, %v3482
  %3484 = vmatmul.bf16.gmra.mxu0 %v3318
  %v3485 = vpop.f32.mrf.mxu0
  %v3486 = vadd.f32 0.0, %v3485
  %v3487 = vpop.f32.mrf.mxu0
  %v3488 = vadd.f32 0.0, %v3487
  %3489 = vmatmul.bf16.gmra.mxu0 %v3321
  %v3490 = vpop.f32.mrf.mxu0
  %v3491 = vadd.f32 0.0, %v3490
  %v3492 = vpop.f32.mrf.mxu0
  %v3493 = vadd.f32 0.0, %v3492
  %3494 = vdwg.mxu0
  %v3495 = vadd.f32 %v3065, %v3336
  %v3496 = vadd.f32 %v3066, %v3338
  %v3497 = vadd.f32 %v3067, %v3341
  %v3498 = vadd.f32 %v3068, %v3343
  %v3499 = vadd.f32 %v3069, %v3346
  %v3500 = vadd.f32 %v3070, %v3348
  %v3501 = vadd.f32 %v3071, %v3351
  %v3502 = vadd.f32 %v3072, %v3353
  %v3503 = vadd.f32 %v3073, %v3356
  %v3504 = vadd.f32 %v3074, %v3358
  %v3505 = vadd.f32 %v3075, %v3361
  %v3506 = vadd.f32 %v3076, %v3363
  %v3507 = vadd.f32 %v3077, %v3366
  %v3508 = vadd.f32 %v3078, %v3368
  %v3509 = vadd.f32 %v3079, %v3371
  %v3510 = vadd.f32 %v3080, %v3373
  %v3511 = vadd.f32 %v3081, %v3376
  %v3512 = vadd.f32 %v3082, %v3378
  %v3513 = vadd.f32 %v3083, %v3381
  %v3514 = vadd.f32 %v3084, %v3383
  %v3515 = vadd.f32 %v3085, %v3386
  %v3516 = vadd.f32 %v3086, %v3388
  %v3517 = vadd.f32 %v3087, %v3391
  %v3518 = vadd.f32 %v3088, %v3393
  %v3519 = vadd.f32 %v3089, %v3396
  %v3520 = vadd.f32 %v3090, %v3398
  %v3521 = vadd.f32 %v3091, %v3401
  %v3522 = vadd.f32 %v3092, %v3403
  %v3523 = vadd.f32 %v3093, %v3406
  %v3524 = vadd.f32 %v3094, %v3408
  %v3525 = vadd.f32 %v3095, %v3411
  %v3526 = vadd.f32 %v3096, %v3413
  %v3527 = vadd.f32 %v3097, %v3416
  %v3528 = vadd.f32 %v3098, %v3418
  %v3529 = vadd.f32 %v3099, %v3421
  %v3530 = vadd.f32 %v3100, %v3423
  %v3531 = vadd.f32 %v3101, %v3426
  %v3532 = vadd.f32 %v3102, %v3428
  %v3533 = vadd.f32 %v3103, %v3431
  %v3534 = vadd.f32 %v3104, %v3433
  %v3535 = vadd.f32 %v3105, %v3436
  %v3536 = vadd.f32 %v3106, %v3438
  %v3537 = vadd.f32 %v3107, %v3441
  %v3538 = vadd.f32 %v3108, %v3443
  %v3539 = vadd.f32 %v3109, %v3446
  %v3540 = vadd.f32 %v3110, %v3448
  %v3541 = vadd.f32 %v3111, %v3451
  %v3542 = vadd.f32 %v3112, %v3453
  %v3543 = vadd.f32 %v3113, %v3456
  %v3544 = vadd.f32 %v3114, %v3458
  %v3545 = vadd.f32 %v3115, %v3461
  %v3546 = vadd.f32 %v3116, %v3463
  %v3547 = vadd.f32 %v3117, %v3466
  %v3548 = vadd.f32 %v3118, %v3468
  %v3549 = vadd.f32 %v3119, %v3471
  %v3550 = vadd.f32 %v3120, %v3473
  %v3551 = vadd.f32 %v3121, %v3476
  %v3552 = vadd.f32 %v3122, %v3478
  %v3553 = vadd.f32 %v3123, %v3481
  %v3554 = vadd.f32 %v3124, %v3483
  %v3555 = vadd.f32 %v3125, %v3486
  %v3556 = vadd.f32 %v3126, %v3488
  %v3557 = vadd.f32 %v3127, %v3491
  %v3558 = vadd.f32 %v3128, %v3493
  %v3559 = vld [vmem:[%s2698 + $0x2] sm:$0xff]
  %v3560 = vld [vmem:[%s2698 + $0xa] sm:$0xff]
  %v3561 = vld [vmem:[%s2698 + $0x1a] sm:$0xff]
  %v3562 = vld [vmem:[%s2698 + $0x22] sm:$0xff]
  %v3563 = vld [vmem:[%s2698 + $0x32] sm:$0xff]
  %v3564 = vld [vmem:[%s2698 + $0x3a] sm:$0xff]
  %v3565 = vld [vmem:[%s2698 + $0x4a] sm:$0xff]
  %v3566 = vld [vmem:[%s2698 + $0x52] sm:$0xff]
  %v3567 = vld [vmem:[%s2698 + $0x62] sm:$0xff]
  %v3568 = vld [vmem:[%s2698 + $0x6a] sm:$0xff]
  %v3569 = vld [vmem:[%s2698 + $0x7a] sm:$0xff]
  %v3570 = vld [vmem:[%s2698 + $0x82] sm:$0xff]
  %v3571 = vld [vmem:[%s2698 + $0x92] sm:$0xff]
  %v3572 = vld [vmem:[%s2698 + $0x9a] sm:$0xff]
  %v3573 = vld [vmem:[%s2698 + $0xaa] sm:$0xff]
  %v3574 = vld [vmem:[%s2698 + $0xb2] sm:$0xff]
  %v3575 = vld [vmem:[%s2698 + $0xc2] sm:$0xff]
  %v3576 = vld [vmem:[%s2698 + $0xca] sm:$0xff]
  %v3577 = vld [vmem:[%s2698 + $0xda] sm:$0xff]
  %v3578 = vld [vmem:[%s2698 + $0xe2] sm:$0xff]
  %v3579 = vld [vmem:[%s2698 + $0xf2] sm:$0xff]
  %v3580 = vld [vmem:[%s2698 + $0xfa] sm:$0xff]
  %v3581 = vld [vmem:[%s2698 + $0x10a] sm:$0xff]
  %v3582 = vld [vmem:[%s2698 + $0x112] sm:$0xff]
  %v3583 = vld [vmem:[%s2698 + $0x122] sm:$0xff]
  %v3584 = vld [vmem:[%s2698 + $0x12a] sm:$0xff]
  %v3585 = vld [vmem:[%s2698 + $0x13a] sm:$0xff]
  %v3586 = vld [vmem:[%s2698 + $0x142] sm:$0xff]
  %v3587 = vld [vmem:[%s2698 + $0x152] sm:$0xff]
  %v3588 = vld [vmem:[%s2698 + $0x15a] sm:$0xff]
  %v3589 = vld [vmem:[%s2698 + $0x16a] sm:$0xff]
  %v3590 = vld [vmem:[%s2698 + $0x172] sm:$0xff]
  %v3591 = vld [vmem:[%s2698 + $0x1b2] sm:$0xff]
  %v3592 = vld [vmem:[%s2698 + $0x1ba] sm:$0xff]
  %v3593 = vld [vmem:[%s2698 + $0x1ca] sm:$0xff]
  %v3594 = vld [vmem:[%s2698 + $0x1d2] sm:$0xff]
  %v3595 = vld [vmem:[%s2698 + $0x1e2] sm:$0xff]
  %v3596 = vld [vmem:[%s2698 + $0x1ea] sm:$0xff]
  %v3597 = vld [vmem:[%s2698 + $0x1fa] sm:$0xff]
  %v3598 = vld [vmem:[%s2698 + $0x202] sm:$0xff]
  %v3599 = vld [vmem:[%s2698 + $0x212] sm:$0xff]
  %v3600 = vld [vmem:[%s2698 + $0x21a] sm:$0xff]
  %v3601 = vld [vmem:[%s2698 + $0x22a] sm:$0xff]
  %v3602 = vld [vmem:[%s2698 + $0x232] sm:$0xff]
  %v3603 = vld [vmem:[%s2698 + $0x242] sm:$0xff]
  %v3604 = vld [vmem:[%s2698 + $0x24a] sm:$0xff]
  %v3605 = vld [vmem:[%s2698 + $0x25a] sm:$0xff]
  %v3606 = vld [vmem:[%s2698 + $0x262] sm:$0xff]
  %v3607 = vld [vmem:[%s2698 + $0x272] sm:$0xff]
  %v3608 = vld [vmem:[%s2698 + $0x27a] sm:$0xff]
  %v3609 = vld [vmem:[%s2698 + $0x28a] sm:$0xff]
  %v3610 = vld [vmem:[%s2698 + $0x292] sm:$0xff]
  %v3611 = vld [vmem:[%s2698 + $0x2a2] sm:$0xff]
  %v3612 = vld [vmem:[%s2698 + $0x2aa] sm:$0xff]
  %v3613 = vld [vmem:[%s2698 + $0x2ba] sm:$0xff]
  %v3614 = vld [vmem:[%s2698 + $0x2c2] sm:$0xff]
  %v3615 = vld [vmem:[%s2698 + $0x2d2] sm:$0xff]
  %v3616 = vld [vmem:[%s2698 + $0x2da] sm:$0xff]
  %v3617 = vld [vmem:[%s2698 + $0x2ea] sm:$0xff]
  %v3618 = vld [vmem:[%s2698 + $0x2f2] sm:$0xff]
  %v3619 = vld [vmem:[%s2698 + $0x302] sm:$0xff]
  %v3620 = vld [vmem:[%s2698 + $0x30a] sm:$0xff]
  %v3621 = vld [vmem:[%s2698 + $0x31a] sm:$0xff]
  %v3622 = vld [vmem:[%s2698 + $0x322] sm:$0xff]
  %v3623 = vpack.c.bf16 %v3560, %v3559
  %v3624 = vpack.c.bf16 %v3562, %v3561
  %v3625 = vpack.c.bf16 %v3564, %v3563
  %v3626 = vpack.c.bf16 %v3566, %v3565
  %v3627 = vpack.c.bf16 %v3568, %v3567
  %v3628 = vpack.c.bf16 %v3570, %v3569
  %v3629 = vpack.c.bf16 %v3572, %v3571
  %v3630 = vpack.c.bf16 %v3574, %v3573
  %v3631 = vpack.c.bf16 %v3576, %v3575
  %v3632 = vpack.c.bf16 %v3578, %v3577
  %v3633 = vpack.c.bf16 %v3580, %v3579
  %v3634 = vpack.c.bf16 %v3582, %v3581
  %v3635 = vpack.c.bf16 %v3584, %v3583
  %v3636 = vpack.c.bf16 %v3586, %v3585
  %v3637 = vpack.c.bf16 %v3588, %v3587
  %v3638 = vpack.c.bf16 %v3590, %v3589
  %v3639 = vpack.c.bf16 %v3592, %v3591
  %v3640 = vpack.c.bf16 %v3594, %v3593
  %v3641 = vpack.c.bf16 %v3596, %v3595
  %v3642 = vpack.c.bf16 %v3598, %v3597
  %v3643 = vpack.c.bf16 %v3600, %v3599
  %v3644 = vpack.c.bf16 %v3602, %v3601
  %v3645 = vpack.c.bf16 %v3604, %v3603
  %v3646 = vpack.c.bf16 %v3606, %v3605
  %v3647 = vpack.c.bf16 %v3608, %v3607
  %v3648 = vpack.c.bf16 %v3610, %v3609
  %v3649 = vpack.c.bf16 %v3612, %v3611
  %v3650 = vpack.c.bf16 %v3614, %v3613
  %v3651 = vpack.c.bf16 %v3616, %v3615
  %v3652 = vpack.c.bf16 %v3618, %v3617
  %v3653 = vpack.c.bf16 %v3620, %v3619
  %v3654 = vpack.c.bf16 %v3622, %v3621
  %s3655 = scalar_lea.vmem %s1, 16
  %v3656 = vld [vmem:[%s3655] sm:$0x3]
  %v3658 = vsel %vm439, %v3623, 0
  %v3661 = vsel %vm439, %v3624, 0
  %v3664 = vsel %vm439, %v3625, 0
  %v3667 = vsel %vm439, %v3626, 0
  %v3670 = vsel %vm439, %v3627, 0
  %v3673 = vsel %vm439, %v3628, 0
  %v3676 = vsel %vm439, %v3629, 0
  %v3679 = vsel %vm439, %v3630, 0
  %v3682 = vsel %vm439, %v3631, 0
  %v3685 = vsel %vm439, %v3632, 0
  %v3688 = vsel %vm439, %v3633, 0
  %v3691 = vsel %vm439, %v3634, 0
  %v3694 = vsel %vm439, %v3635, 0
  %v3697 = vsel %vm439, %v3636, 0
  %v3700 = vsel %vm439, %v3637, 0
  %v3703 = vsel %vm439, %v3638, 0
  %v3706 = vsel %vm439, %v3639, 0
  %v3709 = vsel %vm439, %v3640, 0
  %v3712 = vsel %vm439, %v3641, 0
  %v3715 = vsel %vm439, %v3642, 0
  %v3718 = vsel %vm439, %v3643, 0
  %v3721 = vsel %vm439, %v3644, 0
  %v3724 = vsel %vm439, %v3645, 0
  %v3727 = vsel %vm439, %v3646, 0
  %v3730 = vsel %vm439, %v3647, 0
  %v3733 = vsel %vm439, %v3648, 0
  %v3736 = vsel %vm439, %v3649, 0
  %v3739 = vsel %vm439, %v3650, 0
  %v3742 = vsel %vm439, %v3651, 0
  %v3745 = vsel %vm439, %v3652, 0
  %v3748 = vsel %vm439, %v3653, 0
  %v3751 = vsel %vm439, %v3654, 0
  %v3754 = vsel %vm536, %v3656, 0
  %3756 = vmatpush.bf16.msra.mxu0 0
  %3757 = vmatpush.bf16.msra.mxu0 0
  %3758 = vmatpush.bf16.msra.mxu0 0
  %3759 = vmatpush.bf16.msra.mxu0 0
  %3760 = vmatpush.bf16.msra.mxu0 0
  %3761 = vmatpush.bf16.msra.mxu0 0
  %3762 = vmatpush.bf16.msra.mxu0 0
  %3763 = vmatpush.bf16.msra.mxu0 %v3754
  %3764 = vmatmul.bf16.gmra.mxu0 %v3658
  %v3765 = vpop.f32.mrf.mxu0
  %v3766 = vadd.f32 0.0, %v3765
  %v3767 = vpop.f32.mrf.mxu0
  %v3768 = vadd.f32 0.0, %v3767
  %3769 = vmatmul.bf16.gmra.mxu0 %v3661
  %v3770 = vpop.f32.mrf.mxu0
  %v3771 = vadd.f32 0.0, %v3770
  %v3772 = vpop.f32.mrf.mxu0
  %v3773 = vadd.f32 0.0, %v3772
  %3774 = vmatmul.bf16.gmra.mxu0 %v3664
  %v3775 = vpop.f32.mrf.mxu0
  %v3776 = vadd.f32 0.0, %v3775
  %v3777 = vpop.f32.mrf.mxu0
  %v3778 = vadd.f32 0.0, %v3777
  %3779 = vmatmul.bf16.gmra.mxu0 %v3667
  %v3780 = vpop.f32.mrf.mxu0
  %v3781 = vadd.f32 0.0, %v3780
  %v3782 = vpop.f32.mrf.mxu0
  %v3783 = vadd.f32 0.0, %v3782
  %3784 = vmatmul.bf16.gmra.mxu0 %v3670
  %v3785 = vpop.f32.mrf.mxu0
  %v3786 = vadd.f32 0.0, %v3785
  %v3787 = vpop.f32.mrf.mxu0
  %v3788 = vadd.f32 0.0, %v3787
  %3789 = vmatmul.bf16.gmra.mxu0 %v3673
  %v3790 = vpop.f32.mrf.mxu0
  %v3791 = vadd.f32 0.0, %v3790
  %v3792 = vpop.f32.mrf.mxu0
  %v3793 = vadd.f32 0.0, %v3792
  %3794 = vmatmul.bf16.gmra.mxu0 %v3676
  %v3795 = vpop.f32.mrf.mxu0
  %v3796 = vadd.f32 0.0, %v3795
  %v3797 = vpop.f32.mrf.mxu0
  %v3798 = vadd.f32 0.0, %v3797
  %3799 = vmatmul.bf16.gmra.mxu0 %v3679
  %v3800 = vpop.f32.mrf.mxu0
  %v3801 = vadd.f32 0.0, %v3800
  %v3802 = vpop.f32.mrf.mxu0
  %v3803 = vadd.f32 0.0, %v3802
  %3804 = vmatmul.bf16.gmra.mxu0 %v3682
  %v3805 = vpop.f32.mrf.mxu0
  %v3806 = vadd.f32 0.0, %v3805
  %v3807 = vpop.f32.mrf.mxu0
  %v3808 = vadd.f32 0.0, %v3807
  %3809 = vmatmul.bf16.gmra.mxu0 %v3685
  %v3810 = vpop.f32.mrf.mxu0
  %v3811 = vadd.f32 0.0, %v3810
  %v3812 = vpop.f32.mrf.mxu0
  %v3813 = vadd.f32 0.0, %v3812
  %3814 = vmatmul.bf16.gmra.mxu0 %v3688
  %v3815 = vpop.f32.mrf.mxu0
  %v3816 = vadd.f32 0.0, %v3815
  %v3817 = vpop.f32.mrf.mxu0
  %v3818 = vadd.f32 0.0, %v3817
  %3819 = vmatmul.bf16.gmra.mxu0 %v3691
  %v3820 = vpop.f32.mrf.mxu0
  %v3821 = vadd.f32 0.0, %v3820
  %v3822 = vpop.f32.mrf.mxu0
  %v3823 = vadd.f32 0.0, %v3822
  %3824 = vmatmul.bf16.gmra.mxu0 %v3694
  %v3825 = vpop.f32.mrf.mxu0
  %v3826 = vadd.f32 0.0, %v3825
  %v3827 = vpop.f32.mrf.mxu0
  %v3828 = vadd.f32 0.0, %v3827
  %3829 = vmatmul.bf16.gmra.mxu0 %v3697
  %v3830 = vpop.f32.mrf.mxu0
  %v3831 = vadd.f32 0.0, %v3830
  %v3832 = vpop.f32.mrf.mxu0
  %v3833 = vadd.f32 0.0, %v3832
  %3834 = vmatmul.bf16.gmra.mxu0 %v3700
  %v3835 = vpop.f32.mrf.mxu0
  %v3836 = vadd.f32 0.0, %v3835
  %v3837 = vpop.f32.mrf.mxu0
  %v3838 = vadd.f32 0.0, %v3837
  %3839 = vmatmul.bf16.gmra.mxu0 %v3703
  %v3840 = vpop.f32.mrf.mxu0
  %v3841 = vadd.f32 0.0, %v3840
  %v3842 = vpop.f32.mrf.mxu0
  %v3843 = vadd.f32 0.0, %v3842
  %3844 = vmatmul.bf16.gmra.mxu0 %v3706
  %v3845 = vpop.f32.mrf.mxu0
  %v3846 = vadd.f32 0.0, %v3845
  %v3847 = vpop.f32.mrf.mxu0
  %v3848 = vadd.f32 0.0, %v3847
  %3849 = vmatmul.bf16.gmra.mxu0 %v3709
  %v3850 = vpop.f32.mrf.mxu0
  %v3851 = vadd.f32 0.0, %v3850
  %v3852 = vpop.f32.mrf.mxu0
  %v3853 = vadd.f32 0.0, %v3852
  %3854 = vmatmul.bf16.gmra.mxu0 %v3712
  %v3855 = vpop.f32.mrf.mxu0
  %v3856 = vadd.f32 0.0, %v3855
  %v3857 = vpop.f32.mrf.mxu0
  %v3858 = vadd.f32 0.0, %v3857
  %3859 = vmatmul.bf16.gmra.mxu0 %v3715
  %v3860 = vpop.f32.mrf.mxu0
  %v3861 = vadd.f32 0.0, %v3860
  %v3862 = vpop.f32.mrf.mxu0
  %v3863 = vadd.f32 0.0, %v3862
  %3864 = vmatmul.bf16.gmra.mxu0 %v3718
  %v3865 = vpop.f32.mrf.mxu0
  %v3866 = vadd.f32 0.0, %v3865
  %v3867 = vpop.f32.mrf.mxu0
  %v3868 = vadd.f32 0.0, %v3867
  %3869 = vmatmul.bf16.gmra.mxu0 %v3721
  %v3870 = vpop.f32.mrf.mxu0
  %v3871 = vadd.f32 0.0, %v3870
  %v3872 = vpop.f32.mrf.mxu0
  %v3873 = vadd.f32 0.0, %v3872
  %3874 = vmatmul.bf16.gmra.mxu0 %v3724
  %v3875 = vpop.f32.mrf.mxu0
  %v3876 = vadd.f32 0.0, %v3875
  %v3877 = vpop.f32.mrf.mxu0
  %v3878 = vadd.f32 0.0, %v3877
  %3879 = vmatmul.bf16.gmra.mxu0 %v3727
  %v3880 = vpop.f32.mrf.mxu0
  %v3881 = vadd.f32 0.0, %v3880
  %v3882 = vpop.f32.mrf.mxu0
  %v3883 = vadd.f32 0.0, %v3882
  %3884 = vmatmul.bf16.gmra.mxu0 %v3730
  %v3885 = vpop.f32.mrf.mxu0
  %v3886 = vadd.f32 0.0, %v3885
  %v3887 = vpop.f32.mrf.mxu0
  %v3888 = vadd.f32 0.0, %v3887
  %3889 = vmatmul.bf16.gmra.mxu0 %v3733
  %v3890 = vpop.f32.mrf.mxu0
  %v3891 = vadd.f32 0.0, %v3890
  %v3892 = vpop.f32.mrf.mxu0
  %v3893 = vadd.f32 0.0, %v3892
  %3894 = vmatmul.bf16.gmra.mxu0 %v3736
  %v3895 = vpop.f32.mrf.mxu0
  %v3896 = vadd.f32 0.0, %v3895
  %v3897 = vpop.f32.mrf.mxu0
  %v3898 = vadd.f32 0.0, %v3897
  %3899 = vmatmul.bf16.gmra.mxu0 %v3739
  %v3900 = vpop.f32.mrf.mxu0
  %v3901 = vadd.f32 0.0, %v3900
  %v3902 = vpop.f32.mrf.mxu0
  %v3903 = vadd.f32 0.0, %v3902
  %3904 = vmatmul.bf16.gmra.mxu0 %v3742
  %v3905 = vpop.f32.mrf.mxu0
  %v3906 = vadd.f32 0.0, %v3905
  %v3907 = vpop.f32.mrf.mxu0
  %v3908 = vadd.f32 0.0, %v3907
  %3909 = vmatmul.bf16.gmra.mxu0 %v3745
  %v3910 = vpop.f32.mrf.mxu0
  %v3911 = vadd.f32 0.0, %v3910
  %v3912 = vpop.f32.mrf.mxu0
  %v3913 = vadd.f32 0.0, %v3912
  %3914 = vmatmul.bf16.gmra.mxu0 %v3748
  %v3915 = vpop.f32.mrf.mxu0
  %v3916 = vadd.f32 0.0, %v3915
  %v3917 = vpop.f32.mrf.mxu0
  %v3918 = vadd.f32 0.0, %v3917
  %3919 = vmatmul.bf16.gmra.mxu0 %v3751
  %v3920 = vpop.f32.mrf.mxu0
  %v3921 = vadd.f32 0.0, %v3920
  %v3922 = vpop.f32.mrf.mxu0
  %v3923 = vadd.f32 0.0, %v3922
  %3924 = vdwg.mxu0
  %v3925 = vadd.f32 %v3495, %v3766
  %v3926 = vadd.f32 %v3496, %v3768
  %v3927 = vadd.f32 %v3497, %v3771
  %v3928 = vadd.f32 %v3498, %v3773
  %v3929 = vadd.f32 %v3499, %v3776
  %v3930 = vadd.f32 %v3500, %v3778
  %v3931 = vadd.f32 %v3501, %v3781
  %v3932 = vadd.f32 %v3502, %v3783
  %v3933 = vadd.f32 %v3503, %v3786
  %v3934 = vadd.f32 %v3504, %v3788
  %v3935 = vadd.f32 %v3505, %v3791
  %v3936 = vadd.f32 %v3506, %v3793
  %v3937 = vadd.f32 %v3507, %v3796
  %v3938 = vadd.f32 %v3508, %v3798
  %v3939 = vadd.f32 %v3509, %v3801
  %v3940 = vadd.f32 %v3510, %v3803
  %v3941 = vadd.f32 %v3511, %v3806
  %v3942 = vadd.f32 %v3512, %v3808
  %v3943 = vadd.f32 %v3513, %v3811
  %v3944 = vadd.f32 %v3514, %v3813
  %v3945 = vadd.f32 %v3515, %v3816
  %v3946 = vadd.f32 %v3516, %v3818
  %v3947 = vadd.f32 %v3517, %v3821
  %v3948 = vadd.f32 %v3518, %v3823
  %v3949 = vadd.f32 %v3519, %v3826
  %v3950 = vadd.f32 %v3520, %v3828
  %v3951 = vadd.f32 %v3521, %v3831
  %v3952 = vadd.f32 %v3522, %v3833
  %v3953 = vadd.f32 %v3523, %v3836
  %v3954 = vadd.f32 %v3524, %v3838
  %v3955 = vadd.f32 %v3525, %v3841
  %v3956 = vadd.f32 %v3526, %v3843
  %v3957 = vadd.f32 %v3527, %v3846
  %v3958 = vadd.f32 %v3528, %v3848
  %v3959 = vadd.f32 %v3529, %v3851
  %v3960 = vadd.f32 %v3530, %v3853
  %v3961 = vadd.f32 %v3531, %v3856
  %v3962 = vadd.f32 %v3532, %v3858
  %v3963 = vadd.f32 %v3533, %v3861
  %v3964 = vadd.f32 %v3534, %v3863
  %v3965 = vadd.f32 %v3535, %v3866
  %v3966 = vadd.f32 %v3536, %v3868
  %v3967 = vadd.f32 %v3537, %v3871
  %v3968 = vadd.f32 %v3538, %v3873
  %v3969 = vadd.f32 %v3539, %v3876
  %v3970 = vadd.f32 %v3540, %v3878
  %v3971 = vadd.f32 %v3541, %v3881
  %v3972 = vadd.f32 %v3542, %v3883
  %v3973 = vadd.f32 %v3543, %v3886
  %v3974 = vadd.f32 %v3544, %v3888
  %v3975 = vadd.f32 %v3545, %v3891
  %v3976 = vadd.f32 %v3546, %v3893
  %v3977 = vadd.f32 %v3547, %v3896
  %v3978 = vadd.f32 %v3548, %v3898
  %v3979 = vadd.f32 %v3549, %v3901
  %v3980 = vadd.f32 %v3550, %v3903
  %v3981 = vadd.f32 %v3551, %v3906
  %v3982 = vadd.f32 %v3552, %v3908
  %v3983 = vadd.f32 %v3553, %v3911
  %v3984 = vadd.f32 %v3554, %v3913
  %v3985 = vadd.f32 %v3555, %v3916
  %v3986 = vadd.f32 %v3556, %v3918
  %v3987 = vadd.f32 %v3557, %v3921
  %v3988 = vadd.f32 %v3558, %v3923
  %v3989 = vsel %vm439, %v3925, 0.0
  %v3990 = vsel %vm439, %v3926, 0.0
  %v3991 = vadd.f32 %v3989, %v3990
  %v3992 = vsel %vm439, %v3927, 0.0
  %v3993 = vadd.f32 %v3991, %v3992
  %v3994 = vsel %vm439, %v3928, 0.0
  %v3995 = vadd.f32 %v3993, %v3994
  %v3996 = vsel %vm439, %v3929, 0.0
  %v3997 = vadd.f32 %v3995, %v3996
  %v3998 = vsel %vm439, %v3930, 0.0
  %v3999 = vadd.f32 %v3997, %v3998
  %v4000 = vsel %vm439, %v3931, 0.0
  %v4001 = vadd.f32 %v3999, %v4000
  %v4002 = vsel %vm439, %v3932, 0.0
  %v4003 = vadd.f32 %v4001, %v4002
  %v4004 = vsel %vm439, %v3933, 0.0
  %v4005 = vadd.f32 %v4003, %v4004
  %v4006 = vsel %vm439, %v3934, 0.0
  %v4007 = vadd.f32 %v4005, %v4006
  %v4008 = vsel %vm439, %v3935, 0.0
  %v4009 = vadd.f32 %v4007, %v4008
  %v4010 = vsel %vm439, %v3936, 0.0
  %v4011 = vadd.f32 %v4009, %v4010
  %v4012 = vsel %vm439, %v3937, 0.0
  %v4013 = vadd.f32 %v4011, %v4012
  %v4014 = vsel %vm439, %v3938, 0.0
  %v4015 = vadd.f32 %v4013, %v4014
  %v4016 = vsel %vm439, %v3939, 0.0
  %v4017 = vadd.f32 %v4015, %v4016
  %v4018 = vsel %vm439, %v3940, 0.0
  %v4019 = vadd.f32 %v4017, %v4018
  %v4020 = vsel %vm439, %v3941, 0.0
  %v4021 = vadd.f32 %v4019, %v4020
  %v4022 = vsel %vm439, %v3942, 0.0
  %v4023 = vadd.f32 %v4021, %v4022
  %v4024 = vsel %vm439, %v3943, 0.0
  %v4025 = vadd.f32 %v4023, %v4024
  %v4026 = vsel %vm439, %v3944, 0.0
  %v4027 = vadd.f32 %v4025, %v4026
  %v4028 = vsel %vm439, %v3945, 0.0
  %v4029 = vadd.f32 %v4027, %v4028
  %v4030 = vsel %vm439, %v3946, 0.0
  %v4031 = vadd.f32 %v4029, %v4030
  %v4032 = vsel %vm439, %v3947, 0.0
  %v4033 = vadd.f32 %v4031, %v4032
  %v4034 = vsel %vm439, %v3948, 0.0
  %v4035 = vadd.f32 %v4033, %v4034
  %v4036 = vsel %vm439, %v3949, 0.0
  %v4037 = vadd.f32 %v4035, %v4036
  %v4038 = vsel %vm439, %v3950, 0.0
  %v4039 = vadd.f32 %v4037, %v4038
  %v4040 = vsel %vm439, %v3951, 0.0
  %v4041 = vadd.f32 %v4039, %v4040
  %v4042 = vsel %vm439, %v3952, 0.0
  %v4043 = vadd.f32 %v4041, %v4042
  %v4044 = vsel %vm439, %v3953, 0.0
  %v4045 = vadd.f32 %v4043, %v4044
  %v4046 = vsel %vm439, %v3954, 0.0
  %v4047 = vadd.f32 %v4045, %v4046
  %v4048 = vsel %vm439, %v3955, 0.0
  %v4049 = vadd.f32 %v4047, %v4048
  %v4050 = vsel %vm439, %v3956, 0.0
  %v4051 = vadd.f32 %v4049, %v4050
  %v4052 = vsel %vm439, %v3957, 0.0
  %v4053 = vadd.f32 %v4051, %v4052
  %v4054 = vsel %vm439, %v3958, 0.0
  %v4055 = vadd.f32 %v4053, %v4054
  %v4056 = vsel %vm439, %v3959, 0.0
  %v4057 = vadd.f32 %v4055, %v4056
  %v4058 = vsel %vm439, %v3960, 0.0
  %v4059 = vadd.f32 %v4057, %v4058
  %v4060 = vsel %vm439, %v3961, 0.0
  %v4061 = vadd.f32 %v4059, %v4060
  %v4062 = vsel %vm439, %v3962, 0.0
  %v4063 = vadd.f32 %v4061, %v4062
  %v4064 = vsel %vm439, %v3963, 0.0
  %v4065 = vadd.f32 %v4063, %v4064
  %v4066 = vsel %vm439, %v3964, 0.0
  %v4067 = vadd.f32 %v4065, %v4066
  %v4068 = vsel %vm439, %v3965, 0.0
  %v4069 = vadd.f32 %v4067, %v4068
  %v4070 = vsel %vm439, %v3966, 0.0
  %v4071 = vadd.f32 %v4069, %v4070
  %v4072 = vsel %vm439, %v3967, 0.0
  %v4073 = vadd.f32 %v4071, %v4072
  %v4074 = vsel %vm439, %v3968, 0.0
  %v4075 = vadd.f32 %v4073, %v4074
  %v4076 = vsel %vm439, %v3969, 0.0
  %v4077 = vadd.f32 %v4075, %v4076
  %v4078 = vsel %vm439, %v3970, 0.0
  %v4079 = vadd.f32 %v4077, %v4078
  %v4080 = vsel %vm439, %v3971, 0.0
  %v4081 = vadd.f32 %v4079, %v4080
  %v4082 = vsel %vm439, %v3972, 0.0
  %v4083 = vadd.f32 %v4081, %v4082
  %v4084 = vsel %vm439, %v3973, 0.0
  %v4085 = vadd.f32 %v4083, %v4084
  %v4086 = vsel %vm439, %v3974, 0.0
  %v4087 = vadd.f32 %v4085, %v4086
  %v4088 = vsel %vm439, %v3975, 0.0
  %v4089 = vadd.f32 %v4087, %v4088
  %v4090 = vsel %vm439, %v3976, 0.0
  %v4091 = vadd.f32 %v4089, %v4090
  %v4092 = vsel %vm439, %v3977, 0.0
  %v4093 = vadd.f32 %v4091, %v4092
  %v4094 = vsel %vm439, %v3978, 0.0
  %v4095 = vadd.f32 %v4093, %v4094
  %v4096 = vsel %vm439, %v3979, 0.0
  %v4097 = vadd.f32 %v4095, %v4096
  %v4098 = vsel %vm439, %v3980, 0.0
  %v4099 = vadd.f32 %v4097, %v4098
  %v4100 = vsel %vm439, %v3981, 0.0
  %v4101 = vadd.f32 %v4099, %v4100
  %v4102 = vsel %vm439, %v3982, 0.0
  %v4103 = vadd.f32 %v4101, %v4102
  %v4104 = vsel %vm439, %v3983, 0.0
  %v4105 = vadd.f32 %v4103, %v4104
  %v4106 = vsel %vm439, %v3984, 0.0
  %v4107 = vadd.f32 %v4105, %v4106
  %v4108 = vsel %vm439, %v3985, 0.0
  %v4109 = vadd.f32 %v4107, %v4108
  %v4110 = vsel %vm439, %v3986, 0.0
  %v4111 = vadd.f32 %v4109, %v4110
  %v4112 = vsel %vm439, %v3987, 0.0
  %v4113 = vadd.f32 %v4111, %v4112
  %v4114 = vsel %vm439, %v3988, 0.0
  %v4115 = vadd.f32 %v4113, %v4114
  %v4116 = vrot.slane %v4115, 4
  %v4117 = vadd.f32 %v4115, %v4116
  %v4118 = vrot.slane %v4117, 2
  %v4119 = vadd.f32 %v4117, %v4118
  %v4120 = vrot.slane %v4119, 1
  %v4121 = vadd.f32 %v4119, %v4120
  %v4122 = vmul.f32 %v3925, %v3925
  %v4123 = vmul.f32 %v3926, %v3926
  %v4124 = vmul.f32 %v3927, %v3927
  %v4125 = vmul.f32 %v3928, %v3928
  %v4126 = vmul.f32 %v3929, %v3929
  %v4127 = vmul.f32 %v3930, %v3930
  %v4128 = vmul.f32 %v3931, %v3931
  %v4129 = vmul.f32 %v3932, %v3932
  %v4130 = vmul.f32 %v3933, %v3933
  %v4131 = vmul.f32 %v3934, %v3934
  %v4132 = vmul.f32 %v3935, %v3935
  %v4133 = vmul.f32 %v3936, %v3936
  %v4134 = vmul.f32 %v3937, %v3937
  %v4135 = vmul.f32 %v3938, %v3938
  %v4136 = vmul.f32 %v3939, %v3939
  %v4137 = vmul.f32 %v3940, %v3940
  %v4138 = vmul.f32 %v3941, %v3941
  %v4139 = vmul.f32 %v3942, %v3942
  %v4140 = vmul.f32 %v3943, %v3943
  %v4141 = vmul.f32 %v3944, %v3944
  %v4142 = vmul.f32 %v3945, %v3945
  %v4143 = vmul.f32 %v3946, %v3946
  %v4144 = vmul.f32 %v3947, %v3947
  %v4145 = vmul.f32 %v3948, %v3948
  %v4146 = vmul.f32 %v3949, %v3949
  %v4147 = vmul.f32 %v3950, %v3950
  %v4148 = vmul.f32 %v3951, %v3951
  %v4149 = vmul.f32 %v3952, %v3952
  %v4150 = vmul.f32 %v3953, %v3953
  %v4151 = vmul.f32 %v3954, %v3954
  %v4152 = vmul.f32 %v3955, %v3955
  %v4153 = vmul.f32 %v3956, %v3956
  %v4154 = vmul.f32 %v3957, %v3957
  %v4155 = vmul.f32 %v3958, %v3958
  %v4156 = vmul.f32 %v3959, %v3959
  %v4157 = vmul.f32 %v3960, %v3960
  %v4158 = vmul.f32 %v3961, %v3961
  %v4159 = vmul.f32 %v3962, %v3962
  %v4160 = vmul.f32 %v3963, %v3963
  %v4161 = vmul.f32 %v3964, %v3964
  %v4162 = vmul.f32 %v3965, %v3965
  %v4163 = vmul.f32 %v3966, %v3966
  %v4164 = vmul.f32 %v3967, %v3967
  %v4165 = vmul.f32 %v3968, %v3968
  %v4166 = vmul.f32 %v3969, %v3969
  %v4167 = vmul.f32 %v3970, %v3970
  %v4168 = vmul.f32 %v3971, %v3971
  %v4169 = vmul.f32 %v3972, %v3972
  %v4170 = vmul.f32 %v3973, %v3973
  %v4171 = vmul.f32 %v3974, %v3974
  %v4172 = vmul.f32 %v3975, %v3975
  %v4173 = vmul.f32 %v3976, %v3976
  %v4174 = vmul.f32 %v3977, %v3977
  %v4175 = vmul.f32 %v3978, %v3978
  %v4176 = vmul.f32 %v3979, %v3979
  %v4177 = vmul.f32 %v3980, %v3980
  %v4178 = vmul.f32 %v3981, %v3981
  %v4179 = vmul.f32 %v3982, %v3982
  %v4180 = vmul.f32 %v3983, %v3983
  %v4181 = vmul.f32 %v3984, %v3984
  %v4182 = vmul.f32 %v3985, %v3985
  %v4183 = vmul.f32 %v3986, %v3986
  %v4184 = vmul.f32 %v3987, %v3987
  %v4185 = vmul.f32 %v3988, %v3988
  %v4186 = vsel %vm439, %v4122, 0.0
  %v4187 = vsel %vm439, %v4123, 0.0
  %v4188 = vadd.f32 %v4186, %v4187
  %v4189 = vsel %vm439, %v4124, 0.0
  %v4190 = vadd.f32 %v4188, %v4189
  %v4191 = vsel %vm439, %v4125, 0.0
  %v4192 = vadd.f32 %v4190, %v4191
  %v4193 = vsel %vm439, %v4126, 0.0
  %v4194 = vadd.f32 %v4192, %v4193
  %v4195 = vsel %vm439, %v4127, 0.0
  %v4196 = vadd.f32 %v4194, %v4195
  %v4197 = vsel %vm439, %v4128, 0.0
  %v4198 = vadd.f32 %v4196, %v4197
  %v4199 = vsel %vm439, %v4129, 0.0
  %v4200 = vadd.f32 %v4198, %v4199
  %v4201 = vsel %vm439, %v4130, 0.0
  %v4202 = vadd.f32 %v4200, %v4201
  %v4203 = vsel %vm439, %v4131, 0.0
  %v4204 = vadd.f32 %v4202, %v4203
  %v4205 = vsel %vm439, %v4132, 0.0
  %v4206 = vadd.f32 %v4204, %v4205
  %v4207 = vsel %vm439, %v4133, 0.0
  %v4208 = vadd.f32 %v4206, %v4207
  %v4209 = vsel %vm439, %v4134, 0.0
  %v4210 = vadd.f32 %v4208, %v4209
  %v4211 = vsel %vm439, %v4135, 0.0
  %v4212 = vadd.f32 %v4210, %v4211
  %v4213 = vsel %vm439, %v4136, 0.0
  %v4214 = vadd.f32 %v4212, %v4213
  %v4215 = vsel %vm439, %v4137, 0.0
  %v4216 = vadd.f32 %v4214, %v4215
  %v4217 = vsel %vm439, %v4138, 0.0
  %v4218 = vadd.f32 %v4216, %v4217
  %v4219 = vsel %vm439, %v4139, 0.0
  %v4220 = vadd.f32 %v4218, %v4219
  %v4221 = vsel %vm439, %v4140, 0.0
  %v4222 = vadd.f32 %v4220, %v4221
  %v4223 = vsel %vm439, %v4141, 0.0
  %v4224 = vadd.f32 %v4222, %v4223
  %v4225 = vsel %vm439, %v4142, 0.0
  %v4226 = vadd.f32 %v4224, %v4225
  %v4227 = vsel %vm439, %v4143, 0.0
  %v4228 = vadd.f32 %v4226, %v4227
  %v4229 = vsel %vm439, %v4144, 0.0
  %v4230 = vadd.f32 %v4228, %v4229
  %v4231 = vsel %vm439, %v4145, 0.0
  %v4232 = vadd.f32 %v4230, %v4231
  %v4233 = vsel %vm439, %v4146, 0.0
  %v4234 = vadd.f32 %v4232, %v4233
  %v4235 = vsel %vm439, %v4147, 0.0
  %v4236 = vadd.f32 %v4234, %v4235
  %v4237 = vsel %vm439, %v4148, 0.0
  %v4238 = vadd.f32 %v4236, %v4237
  %v4239 = vsel %vm439, %v4149, 0.0
  %v4240 = vadd.f32 %v4238, %v4239
  %v4241 = vsel %vm439, %v4150, 0.0
  %v4242 = vadd.f32 %v4240, %v4241
  %v4243 = vsel %vm439, %v4151, 0.0
  %v4244 = vadd.f32 %v4242, %v4243
  %v4245 = vsel %vm439, %v4152, 0.0
  %v4246 = vadd.f32 %v4244, %v4245
  %v4247 = vsel %vm439, %v4153, 0.0
  %v4248 = vadd.f32 %v4246, %v4247
  %v4249 = vsel %vm439, %v4154, 0.0
  %v4250 = vadd.f32 %v4248, %v4249
  %v4251 = vsel %vm439, %v4155, 0.0
  %v4252 = vadd.f32 %v4250, %v4251
  %v4253 = vsel %vm439, %v4156, 0.0
  %v4254 = vadd.f32 %v4252, %v4253
  %v4255 = vsel %vm439, %v4157, 0.0
  %v4256 = vadd.f32 %v4254, %v4255
  %v4257 = vsel %vm439, %v4158, 0.0
  %v4258 = vadd.f32 %v4256, %v4257
  %v4259 = vsel %vm439, %v4159, 0.0
  %v4260 = vadd.f32 %v4258, %v4259
  %v4261 = vsel %vm439, %v4160, 0.0
  %v4262 = vadd.f32 %v4260, %v4261
  %v4263 = vsel %vm439, %v4161, 0.0
  %v4264 = vadd.f32 %v4262, %v4263
  %v4265 = vsel %vm439, %v4162, 0.0
  %v4266 = vadd.f32 %v4264, %v4265
  %v4267 = vsel %vm439, %v4163, 0.0
  %v4268 = vadd.f32 %v4266, %v4267
  %v4269 = vsel %vm439, %v4164, 0.0
  %v4270 = vadd.f32 %v4268, %v4269
  %v4271 = vsel %vm439, %v4165, 0.0
  %v4272 = vadd.f32 %v4270, %v4271
  %v4273 = vsel %vm439, %v4166, 0.0
  %v4274 = vadd.f32 %v4272, %v4273
  %v4275 = vsel %vm439, %v4167, 0.0
  %v4276 = vadd.f32 %v4274, %v4275
  %v4277 = vsel %vm439, %v4168, 0.0
  %v4278 = vadd.f32 %v4276, %v4277
  %v4279 = vsel %vm439, %v4169, 0.0
  %v4280 = vadd.f32 %v4278, %v4279
  %v4281 = vsel %vm439, %v4170, 0.0
  %v4282 = vadd.f32 %v4280, %v4281
  %v4283 = vsel %vm439, %v4171, 0.0
  %v4284 = vadd.f32 %v4282, %v4283
  %v4285 = vsel %vm439, %v4172, 0.0
  %v4286 = vadd.f32 %v4284, %v4285
  %v4287 = vsel %vm439, %v4173, 0.0
  %v4288 = vadd.f32 %v4286, %v4287
  %v4289 = vsel %vm439, %v4174, 0.0
  %v4290 = vadd.f32 %v4288, %v4289
  %v4291 = vsel %vm439, %v4175, 0.0
  %v4292 = vadd.f32 %v4290, %v4291
  %v4293 = vsel %vm439, %v4176, 0.0
  %v4294 = vadd.f32 %v4292, %v4293
  %v4295 = vsel %vm439, %v4177, 0.0
  %v4296 = vadd.f32 %v4294, %v4295
  %v4297 = vsel %vm439, %v4178, 0.0
  %v4298 = vadd.f32 %v4296, %v4297
  %v4299 = vsel %vm439, %v4179, 0.0
  %v4300 = vadd.f32 %v4298, %v4299
  %v4301 = vsel %vm439, %v4180, 0.0
  %v4302 = vadd.f32 %v4300, %v4301
  %v4303 = vsel %vm439, %v4181, 0.0
  %v4304 = vadd.f32 %v4302, %v4303
  %v4305 = vsel %vm439, %v4182, 0.0
  %v4306 = vadd.f32 %v4304, %v4305
  %v4307 = vsel %vm439, %v4183, 0.0
  %v4308 = vadd.f32 %v4306, %v4307
  %v4309 = vsel %vm439, %v4184, 0.0
  %v4310 = vadd.f32 %v4308, %v4309
  %v4311 = vsel %vm439, %v4185, 0.0
  %v4312 = vadd.f32 %v4310, %v4311
  %v4313 = vrot.slane %v4312, 4
  %v4314 = vadd.f32 %v4312, %v4313
  %v4315 = vrot.slane %v4314, 2
  %v4316 = vadd.f32 %v4314, %v4315
  %v4317 = vrot.slane %v4316, 1
  %v4318 = vadd.f32 %v4316, %v4317
  %v4319 = vmul.f32 %v4121, 0.001953125
  %v4320 = vmul.f32 %v4318, 0.001953125
  %v4321 = vmul.f32 %v4319, %v4319
  %v4322 = vsub.f32 %v4320, %v4321
  %v4323 = vld [vmem:[%s2] sm:$0x1]
  %v4324 = vadd.f32 %v4322, 0.8
  %v4325 = vrsqrt.pop %v4324
  %v4326 = vmul.f32 %v4325, %v4324
  %v4327 = vmul.f32 %v4326, %v4325
  %v4328 = vmul.f32 0.5, %v4327
  %v4329 = vsub.f32 1.5, %v4328
  %v4330 = vmul.f32 %v4325, %v4329
  %vm4331 = vweird.f32 %v4324
  %vm4332 = vweird.f32 %v4325
  %vm4333 = vmor %vm4331, %vm4332
  %v4334 = vsel %vm4333, %v4325, %v4330
  %v4335 = vmul.f32 %v4323, %v4334
  %v4336 = vld [vmem:[%s3] sm:$0x1]
  %v4337 = vmul.f32 %v4319, %v4335
  %v4338 = vsub.f32 %v4336, %v4337
  %v4340 = vperm.slane %v4335, 0
  %v4342 = vmul.f32 %v3925, %v4340
  %v4343 = vmul.f32 %v3926, %v4340
  %v4344 = vmul.f32 %v3927, %v4340
  %v4345 = vmul.f32 %v3928, %v4340
  %v4346 = vmul.f32 %v3929, %v4340
  %v4347 = vmul.f32 %v3930, %v4340
  %v4348 = vmul.f32 %v3931, %v4340
  %v4349 = vmul.f32 %v3932, %v4340
  %v4350 = vmul.f32 %v3933, %v4340
  %v4351 = vmul.f32 %v3934, %v4340
  %v4352 = vmul.f32 %v3935, %v4340
  %v4353 = vmul.f32 %v3936, %v4340
  %v4354 = vmul.f32 %v3937, %v4340
  %v4355 = vmul.f32 %v3938, %v4340
  %v4356 = vmul.f32 %v3939, %v4340
  %v4357 = vmul.f32 %v3940, %v4340
  %v4358 = vmul.f32 %v3941, %v4340
  %v4359 = vmul.f32 %v3942, %v4340
  %v4360 = vmul.f32 %v3943, %v4340
  %v4361 = vmul.f32 %v3944, %v4340
  %v4362 = vmul.f32 %v3945, %v4340
  %v4363 = vmul.f32 %v3946, %v4340
  %v4364 = vmul.f32 %v3947, %v4340
  %v4365 = vmul.f32 %v3948, %v4340
  %v4366 = vmul.f32 %v3949, %v4340
  %v4367 = vmul.f32 %v3950, %v4340
  %v4368 = vmul.f32 %v3951, %v4340
  %v4369 = vmul.f32 %v3952, %v4340
  %v4370 = vmul.f32 %v3953, %v4340
  %v4371 = vmul.f32 %v3954, %v4340
  %v4372 = vmul.f32 %v3955, %v4340
  %v4373 = vmul.f32 %v3956, %v4340
  %v4374 = vmul.f32 %v3957, %v4340
  %v4375 = vmul.f32 %v3958, %v4340
  %v4376 = vmul.f32 %v3959, %v4340
  %v4377 = vmul.f32 %v3960, %v4340
  %v4378 = vmul.f32 %v3961, %v4340
  %v4379 = vmul.f32 %v3962, %v4340
  %v4380 = vmul.f32 %v3963, %v4340
  %v4381 = vmul.f32 %v3964, %v4340
  %v4382 = vmul.f32 %v3965, %v4340
  %v4383 = vmul.f32 %v3966, %v4340
  %v4384 = vmul.f32 %v3967, %v4340
  %v4385 = vmul.f32 %v3968, %v4340
  %v4386 = vmul.f32 %v3969, %v4340
  %v4387 = vmul.f32 %v3970, %v4340
  %v4388 = vmul.f32 %v3971, %v4340
  %v4389 = vmul.f32 %v3972, %v4340
  %v4390 = vmul.f32 %v3973, %v4340
  %v4391 = vmul.f32 %v3974, %v4340
  %v4392 = vmul.f32 %v3975, %v4340
  %v4393 = vmul.f32 %v3976, %v4340
  %v4394 = vmul.f32 %v3977, %v4340
  %v4395 = vmul.f32 %v3978, %v4340
  %v4396 = vmul.f32 %v3979, %v4340
  %v4397 = vmul.f32 %v3980, %v4340
  %v4398 = vmul.f32 %v3981, %v4340
  %v4399 = vmul.f32 %v3982, %v4340
  %v4400 = vmul.f32 %v3983, %v4340
  %v4401 = vmul.f32 %v3984, %v4340
  %v4402 = vmul.f32 %v3985, %v4340
  %v4403 = vmul.f32 %v3986, %v4340
  %v4404 = vmul.f32 %v3987, %v4340
  %v4405 = vmul.f32 %v3988, %v4340
  %v4407 = vperm.slane %v4338, 0
  %v4409 = vadd.f32 %v4342, %v4407
  %v4410 = vadd.f32 %v4343, %v4407
  %v4411 = vadd.f32 %v4344, %v4407
  %v4412 = vadd.f32 %v4345, %v4407
  %v4413 = vadd.f32 %v4346, %v4407
  %v4414 = vadd.f32 %v4347, %v4407
  %v4415 = vadd.f32 %v4348, %v4407
  %v4416 = vadd.f32 %v4349, %v4407
  %v4417 = vadd.f32 %v4350, %v4407
  %v4418 = vadd.f32 %v4351, %v4407
  %v4419 = vadd.f32 %v4352, %v4407
  %v4420 = vadd.f32 %v4353, %v4407
  %v4421 = vadd.f32 %v4354, %v4407
  %v4422 = vadd.f32 %v4355, %v4407
  %v4423 = vadd.f32 %v4356, %v4407
  %v4424 = vadd.f32 %v4357, %v4407
  %v4425 = vadd.f32 %v4358, %v4407
  %v4426 = vadd.f32 %v4359, %v4407
  %v4427 = vadd.f32 %v4360, %v4407
  %v4428 = vadd.f32 %v4361, %v4407
  %v4429 = vadd.f32 %v4362, %v4407
  %v4430 = vadd.f32 %v4363, %v4407
  %v4431 = vadd.f32 %v4364, %v4407
  %v4432 = vadd.f32 %v4365, %v4407
  %v4433 = vadd.f32 %v4366, %v4407
  %v4434 = vadd.f32 %v4367, %v4407
  %v4435 = vadd.f32 %v4368, %v4407
  %v4436 = vadd.f32 %v4369, %v4407
  %v4437 = vadd.f32 %v4370, %v4407
  %v4438 = vadd.f32 %v4371, %v4407
  %v4439 = vadd.f32 %v4372, %v4407
  %v4440 = vadd.f32 %v4373, %v4407
  %v4441 = vadd.f32 %v4374, %v4407
  %v4442 = vadd.f32 %v4375, %v4407
  %v4443 = vadd.f32 %v4376, %v4407
  %v4444 = vadd.f32 %v4377, %v4407
  %v4445 = vadd.f32 %v4378, %v4407
  %v4446 = vadd.f32 %v4379, %v4407
  %v4447 = vadd.f32 %v4380, %v4407
  %v4448 = vadd.f32 %v4381, %v4407
  %v4449 = vadd.f32 %v4382, %v4407
  %v4450 = vadd.f32 %v4383, %v4407
  %v4451 = vadd.f32 %v4384, %v4407
  %v4452 = vadd.f32 %v4385, %v4407
  %v4453 = vadd.f32 %v4386, %v4407
  %v4454 = vadd.f32 %v4387, %v4407
  %v4455 = vadd.f32 %v4388, %v4407
  %v4456 = vadd.f32 %v4389, %v4407
  %v4457 = vadd.f32 %v4390, %v4407
  %v4458 = vadd.f32 %v4391, %v4407
  %v4459 = vadd.f32 %v4392, %v4407
  %v4460 = vadd.f32 %v4393, %v4407
  %v4461 = vadd.f32 %v4394, %v4407
  %v4462 = vadd.f32 %v4395, %v4407
  %v4463 = vadd.f32 %v4396, %v4407
  %v4464 = vadd.f32 %v4397, %v4407
  %v4465 = vadd.f32 %v4398, %v4407
  %v4466 = vadd.f32 %v4399, %v4407
  %v4467 = vadd.f32 %v4400, %v4407
  %v4468 = vadd.f32 %v4401, %v4407
  %v4469 = vadd.f32 %v4402, %v4407
  %v4470 = vadd.f32 %v4403, %v4407
  %v4471 = vadd.f32 %v4404, %v4407
  %v4472 = vadd.f32 %v4405, %v4407
  %s4473 = sld [smem:[#allocation3]]
  %vm4474 = vcmp.gt.f32.partialorder %v4409, 0.0
  %vm4475 = vcmp.gt.f32.partialorder %v4410, 0.0
  %vm4476 = vcmp.gt.f32.partialorder %v4411, 0.0
  %vm4477 = vcmp.gt.f32.partialorder %v4412, 0.0
  %vm4478 = vcmp.gt.f32.partialorder %v4413, 0.0
  %vm4479 = vcmp.gt.f32.partialorder %v4414, 0.0
  %vm4480 = vcmp.gt.f32.partialorder %v4415, 0.0
  %vm4481 = vcmp.gt.f32.partialorder %v4416, 0.0
  %vm4482 = vcmp.gt.f32.partialorder %v4417, 0.0
  %vm4483 = vcmp.gt.f32.partialorder %v4418, 0.0
  %vm4484 = vcmp.gt.f32.partialorder %v4419, 0.0
  %vm4485 = vcmp.gt.f32.partialorder %v4420, 0.0
  %vm4486 = vcmp.gt.f32.partialorder %v4421, 0.0
  %vm4487 = vcmp.gt.f32.partialorder %v4422, 0.0
  %vm4488 = vcmp.gt.f32.partialorder %v4423, 0.0
  %vm4489 = vcmp.gt.f32.partialorder %v4424, 0.0
  %vm4490 = vcmp.gt.f32.partialorder %v4425, 0.0
  %vm4491 = vcmp.gt.f32.partialorder %v4426, 0.0
  %vm4492 = vcmp.gt.f32.partialorder %v4427, 0.0
  %vm4493 = vcmp.gt.f32.partialorder %v4428, 0.0
  %vm4494 = vcmp.gt.f32.partialorder %v4429, 0.0
  %vm4495 = vcmp.gt.f32.partialorder %v4430, 0.0
  %vm4496 = vcmp.gt.f32.partialorder %v4431, 0.0
  %vm4497 = vcmp.gt.f32.partialorder %v4432, 0.0
  %vm4498 = vcmp.gt.f32.partialorder %v4433, 0.0
  %vm4499 = vcmp.gt.f32.partialorder %v4434, 0.0
  %vm4500 = vcmp.gt.f32.partialorder %v4435, 0.0
  %vm4501 = vcmp.gt.f32.partialorder %v4436, 0.0
  %vm4502 = vcmp.gt.f32.partialorder %v4437, 0.0
  %vm4503 = vcmp.gt.f32.partialorder %v4438, 0.0
  %vm4504 = vcmp.gt.f32.partialorder %v4439, 0.0
  %vm4505 = vcmp.gt.f32.partialorder %v4440, 0.0
  %vm4506 = vcmp.gt.f32.partialorder %v4441, 0.0
  %vm4507 = vcmp.gt.f32.partialorder %v4442, 0.0
  %vm4508 = vcmp.gt.f32.partialorder %v4443, 0.0
  %vm4509 = vcmp.gt.f32.partialorder %v4444, 0.0
  %vm4510 = vcmp.gt.f32.partialorder %v4445, 0.0
  %vm4511 = vcmp.gt.f32.partialorder %v4446, 0.0
  %vm4512 = vcmp.gt.f32.partialorder %v4447, 0.0
  %vm4513 = vcmp.gt.f32.partialorder %v4448, 0.0
  %vm4514 = vcmp.gt.f32.partialorder %v4449, 0.0
  %vm4515 = vcmp.gt.f32.partialorder %v4450, 0.0
  %vm4516 = vcmp.gt.f32.partialorder %v4451, 0.0
  %vm4517 = vcmp.gt.f32.partialorder %v4452, 0.0
  %vm4518 = vcmp.gt.f32.partialorder %v4453, 0.0
  %vm4519 = vcmp.gt.f32.partialorder %v4454, 0.0
  %vm4520 = vcmp.gt.f32.partialorder %v4455, 0.0
  %vm4521 = vcmp.gt.f32.partialorder %v4456, 0.0
  %vm4522 = vcmp.gt.f32.partialorder %v4457, 0.0
  %vm4523 = vcmp.gt.f32.partialorder %v4458, 0.0
  %vm4524 = vcmp.gt.f32.partialorder %v4459, 0.0
  %vm4525 = vcmp.gt.f32.partialorder %v4460, 0.0
  %vm4526 = vcmp.gt.f32.partialorder %v4461, 0.0
  %vm4527 = vcmp.gt.f32.partialorder %v4462, 0.0
  %vm4528 = vcmp.gt.f32.partialorder %v4463, 0.0
  %vm4529 = vcmp.gt.f32.partialorder %v4464, 0.0
  %vm4530 = vcmp.gt.f32.partialorder %v4465, 0.0
  %vm4531 = vcmp.gt.f32.partialorder %v4466, 0.0
  %vm4532 = vcmp.gt.f32.partialorder %v4467, 0.0
  %vm4533 = vcmp.gt.f32.partialorder %v4468, 0.0
  %vm4534 = vcmp.gt.f32.partialorder %v4469, 0.0
  %vm4535 = vcmp.gt.f32.partialorder %v4470, 0.0
  %vm4536 = vcmp.gt.f32.partialorder %v4471, 0.0
  %vm4537 = vcmp.gt.f32.partialorder %v4472, 0.0
  %v4538 = vstv %s4473
  %v4539 = vmul.f32 %v4538, %v4409
  %v4540 = vmul.f32 %v4538, %v4410
  %v4541 = vmul.f32 %v4538, %v4411
  %v4542 = vmul.f32 %v4538, %v4412
  %v4543 = vmul.f32 %v4538, %v4413
  %v4544 = vmul.f32 %v4538, %v4414
  %v4545 = vmul.f32 %v4538, %v4415
  %v4546 = vmul.f32 %v4538, %v4416
  %v4547 = vmul.f32 %v4538, %v4417
  %v4548 = vmul.f32 %v4538, %v4418
  %v4549 = vmul.f32 %v4538, %v4419
  %v4550 = vmul.f32 %v4538, %v4420
  %v4551 = vmul.f32 %v4538, %v4421
  %v4552 = vmul.f32 %v4538, %v4422
  %v4553 = vmul.f32 %v4538, %v4423
  %v4554 = vmul.f32 %v4538, %v4424
  %v4555 = vmul.f32 %v4538, %v4425
  %v4556 = vmul.f32 %v4538, %v4426
  %v4557 = vmul.f32 %v4538, %v4427
  %v4558 = vmul.f32 %v4538, %v4428
  %v4559 = vmul.f32 %v4538, %v4429
  %v4560 = vmul.f32 %v4538, %v4430
  %v4561 = vmul.f32 %v4538, %v4431
  %v4562 = vmul.f32 %v4538, %v4432
  %v4563 = vmul.f32 %v4538, %v4433
  %v4564 = vmul.f32 %v4538, %v4434
  %v4565 = vmul.f32 %v4538, %v4435
  %v4566 = vmul.f32 %v4538, %v4436
  %v4567 = vmul.f32 %v4538, %v4437
  %v4568 = vmul.f32 %v4538, %v4438
  %v4569 = vmul.f32 %v4538, %v4439
  %v4570 = vmul.f32 %v4538, %v4440
  %v4571 = vmul.f32 %v4538, %v4441
  %v4572 = vmul.f32 %v4538, %v4442
  %v4573 = vmul.f32 %v4538, %v4443
  %v4574 = vmul.f32 %v4538, %v4444
  %v4575 = vmul.f32 %v4538, %v4445
  %v4576 = vmul.f32 %v4538, %v4446
  %v4577 = vmul.f32 %v4538, %v4447
  %v4578 = vmul.f32 %v4538, %v4448
  %v4579 = vmul.f32 %v4538, %v4449
  %v4580 = vmul.f32 %v4538, %v4450
  %v4581 = vmul.f32 %v4538, %v4451
  %v4582 = vmul.f32 %v4538, %v4452
  %v4583 = vmul.f32 %v4538, %v4453
  %v4584 = vmul.f32 %v4538, %v4454
  %v4585 = vmul.f32 %v4538, %v4455
  %v4586 = vmul.f32 %v4538, %v4456
  %v4587 = vmul.f32 %v4538, %v4457
  %v4588 = vmul.f32 %v4538, %v4458
  %v4589 = vmul.f32 %v4538, %v4459
  %v4590 = vmul.f32 %v4538, %v4460
  %v4591 = vmul.f32 %v4538, %v4461
  %v4592 = vmul.f32 %v4538, %v4462
  %v4593 = vmul.f32 %v4538, %v4463
  %v4594 = vmul.f32 %v4538, %v4464
  %v4595 = vmul.f32 %v4538, %v4465
  %v4596 = vmul.f32 %v4538, %v4466
  %v4597 = vmul.f32 %v4538, %v4467
  %v4598 = vmul.f32 %v4538, %v4468
  %v4599 = vmul.f32 %v4538, %v4469
  %v4600 = vmul.f32 %v4538, %v4470
  %v4601 = vmul.f32 %v4538, %v4471
  %v4602 = vmul.f32 %v4538, %v4472
  %v4603 = vsel %vm4474, %v4409, %v4539
  %v4604 = vsel %vm4475, %v4410, %v4540
  %v4605 = vsel %vm4476, %v4411, %v4541
  %v4606 = vsel %vm4477, %v4412, %v4542
  %v4607 = vsel %vm4478, %v4413, %v4543
  %v4608 = vsel %vm4479, %v4414, %v4544
  %v4609 = vsel %vm4480, %v4415, %v4545
  %v4610 = vsel %vm4481, %v4416, %v4546
  %v4611 = vsel %vm4482, %v4417, %v4547
  %v4612 = vsel %vm4483, %v4418, %v4548
  %v4613 = vsel %vm4484, %v4419, %v4549
  %v4614 = vsel %vm4485, %v4420, %v4550
  %v4615 = vsel %vm4486, %v4421, %v4551
  %v4616 = vsel %vm4487, %v4422, %v4552
  %v4617 = vsel %vm4488, %v4423, %v4553
  %v4618 = vsel %vm4489, %v4424, %v4554
  %v4619 = vsel %vm4490, %v4425, %v4555
  %v4620 = vsel %vm4491, %v4426, %v4556
  %v4621 = vsel %vm4492, %v4427, %v4557
  %v4622 = vsel %vm4493, %v4428, %v4558
  %v4623 = vsel %vm4494, %v4429, %v4559
  %v4624 = vsel %vm4495, %v4430, %v4560
  %v4625 = vsel %vm4496, %v4431, %v4561
  %v4626 = vsel %vm4497, %v4432, %v4562
  %v4627 = vsel %vm4498, %v4433, %v4563
  %v4628 = vsel %vm4499, %v4434, %v4564
  %v4629 = vsel %vm4500, %v4435, %v4565
  %v4630 = vsel %vm4501, %v4436, %v4566
  %v4631 = vsel %vm4502, %v4437, %v4567
  %v4632 = vsel %vm4503, %v4438, %v4568
  %v4633 = vsel %vm4504, %v4439, %v4569
  %v4634 = vsel %vm4505, %v4440, %v4570
  %v4635 = vsel %vm4506, %v4441, %v4571
  %v4636 = vsel %vm4507, %v4442, %v4572
  %v4637 = vsel %vm4508, %v4443, %v4573
  %v4638 = vsel %vm4509, %v4444, %v4574
  %v4639 = vsel %vm4510, %v4445, %v4575
  %v4640 = vsel %vm4511, %v4446, %v4576
  %v4641 = vsel %vm4512, %v4447, %v4577
  %v4642 = vsel %vm4513, %v4448, %v4578
  %v4643 = vsel %vm4514, %v4449, %v4579
  %v4644 = vsel %vm4515, %v4450, %v4580
  %v4645 = vsel %vm4516, %v4451, %v4581
  %v4646 = vsel %vm4517, %v4452, %v4582
  %v4647 = vsel %vm4518, %v4453, %v4583
  %v4648 = vsel %vm4519, %v4454, %v4584
  %v4649 = vsel %vm4520, %v4455, %v4585
  %v4650 = vsel %vm4521, %v4456, %v4586
  %v4651 = vsel %vm4522, %v4457, %v4587
  %v4652 = vsel %vm4523, %v4458, %v4588
  %v4653 = vsel %vm4524, %v4459, %v4589
  %v4654 = vsel %vm4525, %v4460, %v4590
  %v4655 = vsel %vm4526, %v4461, %v4591
  %v4656 = vsel %vm4527, %v4462, %v4592
  %v4657 = vsel %vm4528, %v4463, %v4593
  %v4658 = vsel %vm4529, %v4464, %v4594
  %v4659 = vsel %vm4530, %v4465, %v4595
  %v4660 = vsel %vm4531, %v4466, %v4596
  %v4661 = vsel %vm4532, %v4467, %v4597
  %v4662 = vsel %vm4533, %v4468, %v4598
  %v4663 = vsel %vm4534, %v4469, %v4599
  %v4664 = vsel %vm4535, %v4470, %v4600
  %v4665 = vsel %vm4536, %v4471, %v4601
  %v4666 = vsel %vm4537, %v4472, %v4602
  %v4667 = vpack.c.bf16 %v4603, %v4603
  %v4668 = vpack.c.bf16 %v4604, %v4604
  %v4669 = vpack.c.bf16 %v4605, %v4605
  %v4670 = vpack.c.bf16 %v4606, %v4606
  %v4671 = vpack.c.bf16 %v4607, %v4607
  %v4672 = vpack.c.bf16 %v4608, %v4608
  %v4673 = vpack.c.bf16 %v4609, %v4609
  %v4674 = vpack.c.bf16 %v4610, %v4610
  %v4675 = vpack.c.bf16 %v4611, %v4611
  %v4676 = vpack.c.bf16 %v4612, %v4612
  %v4677 = vpack.c.bf16 %v4613, %v4613
  %v4678 = vpack.c.bf16 %v4614, %v4614
  %v4679 = vpack.c.bf16 %v4615, %v4615
  %v4680 = vpack.c.bf16 %v4616, %v4616
  %v4681 = vpack.c.bf16 %v4617, %v4617
  %v4682 = vpack.c.bf16 %v4618, %v4618
  %v4683 = vpack.c.bf16 %v4619, %v4619
  %v4684 = vpack.c.bf16 %v4620, %v4620
  %v4685 = vpack.c.bf16 %v4621, %v4621
  %v4686 = vpack.c.bf16 %v4622, %v4622
  %v4687 = vpack.c.bf16 %v4623, %v4623
  %v4688 = vpack.c.bf16 %v4624, %v4624
  %v4689 = vpack.c.bf16 %v4625, %v4625
  %v4690 = vpack.c.bf16 %v4626, %v4626
  %v4691 = vpack.c.bf16 %v4627, %v4627
  %v4692 = vpack.c.bf16 %v4628, %v4628
  %v4693 = vpack.c.bf16 %v4629, %v4629
  %v4694 = vpack.c.bf16 %v4630, %v4630
  %v4695 = vpack.c.bf16 %v4631, %v4631
  %v4696 = vpack.c.bf16 %v4632, %v4632
  %v4697 = vpack.c.bf16 %v4633, %v4633
  %v4698 = vpack.c.bf16 %v4634, %v4634
  %v4699 = vpack.c.bf16 %v4635, %v4635
  %v4700 = vpack.c.bf16 %v4636, %v4636
  %v4701 = vpack.c.bf16 %v4637, %v4637
  %v4702 = vpack.c.bf16 %v4638, %v4638
  %v4703 = vpack.c.bf16 %v4639, %v4639
  %v4704 = vpack.c.bf16 %v4640, %v4640
  %v4705 = vpack.c.bf16 %v4641, %v4641
  %v4706 = vpack.c.bf16 %v4642, %v4642
  %v4707 = vpack.c.bf16 %v4643, %v4643
  %v4708 = vpack.c.bf16 %v4644, %v4644
  %v4709 = vpack.c.bf16 %v4645, %v4645
  %v4710 = vpack.c.bf16 %v4646, %v4646
  %v4711 = vpack.c.bf16 %v4647, %v4647
  %v4712 = vpack.c.bf16 %v4648, %v4648
  %v4713 = vpack.c.bf16 %v4649, %v4649
  %v4714 = vpack.c.bf16 %v4650, %v4650
  %v4715 = vpack.c.bf16 %v4651, %v4651
  %v4716 = vpack.c.bf16 %v4652, %v4652
  %v4717 = vpack.c.bf16 %v4653, %v4653
  %v4718 = vpack.c.bf16 %v4654, %v4654
  %v4719 = vpack.c.bf16 %v4655, %v4655
  %v4720 = vpack.c.bf16 %v4656, %v4656
  %v4721 = vpack.c.bf16 %v4657, %v4657
  %v4722 = vpack.c.bf16 %v4658, %v4658
  %v4723 = vpack.c.bf16 %v4659, %v4659
  %v4724 = vpack.c.bf16 %v4660, %v4660
  %v4725 = vpack.c.bf16 %v4661, %v4661
  %v4726 = vpack.c.bf16 %v4662, %v4662
  %v4727 = vpack.c.bf16 %v4663, %v4663
  %v4728 = vpack.c.bf16 %v4664, %v4664
  %v4729 = vpack.c.bf16 %v4665, %v4665
  %v4730 = vpack.c.bf16 %v4666, %v4666
  %vm4731 = vsmask.f32 4368
  %vm4732 = vmor %vm48, %vm4731
  %v4734 = vshrl.u32 %v4667, 16
  %v4736 = vrot.slane %v4734, 7
  %v4737 = vshll.u32 %v4667, 16
  %v4739 = vor.u32 %v4736, %v4737
  %v4740 = vrot.slane %v4736, 4
  %v4742 = vshrl.u32 %v4668, 16
  %v4744 = vrot.slane %v4742, 7
  %v4745 = vshll.u32 %v4668, 16
  %v4747 = vor.u32 %v4744, %v4745
  %v4748 = vsel %vm4732, %v4740, %v4747
  %v4749 = vrot.slane %v4744, 4
  %v4751 = vshrl.u32 %v4669, 16
  %v4753 = vrot.slane %v4751, 7
  %v4754 = vshll.u32 %v4669, 16
  %v4756 = vor.u32 %v4753, %v4754
  %v4757 = vrot.slane %v4753, 4
  %v4759 = vshrl.u32 %v4670, 16
  %v4761 = vrot.slane %v4759, 7
  %v4762 = vshll.u32 %v4670, 16
  %v4764 = vor.u32 %v4761, %v4762
  %v4765 = vsel %vm4732, %v4757, %v4764
  %v4766 = vrot.slane %v4761, 4
  %v4768 = vshrl.u32 %v4671, 16
  %v4770 = vrot.slane %v4768, 7
  %v4771 = vshll.u32 %v4671, 16
  %v4773 = vor.u32 %v4770, %v4771
  %v4774 = vrot.slane %v4770, 4
  %v4776 = vshrl.u32 %v4672, 16
  %v4778 = vrot.slane %v4776, 7
  %v4779 = vshll.u32 %v4672, 16
  %v4781 = vor.u32 %v4778, %v4779
  %v4782 = vsel %vm4732, %v4774, %v4781
  %v4783 = vrot.slane %v4778, 4
  %v4785 = vshrl.u32 %v4673, 16
  %v4787 = vrot.slane %v4785, 7
  %v4788 = vshll.u32 %v4673, 16
  %v4790 = vor.u32 %v4787, %v4788
  %v4791 = vrot.slane %v4787, 4
  %v4793 = vshrl.u32 %v4674, 16
  %v4795 = vrot.slane %v4793, 7
  %v4796 = vshll.u32 %v4674, 16
  %v4798 = vor.u32 %v4795, %v4796
  %v4799 = vsel %vm4732, %v4791, %v4798
  %v4800 = vrot.slane %v4795, 4
  %v4802 = vshrl.u32 %v4675, 16
  %v4804 = vrot.slane %v4802, 7
  %v4805 = vshll.u32 %v4675, 16
  %v4807 = vor.u32 %v4804, %v4805
  %v4808 = vrot.slane %v4804, 4
  %v4810 = vshrl.u32 %v4676, 16
  %v4812 = vrot.slane %v4810, 7
  %v4813 = vshll.u32 %v4676, 16
  %v4815 = vor.u32 %v4812, %v4813
  %v4816 = vsel %vm4732, %v4808, %v4815
  %v4817 = vrot.slane %v4812, 4
  %v4819 = vshrl.u32 %v4677, 16
  %v4821 = vrot.slane %v4819, 7
  %v4822 = vshll.u32 %v4677, 16
  %v4824 = vor.u32 %v4821, %v4822
  %v4825 = vrot.slane %v4821, 4
  %v4827 = vshrl.u32 %v4678, 16
  %v4829 = vrot.slane %v4827, 7
  %v4830 = vshll.u32 %v4678, 16
  %v4832 = vor.u32 %v4829, %v4830
  %v4833 = vsel %vm4732, %v4825, %v4832
  %v4834 = vrot.slane %v4829, 4
  %v4836 = vshrl.u32 %v4679, 16
  %v4838 = vrot.slane %v4836, 7
  %v4839 = vshll.u32 %v4679, 16
  %v4841 = vor.u32 %v4838, %v4839
  %v4842 = vrot.slane %v4838, 4
  %v4844 = vshrl.u32 %v4680, 16
  %v4846 = vrot.slane %v4844, 7
  %v4847 = vshll.u32 %v4680, 16
  %v4849 = vor.u32 %v4846, %v4847
  %v4850 = vsel %vm4732, %v4842, %v4849
  %v4851 = vrot.slane %v4846, 4
  %v4853 = vshrl.u32 %v4681, 16
  %v4855 = vrot.slane %v4853, 7
  %v4856 = vshll.u32 %v4681, 16
  %v4858 = vor.u32 %v4855, %v4856
  %v4859 = vrot.slane %v4855, 4
  %v4861 = vshrl.u32 %v4682, 16
  %v4863 = vrot.slane %v4861, 7
  %v4864 = vshll.u32 %v4682, 16
  %v4866 = vor.u32 %v4863, %v4864
  %v4867 = vsel %vm4732, %v4859, %v4866
  %v4868 = vrot.slane %v4863, 4
  %v4870 = vshrl.u32 %v4683, 16
  %v4872 = vrot.slane %v4870, 7
  %v4873 = vshll.u32 %v4683, 16
  %v4875 = vor.u32 %v4872, %v4873
  %v4876 = vrot.slane %v4872, 4
  %v4878 = vshrl.u32 %v4684, 16
  %v4880 = vrot.slane %v4878, 7
  %v4881 = vshll.u32 %v4684, 16
  %v4883 = vor.u32 %v4880, %v4881
  %v4884 = vsel %vm4732, %v4876, %v4883
  %v4885 = vrot.slane %v4880, 4
  %v4887 = vshrl.u32 %v4685, 16
  %v4889 = vrot.slane %v4887, 7
  %v4890 = vshll.u32 %v4685, 16
  %v4892 = vor.u32 %v4889, %v4890
  %v4893 = vrot.slane %v4889, 4
  %v4895 = vshrl.u32 %v4686, 16
  %v4897 = vrot.slane %v4895, 7
  %v4898 = vshll.u32 %v4686, 16
  %v4900 = vor.u32 %v4897, %v4898
  %v4901 = vsel %vm4732, %v4893, %v4900
  %v4902 = vrot.slane %v4897, 4
  %v4904 = vshrl.u32 %v4687, 16
  %v4906 = vrot.slane %v4904, 7
  %v4907 = vshll.u32 %v4687, 16
  %v4909 = vor.u32 %v4906, %v4907
  %v4910 = vrot.slane %v4906, 4
  %v4912 = vshrl.u32 %v4688, 16
  %v4914 = vrot.slane %v4912, 7
  %v4915 = vshll.u32 %v4688, 16
  %v4917 = vor.u32 %v4914, %v4915
  %v4918 = vsel %vm4732, %v4910, %v4917
  %v4919 = vrot.slane %v4914, 4
  %v4921 = vshrl.u32 %v4689, 16
  %v4923 = vrot.slane %v4921, 7
  %v4924 = vshll.u32 %v4689, 16
  %v4926 = vor.u32 %v4923, %v4924
  %v4927 = vrot.slane %v4923, 4
  %v4929 = vshrl.u32 %v4690, 16
  %v4931 = vrot.slane %v4929, 7
  %v4932 = vshll.u32 %v4690, 16
  %v4934 = vor.u32 %v4931, %v4932
  %v4935 = vsel %vm4732, %v4927, %v4934
  %v4936 = vrot.slane %v4931, 4
  %v4938 = vshrl.u32 %v4691, 16
  %v4940 = vrot.slane %v4938, 7
  %v4941 = vshll.u32 %v4691, 16
  %v4943 = vor.u32 %v4940, %v4941
  %v4944 = vrot.slane %v4940, 4
  %v4946 = vshrl.u32 %v4692, 16
  %v4948 = vrot.slane %v4946, 7
  %v4949 = vshll.u32 %v4692, 16
  %v4951 = vor.u32 %v4948, %v4949
  %v4952 = vsel %vm4732, %v4944, %v4951
  %v4953 = vrot.slane %v4948, 4
  %v4955 = vshrl.u32 %v4693, 16
  %v4957 = vrot.slane %v4955, 7
  %v4958 = vshll.u32 %v4693, 16
  %v4960 = vor.u32 %v4957, %v4958
  %v4961 = vrot.slane %v4957, 4
  %v4963 = vshrl.u32 %v4694, 16
  %v4965 = vrot.slane %v4963, 7
  %v4966 = vshll.u32 %v4694, 16
  %v4968 = vor.u32 %v4965, %v4966
  %v4969 = vsel %vm4732, %v4961, %v4968
  %v4970 = vrot.slane %v4965, 4
  %v4972 = vshrl.u32 %v4695, 16
  %v4974 = vrot.slane %v4972, 7
  %v4975 = vshll.u32 %v4695, 16
  %v4977 = vor.u32 %v4974, %v4975
  %v4978 = vrot.slane %v4974, 4
  %v4980 = vshrl.u32 %v4696, 16
  %v4982 = vrot.slane %v4980, 7
  %v4983 = vshll.u32 %v4696, 16
  %v4985 = vor.u32 %v4982, %v4983
  %v4986 = vsel %vm4732, %v4978, %v4985
  %v4987 = vrot.slane %v4982, 4
  %v4989 = vshrl.u32 %v4697, 16
  %v4991 = vrot.slane %v4989, 7
  %v4992 = vshll.u32 %v4697, 16
  %v4994 = vor.u32 %v4991, %v4992
  %v4995 = vrot.slane %v4991, 4
  %v4997 = vshrl.u32 %v4698, 16
  %v4999 = vrot.slane %v4997, 7
  %v5000 = vshll.u32 %v4698, 16
  %v5002 = vor.u32 %v4999, %v5000
  %v5003 = vsel %vm4732, %v4995, %v5002
  %v5004 = vrot.slane %v4999, 4
  %v5006 = vshrl.u32 %v4699, 16
  %v5008 = vrot.slane %v5006, 7
  %v5009 = vshll.u32 %v4699, 16
  %v5011 = vor.u32 %v5008, %v5009
  %v5012 = vrot.slane %v5008, 4
  %v5014 = vshrl.u32 %v4700, 16
  %v5016 = vrot.slane %v5014, 7
  %v5017 = vshll.u32 %v4700, 16
  %v5019 = vor.u32 %v5016, %v5017
  %v5020 = vsel %vm4732, %v5012, %v5019
  %v5021 = vrot.slane %v5016, 4
  %v5023 = vshrl.u32 %v4701, 16
  %v5025 = vrot.slane %v5023, 7
  %v5026 = vshll.u32 %v4701, 16
  %v5028 = vor.u32 %v5025, %v5026
  %v5029 = vrot.slane %v5025, 4
  %v5031 = vshrl.u32 %v4702, 16
  %v5033 = vrot.slane %v5031, 7
  %v5034 = vshll.u32 %v4702, 16
  %v5036 = vor.u32 %v5033, %v5034
  %v5037 = vsel %vm4732, %v5029, %v5036
  %v5038 = vrot.slane %v5033, 4
  %v5040 = vshrl.u32 %v4703, 16
  %v5042 = vrot.slane %v5040, 7
  %v5043 = vshll.u32 %v4703, 16
  %v5045 = vor.u32 %v5042, %v5043
  %v5046 = vrot.slane %v5042, 4
  %v5048 = vshrl.u32 %v4704, 16
  %v5050 = vrot.slane %v5048, 7
  %v5051 = vshll.u32 %v4704, 16
  %v5053 = vor.u32 %v5050, %v5051
  %v5054 = vsel %vm4732, %v5046, %v5053
  %v5055 = vrot.slane %v5050, 4
  %v5057 = vshrl.u32 %v4705, 16
  %v5059 = vrot.slane %v5057, 7
  %v5060 = vshll.u32 %v4705, 16
  %v5062 = vor.u32 %v5059, %v5060
  %v5063 = vrot.slane %v5059, 4
  %v5065 = vshrl.u32 %v4706, 16
  %v5067 = vrot.slane %v5065, 7
  %v5068 = vshll.u32 %v4706, 16
  %v5070 = vor.u32 %v5067, %v5068
  %v5071 = vsel %vm4732, %v5063, %v5070
  %v5072 = vrot.slane %v5067, 4
  %v5074 = vshrl.u32 %v4707, 16
  %v5076 = vrot.slane %v5074, 7
  %v5077 = vshll.u32 %v4707, 16
  %v5079 = vor.u32 %v5076, %v5077
  %v5080 = vrot.slane %v5076, 4
  %v5082 = vshrl.u32 %v4708, 16
  %v5084 = vrot.slane %v5082, 7
  %v5085 = vshll.u32 %v4708, 16
  %v5087 = vor.u32 %v5084, %v5085
  %v5088 = vsel %vm4732, %v5080, %v5087
  %v5089 = vrot.slane %v5084, 4
  %v5091 = vshrl.u32 %v4709, 16
  %v5093 = vrot.slane %v5091, 7
  %v5094 = vshll.u32 %v4709, 16
  %v5096 = vor.u32 %v5093, %v5094
  %v5097 = vrot.slane %v5093, 4
  %v5099 = vshrl.u32 %v4710, 16
  %v5101 = vrot.slane %v5099, 7
  %v5102 = vshll.u32 %v4710, 16
  %v5104 = vor.u32 %v5101, %v5102
  %v5105 = vsel %vm4732, %v5097, %v5104
  %v5106 = vrot.slane %v5101, 4
  %v5108 = vshrl.u32 %v4711, 16
  %v5110 = vrot.slane %v5108, 7
  %v5111 = vshll.u32 %v4711, 16
  %v5113 = vor.u32 %v5110, %v5111
  %v5114 = vrot.slane %v5110, 4
  %v5116 = vshrl.u32 %v4712, 16
  %v5118 = vrot.slane %v5116, 7
  %v5119 = vshll.u32 %v4712, 16
  %v5121 = vor.u32 %v5118, %v5119
  %v5122 = vsel %vm4732, %v5114, %v5121
  %v5123 = vrot.slane %v5118, 4
  %v5125 = vshrl.u32 %v4713, 16
  %v5127 = vrot.slane %v5125, 7
  %v5128 = vshll.u32 %v4713, 16
  %v5130 = vor.u32 %v5127, %v5128
  %v5131 = vrot.slane %v5127, 4
  %v5133 = vshrl.u32 %v4714, 16
  %v5135 = vrot.slane %v5133, 7
  %v5136 = vshll.u32 %v4714, 16
  %v5138 = vor.u32 %v5135, %v5136
  %v5139 = vsel %vm4732, %v5131, %v5138
  %v5140 = vrot.slane %v5135, 4
  %v5142 = vshrl.u32 %v4715, 16
  %v5144 = vrot.slane %v5142, 7
  %v5145 = vshll.u32 %v4715, 16
  %v5147 = vor.u32 %v5144, %v5145
  %v5148 = vrot.slane %v5144, 4
  %v5150 = vshrl.u32 %v4716, 16
  %v5152 = vrot.slane %v5150, 7
  %v5153 = vshll.u32 %v4716, 16
  %v5155 = vor.u32 %v5152, %v5153
  %v5156 = vsel %vm4732, %v5148, %v5155
  %v5157 = vrot.slane %v5152, 4
  %v5159 = vshrl.u32 %v4717, 16
  %v5161 = vrot.slane %v5159, 7
  %v5162 = vshll.u32 %v4717, 16
  %v5164 = vor.u32 %v5161, %v5162
  %v5165 = vrot.slane %v5161, 4
  %v5167 = vshrl.u32 %v4718, 16
  %v5169 = vrot.slane %v5167, 7
  %v5170 = vshll.u32 %v4718, 16
  %v5172 = vor.u32 %v5169, %v5170
  %v5173 = vsel %vm4732, %v5165, %v5172
  %v5174 = vrot.slane %v5169, 4
  %v5176 = vshrl.u32 %v4719, 16
  %v5178 = vrot.slane %v5176, 7
  %v5179 = vshll.u32 %v4719, 16
  %v5181 = vor.u32 %v5178, %v5179
  %v5182 = vrot.slane %v5178, 4
  %v5184 = vshrl.u32 %v4720, 16
  %v5186 = vrot.slane %v5184, 7
  %v5187 = vshll.u32 %v4720, 16
  %v5189 = vor.u32 %v5186, %v5187
  %v5190 = vsel %vm4732, %v5182, %v5189
  %v5191 = vrot.slane %v5186, 4
  %v5193 = vshrl.u32 %v4721, 16
  %v5195 = vrot.slane %v5193, 7
  %v5196 = vshll.u32 %v4721, 16
  %v5198 = vor.u32 %v5195, %v5196
  %v5199 = vrot.slane %v5195, 4
  %v5201 = vshrl.u32 %v4722, 16
  %v5203 = vrot.slane %v5201, 7
  %v5204 = vshll.u32 %v4722, 16
  %v5206 = vor.u32 %v5203, %v5204
  %v5207 = vsel %vm4732, %v5199, %v5206
  %v5208 = vrot.slane %v5203, 4
  %v5210 = vshrl.u32 %v4723, 16
  %v5212 = vrot.slane %v5210, 7
  %v5213 = vshll.u32 %v4723, 16
  %v5215 = vor.u32 %v5212, %v5213
  %v5216 = vrot.slane %v5212, 4
  %v5218 = vshrl.u32 %v4724, 16
  %v5220 = vrot.slane %v5218, 7
  %v5221 = vshll.u32 %v4724, 16
  %v5223 = vor.u32 %v5220, %v5221
  %v5224 = vsel %vm4732, %v5216, %v5223
  %v5225 = vrot.slane %v5220, 4
  %v5227 = vshrl.u32 %v4725, 16
  %v5229 = vrot.slane %v5227, 7
  %v5230 = vshll.u32 %v4725, 16
  %v5232 = vor.u32 %v5229, %v5230
  %v5233 = vrot.slane %v5229, 4
  %v5235 = vshrl.u32 %v4726, 16
  %v5237 = vrot.slane %v5235, 7
  %v5238 = vshll.u32 %v4726, 16
  %v5240 = vor.u32 %v5237, %v5238
  %v5241 = vsel %vm4732, %v5233, %v5240
  %v5242 = vrot.slane %v5237, 4
  %v5244 = vshrl.u32 %v4727, 16
  %v5246 = vrot.slane %v5244, 7
  %v5247 = vshll.u32 %v4727, 16
  %v5249 = vor.u32 %v5246, %v5247
  %v5250 = vrot.slane %v5246, 4
  %v5252 = vshrl.u32 %v4728, 16
  %v5254 = vrot.slane %v5252, 7
  %v5255 = vshll.u32 %v4728, 16
  %v5257 = vor.u32 %v5254, %v5255
  %v5258 = vsel %vm4732, %v5250, %v5257
  %v5259 = vrot.slane %v5254, 4
  %v5261 = vshrl.u32 %v4729, 16
  %v5263 = vrot.slane %v5261, 7
  %v5264 = vshll.u32 %v4729, 16
  %v5266 = vor.u32 %v5263, %v5264
  %v5267 = vrot.slane %v5263, 4
  %v5269 = vshrl.u32 %v4730, 16
  %v5271 = vrot.slane %v5269, 7
  %v5272 = vshll.u32 %v4730, 16
  %v5274 = vor.u32 %v5271, %v5272
  %v5275 = vsel %vm4732, %v5267, %v5274
  %v5276 = vrot.slane %v5271, 4
  %vm5373 = vcmask 27648
  %vm5374 = vmand %vm5373, %vm146
  %v5375 = vld [vmem:[%s46] sm:$0xf]
  %v5376 = vsel %vm5374, %v4739, %v5375
  %5377 = vst [vmem:[%s46] sm:$0xf] %v5376
  %5378 = vst.msk [vmem:[%s46 + $0x4] sm:$0xf] %vm31, %v4748
  %v5379 = vld [vmem:[%s46 + $0x8] sm:$0x1]
  %v5380 = vsel %vm49, %v4749, %v5379
  %5381 = vst [vmem:[%s46 + $0x8] sm:$0x1] %v5380
  %v5382 = vld [vmem:[%s46 + $0xc] sm:$0xf]
  %v5383 = vsel %vm5374, %v4756, %v5382
  %5384 = vst [vmem:[%s46 + $0xc] sm:$0xf] %v5383
  %5385 = vst.msk [vmem:[%s46 + $0x10] sm:$0xf] %vm31, %v4765
  %v5386 = vld [vmem:[%s46 + $0x14] sm:$0x1]
  %v5387 = vsel %vm49, %v4766, %v5386
  %5388 = vst [vmem:[%s46 + $0x14] sm:$0x1] %v5387
  %v5389 = vld [vmem:[%s46 + $0x18] sm:$0xf]
  %v5390 = vsel %vm5374, %v4773, %v5389
  %5391 = vst [vmem:[%s46 + $0x18] sm:$0xf] %v5390
  %5392 = vst.msk [vmem:[%s46 + $0x1c] sm:$0xf] %vm31, %v4782
  %v5393 = vld [vmem:[%s46 + $0x20] sm:$0x1]
  %v5394 = vsel %vm49, %v4783, %v5393
  %5395 = vst [vmem:[%s46 + $0x20] sm:$0x1] %v5394
  %v5396 = vld [vmem:[%s46 + $0x24] sm:$0xf]
  %v5397 = vsel %vm5374, %v4790, %v5396
  %5398 = vst [vmem:[%s46 + $0x24] sm:$0xf] %v5397
  %5399 = vst.msk [vmem:[%s46 + $0x28] sm:$0xf] %vm31, %v4799
  %v5400 = vld [vmem:[%s46 + $0x2c] sm:$0x1]
  %v5401 = vsel %vm49, %v4800, %v5400
  %5402 = vst [vmem:[%s46 + $0x2c] sm:$0x1] %v5401
  %v5403 = vld [vmem:[%s46 + $0x30] sm:$0xf]
  %v5404 = vsel %vm5374, %v4807, %v5403
  %5405 = vst [vmem:[%s46 + $0x30] sm:$0xf] %v5404
  %5406 = vst.msk [vmem:[%s46 + $0x34] sm:$0xf] %vm31, %v4816
  %v5407 = vld [vmem:[%s46 + $0x38] sm:$0x1]
  %v5408 = vsel %vm49, %v4817, %v5407
  %5409 = vst [vmem:[%s46 + $0x38] sm:$0x1] %v5408
  %v5410 = vld [vmem:[%s46 + $0x3c] sm:$0xf]
  %v5411 = vsel %vm5374, %v4824, %v5410
  %5412 = vst [vmem:[%s46 + $0x3c] sm:$0xf] %v5411
  %5413 = vst.msk [vmem:[%s46 + $0x40] sm:$0xf] %vm31, %v4833
  %v5414 = vld [vmem:[%s46 + $0x44] sm:$0x1]
  %v5415 = vsel %vm49, %v4834, %v5414
  %5416 = vst [vmem:[%s46 + $0x44] sm:$0x1] %v5415
  %v5417 = vld [vmem:[%s46 + $0x48] sm:$0xf]
  %v5418 = vsel %vm5374, %v4841, %v5417
  %5419 = vst [vmem:[%s46 + $0x48] sm:$0xf] %v5418
  %5420 = vst.msk [vmem:[%s46 + $0x4c] sm:$0xf] %vm31, %v4850
  %v5421 = vld [vmem:[%s46 + $0x50] sm:$0x1]
  %v5422 = vsel %vm49, %v4851, %v5421
  %5423 = vst [vmem:[%s46 + $0x50] sm:$0x1] %v5422
  %v5424 = vld [vmem:[%s46 + $0x54] sm:$0xf]
  %v5425 = vsel %vm5374, %v4858, %v5424
  %5426 = vst [vmem:[%s46 + $0x54] sm:$0xf] %v5425
  %5427 = vst.msk [vmem:[%s46 + $0x58] sm:$0xf] %vm31, %v4867
  %v5428 = vld [vmem:[%s46 + $0x5c] sm:$0x1]
  %v5429 = vsel %vm49, %v4868, %v5428
  %5430 = vst [vmem:[%s46 + $0x5c] sm:$0x1] %v5429
  %v5431 = vld [vmem:[%s46 + $0x60] sm:$0xf]
  %v5432 = vsel %vm5374, %v4875, %v5431
  %5433 = vst [vmem:[%s46 + $0x60] sm:$0xf] %v5432
  %5434 = vst.msk [vmem:[%s46 + $0x64] sm:$0xf] %vm31, %v4884
  %v5435 = vld [vmem:[%s46 + $0x68] sm:$0x1]
  %v5436 = vsel %vm49, %v4885, %v5435
  %5437 = vst [vmem:[%s46 + $0x68] sm:$0x1] %v5436
  %v5438 = vld [vmem:[%s46 + $0x6c] sm:$0xf]
  %v5439 = vsel %vm5374, %v4892, %v5438
  %5440 = vst [vmem:[%s46 + $0x6c] sm:$0xf] %v5439
  %5441 = vst.msk [vmem:[%s46 + $0x70] sm:$0xf] %vm31, %v4901
  %v5442 = vld [vmem:[%s46 + $0x74] sm:$0x1]
  %v5443 = vsel %vm49, %v4902, %v5442
  %5444 = vst [vmem:[%s46 + $0x74] sm:$0x1] %v5443
  %v5445 = vld [vmem:[%s46 + $0x78] sm:$0xf]
  %v5446 = vsel %vm5374, %v4909, %v5445
  %5447 = vst [vmem:[%s46 + $0x78] sm:$0xf] %v5446
  %5448 = vst.msk [vmem:[%s46 + $0x7c] sm:$0xf] %vm31, %v4918
  %v5449 = vld [vmem:[%s46 + $0x80] sm:$0x1]
  %v5450 = vsel %vm49, %v4919, %v5449
  %5451 = vst [vmem:[%s46 + $0x80] sm:$0x1] %v5450
  %v5452 = vld [vmem:[%s46 + $0x84] sm:$0xf]
  %v5453 = vsel %vm5374, %v4926, %v5452
  %5454 = vst [vmem:[%s46 + $0x84] sm:$0xf] %v5453
  %5455 = vst.msk [vmem:[%s46 + $0x88] sm:$0xf] %vm31, %v4935
  %v5456 = vld [vmem:[%s46 + $0x8c] sm:$0x1]
  %v5457 = vsel %vm49, %v4936, %v5456
  %5458 = vst [vmem:[%s46 + $0x8c] sm:$0x1] %v5457
  %v5459 = vld [vmem:[%s46 + $0x90] sm:$0xf]
  %v5460 = vsel %vm5374, %v4943, %v5459
  %5461 = vst [vmem:[%s46 + $0x90] sm:$0xf] %v5460
  %5462 = vst.msk [vmem:[%s46 + $0x94] sm:$0xf] %vm31, %v4952
  %v5463 = vld [vmem:[%s46 + $0x98] sm:$0x1]
  %v5464 = vsel %vm49, %v4953, %v5463
  %5465 = vst [vmem:[%s46 + $0x98] sm:$0x1] %v5464
  %v5466 = vld [vmem:[%s46 + $0x9c] sm:$0xf]
  %v5467 = vsel %vm5374, %v4960, %v5466
  %5468 = vst [vmem:[%s46 + $0x9c] sm:$0xf] %v5467
  %5469 = vst.msk [vmem:[%s46 + $0xa0] sm:$0xf] %vm31, %v4969
  %v5470 = vld [vmem:[%s46 + $0xa4] sm:$0x1]
  %v5471 = vsel %vm49, %v4970, %v5470
  %5472 = vst [vmem:[%s46 + $0xa4] sm:$0x1] %v5471
  %v5473 = vld [vmem:[%s46 + $0xa8] sm:$0xf]
  %v5474 = vsel %vm5374, %v4977, %v5473
  %5475 = vst [vmem:[%s46 + $0xa8] sm:$0xf] %v5474
  %5476 = vst.msk [vmem:[%s46 + $0xac] sm:$0xf] %vm31, %v4986
  %v5477 = vld [vmem:[%s46 + $0xb0] sm:$0x1]
  %v5478 = vsel %vm49, %v4987, %v5477
  %5479 = vst [vmem:[%s46 + $0xb0] sm:$0x1] %v5478
  %v5480 = vld [vmem:[%s46 + $0xb4] sm:$0xf]
  %v5481 = vsel %vm5374, %v4994, %v5480
  %5482 = vst [vmem:[%s46 + $0xb4] sm:$0xf] %v5481
  %5483 = vst.msk [vmem:[%s46 + $0xb8] sm:$0xf] %vm31, %v5003
  %v5484 = vld [vmem:[%s46 + $0xbc] sm:$0x1]
  %v5485 = vsel %vm49, %v5004, %v5484
  %5486 = vst [vmem:[%s46 + $0xbc] sm:$0x1] %v5485
  %v5487 = vld [vmem:[%s46 + $0xd8] sm:$0xf]
  %v5488 = vsel %vm5374, %v5011, %v5487
  %5489 = vst [vmem:[%s46 + $0xd8] sm:$0xf] %v5488
  %5490 = vst.msk [vmem:[%s46 + $0xdc] sm:$0xf] %vm31, %v5020
  %v5491 = vld [vmem:[%s46 + $0xe0] sm:$0x1]
  %v5492 = vsel %vm49, %v5021, %v5491
  %5493 = vst [vmem:[%s46 + $0xe0] sm:$0x1] %v5492
  %v5494 = vld [vmem:[%s46 + $0xe4] sm:$0xf]
  %v5495 = vsel %vm5374, %v5028, %v5494
  %5496 = vst [vmem:[%s46 + $0xe4] sm:$0xf] %v5495
  %5497 = vst.msk [vmem:[%s46 + $0xe8] sm:$0xf] %vm31, %v5037
  %v5498 = vld [vmem:[%s46 + $0xec] sm:$0x1]
  %v5499 = vsel %vm49, %v5038, %v5498
  %5500 = vst [vmem:[%s46 + $0xec] sm:$0x1] %v5499
  %v5501 = vld [vmem:[%s46 + $0xf0] sm:$0xf]
  %v5502 = vsel %vm5374, %v5045, %v5501
  %5503 = vst [vmem:[%s46 + $0xf0] sm:$0xf] %v5502
  %5504 = vst.msk [vmem:[%s46 + $0xf4] sm:$0xf] %vm31, %v5054
  %v5505 = vld [vmem:[%s46 + $0xf8] sm:$0x1]
  %v5506 = vsel %vm49, %v5055, %v5505
  %5507 = vst [vmem:[%s46 + $0xf8] sm:$0x1] %v5506
  %v5508 = vld [vmem:[%s46 + $0xfc] sm:$0xf]
  %v5509 = vsel %vm5374, %v5062, %v5508
  %5510 = vst [vmem:[%s46 + $0xfc] sm:$0xf] %v5509
  %5511 = vst.msk [vmem:[%s46 + $0x100] sm:$0xf] %vm31, %v5071
  %v5512 = vld [vmem:[%s46 + $0x104] sm:$0x1]
  %v5513 = vsel %vm49, %v5072, %v5512
  %5514 = vst [vmem:[%s46 + $0x104] sm:$0x1] %v5513
  %v5515 = vld [vmem:[%s46 + $0x108] sm:$0xf]
  %v5516 = vsel %vm5374, %v5079, %v5515
  %5517 = vst [vmem:[%s46 + $0x108] sm:$0xf] %v5516
  %5518 = vst.msk [vmem:[%s46 + $0x10c] sm:$0xf] %vm31, %v5088
  %v5519 = vld [vmem:[%s46 + $0x110] sm:$0x1]
  %v5520 = vsel %vm49, %v5089, %v5519
  %5521 = vst [vmem:[%s46 + $0x110] sm:$0x1] %v5520
  %v5522 = vld [vmem:[%s46 + $0x114] sm:$0xf]
  %v5523 = vsel %vm5374, %v5096, %v5522
  %5524 = vst [vmem:[%s46 + $0x114] sm:$0xf] %v5523
  %5525 = vst.msk [vmem:[%s46 + $0x118] sm:$0xf] %vm31, %v5105
  %v5526 = vld [vmem:[%s46 + $0x11c] sm:$0x1]
  %v5527 = vsel %vm49, %v5106, %v5526
  %5528 = vst [vmem:[%s46 + $0x11c] sm:$0x1] %v5527
  %v5529 = vld [vmem:[%s46 + $0x120] sm:$0xf]
  %v5530 = vsel %vm5374, %v5113, %v5529
  %5531 = vst [vmem:[%s46 + $0x120] sm:$0xf] %v5530
  %5532 = vst.msk [vmem:[%s46 + $0x124] sm:$0xf] %vm31, %v5122
  %v5533 = vld [vmem:[%s46 + $0x128] sm:$0x1]
  %v5534 = vsel %vm49, %v5123, %v5533
  %5535 = vst [vmem:[%s46 + $0x128] sm:$0x1] %v5534
  %v5536 = vld [vmem:[%s46 + $0x12c] sm:$0xf]
  %v5537 = vsel %vm5374, %v5130, %v5536
  %5538 = vst [vmem:[%s46 + $0x12c] sm:$0xf] %v5537
  %5539 = vst.msk [vmem:[%s46 + $0x130] sm:$0xf] %vm31, %v5139
  %v5540 = vld [vmem:[%s46 + $0x134] sm:$0x1]
  %v5541 = vsel %vm49, %v5140, %v5540
  %5542 = vst [vmem:[%s46 + $0x134] sm:$0x1] %v5541
  %v5543 = vld [vmem:[%s46 + $0x138] sm:$0xf]
  %v5544 = vsel %vm5374, %v5147, %v5543
  %5545 = vst [vmem:[%s46 + $0x138] sm:$0xf] %v5544
  %5546 = vst.msk [vmem:[%s46 + $0x13c] sm:$0xf] %vm31, %v5156
  %v5547 = vld [vmem:[%s46 + $0x140] sm:$0x1]
  %v5548 = vsel %vm49, %v5157, %v5547
  %5549 = vst [vmem:[%s46 + $0x140] sm:$0x1] %v5548
  %v5550 = vld [vmem:[%s46 + $0x144] sm:$0xf]
  %v5551 = vsel %vm5374, %v5164, %v5550
  %5552 = vst [vmem:[%s46 + $0x144] sm:$0xf] %v5551
  %5553 = vst.msk [vmem:[%s46 + $0x148] sm:$0xf] %vm31, %v5173
  %v5554 = vld [vmem:[%s46 + $0x14c] sm:$0x1]
  %v5555 = vsel %vm49, %v5174, %v5554
  %5556 = vst [vmem:[%s46 + $0x14c] sm:$0x1] %v5555
  %v5557 = vld [vmem:[%s46 + $0x150] sm:$0xf]
  %v5558 = vsel %vm5374, %v5181, %v5557
  %5559 = vst [vmem:[%s46 + $0x150] sm:$0xf] %v5558
  %5560 = vst.msk [vmem:[%s46 + $0x154] sm:$0xf] %vm31, %v5190
  %v5561 = vld [vmem:[%s46 + $0x158] sm:$0x1]
  %v5562 = vsel %vm49, %v5191, %v5561
  %5563 = vst [vmem:[%s46 + $0x158] sm:$0x1] %v5562
  %v5564 = vld [vmem:[%s46 + $0x15c] sm:$0xf]
  %v5565 = vsel %vm5374, %v5198, %v5564
  %5566 = vst [vmem:[%s46 + $0x15c] sm:$0xf] %v5565
  %5567 = vst.msk [vmem:[%s46 + $0x160] sm:$0xf] %vm31, %v5207
  %v5568 = vld [vmem:[%s46 + $0x164] sm:$0x1]
  %v5569 = vsel %vm49, %v5208, %v5568
  %5570 = vst [vmem:[%s46 + $0x164] sm:$0x1] %v5569
  %v5571 = vld [vmem:[%s46 + $0x168] sm:$0xf]
  %v5572 = vsel %vm5374, %v5215, %v5571
  %5573 = vst [vmem:[%s46 + $0x168] sm:$0xf] %v5572
  %5574 = vst.msk [vmem:[%s46 + $0x16c] sm:$0xf] %vm31, %v5224
  %v5575 = vld [vmem:[%s46 + $0x170] sm:$0x1]
  %v5576 = vsel %vm49, %v5225, %v5575
  %5577 = vst [vmem:[%s46 + $0x170] sm:$0x1] %v5576
  %v5578 = vld [vmem:[%s46 + $0x174] sm:$0xf]
  %v5579 = vsel %vm5374, %v5232, %v5578
  %5580 = vst [vmem:[%s46 + $0x174] sm:$0xf] %v5579
  %5581 = vst.msk [vmem:[%s46 + $0x178] sm:$0xf] %vm31, %v5241
  %v5582 = vld [vmem:[%s46 + $0x17c] sm:$0x1]
  %v5583 = vsel %vm49, %v5242, %v5582
  %5584 = vst [vmem:[%s46 + $0x17c] sm:$0x1] %v5583
  %v5585 = vld [vmem:[%s46 + $0x180] sm:$0xf]
  %v5586 = vsel %vm5374, %v5249, %v5585
  %5587 = vst [vmem:[%s46 + $0x180] sm:$0xf] %v5586
  %5588 = vst.msk [vmem:[%s46 + $0x184] sm:$0xf] %vm31, %v5258
  %v5589 = vld [vmem:[%s46 + $0x188] sm:$0x1]
  %v5590 = vsel %vm49, %v5259, %v5589
  %5591 = vst [vmem:[%s46 + $0x188] sm:$0x1] %v5590
  %v5592 = vld [vmem:[%s46 + $0x18c] sm:$0xf]
  %v5593 = vsel %vm5374, %v5266, %v5592
  %5594 = vst [vmem:[%s46 + $0x18c] sm:$0xf] %v5593
  %5595 = vst.msk [vmem:[%s46 + $0x190] sm:$0xf] %vm31, %v5275
  %v5596 = vld [vmem:[%s46 + $0x194] sm:$0x1]
  %v5597 = vsel %vm49, %v5276, %v5596
  %5598 = vst [vmem:[%s46 + $0x194] sm:$0x1] %v5597
  %v5599 = vld [vmem:[#allocation2] sm:$0xf]
  %v5600 = vld [vmem:[#allocation2 + $0x4] sm:$0xf]
  %v5601 = vld [vmem:[#allocation2 + $0xc] sm:$0xf]
  %v5602 = vld [vmem:[#allocation2 + $0x10] sm:$0xf]
  %v5603 = vld [vmem:[#allocation2 + $0x18] sm:$0xf]
  %v5604 = vld [vmem:[#allocation2 + $0x1c] sm:$0xf]
  %v5605 = vld [vmem:[#allocation2 + $0x24] sm:$0xf]
  %v5606 = vld [vmem:[#allocation2 + $0x28] sm:$0xf]
  %v5607 = vld [vmem:[#allocation2 + $0x30] sm:$0xf]
  %v5608 = vld [vmem:[#allocation2 + $0x34] sm:$0xf]
  %v5609 = vld [vmem:[#allocation2 + $0x3c] sm:$0xf]
  %v5610 = vld [vmem:[#allocation2 + $0x40] sm:$0xf]
  %v5611 = vld [vmem:[#allocation2 + $0x48] sm:$0xf]
  %v5612 = vld [vmem:[#allocation2 + $0x4c] sm:$0xf]
  %v5613 = vld [vmem:[#allocation2 + $0x54] sm:$0xf]
  %v5614 = vld [vmem:[#allocation2 + $0x58] sm:$0xf]
  %v5615 = vld [vmem:[#allocation2 + $0x60] sm:$0xf]
  %v5616 = vld [vmem:[#allocation2 + $0x64] sm:$0xf]
  %v5617 = vld [vmem:[#allocation2 + $0x6c] sm:$0xf]
  %v5618 = vld [vmem:[#allocation2 + $0x70] sm:$0xf]
  %v5619 = vld [vmem:[#allocation2 + $0x78] sm:$0xf]
  %v5620 = vld [vmem:[#allocation2 + $0x7c] sm:$0xf]
  %v5621 = vld [vmem:[#allocation2 + $0x84] sm:$0xf]
  %v5622 = vld [vmem:[#allocation2 + $0x88] sm:$0xf]
  %v5623 = vld [vmem:[#allocation2 + $0x90] sm:$0xf]
  %v5624 = vld [vmem:[#allocation2 + $0x94] sm:$0xf]
  %v5625 = vld [vmem:[#allocation2 + $0x9c] sm:$0xf]
  %v5626 = vld [vmem:[#allocation2 + $0xa0] sm:$0xf]
  %v5627 = vld [vmem:[#allocation2 + $0xa8] sm:$0xf]
  %v5628 = vld [vmem:[#allocation2 + $0xac] sm:$0xf]
  %v5629 = vld [vmem:[#allocation2 + $0xb4] sm:$0xf]
  %v5630 = vld [vmem:[#allocation2 + $0xb8] sm:$0xf]
  %v5631 = vld [vmem:[#allocation2 + $0xd8] sm:$0xf]
  %v5632 = vld [vmem:[#allocation2 + $0xdc] sm:$0xf]
  %v5633 = vld [vmem:[#allocation2 + $0xe4] sm:$0xf]
  %v5634 = vld [vmem:[#allocation2 + $0xe8] sm:$0xf]
  %v5635 = vld [vmem:[#allocation2 + $0xf0] sm:$0xf]
  %v5636 = vld [vmem:[#allocation2 + $0xf4] sm:$0xf]
  %v5637 = vld [vmem:[#allocation2 + $0xfc] sm:$0xf]
  %v5638 = vld [vmem:[#allocation2 + $0x100] sm:$0xf]
  %v5639 = vld [vmem:[#allocation2 + $0x108] sm:$0xf]
  %v5640 = vld [vmem:[#allocation2 + $0x10c] sm:$0xf]
  %v5641 = vld [vmem:[#allocation2 + $0x114] sm:$0xf]
  %v5642 = vld [vmem:[#allocation2 + $0x118] sm:$0xf]
  %v5643 = vld [vmem:[#allocation2 + $0x120] sm:$0xf]
  %v5644 = vld [vmem:[#allocation2 + $0x124] sm:$0xf]
  %v5645 = vld [vmem:[#allocation2 + $0x12c] sm:$0xf]
  %v5646 = vld [vmem:[#allocation2 + $0x130] sm:$0xf]
  %v5647 = vld [vmem:[#allocation2 + $0x138] sm:$0xf]
  %v5648 = vld [vmem:[#allocation2 + $0x13c] sm:$0xf]
  %v5649 = vld [vmem:[#allocation2 + $0x144] sm:$0xf]
  %v5650 = vld [vmem:[#allocation2 + $0x148] sm:$0xf]
  %v5651 = vld [vmem:[#allocation2 + $0x150] sm:$0xf]
  %v5652 = vld [vmem:[#allocation2 + $0x154] sm:$0xf]
  %v5653 = vld [vmem:[#allocation2 + $0x15c] sm:$0xf]
  %v5654 = vld [vmem:[#allocation2 + $0x160] sm:$0xf]
  %v5655 = vld [vmem:[#allocation2 + $0x168] sm:$0xf]
  %v5656 = vld [vmem:[#allocation2 + $0x16c] sm:$0xf]
  %v5657 = vld [vmem:[#allocation2 + $0x174] sm:$0xf]
  %v5658 = vld [vmem:[#allocation2 + $0x178] sm:$0xf]
  %v5659 = vld [vmem:[#allocation2 + $0x180] sm:$0xf]
  %v5660 = vld [vmem:[#allocation2 + $0x184] sm:$0xf]
  %v5661 = vld [vmem:[#allocation2 + $0x18c] sm:$0xf]
  %v5662 = vld [vmem:[#allocation2 + $0x190] sm:$0xf]
  %v5663 = vld [vmem:[%s4] sm:$0x3]
  %v5664 = vld [vmem:[#allocation2 + $0x8] sm:$0x1]
  %v5665 = vld [vmem:[#allocation2 + $0x14] sm:$0x1]
  %v5666 = vld [vmem:[#allocation2 + $0x20] sm:$0x1]
  %v5667 = vld [vmem:[#allocation2 + $0x2c] sm:$0x1]
  %v5668 = vld [vmem:[#allocation2 + $0x38] sm:$0x1]
  %v5669 = vld [vmem:[#allocation2 + $0x44] sm:$0x1]
  %v5670 = vld [vmem:[#allocation2 + $0x50] sm:$0x1]
  %v5671 = vld [vmem:[#allocation2 + $0x5c] sm:$0x1]
  %v5672 = vld [vmem:[#allocation2 + $0x68] sm:$0x1]
  %v5673 = vld [vmem:[#allocation2 + $0x74] sm:$0x1]
  %v5674 = vld [vmem:[#allocation2 + $0x80] sm:$0x1]
  %v5675 = vld [vmem:[#allocation2 + $0x8c] sm:$0x1]
  %v5676 = vld [vmem:[#allocation2 + $0x98] sm:$0x1]
  %v5677 = vld [vmem:[#allocation2 + $0xa4] sm:$0x1]
  %v5678 = vld [vmem:[#allocation2 + $0xb0] sm:$0x1]
  %v5679 = vld [vmem:[#allocation2 + $0xbc] sm:$0x1]
  %v5680 = vld [vmem:[#allocation2 + $0xe0] sm:$0x1]
  %v5681 = vld [vmem:[#allocation2 + $0xec] sm:$0x1]
  %v5682 = vld [vmem:[#allocation2 + $0xf8] sm:$0x1]
  %v5683 = vld [vmem:[#allocation2 + $0x104] sm:$0x1]
  %v5684 = vld [vmem:[#allocation2 + $0x110] sm:$0x1]
  %v5685 = vld [vmem:[#allocation2 + $0x11c] sm:$0x1]
  %v5686 = vld [vmem:[#allocation2 + $0x128] sm:$0x1]
  %v5687 = vld [vmem:[#allocation2 + $0x134] sm:$0x1]
  %v5688 = vld [vmem:[#allocation2 + $0x140] sm:$0x1]
  %v5689 = vld [vmem:[#allocation2 + $0x14c] sm:$0x1]
  %v5690 = vld [vmem:[#allocation2 + $0x158] sm:$0x1]
  %v5691 = vld [vmem:[#allocation2 + $0x164] sm:$0x1]
  %v5692 = vld [vmem:[#allocation2 + $0x170] sm:$0x1]
  %v5693 = vld [vmem:[#allocation2 + $0x17c] sm:$0x1]
  %v5694 = vld [vmem:[#allocation2 + $0x188] sm:$0x1]
  %v5695 = vld [vmem:[#allocation2 + $0x194] sm:$0x1]
  %vm5696 = vsmask.f32 3328
  %vm5697 = vsmask.f32 7440
  %vm5698 = vmor %vm5696, %vm5697
  %v5700 = vshrl.u32 %v5599, 16
  %v5702 = vrot.slane %v5700, 4
  %v5703 = vshll.u32 %v5599, 16
  %v5705 = vrot.slane %v5703, 5
  %v5706 = vor.u32 %v5702, %v5705
  %v5707 = vrot.slane %v5706, 4
  %v5709 = vshll.u32 %v5600, 16
  %v5711 = vrot.slane %v5709, 5
  %v5712 = vsel %vm5698, %v5707, %v5711
  %v5713 = vshrl.u32 %v5600, 16
  %v5715 = vrot.slane %v5713, 4
  %v5716 = vor.u32 %v5715, %v5711
  %v5717 = vrot.slane %v5716, 4
  %v5719 = vshll.u32 %v5664, 16
  %v5721 = vrot.slane %v5719, 5
  %v5722 = vsel %vm5698, %v5717, %v5721
  %v5724 = vshrl.u32 %v5601, 16
  %v5726 = vrot.slane %v5724, 4
  %v5727 = vshll.u32 %v5601, 16
  %v5729 = vrot.slane %v5727, 5
  %v5730 = vor.u32 %v5726, %v5729
  %v5731 = vrot.slane %v5730, 4
  %v5733 = vshll.u32 %v5602, 16
  %v5735 = vrot.slane %v5733, 5
  %v5736 = vsel %vm5698, %v5731, %v5735
  %v5737 = vshrl.u32 %v5602, 16
  %v5739 = vrot.slane %v5737, 4
  %v5740 = vor.u32 %v5739, %v5735
  %v5741 = vrot.slane %v5740, 4
  %v5743 = vshll.u32 %v5665, 16
  %v5745 = vrot.slane %v5743, 5
  %v5746 = vsel %vm5698, %v5741, %v5745
  %v5748 = vshrl.u32 %v5603, 16
  %v5750 = vrot.slane %v5748, 4
  %v5751 = vshll.u32 %v5603, 16
  %v5753 = vrot.slane %v5751, 5
  %v5754 = vor.u32 %v5750, %v5753
  %v5755 = vrot.slane %v5754, 4
  %v5757 = vshll.u32 %v5604, 16
  %v5759 = vrot.slane %v5757, 5
  %v5760 = vsel %vm5698, %v5755, %v5759
  %v5761 = vshrl.u32 %v5604, 16
  %v5763 = vrot.slane %v5761, 4
  %v5764 = vor.u32 %v5763, %v5759
  %v5765 = vrot.slane %v5764, 4
  %v5767 = vshll.u32 %v5666, 16
  %v5769 = vrot.slane %v5767, 5
  %v5770 = vsel %vm5698, %v5765, %v5769
  %v5772 = vshrl.u32 %v5605, 16
  %v5774 = vrot.slane %v5772, 4
  %v5775 = vshll.u32 %v5605, 16
  %v5777 = vrot.slane %v5775, 5
  %v5778 = vor.u32 %v5774, %v5777
  %v5779 = vrot.slane %v5778, 4
  %v5781 = vshll.u32 %v5606, 16
  %v5783 = vrot.slane %v5781, 5
  %v5784 = vsel %vm5698, %v5779, %v5783
  %v5785 = vshrl.u32 %v5606, 16
  %v5787 = vrot.slane %v5785, 4
  %v5788 = vor.u32 %v5787, %v5783
  %v5789 = vrot.slane %v5788, 4
  %v5791 = vshll.u32 %v5667, 16
  %v5793 = vrot.slane %v5791, 5
  %v5794 = vsel %vm5698, %v5789, %v5793
  %v5796 = vshrl.u32 %v5607, 16
  %v5798 = vrot.slane %v5796, 4
  %v5799 = vshll.u32 %v5607, 16
  %v5801 = vrot.slane %v5799, 5
  %v5802 = vor.u32 %v5798, %v5801
  %v5803 = vrot.slane %v5802, 4
  %v5805 = vshll.u32 %v5608, 16
  %v5807 = vrot.slane %v5805, 5
  %v5808 = vsel %vm5698, %v5803, %v5807
  %v5809 = vshrl.u32 %v5608, 16
  %v5811 = vrot.slane %v5809, 4
  %v5812 = vor.u32 %v5811, %v5807
  %v5813 = vrot.slane %v5812, 4
  %v5815 = vshll.u32 %v5668, 16
  %v5817 = vrot.slane %v5815, 5
  %v5818 = vsel %vm5698, %v5813, %v5817
  %v5820 = vshrl.u32 %v5609, 16
  %v5822 = vrot.slane %v5820, 4
  %v5823 = vshll.u32 %v5609, 16
  %v5825 = vrot.slane %v5823, 5
  %v5826 = vor.u32 %v5822, %v5825
  %v5827 = vrot.slane %v5826, 4
  %v5829 = vshll.u32 %v5610, 16
  %v5831 = vrot.slane %v5829, 5
  %v5832 = vsel %vm5698, %v5827, %v5831
  %v5833 = vshrl.u32 %v5610, 16
  %v5835 = vrot.slane %v5833, 4
  %v5836 = vor.u32 %v5835, %v5831
  %v5837 = vrot.slane %v5836, 4
  %v5839 = vshll.u32 %v5669, 16
  %v5841 = vrot.slane %v5839, 5
  %v5842 = vsel %vm5698, %v5837, %v5841
  %v5844 = vshrl.u32 %v5611, 16
  %v5846 = vrot.slane %v5844, 4
  %v5847 = vshll.u32 %v5611, 16
  %v5849 = vrot.slane %v5847, 5
  %v5850 = vor.u32 %v5846, %v5849
  %v5851 = vrot.slane %v5850, 4
  %v5853 = vshll.u32 %v5612, 16
  %v5855 = vrot.slane %v5853, 5
  %v5856 = vsel %vm5698, %v5851, %v5855
  %v5857 = vshrl.u32 %v5612, 16
  %v5859 = vrot.slane %v5857, 4
  %v5860 = vor.u32 %v5859, %v5855
  %v5861 = vrot.slane %v5860, 4
  %v5863 = vshll.u32 %v5670, 16
  %v5865 = vrot.slane %v5863, 5
  %v5866 = vsel %vm5698, %v5861, %v5865
  %v5868 = vshrl.u32 %v5613, 16
  %v5870 = vrot.slane %v5868, 4
  %v5871 = vshll.u32 %v5613, 16
  %v5873 = vrot.slane %v5871, 5
  %v5874 = vor.u32 %v5870, %v5873
  %v5875 = vrot.slane %v5874, 4
  %v5877 = vshll.u32 %v5614, 16
  %v5879 = vrot.slane %v5877, 5
  %v5880 = vsel %vm5698, %v5875, %v5879
  %v5881 = vshrl.u32 %v5614, 16
  %v5883 = vrot.slane %v5881, 4
  %v5884 = vor.u32 %v5883, %v5879
  %v5885 = vrot.slane %v5884, 4
  %v5887 = vshll.u32 %v5671, 16
  %v5889 = vrot.slane %v5887, 5
  %v5890 = vsel %vm5698, %v5885, %v5889
  %v5892 = vshrl.u32 %v5615, 16
  %v5894 = vrot.slane %v5892, 4
  %v5895 = vshll.u32 %v5615, 16
  %v5897 = vrot.slane %v5895, 5
  %v5898 = vor.u32 %v5894, %v5897
  %v5899 = vrot.slane %v5898, 4
  %v5901 = vshll.u32 %v5616, 16
  %v5903 = vrot.slane %v5901, 5
  %v5904 = vsel %vm5698, %v5899, %v5903
  %v5905 = vshrl.u32 %v5616, 16
  %v5907 = vrot.slane %v5905, 4
  %v5908 = vor.u32 %v5907, %v5903
  %v5909 = vrot.slane %v5908, 4
  %v5911 = vshll.u32 %v5672, 16
  %v5913 = vrot.slane %v5911, 5
  %v5914 = vsel %vm5698, %v5909, %v5913
  %v5916 = vshrl.u32 %v5617, 16
  %v5918 = vrot.slane %v5916, 4
  %v5919 = vshll.u32 %v5617, 16
  %v5921 = vrot.slane %v5919, 5
  %v5922 = vor.u32 %v5918, %v5921
  %v5923 = vrot.slane %v5922, 4
  %v5925 = vshll.u32 %v5618, 16
  %v5927 = vrot.slane %v5925, 5
  %v5928 = vsel %vm5698, %v5923, %v5927
  %v5929 = vshrl.u32 %v5618, 16
  %v5931 = vrot.slane %v5929, 4
  %v5932 = vor.u32 %v5931, %v5927
  %v5933 = vrot.slane %v5932, 4
  %v5935 = vshll.u32 %v5673, 16
  %v5937 = vrot.slane %v5935, 5
  %v5938 = vsel %vm5698, %v5933, %v5937
  %v5940 = vshrl.u32 %v5619, 16
  %v5942 = vrot.slane %v5940, 4
  %v5943 = vshll.u32 %v5619, 16
  %v5945 = vrot.slane %v5943, 5
  %v5946 = vor.u32 %v5942, %v5945
  %v5947 = vrot.slane %v5946, 4
  %v5949 = vshll.u32 %v5620, 16
  %v5951 = vrot.slane %v5949, 5
  %v5952 = vsel %vm5698, %v5947, %v5951
  %v5953 = vshrl.u32 %v5620, 16
  %v5955 = vrot.slane %v5953, 4
  %v5956 = vor.u32 %v5955, %v5951
  %v5957 = vrot.slane %v5956, 4
  %v5959 = vshll.u32 %v5674, 16
  %v5961 = vrot.slane %v5959, 5
  %v5962 = vsel %vm5698, %v5957, %v5961
  %v5964 = vshrl.u32 %v5621, 16
  %v5966 = vrot.slane %v5964, 4
  %v5967 = vshll.u32 %v5621, 16
  %v5969 = vrot.slane %v5967, 5
  %v5970 = vor.u32 %v5966, %v5969
  %v5971 = vrot.slane %v5970, 4
  %v5973 = vshll.u32 %v5622, 16
  %v5975 = vrot.slane %v5973, 5
  %v5976 = vsel %vm5698, %v5971, %v5975
  %v5977 = vshrl.u32 %v5622, 16
  %v5979 = vrot.slane %v5977, 4
  %v5980 = vor.u32 %v5979, %v5975
  %v5981 = vrot.slane %v5980, 4
  %v5983 = vshll.u32 %v5675, 16
  %v5985 = vrot.slane %v5983, 5
  %v5986 = vsel %vm5698, %v5981, %v5985
  %v5988 = vshrl.u32 %v5623, 16
  %v5990 = vrot.slane %v5988, 4
  %v5991 = vshll.u32 %v5623, 16
  %v5993 = vrot.slane %v5991, 5
  %v5994 = vor.u32 %v5990, %v5993
  %v5995 = vrot.slane %v5994, 4
  %v5997 = vshll.u32 %v5624, 16
  %v5999 = vrot.slane %v5997, 5
  %v6000 = vsel %vm5698, %v5995, %v5999
  %v6001 = vshrl.u32 %v5624, 16
  %v6003 = vrot.slane %v6001, 4
  %v6004 = vor.u32 %v6003, %v5999
  %v6005 = vrot.slane %v6004, 4
  %v6007 = vshll.u32 %v5676, 16
  %v6009 = vrot.slane %v6007, 5
  %v6010 = vsel %vm5698, %v6005, %v6009
  %v6012 = vshrl.u32 %v5625, 16
  %v6014 = vrot.slane %v6012, 4
  %v6015 = vshll.u32 %v5625, 16
  %v6017 = vrot.slane %v6015, 5
  %v6018 = vor.u32 %v6014, %v6017
  %v6019 = vrot.slane %v6018, 4
  %v6021 = vshll.u32 %v5626, 16
  %v6023 = vrot.slane %v6021, 5
  %v6024 = vsel %vm5698, %v6019, %v6023
  %v6025 = vshrl.u32 %v5626, 16
  %v6027 = vrot.slane %v6025, 4
  %v6028 = vor.u32 %v6027, %v6023
  %v6029 = vrot.slane %v6028, 4
  %v6031 = vshll.u32 %v5677, 16
  %v6033 = vrot.slane %v6031, 5
  %v6034 = vsel %vm5698, %v6029, %v6033
  %v6036 = vshrl.u32 %v5627, 16
  %v6038 = vrot.slane %v6036, 4
  %v6039 = vshll.u32 %v5627, 16
  %v6041 = vrot.slane %v6039, 5
  %v6042 = vor.u32 %v6038, %v6041
  %v6043 = vrot.slane %v6042, 4
  %v6045 = vshll.u32 %v5628, 16
  %v6047 = vrot.slane %v6045, 5
  %v6048 = vsel %vm5698, %v6043, %v6047
  %v6049 = vshrl.u32 %v5628, 16
  %v6051 = vrot.slane %v6049, 4
  %v6052 = vor.u32 %v6051, %v6047
  %v6053 = vrot.slane %v6052, 4
  %v6055 = vshll.u32 %v5678, 16
  %v6057 = vrot.slane %v6055, 5
  %v6058 = vsel %vm5698, %v6053, %v6057
  %v6060 = vshrl.u32 %v5629, 16
  %v6062 = vrot.slane %v6060, 4
  %v6063 = vshll.u32 %v5629, 16
  %v6065 = vrot.slane %v6063, 5
  %v6066 = vor.u32 %v6062, %v6065
  %v6067 = vrot.slane %v6066, 4
  %v6069 = vshll.u32 %v5630, 16
  %v6071 = vrot.slane %v6069, 5
  %v6072 = vsel %vm5698, %v6067, %v6071
  %v6073 = vshrl.u32 %v5630, 16
  %v6075 = vrot.slane %v6073, 4
  %v6076 = vor.u32 %v6075, %v6071
  %v6077 = vrot.slane %v6076, 4
  %v6079 = vshll.u32 %v5679, 16
  %v6081 = vrot.slane %v6079, 5
  %v6082 = vsel %vm5698, %v6077, %v6081
  %v6084 = vshrl.u32 %v5631, 16
  %v6086 = vrot.slane %v6084, 4
  %v6087 = vshll.u32 %v5631, 16
  %v6089 = vrot.slane %v6087, 5
  %v6090 = vor.u32 %v6086, %v6089
  %v6091 = vrot.slane %v6090, 4
  %v6093 = vshll.u32 %v5632, 16
  %v6095 = vrot.slane %v6093, 5
  %v6096 = vsel %vm5698, %v6091, %v6095
  %v6097 = vshrl.u32 %v5632, 16
  %v6099 = vrot.slane %v6097, 4
  %v6100 = vor.u32 %v6099, %v6095
  %v6101 = vrot.slane %v6100, 4
  %v6103 = vshll.u32 %v5680, 16
  %v6105 = vrot.slane %v6103, 5
  %v6106 = vsel %vm5698, %v6101, %v6105
  %v6108 = vshrl.u32 %v5633, 16
  %v6110 = vrot.slane %v6108, 4
  %v6111 = vshll.u32 %v5633, 16
  %v6113 = vrot.slane %v6111, 5
  %v6114 = vor.u32 %v6110, %v6113
  %v6115 = vrot.slane %v6114, 4
  %v6117 = vshll.u32 %v5634, 16
  %v6119 = vrot.slane %v6117, 5
  %v6120 = vsel %vm5698, %v6115, %v6119
  %v6121 = vshrl.u32 %v5634, 16
  %v6123 = vrot.slane %v6121, 4
  %v6124 = vor.u32 %v6123, %v6119
  %v6125 = vrot.slane %v6124, 4
  %v6127 = vshll.u32 %v5681, 16
  %v6129 = vrot.slane %v6127, 5
  %v6130 = vsel %vm5698, %v6125, %v6129
  %v6132 = vshrl.u32 %v5635, 16
  %v6134 = vrot.slane %v6132, 4
  %v6135 = vshll.u32 %v5635, 16
  %v6137 = vrot.slane %v6135, 5
  %v6138 = vor.u32 %v6134, %v6137
  %v6139 = vrot.slane %v6138, 4
  %v6141 = vshll.u32 %v5636, 16
  %v6143 = vrot.slane %v6141, 5
  %v6144 = vsel %vm5698, %v6139, %v6143
  %v6145 = vshrl.u32 %v5636, 16
  %v6147 = vrot.slane %v6145, 4
  %v6148 = vor.u32 %v6147, %v6143
  %v6149 = vrot.slane %v6148, 4
  %v6151 = vshll.u32 %v5682, 16
  %v6153 = vrot.slane %v6151, 5
  %v6154 = vsel %vm5698, %v6149, %v6153
  %v6156 = vshrl.u32 %v5637, 16
  %v6158 = vrot.slane %v6156, 4
  %v6159 = vshll.u32 %v5637, 16
  %v6161 = vrot.slane %v6159, 5
  %v6162 = vor.u32 %v6158, %v6161
  %v6163 = vrot.slane %v6162, 4
  %v6165 = vshll.u32 %v5638, 16
  %v6167 = vrot.slane %v6165, 5
  %v6168 = vsel %vm5698, %v6163, %v6167
  %v6169 = vshrl.u32 %v5638, 16
  %v6171 = vrot.slane %v6169, 4
  %v6172 = vor.u32 %v6171, %v6167
  %v6173 = vrot.slane %v6172, 4
  %v6175 = vshll.u32 %v5683, 16
  %v6177 = vrot.slane %v6175, 5
  %v6178 = vsel %vm5698, %v6173, %v6177
  %v6180 = vshrl.u32 %v5639, 16
  %v6182 = vrot.slane %v6180, 4
  %v6183 = vshll.u32 %v5639, 16
  %v6185 = vrot.slane %v6183, 5
  %v6186 = vor.u32 %v6182, %v6185
  %v6187 = vrot.slane %v6186, 4
  %v6189 = vshll.u32 %v5640, 16
  %v6191 = vrot.slane %v6189, 5
  %v6192 = vsel %vm5698, %v6187, %v6191
  %v6193 = vshrl.u32 %v5640, 16
  %v6195 = vrot.slane %v6193, 4
  %v6196 = vor.u32 %v6195, %v6191
  %v6197 = vrot.slane %v6196, 4
  %v6199 = vshll.u32 %v5684, 16
  %v6201 = vrot.slane %v6199, 5
  %v6202 = vsel %vm5698, %v6197, %v6201
  %v6204 = vshrl.u32 %v5641, 16
  %v6206 = vrot.slane %v6204, 4
  %v6207 = vshll.u32 %v5641, 16
  %v6209 = vrot.slane %v6207, 5
  %v6210 = vor.u32 %v6206, %v6209
  %v6211 = vrot.slane %v6210, 4
  %v6213 = vshll.u32 %v5642, 16
  %v6215 = vrot.slane %v6213, 5
  %v6216 = vsel %vm5698, %v6211, %v6215
  %v6217 = vshrl.u32 %v5642, 16
  %v6219 = vrot.slane %v6217, 4
  %v6220 = vor.u32 %v6219, %v6215
  %v6221 = vrot.slane %v6220, 4
  %v6223 = vshll.u32 %v5685, 16
  %v6225 = vrot.slane %v6223, 5
  %v6226 = vsel %vm5698, %v6221, %v6225
  %v6228 = vshrl.u32 %v5643, 16
  %v6230 = vrot.slane %v6228, 4
  %v6231 = vshll.u32 %v5643, 16
  %v6233 = vrot.slane %v6231, 5
  %v6234 = vor.u32 %v6230, %v6233
  %v6235 = vrot.slane %v6234, 4
  %v6237 = vshll.u32 %v5644, 16
  %v6239 = vrot.slane %v6237, 5
  %v6240 = vsel %vm5698, %v6235, %v6239
  %v6241 = vshrl.u32 %v5644, 16
  %v6243 = vrot.slane %v6241, 4
  %v6244 = vor.u32 %v6243, %v6239
  %v6245 = vrot.slane %v6244, 4
  %v6247 = vshll.u32 %v5686, 16
  %v6249 = vrot.slane %v6247, 5
  %v6250 = vsel %vm5698, %v6245, %v6249
  %v6252 = vshrl.u32 %v5645, 16
  %v6254 = vrot.slane %v6252, 4
  %v6255 = vshll.u32 %v5645, 16
  %v6257 = vrot.slane %v6255, 5
  %v6258 = vor.u32 %v6254, %v6257
  %v6259 = vrot.slane %v6258, 4
  %v6261 = vshll.u32 %v5646, 16
  %v6263 = vrot.slane %v6261, 5
  %v6264 = vsel %vm5698, %v6259, %v6263
  %v6265 = vshrl.u32 %v5646, 16
  %v6267 = vrot.slane %v6265, 4
  %v6268 = vor.u32 %v6267, %v6263
  %v6269 = vrot.slane %v6268, 4
  %v6271 = vshll.u32 %v5687, 16
  %v6273 = vrot.slane %v6271, 5
  %v6274 = vsel %vm5698, %v6269, %v6273
  %v6276 = vshrl.u32 %v5647, 16
  %v6278 = vrot.slane %v6276, 4
  %v6279 = vshll.u32 %v5647, 16
  %v6281 = vrot.slane %v6279, 5
  %v6282 = vor.u32 %v6278, %v6281
  %v6283 = vrot.slane %v6282, 4
  %v6285 = vshll.u32 %v5648, 16
  %v6287 = vrot.slane %v6285, 5
  %v6288 = vsel %vm5698, %v6283, %v6287
  %v6289 = vshrl.u32 %v5648, 16
  %v6291 = vrot.slane %v6289, 4
  %v6292 = vor.u32 %v6291, %v6287
  %v6293 = vrot.slane %v6292, 4
  %v6295 = vshll.u32 %v5688, 16
  %v6297 = vrot.slane %v6295, 5
  %v6298 = vsel %vm5698, %v6293, %v6297
  %v6300 = vshrl.u32 %v5649, 16
  %v6302 = vrot.slane %v6300, 4
  %v6303 = vshll.u32 %v5649, 16
  %v6305 = vrot.slane %v6303, 5
  %v6306 = vor.u32 %v6302, %v6305
  %v6307 = vrot.slane %v6306, 4
  %v6309 = vshll.u32 %v5650, 16
  %v6311 = vrot.slane %v6309, 5
  %v6312 = vsel %vm5698, %v6307, %v6311
  %v6313 = vshrl.u32 %v5650, 16
  %v6315 = vrot.slane %v6313, 4
  %v6316 = vor.u32 %v6315, %v6311
  %v6317 = vrot.slane %v6316, 4
  %v6319 = vshll.u32 %v5689, 16
  %v6321 = vrot.slane %v6319, 5
  %v6322 = vsel %vm5698, %v6317, %v6321
  %v6324 = vshrl.u32 %v5651, 16
  %v6326 = vrot.slane %v6324, 4
  %v6327 = vshll.u32 %v5651, 16
  %v6329 = vrot.slane %v6327, 5
  %v6330 = vor.u32 %v6326, %v6329
  %v6331 = vrot.slane %v6330, 4
  %v6333 = vshll.u32 %v5652, 16
  %v6335 = vrot.slane %v6333, 5
  %v6336 = vsel %vm5698, %v6331, %v6335
  %v6337 = vshrl.u32 %v5652, 16
  %v6339 = vrot.slane %v6337, 4
  %v6340 = vor.u32 %v6339, %v6335
  %v6341 = vrot.slane %v6340, 4
  %v6343 = vshll.u32 %v5690, 16
  %v6345 = vrot.slane %v6343, 5
  %v6346 = vsel %vm5698, %v6341, %v6345
  %v6348 = vshrl.u32 %v5653, 16
  %v6350 = vrot.slane %v6348, 4
  %v6351 = vshll.u32 %v5653, 16
  %v6353 = vrot.slane %v6351, 5
  %v6354 = vor.u32 %v6350, %v6353
  %v6355 = vrot.slane %v6354, 4
  %v6357 = vshll.u32 %v5654, 16
  %v6359 = vrot.slane %v6357, 5
  %v6360 = vsel %vm5698, %v6355, %v6359
  %v6361 = vshrl.u32 %v5654, 16
  %v6363 = vrot.slane %v6361, 4
  %v6364 = vor.u32 %v6363, %v6359
  %v6365 = vrot.slane %v6364, 4
  %v6367 = vshll.u32 %v5691, 16
  %v6369 = vrot.slane %v6367, 5
  %v6370 = vsel %vm5698, %v6365, %v6369
  %v6372 = vshrl.u32 %v5655, 16
  %v6374 = vrot.slane %v6372, 4
  %v6375 = vshll.u32 %v5655, 16
  %v6377 = vrot.slane %v6375, 5
  %v6378 = vor.u32 %v6374, %v6377
  %v6379 = vrot.slane %v6378, 4
  %v6381 = vshll.u32 %v5656, 16
  %v6383 = vrot.slane %v6381, 5
  %v6384 = vsel %vm5698, %v6379, %v6383
  %v6385 = vshrl.u32 %v5656, 16
  %v6387 = vrot.slane %v6385, 4
  %v6388 = vor.u32 %v6387, %v6383
  %v6389 = vrot.slane %v6388, 4
  %v6391 = vshll.u32 %v5692, 16
  %v6393 = vrot.slane %v6391, 5
  %v6394 = vsel %vm5698, %v6389, %v6393
  %v6396 = vshrl.u32 %v5657, 16
  %v6398 = vrot.slane %v6396, 4
  %v6399 = vshll.u32 %v5657, 16
  %v6401 = vrot.slane %v6399, 5
  %v6402 = vor.u32 %v6398, %v6401
  %v6403 = vrot.slane %v6402, 4
  %v6405 = vshll.u32 %v5658, 16
  %v6407 = vrot.slane %v6405, 5
  %v6408 = vsel %vm5698, %v6403, %v6407
  %v6409 = vshrl.u32 %v5658, 16
  %v6411 = vrot.slane %v6409, 4
  %v6412 = vor.u32 %v6411, %v6407
  %v6413 = vrot.slane %v6412, 4
  %v6415 = vshll.u32 %v5693, 16
  %v6417 = vrot.slane %v6415, 5
  %v6418 = vsel %vm5698, %v6413, %v6417
  %v6420 = vshrl.u32 %v5659, 16
  %v6422 = vrot.slane %v6420, 4
  %v6423 = vshll.u32 %v5659, 16
  %v6425 = vrot.slane %v6423, 5
  %v6426 = vor.u32 %v6422, %v6425
  %v6427 = vrot.slane %v6426, 4
  %v6429 = vshll.u32 %v5660, 16
  %v6431 = vrot.slane %v6429, 5
  %v6432 = vsel %vm5698, %v6427, %v6431
  %v6433 = vshrl.u32 %v5660, 16
  %v6435 = vrot.slane %v6433, 4
  %v6436 = vor.u32 %v6435, %v6431
  %v6437 = vrot.slane %v6436, 4
  %v6439 = vshll.u32 %v5694, 16
  %v6441 = vrot.slane %v6439, 5
  %v6442 = vsel %vm5698, %v6437, %v6441
  %v6444 = vshrl.u32 %v5661, 16
  %v6446 = vrot.slane %v6444, 4
  %v6447 = vshll.u32 %v5661, 16
  %v6449 = vrot.slane %v6447, 5
  %v6450 = vor.u32 %v6446, %v6449
  %v6451 = vrot.slane %v6450, 4
  %v6453 = vshll.u32 %v5662, 16
  %v6455 = vrot.slane %v6453, 5
  %v6456 = vsel %vm5698, %v6451, %v6455
  %v6457 = vshrl.u32 %v5662, 16
  %v6459 = vrot.slane %v6457, 4
  %v6460 = vor.u32 %v6459, %v6455
  %v6461 = vrot.slane %v6460, 4
  %v6463 = vshll.u32 %v5695, 16
  %v6465 = vrot.slane %v6463, 5
  %v6466 = vsel %vm5698, %v6461, %v6465
  %s6467 = scalar_lea.vmem %s4, 2
  %v6468 = vld [vmem:[%s6467] sm:$0x3]
  %v6469 = vunpack.c.l.b16 %v5712
  %v6470 = vunpack.c.l.b16 %v5722
  %v6471 = vunpack.c.l.b16 %v5736
  %v6472 = vunpack.c.l.b16 %v5746
  %v6473 = vunpack.c.l.b16 %v5760
  %v6474 = vunpack.c.l.b16 %v5770
  %v6475 = vunpack.c.l.b16 %v5784
  %v6476 = vunpack.c.l.b16 %v5794
  %v6477 = vunpack.c.l.b16 %v5808
  %v6478 = vunpack.c.l.b16 %v5818
  %v6479 = vunpack.c.l.b16 %v5832
  %v6480 = vunpack.c.l.b16 %v5842
  %v6481 = vunpack.c.l.b16 %v5856
  %v6482 = vunpack.c.l.b16 %v5866
  %v6483 = vunpack.c.l.b16 %v5880
  %v6484 = vunpack.c.l.b16 %v5890
  %v6485 = vunpack.c.l.b16 %v5904
  %v6486 = vunpack.c.l.b16 %v5914
  %v6487 = vunpack.c.l.b16 %v5928
  %v6488 = vunpack.c.l.b16 %v5938
  %v6489 = vunpack.c.l.b16 %v5952
  %v6490 = vunpack.c.l.b16 %v5962
  %v6491 = vunpack.c.l.b16 %v5976
  %v6492 = vunpack.c.l.b16 %v5986
  %v6493 = vunpack.c.l.b16 %v6000
  %v6494 = vunpack.c.l.b16 %v6010
  %v6495 = vunpack.c.l.b16 %v6024
  %v6496 = vunpack.c.l.b16 %v6034
  %v6497 = vunpack.c.l.b16 %v6048
  %v6498 = vunpack.c.l.b16 %v6058
  %v6499 = vunpack.c.l.b16 %v6072
  %v6500 = vunpack.c.l.b16 %v6082
  %v6501 = vunpack.c.l.b16 %v6096
  %v6502 = vunpack.c.l.b16 %v6106
  %v6503 = vunpack.c.l.b16 %v6120
  %v6504 = vunpack.c.l.b16 %v6130
  %v6505 = vunpack.c.l.b16 %v6144
  %v6506 = vunpack.c.l.b16 %v6154
  %v6507 = vunpack.c.l.b16 %v6168
  %v6508 = vunpack.c.l.b16 %v6178
  %v6509 = vunpack.c.l.b16 %v6192
  %v6510 = vunpack.c.l.b16 %v6202
  %v6511 = vunpack.c.l.b16 %v6216
  %v6512 = vunpack.c.l.b16 %v6226
  %v6513 = vunpack.c.l.b16 %v6240
  %v6514 = vunpack.c.l.b16 %v6250
  %v6515 = vunpack.c.l.b16 %v6264
  %v6516 = vunpack.c.l.b16 %v6274
  %v6517 = vunpack.c.l.b16 %v6288
  %v6518 = vunpack.c.l.b16 %v6298
  %v6519 = vunpack.c.l.b16 %v6312
  %v6520 = vunpack.c.l.b16 %v6322
  %v6521 = vunpack.c.l.b16 %v6336
  %v6522 = vunpack.c.l.b16 %v6346
  %v6523 = vunpack.c.l.b16 %v6360
  %v6524 = vunpack.c.l.b16 %v6370
  %v6525 = vunpack.c.l.b16 %v6384
  %v6526 = vunpack.c.l.b16 %v6394
  %v6527 = vunpack.c.l.b16 %v6408
  %v6528 = vunpack.c.l.b16 %v6418
  %v6529 = vunpack.c.l.b16 %v6432
  %v6530 = vunpack.c.l.b16 %v6442
  %v6531 = vunpack.c.l.b16 %v6456
  %v6532 = vunpack.c.l.b16 %v6466
  %v6533 = vpack.c.b16 %v6470, %v6469
  %v6534 = vpack.c.b16 %v6472, %v6471
  %v6535 = vpack.c.b16 %v6474, %v6473
  %v6536 = vpack.c.b16 %v6476, %v6475
  %v6537 = vpack.c.b16 %v6478, %v6477
  %v6538 = vpack.c.b16 %v6480, %v6479
  %v6539 = vpack.c.b16 %v6482, %v6481
  %v6540 = vpack.c.b16 %v6484, %v6483
  %v6541 = vpack.c.b16 %v6486, %v6485
  %v6542 = vpack.c.b16 %v6488, %v6487
  %v6543 = vpack.c.b16 %v6490, %v6489
  %v6544 = vpack.c.b16 %v6492, %v6491
  %v6545 = vpack.c.b16 %v6494, %v6493
  %v6546 = vpack.c.b16 %v6496, %v6495
  %v6547 = vpack.c.b16 %v6498, %v6497
  %v6548 = vpack.c.b16 %v6500, %v6499
  %v6549 = vpack.c.b16 %v6502, %v6501
  %v6550 = vpack.c.b16 %v6504, %v6503
  %v6551 = vpack.c.b16 %v6506, %v6505
  %v6552 = vpack.c.b16 %v6508, %v6507
  %v6553 = vpack.c.b16 %v6510, %v6509
  %v6554 = vpack.c.b16 %v6512, %v6511
  %v6555 = vpack.c.b16 %v6514, %v6513
  %v6556 = vpack.c.b16 %v6516, %v6515
  %v6557 = vpack.c.b16 %v6518, %v6517
  %v6558 = vpack.c.b16 %v6520, %v6519
  %v6559 = vpack.c.b16 %v6522, %v6521
  %v6560 = vpack.c.b16 %v6524, %v6523
  %v6561 = vpack.c.b16 %v6526, %v6525
  %v6562 = vpack.c.b16 %v6528, %v6527
  %v6563 = vpack.c.b16 %v6530, %v6529
  %v6564 = vpack.c.b16 %v6532, %v6531
  %v6566 = vsel %vm439, %v6533, 0
  %v6569 = vsel %vm439, %v6534, 0
  %v6572 = vsel %vm439, %v6535, 0
  %v6575 = vsel %vm439, %v6536, 0
  %v6578 = vsel %vm439, %v6537, 0
  %v6581 = vsel %vm439, %v6538, 0
  %v6584 = vsel %vm439, %v6539, 0
  %v6587 = vsel %vm439, %v6540, 0
  %v6590 = vsel %vm439, %v6541, 0
  %v6593 = vsel %vm439, %v6542, 0
  %v6596 = vsel %vm439, %v6543, 0
  %v6599 = vsel %vm439, %v6544, 0
  %v6602 = vsel %vm439, %v6545, 0
  %v6605 = vsel %vm439, %v6546, 0
  %v6608 = vsel %vm439, %v6547, 0
  %v6611 = vsel %vm439, %v6548, 0
  %v6614 = vsel %vm439, %v6549, 0
  %v6617 = vsel %vm439, %v6550, 0
  %v6620 = vsel %vm439, %v6551, 0
  %v6623 = vsel %vm439, %v6552, 0
  %v6626 = vsel %vm439, %v6553, 0
  %v6629 = vsel %vm439, %v6554, 0
  %v6632 = vsel %vm439, %v6555, 0
  %v6635 = vsel %vm439, %v6556, 0
  %v6638 = vsel %vm439, %v6557, 0
  %v6641 = vsel %vm439, %v6558, 0
  %v6644 = vsel %vm439, %v6559, 0
  %v6647 = vsel %vm439, %v6560, 0
  %v6650 = vsel %vm439, %v6561, 0
  %v6653 = vsel %vm439, %v6562, 0
  %v6656 = vsel %vm439, %v6563, 0
  %v6659 = vsel %vm439, %v6564, 0
  %v6662 = vsel %vm536, %v6468, 0
  %6664 = vmatpush.bf16.msra.mxu0 0
  %6665 = vmatpush.bf16.msra.mxu0 0
  %6666 = vmatpush.bf16.msra.mxu0 0
  %6667 = vmatpush.bf16.msra.mxu0 0
  %6668 = vmatpush.bf16.msra.mxu0 0
  %6669 = vmatpush.bf16.msra.mxu0 0
  %6670 = vmatpush.bf16.msra.mxu0 0
  %6671 = vmatpush.bf16.msra.mxu0 %v6662
  %6672 = vmatmul.bf16.gmra.mxu0 %v6566
  %v6673 = vpop.f32.mrf.mxu0
  %v6674 = vadd.f32 0.0, %v6673
  %v6675 = vpop.f32.mrf.mxu0
  %v6676 = vadd.f32 0.0, %v6675
  %6677 = vmatmul.bf16.gmra.mxu0 %v6569
  %v6678 = vpop.f32.mrf.mxu0
  %v6679 = vadd.f32 0.0, %v6678
  %v6680 = vpop.f32.mrf.mxu0
  %v6681 = vadd.f32 0.0, %v6680
  %6682 = vmatmul.bf16.gmra.mxu0 %v6572
  %v6683 = vpop.f32.mrf.mxu0
  %v6684 = vadd.f32 0.0, %v6683
  %v6685 = vpop.f32.mrf.mxu0
  %v6686 = vadd.f32 0.0, %v6685
  %6687 = vmatmul.bf16.gmra.mxu0 %v6575
  %v6688 = vpop.f32.mrf.mxu0
  %v6689 = vadd.f32 0.0, %v6688
  %v6690 = vpop.f32.mrf.mxu0
  %v6691 = vadd.f32 0.0, %v6690
  %6692 = vmatmul.bf16.gmra.mxu0 %v6578
  %v6693 = vpop.f32.mrf.mxu0
  %v6694 = vadd.f32 0.0, %v6693
  %v6695 = vpop.f32.mrf.mxu0
  %v6696 = vadd.f32 0.0, %v6695
  %6697 = vmatmul.bf16.gmra.mxu0 %v6581
  %v6698 = vpop.f32.mrf.mxu0
  %v6699 = vadd.f32 0.0, %v6698
  %v6700 = vpop.f32.mrf.mxu0
  %v6701 = vadd.f32 0.0, %v6700
  %6702 = vmatmul.bf16.gmra.mxu0 %v6584
  %v6703 = vpop.f32.mrf.mxu0
  %v6704 = vadd.f32 0.0, %v6703
  %v6705 = vpop.f32.mrf.mxu0
  %v6706 = vadd.f32 0.0, %v6705
  %6707 = vmatmul.bf16.gmra.mxu0 %v6587
  %v6708 = vpop.f32.mrf.mxu0
  %v6709 = vadd.f32 0.0, %v6708
  %v6710 = vpop.f32.mrf.mxu0
  %v6711 = vadd.f32 0.0, %v6710
  %6712 = vmatmul.bf16.gmra.mxu0 %v6590
  %v6713 = vpop.f32.mrf.mxu0
  %v6714 = vadd.f32 0.0, %v6713
  %v6715 = vpop.f32.mrf.mxu0
  %v6716 = vadd.f32 0.0, %v6715
  %6717 = vmatmul.bf16.gmra.mxu0 %v6593
  %v6718 = vpop.f32.mrf.mxu0
  %v6719 = vadd.f32 0.0, %v6718
  %v6720 = vpop.f32.mrf.mxu0
  %v6721 = vadd.f32 0.0, %v6720
  %6722 = vmatmul.bf16.gmra.mxu0 %v6596
  %v6723 = vpop.f32.mrf.mxu0
  %v6724 = vadd.f32 0.0, %v6723
  %v6725 = vpop.f32.mrf.mxu0
  %v6726 = vadd.f32 0.0, %v6725
  %6727 = vmatmul.bf16.gmra.mxu0 %v6599
  %v6728 = vpop.f32.mrf.mxu0
  %v6729 = vadd.f32 0.0, %v6728
  %v6730 = vpop.f32.mrf.mxu0
  %v6731 = vadd.f32 0.0, %v6730
  %6732 = vmatmul.bf16.gmra.mxu0 %v6602
  %v6733 = vpop.f32.mrf.mxu0
  %v6734 = vadd.f32 0.0, %v6733
  %v6735 = vpop.f32.mrf.mxu0
  %v6736 = vadd.f32 0.0, %v6735
  %6737 = vmatmul.bf16.gmra.mxu0 %v6605
  %v6738 = vpop.f32.mrf.mxu0
  %v6739 = vadd.f32 0.0, %v6738
  %v6740 = vpop.f32.mrf.mxu0
  %v6741 = vadd.f32 0.0, %v6740
  %6742 = vmatmul.bf16.gmra.mxu0 %v6608
  %v6743 = vpop.f32.mrf.mxu0
  %v6744 = vadd.f32 0.0, %v6743
  %v6745 = vpop.f32.mrf.mxu0
  %v6746 = vadd.f32 0.0, %v6745
  %6747 = vmatmul.bf16.gmra.mxu0 %v6611
  %v6748 = vpop.f32.mrf.mxu0
  %v6749 = vadd.f32 0.0, %v6748
  %v6750 = vpop.f32.mrf.mxu0
  %v6751 = vadd.f32 0.0, %v6750
  %6752 = vmatmul.bf16.gmra.mxu0 %v6614
  %v6753 = vpop.f32.mrf.mxu0
  %v6754 = vadd.f32 0.0, %v6753
  %v6755 = vpop.f32.mrf.mxu0
  %v6756 = vadd.f32 0.0, %v6755
  %6757 = vmatmul.bf16.gmra.mxu0 %v6617
  %v6758 = vpop.f32.mrf.mxu0
  %v6759 = vadd.f32 0.0, %v6758
  %v6760 = vpop.f32.mrf.mxu0
  %v6761 = vadd.f32 0.0, %v6760
  %6762 = vmatmul.bf16.gmra.mxu0 %v6620
  %v6763 = vpop.f32.mrf.mxu0
  %v6764 = vadd.f32 0.0, %v6763
  %v6765 = vpop.f32.mrf.mxu0
  %v6766 = vadd.f32 0.0, %v6765
  %6767 = vmatmul.bf16.gmra.mxu0 %v6623
  %v6768 = vpop.f32.mrf.mxu0
  %v6769 = vadd.f32 0.0, %v6768
  %v6770 = vpop.f32.mrf.mxu0
  %v6771 = vadd.f32 0.0, %v6770
  %6772 = vmatmul.bf16.gmra.mxu0 %v6626
  %v6773 = vpop.f32.mrf.mxu0
  %v6774 = vadd.f32 0.0, %v6773
  %v6775 = vpop.f32.mrf.mxu0
  %v6776 = vadd.f32 0.0, %v6775
  %6777 = vmatmul.bf16.gmra.mxu0 %v6629
  %v6778 = vpop.f32.mrf.mxu0
  %v6779 = vadd.f32 0.0, %v6778
  %v6780 = vpop.f32.mrf.mxu0
  %v6781 = vadd.f32 0.0, %v6780
  %6782 = vmatmul.bf16.gmra.mxu0 %v6632
  %v6783 = vpop.f32.mrf.mxu0
  %v6784 = vadd.f32 0.0, %v6783
  %v6785 = vpop.f32.mrf.mxu0
  %v6786 = vadd.f32 0.0, %v6785
  %6787 = vmatmul.bf16.gmra.mxu0 %v6635
  %v6788 = vpop.f32.mrf.mxu0
  %v6789 = vadd.f32 0.0, %v6788
  %v6790 = vpop.f32.mrf.mxu0
  %v6791 = vadd.f32 0.0, %v6790
  %6792 = vmatmul.bf16.gmra.mxu0 %v6638
  %v6793 = vpop.f32.mrf.mxu0
  %v6794 = vadd.f32 0.0, %v6793
  %v6795 = vpop.f32.mrf.mxu0
  %v6796 = vadd.f32 0.0, %v6795
  %6797 = vmatmul.bf16.gmra.mxu0 %v6641
  %v6798 = vpop.f32.mrf.mxu0
  %v6799 = vadd.f32 0.0, %v6798
  %v6800 = vpop.f32.mrf.mxu0
  %v6801 = vadd.f32 0.0, %v6800
  %6802 = vmatmul.bf16.gmra.mxu0 %v6644
  %v6803 = vpop.f32.mrf.mxu0
  %v6804 = vadd.f32 0.0, %v6803
  %v6805 = vpop.f32.mrf.mxu0
  %v6806 = vadd.f32 0.0, %v6805
  %6807 = vmatmul.bf16.gmra.mxu0 %v6647
  %v6808 = vpop.f32.mrf.mxu0
  %v6809 = vadd.f32 0.0, %v6808
  %v6810 = vpop.f32.mrf.mxu0
  %v6811 = vadd.f32 0.0, %v6810
  %6812 = vmatmul.bf16.gmra.mxu0 %v6650
  %v6813 = vpop.f32.mrf.mxu0
  %v6814 = vadd.f32 0.0, %v6813
  %v6815 = vpop.f32.mrf.mxu0
  %v6816 = vadd.f32 0.0, %v6815
  %6817 = vmatmul.bf16.gmra.mxu0 %v6653
  %v6818 = vpop.f32.mrf.mxu0
  %v6819 = vadd.f32 0.0, %v6818
  %v6820 = vpop.f32.mrf.mxu0
  %v6821 = vadd.f32 0.0, %v6820
  %6822 = vmatmul.bf16.gmra.mxu0 %v6656
  %v6823 = vpop.f32.mrf.mxu0
  %v6824 = vadd.f32 0.0, %v6823
  %v6825 = vpop.f32.mrf.mxu0
  %v6826 = vadd.f32 0.0, %v6825
  %6827 = vmatmul.bf16.gmra.mxu0 %v6659
  %v6828 = vpop.f32.mrf.mxu0
  %v6829 = vadd.f32 0.0, %v6828
  %v6830 = vpop.f32.mrf.mxu0
  %v6831 = vadd.f32 0.0, %v6830
  %6832 = vdwg.mxu0
  %v6897 = vunpack.c.l.b16 %v5599
  %v6898 = vunpack.c.l.b16 %v5600
  %v6899 = vunpack.c.l.b16 %v5601
  %v6900 = vunpack.c.l.b16 %v5602
  %v6901 = vunpack.c.l.b16 %v5603
  %v6902 = vunpack.c.l.b16 %v5604
  %v6903 = vunpack.c.l.b16 %v5605
  %v6904 = vunpack.c.l.b16 %v5606
  %v6905 = vunpack.c.l.b16 %v5607
  %v6906 = vunpack.c.l.b16 %v5608
  %v6907 = vunpack.c.l.b16 %v5609
  %v6908 = vunpack.c.l.b16 %v5610
  %v6909 = vunpack.c.l.b16 %v5611
  %v6910 = vunpack.c.l.b16 %v5612
  %v6911 = vunpack.c.l.b16 %v5613
  %v6912 = vunpack.c.l.b16 %v5614
  %v6913 = vunpack.c.l.b16 %v5615
  %v6914 = vunpack.c.l.b16 %v5616
  %v6915 = vunpack.c.l.b16 %v5617
  %v6916 = vunpack.c.l.b16 %v5618
  %v6917 = vunpack.c.l.b16 %v5619
  %v6918 = vunpack.c.l.b16 %v5620
  %v6919 = vunpack.c.l.b16 %v5621
  %v6920 = vunpack.c.l.b16 %v5622
  %v6921 = vunpack.c.l.b16 %v5623
  %v6922 = vunpack.c.l.b16 %v5624
  %v6923 = vunpack.c.l.b16 %v5625
  %v6924 = vunpack.c.l.b16 %v5626
  %v6925 = vunpack.c.l.b16 %v5627
  %v6926 = vunpack.c.l.b16 %v5628
  %v6927 = vunpack.c.l.b16 %v5629
  %v6928 = vunpack.c.l.b16 %v5630
  %v6929 = vunpack.c.l.b16 %v5631
  %v6930 = vunpack.c.l.b16 %v5632
  %v6931 = vunpack.c.l.b16 %v5633
  %v6932 = vunpack.c.l.b16 %v5634
  %v6933 = vunpack.c.l.b16 %v5635
  %v6934 = vunpack.c.l.b16 %v5636
  %v6935 = vunpack.c.l.b16 %v5637
  %v6936 = vunpack.c.l.b16 %v5638
  %v6937 = vunpack.c.l.b16 %v5639
  %v6938 = vunpack.c.l.b16 %v5640
  %v6939 = vunpack.c.l.b16 %v5641
  %v6940 = vunpack.c.l.b16 %v5642
  %v6941 = vunpack.c.l.b16 %v5643
  %v6942 = vunpack.c.l.b16 %v5644
  %v6943 = vunpack.c.l.b16 %v5645
  %v6944 = vunpack.c.l.b16 %v5646
  %v6945 = vunpack.c.l.b16 %v5647
  %v6946 = vunpack.c.l.b16 %v5648
  %v6947 = vunpack.c.l.b16 %v5649
  %v6948 = vunpack.c.l.b16 %v5650
  %v6949 = vunpack.c.l.b16 %v5651
  %v6950 = vunpack.c.l.b16 %v5652
  %v6951 = vunpack.c.l.b16 %v5653
  %v6952 = vunpack.c.l.b16 %v5654
  %v6953 = vunpack.c.l.b16 %v5655
  %v6954 = vunpack.c.l.b16 %v5656
  %v6955 = vunpack.c.l.b16 %v5657
  %v6956 = vunpack.c.l.b16 %v5658
  %v6957 = vunpack.c.l.b16 %v5659
  %v6958 = vunpack.c.l.b16 %v5660
  %v6959 = vunpack.c.l.b16 %v5661
  %v6960 = vunpack.c.l.b16 %v5662
  %v6961 = vpack.c.b16 %v6898, %v6897
  %v6962 = vpack.c.b16 %v6900, %v6899
  %v6963 = vpack.c.b16 %v6902, %v6901
  %v6964 = vpack.c.b16 %v6904, %v6903
  %v6965 = vpack.c.b16 %v6906, %v6905
  %v6966 = vpack.c.b16 %v6908, %v6907
  %v6967 = vpack.c.b16 %v6910, %v6909
  %v6968 = vpack.c.b16 %v6912, %v6911
  %v6969 = vpack.c.b16 %v6914, %v6913
  %v6970 = vpack.c.b16 %v6916, %v6915
  %v6971 = vpack.c.b16 %v6918, %v6917
  %v6972 = vpack.c.b16 %v6920, %v6919
  %v6973 = vpack.c.b16 %v6922, %v6921
  %v6974 = vpack.c.b16 %v6924, %v6923
  %v6975 = vpack.c.b16 %v6926, %v6925
  %v6976 = vpack.c.b16 %v6928, %v6927
  %v6977 = vpack.c.b16 %v6930, %v6929
  %v6978 = vpack.c.b16 %v6932, %v6931
  %v6979 = vpack.c.b16 %v6934, %v6933
  %v6980 = vpack.c.b16 %v6936, %v6935
  %v6981 = vpack.c.b16 %v6938, %v6937
  %v6982 = vpack.c.b16 %v6940, %v6939
  %v6983 = vpack.c.b16 %v6942, %v6941
  %v6984 = vpack.c.b16 %v6944, %v6943
  %v6985 = vpack.c.b16 %v6946, %v6945
  %v6986 = vpack.c.b16 %v6948, %v6947
  %v6987 = vpack.c.b16 %v6950, %v6949
  %v6988 = vpack.c.b16 %v6952, %v6951
  %v6989 = vpack.c.b16 %v6954, %v6953
  %v6990 = vpack.c.b16 %v6956, %v6955
  %v6991 = vpack.c.b16 %v6958, %v6957
  %v6992 = vpack.c.b16 %v6960, %v6959
  %v6994 = vsel %vm439, %v6961, 0
  %v6997 = vsel %vm439, %v6962, 0
  %v7000 = vsel %vm439, %v6963, 0
  %v7003 = vsel %vm439, %v6964, 0
  %v7006 = vsel %vm439, %v6965, 0
  %v7009 = vsel %vm439, %v6966, 0
  %v7012 = vsel %vm439, %v6967, 0
  %v7015 = vsel %vm439, %v6968, 0
  %v7018 = vsel %vm439, %v6969, 0
  %v7021 = vsel %vm439, %v6970, 0
  %v7024 = vsel %vm439, %v6971, 0
  %v7027 = vsel %vm439, %v6972, 0
  %v7030 = vsel %vm439, %v6973, 0
  %v7033 = vsel %vm439, %v6974, 0
  %v7036 = vsel %vm439, %v6975, 0
  %v7039 = vsel %vm439, %v6976, 0
  %v7042 = vsel %vm439, %v6977, 0
  %v7045 = vsel %vm439, %v6978, 0
  %v7048 = vsel %vm439, %v6979, 0
  %v7051 = vsel %vm439, %v6980, 0
  %v7054 = vsel %vm439, %v6981, 0
  %v7057 = vsel %vm439, %v6982, 0
  %v7060 = vsel %vm439, %v6983, 0
  %v7063 = vsel %vm439, %v6984, 0
  %v7066 = vsel %vm439, %v6985, 0
  %v7069 = vsel %vm439, %v6986, 0
  %v7072 = vsel %vm439, %v6987, 0
  %v7075 = vsel %vm439, %v6988, 0
  %v7078 = vsel %vm439, %v6989, 0
  %v7081 = vsel %vm439, %v6990, 0
  %v7084 = vsel %vm439, %v6991, 0
  %v7087 = vsel %vm439, %v6992, 0
  %v7090 = vsel %vm536, %v5663, 0
  %7092 = vmatpush.bf16.msra.mxu0 0
  %7093 = vmatpush.bf16.msra.mxu0 0
  %7094 = vmatpush.bf16.msra.mxu0 0
  %7095 = vmatpush.bf16.msra.mxu0 0
  %7096 = vmatpush.bf16.msra.mxu0 0
  %7097 = vmatpush.bf16.msra.mxu0 0
  %7098 = vmatpush.bf16.msra.mxu0 0
  %7099 = vmatpush.bf16.msra.mxu0 %v7090
  %7100 = vmatmul.bf16.gmra.mxu0 %v6994
  %v7101 = vpop.f32.mrf.mxu0
  %v7102 = vadd.f32 %v6674, %v7101
  %v7103 = vpop.f32.mrf.mxu0
  %v7104 = vadd.f32 %v6676, %v7103
  %7105 = vmatmul.bf16.gmra.mxu0 %v6997
  %v7106 = vpop.f32.mrf.mxu0
  %v7107 = vadd.f32 %v6679, %v7106
  %v7108 = vpop.f32.mrf.mxu0
  %v7109 = vadd.f32 %v6681, %v7108
  %7110 = vmatmul.bf16.gmra.mxu0 %v7000
  %v7111 = vpop.f32.mrf.mxu0
  %v7112 = vadd.f32 %v6684, %v7111
  %v7113 = vpop.f32.mrf.mxu0
  %v7114 = vadd.f32 %v6686, %v7113
  %7115 = vmatmul.bf16.gmra.mxu0 %v7003
  %v7116 = vpop.f32.mrf.mxu0
  %v7117 = vadd.f32 %v6689, %v7116
  %v7118 = vpop.f32.mrf.mxu0
  %v7119 = vadd.f32 %v6691, %v7118
  %7120 = vmatmul.bf16.gmra.mxu0 %v7006
  %v7121 = vpop.f32.mrf.mxu0
  %v7122 = vadd.f32 %v6694, %v7121
  %v7123 = vpop.f32.mrf.mxu0
  %v7124 = vadd.f32 %v6696, %v7123
  %7125 = vmatmul.bf16.gmra.mxu0 %v7009
  %v7126 = vpop.f32.mrf.mxu0
  %v7127 = vadd.f32 %v6699, %v7126
  %v7128 = vpop.f32.mrf.mxu0
  %v7129 = vadd.f32 %v6701, %v7128
  %7130 = vmatmul.bf16.gmra.mxu0 %v7012
  %v7131 = vpop.f32.mrf.mxu0
  %v7132 = vadd.f32 %v6704, %v7131
  %v7133 = vpop.f32.mrf.mxu0
  %v7134 = vadd.f32 %v6706, %v7133
  %7135 = vmatmul.bf16.gmra.mxu0 %v7015
  %v7136 = vpop.f32.mrf.mxu0
  %v7137 = vadd.f32 %v6709, %v7136
  %v7138 = vpop.f32.mrf.mxu0
  %v7139 = vadd.f32 %v6711, %v7138
  %7140 = vmatmul.bf16.gmra.mxu0 %v7018
  %v7141 = vpop.f32.mrf.mxu0
  %v7142 = vadd.f32 %v6714, %v7141
  %v7143 = vpop.f32.mrf.mxu0
  %v7144 = vadd.f32 %v6716, %v7143
  %7145 = vmatmul.bf16.gmra.mxu0 %v7021
  %v7146 = vpop.f32.mrf.mxu0
  %v7147 = vadd.f32 %v6719, %v7146
  %v7148 = vpop.f32.mrf.mxu0
  %v7149 = vadd.f32 %v6721, %v7148
  %7150 = vmatmul.bf16.gmra.mxu0 %v7024
  %v7151 = vpop.f32.mrf.mxu0
  %v7152 = vadd.f32 %v6724, %v7151
  %v7153 = vpop.f32.mrf.mxu0
  %v7154 = vadd.f32 %v6726, %v7153
  %7155 = vmatmul.bf16.gmra.mxu0 %v7027
  %v7156 = vpop.f32.mrf.mxu0
  %v7157 = vadd.f32 %v6729, %v7156
  %v7158 = vpop.f32.mrf.mxu0
  %v7159 = vadd.f32 %v6731, %v7158
  %7160 = vmatmul.bf16.gmra.mxu0 %v7030
  %v7161 = vpop.f32.mrf.mxu0
  %v7162 = vadd.f32 %v6734, %v7161
  %v7163 = vpop.f32.mrf.mxu0
  %v7164 = vadd.f32 %v6736, %v7163
  %7165 = vmatmul.bf16.gmra.mxu0 %v7033
  %v7166 = vpop.f32.mrf.mxu0
  %v7167 = vadd.f32 %v6739, %v7166
  %v7168 = vpop.f32.mrf.mxu0
  %v7169 = vadd.f32 %v6741, %v7168
  %7170 = vmatmul.bf16.gmra.mxu0 %v7036
  %v7171 = vpop.f32.mrf.mxu0
  %v7172 = vadd.f32 %v6744, %v7171
  %v7173 = vpop.f32.mrf.mxu0
  %v7174 = vadd.f32 %v6746, %v7173
  %7175 = vmatmul.bf16.gmra.mxu0 %v7039
  %v7176 = vpop.f32.mrf.mxu0
  %v7177 = vadd.f32 %v6749, %v7176
  %v7178 = vpop.f32.mrf.mxu0
  %v7179 = vadd.f32 %v6751, %v7178
  %7180 = vmatmul.bf16.gmra.mxu0 %v7042
  %v7181 = vpop.f32.mrf.mxu0
  %v7182 = vadd.f32 %v6754, %v7181
  %v7183 = vpop.f32.mrf.mxu0
  %v7184 = vadd.f32 %v6756, %v7183
  %7185 = vmatmul.bf16.gmra.mxu0 %v7045
  %v7186 = vpop.f32.mrf.mxu0
  %v7187 = vadd.f32 %v6759, %v7186
  %v7188 = vpop.f32.mrf.mxu0
  %v7189 = vadd.f32 %v6761, %v7188
  %7190 = vmatmul.bf16.gmra.mxu0 %v7048
  %v7191 = vpop.f32.mrf.mxu0
  %v7192 = vadd.f32 %v6764, %v7191
  %v7193 = vpop.f32.mrf.mxu0
  %v7194 = vadd.f32 %v6766, %v7193
  %7195 = vmatmul.bf16.gmra.mxu0 %v7051
  %v7196 = vpop.f32.mrf.mxu0
  %v7197 = vadd.f32 %v6769, %v7196
  %v7198 = vpop.f32.mrf.mxu0
  %v7199 = vadd.f32 %v6771, %v7198
  %7200 = vmatmul.bf16.gmra.mxu0 %v7054
  %v7201 = vpop.f32.mrf.mxu0
  %v7202 = vadd.f32 %v6774, %v7201
  %v7203 = vpop.f32.mrf.mxu0
  %v7204 = vadd.f32 %v6776, %v7203
  %7205 = vmatmul.bf16.gmra.mxu0 %v7057
  %v7206 = vpop.f32.mrf.mxu0
  %v7207 = vadd.f32 %v6779, %v7206
  %v7208 = vpop.f32.mrf.mxu0
  %v7209 = vadd.f32 %v6781, %v7208
  %7210 = vmatmul.bf16.gmra.mxu0 %v7060
  %v7211 = vpop.f32.mrf.mxu0
  %v7212 = vadd.f32 %v6784, %v7211
  %v7213 = vpop.f32.mrf.mxu0
  %v7214 = vadd.f32 %v6786, %v7213
  %7215 = vmatmul.bf16.gmra.mxu0 %v7063
  %v7216 = vpop.f32.mrf.mxu0
  %v7217 = vadd.f32 %v6789, %v7216
  %v7218 = vpop.f32.mrf.mxu0
  %v7219 = vadd.f32 %v6791, %v7218
  %7220 = vmatmul.bf16.gmra.mxu0 %v7066
  %v7221 = vpop.f32.mrf.mxu0
  %v7222 = vadd.f32 %v6794, %v7221
  %v7223 = vpop.f32.mrf.mxu0
  %v7224 = vadd.f32 %v6796, %v7223
  %7225 = vmatmul.bf16.gmra.mxu0 %v7069
  %v7226 = vpop.f32.mrf.mxu0
  %v7227 = vadd.f32 %v6799, %v7226
  %v7228 = vpop.f32.mrf.mxu0
  %v7229 = vadd.f32 %v6801, %v7228
  %7230 = vmatmul.bf16.gmra.mxu0 %v7072
  %v7231 = vpop.f32.mrf.mxu0
  %v7232 = vadd.f32 %v6804, %v7231
  %v7233 = vpop.f32.mrf.mxu0
  %v7234 = vadd.f32 %v6806, %v7233
  %7235 = vmatmul.bf16.gmra.mxu0 %v7075
  %v7236 = vpop.f32.mrf.mxu0
  %v7237 = vadd.f32 %v6809, %v7236
  %v7238 = vpop.f32.mrf.mxu0
  %v7239 = vadd.f32 %v6811, %v7238
  %7240 = vmatmul.bf16.gmra.mxu0 %v7078
  %v7241 = vpop.f32.mrf.mxu0
  %v7242 = vadd.f32 %v6814, %v7241
  %v7243 = vpop.f32.mrf.mxu0
  %v7244 = vadd.f32 %v6816, %v7243
  %7245 = vmatmul.bf16.gmra.mxu0 %v7081
  %v7246 = vpop.f32.mrf.mxu0
  %v7247 = vadd.f32 %v6819, %v7246
  %v7248 = vpop.f32.mrf.mxu0
  %v7249 = vadd.f32 %v6821, %v7248
  %7250 = vmatmul.bf16.gmra.mxu0 %v7084
  %v7251 = vpop.f32.mrf.mxu0
  %v7252 = vadd.f32 %v6824, %v7251
  %v7253 = vpop.f32.mrf.mxu0
  %v7254 = vadd.f32 %v6826, %v7253
  %7255 = vmatmul.bf16.gmra.mxu0 %v7087
  %v7256 = vpop.f32.mrf.mxu0
  %v7257 = vadd.f32 %v6829, %v7256
  %v7258 = vpop.f32.mrf.mxu0
  %v7259 = vadd.f32 %v6831, %v7258
  %7260 = vdwg.mxu0
  %v7261 = vld [vmem:[#allocation2] sm:$0xe]
  %v7262 = vld [vmem:[#allocation2 + $0xc] sm:$0xe]
  %v7263 = vld [vmem:[#allocation2 + $0x18] sm:$0xe]
  %v7264 = vld [vmem:[#allocation2 + $0x24] sm:$0xe]
  %v7265 = vld [vmem:[#allocation2 + $0x30] sm:$0xe]
  %v7266 = vld [vmem:[#allocation2 + $0x3c] sm:$0xe]
  %v7267 = vld [vmem:[#allocation2 + $0x48] sm:$0xe]
  %v7268 = vld [vmem:[#allocation2 + $0x54] sm:$0xe]
  %v7269 = vld [vmem:[#allocation2 + $0x60] sm:$0xe]
  %v7270 = vld [vmem:[#allocation2 + $0x6c] sm:$0xe]
  %v7271 = vld [vmem:[#allocation2 + $0x78] sm:$0xe]
  %v7272 = vld [vmem:[#allocation2 + $0x84] sm:$0xe]
  %v7273 = vld [vmem:[#allocation2 + $0x90] sm:$0xe]
  %v7274 = vld [vmem:[#allocation2 + $0x9c] sm:$0xe]
  %v7275 = vld [vmem:[#allocation2 + $0xa8] sm:$0xe]
  %v7276 = vld [vmem:[#allocation2 + $0xb4] sm:$0xe]
  %v7277 = vld [vmem:[#allocation2 + $0xd8] sm:$0xe]
  %v7278 = vld [vmem:[#allocation2 + $0xe4] sm:$0xe]
  %v7279 = vld [vmem:[#allocation2 + $0xf0] sm:$0xe]
  %v7280 = vld [vmem:[#allocation2 + $0xfc] sm:$0xe]
  %v7281 = vld [vmem:[#allocation2 + $0x108] sm:$0xe]
  %v7282 = vld [vmem:[#allocation2 + $0x114] sm:$0xe]
  %v7283 = vld [vmem:[#allocation2 + $0x120] sm:$0xe]
  %v7284 = vld [vmem:[#allocation2 + $0x12c] sm:$0xe]
  %v7285 = vld [vmem:[#allocation2 + $0x138] sm:$0xe]
  %v7286 = vld [vmem:[#allocation2 + $0x144] sm:$0xe]
  %v7287 = vld [vmem:[#allocation2 + $0x150] sm:$0xe]
  %v7288 = vld [vmem:[#allocation2 + $0x15c] sm:$0xe]
  %v7289 = vld [vmem:[#allocation2 + $0x168] sm:$0xe]
  %v7290 = vld [vmem:[#allocation2 + $0x174] sm:$0xe]
  %v7291 = vld [vmem:[#allocation2 + $0x180] sm:$0xe]
  %v7292 = vld [vmem:[#allocation2 + $0x18c] sm:$0xe]
  %vm7357 = vcmask 1042432
  %vm7358 = vcmask 1046532
  %vm7359 = vmor %vm7357, %vm7358
  %v7360 = vrot.slane %v7261, 5
  %v7361 = vrot.slane %v7360, 4
  %v7362 = vrot.slane %v5600, 5
  %v7363 = vsel %vm7359, %v7361, %v7362
  %v7364 = vrot.slane %v7362, 4
  %v7365 = vrot.slane %v5664, 5
  %v7366 = vsel %vm7359, %v7364, %v7365
  %v7367 = vrot.slane %v7262, 5
  %v7368 = vrot.slane %v7367, 4
  %v7369 = vrot.slane %v5602, 5
  %v7370 = vsel %vm7359, %v7368, %v7369
  %v7371 = vrot.slane %v7369, 4
  %v7372 = vrot.slane %v5665, 5
  %v7373 = vsel %vm7359, %v7371, %v7372
  %v7374 = vrot.slane %v7263, 5
  %v7375 = vrot.slane %v7374, 4
  %v7376 = vrot.slane %v5604, 5
  %v7377 = vsel %vm7359, %v7375, %v7376
  %v7378 = vrot.slane %v7376, 4
  %v7379 = vrot.slane %v5666, 5
  %v7380 = vsel %vm7359, %v7378, %v7379
  %v7381 = vrot.slane %v7264, 5
  %v7382 = vrot.slane %v7381, 4
  %v7383 = vrot.slane %v5606, 5
  %v7384 = vsel %vm7359, %v7382, %v7383
  %v7385 = vrot.slane %v7383, 4
  %v7386 = vrot.slane %v5667, 5
  %v7387 = vsel %vm7359, %v7385, %v7386
  %v7388 = vrot.slane %v7265, 5
  %v7389 = vrot.slane %v7388, 4
  %v7390 = vrot.slane %v5608, 5
  %v7391 = vsel %vm7359, %v7389, %v7390
  %v7392 = vrot.slane %v7390, 4
  %v7393 = vrot.slane %v5668, 5
  %v7394 = vsel %vm7359, %v7392, %v7393
  %v7395 = vrot.slane %v7266, 5
  %v7396 = vrot.slane %v7395, 4
  %v7397 = vrot.slane %v5610, 5
  %v7398 = vsel %vm7359, %v7396, %v7397
  %v7399 = vrot.slane %v7397, 4
  %v7400 = vrot.slane %v5669, 5
  %v7401 = vsel %vm7359, %v7399, %v7400
  %v7402 = vrot.slane %v7267, 5
  %v7403 = vrot.slane %v7402, 4
  %v7404 = vrot.slane %v5612, 5
  %v7405 = vsel %vm7359, %v7403, %v7404
  %v7406 = vrot.slane %v7404, 4
  %v7407 = vrot.slane %v5670, 5
  %v7408 = vsel %vm7359, %v7406, %v7407
  %v7409 = vrot.slane %v7268, 5
  %v7410 = vrot.slane %v7409, 4
  %v7411 = vrot.slane %v5614, 5
  %v7412 = vsel %vm7359, %v7410, %v7411
  %v7413 = vrot.slane %v7411, 4
  %v7414 = vrot.slane %v5671, 5
  %v7415 = vsel %vm7359, %v7413, %v7414
  %v7416 = vrot.slane %v7269, 5
  %v7417 = vrot.slane %v7416, 4
  %v7418 = vrot.slane %v5616, 5
  %v7419 = vsel %vm7359, %v7417, %v7418
  %v7420 = vrot.slane %v7418, 4
  %v7421 = vrot.slane %v5672, 5
  %v7422 = vsel %vm7359, %v7420, %v7421
  %v7423 = vrot.slane %v7270, 5
  %v7424 = vrot.slane %v7423, 4
  %v7425 = vrot.slane %v5618, 5
  %v7426 = vsel %vm7359, %v7424, %v7425
  %v7427 = vrot.slane %v7425, 4
  %v7428 = vrot.slane %v5673, 5
  %v7429 = vsel %vm7359, %v7427, %v7428
  %v7430 = vrot.slane %v7271, 5
  %v7431 = vrot.slane %v7430, 4
  %v7432 = vrot.slane %v5620, 5
  %v7433 = vsel %vm7359, %v7431, %v7432
  %v7434 = vrot.slane %v7432, 4
  %v7435 = vrot.slane %v5674, 5
  %v7436 = vsel %vm7359, %v7434, %v7435
  %v7437 = vrot.slane %v7272, 5
  %v7438 = vrot.slane %v7437, 4
  %v7439 = vrot.slane %v5622, 5
  %v7440 = vsel %vm7359, %v7438, %v7439
  %v7441 = vrot.slane %v7439, 4
  %v7442 = vrot.slane %v5675, 5
  %v7443 = vsel %vm7359, %v7441, %v7442
  %v7444 = vrot.slane %v7273, 5
  %v7445 = vrot.slane %v7444, 4
  %v7446 = vrot.slane %v5624, 5
  %v7447 = vsel %vm7359, %v7445, %v7446
  %v7448 = vrot.slane %v7446, 4
  %v7449 = vrot.slane %v5676, 5
  %v7450 = vsel %vm7359, %v7448, %v7449
  %v7451 = vrot.slane %v7274, 5
  %v7452 = vrot.slane %v7451, 4
  %v7453 = vrot.slane %v5626, 5
  %v7454 = vsel %vm7359, %v7452, %v7453
  %v7455 = vrot.slane %v7453, 4
  %v7456 = vrot.slane %v5677, 5
  %v7457 = vsel %vm7359, %v7455, %v7456
  %v7458 = vrot.slane %v7275, 5
  %v7459 = vrot.slane %v7458, 4
  %v7460 = vrot.slane %v5628, 5
  %v7461 = vsel %vm7359, %v7459, %v7460
  %v7462 = vrot.slane %v7460, 4
  %v7463 = vrot.slane %v5678, 5
  %v7464 = vsel %vm7359, %v7462, %v7463
  %v7465 = vrot.slane %v7276, 5
  %v7466 = vrot.slane %v7465, 4
  %v7467 = vrot.slane %v5630, 5
  %v7468 = vsel %vm7359, %v7466, %v7467
  %v7469 = vrot.slane %v7467, 4
  %v7470 = vrot.slane %v5679, 5
  %v7471 = vsel %vm7359, %v7469, %v7470
  %v7472 = vrot.slane %v7277, 5
  %v7473 = vrot.slane %v7472, 4
  %v7474 = vrot.slane %v5632, 5
  %v7475 = vsel %vm7359, %v7473, %v7474
  %v7476 = vrot.slane %v7474, 4
  %v7477 = vrot.slane %v5680, 5
  %v7478 = vsel %vm7359, %v7476, %v7477
  %v7479 = vrot.slane %v7278, 5
  %v7480 = vrot.slane %v7479, 4
  %v7481 = vrot.slane %v5634, 5
  %v7482 = vsel %vm7359, %v7480, %v7481
  %v7483 = vrot.slane %v7481, 4
  %v7484 = vrot.slane %v5681, 5
  %v7485 = vsel %vm7359, %v7483, %v7484
  %v7486 = vrot.slane %v7279, 5
  %v7487 = vrot.slane %v7486, 4
  %v7488 = vrot.slane %v5636, 5
  %v7489 = vsel %vm7359, %v7487, %v7488
  %v7490 = vrot.slane %v7488, 4
  %v7491 = vrot.slane %v5682, 5
  %v7492 = vsel %vm7359, %v7490, %v7491
  %v7493 = vrot.slane %v7280, 5
  %v7494 = vrot.slane %v7493, 4
  %v7495 = vrot.slane %v5638, 5
  %v7496 = vsel %vm7359, %v7494, %v7495
  %v7497 = vrot.slane %v7495, 4
  %v7498 = vrot.slane %v5683, 5
  %v7499 = vsel %vm7359, %v7497, %v7498
  %v7500 = vrot.slane %v7281, 5
  %v7501 = vrot.slane %v7500, 4
  %v7502 = vrot.slane %v5640, 5
  %v7503 = vsel %vm7359, %v7501, %v7502
  %v7504 = vrot.slane %v7502, 4
  %v7505 = vrot.slane %v5684, 5
  %v7506 = vsel %vm7359, %v7504, %v7505
  %v7507 = vrot.slane %v7282, 5
  %v7508 = vrot.slane %v7507, 4
  %v7509 = vrot.slane %v5642, 5
  %v7510 = vsel %vm7359, %v7508, %v7509
  %v7511 = vrot.slane %v7509, 4
  %v7512 = vrot.slane %v5685, 5
  %v7513 = vsel %vm7359, %v7511, %v7512
  %v7514 = vrot.slane %v7283, 5
  %v7515 = vrot.slane %v7514, 4
  %v7516 = vrot.slane %v5644, 5
  %v7517 = vsel %vm7359, %v7515, %v7516
  %v7518 = vrot.slane %v7516, 4
  %v7519 = vrot.slane %v5686, 5
  %v7520 = vsel %vm7359, %v7518, %v7519
  %v7521 = vrot.slane %v7284, 5
  %v7522 = vrot.slane %v7521, 4
  %v7523 = vrot.slane %v5646, 5
  %v7524 = vsel %vm7359, %v7522, %v7523
  %v7525 = vrot.slane %v7523, 4
  %v7526 = vrot.slane %v5687, 5
  %v7527 = vsel %vm7359, %v7525, %v7526
  %v7528 = vrot.slane %v7285, 5
  %v7529 = vrot.slane %v7528, 4
  %v7530 = vrot.slane %v5648, 5
  %v7531 = vsel %vm7359, %v7529, %v7530
  %v7532 = vrot.slane %v7530, 4
  %v7533 = vrot.slane %v5688, 5
  %v7534 = vsel %vm7359, %v7532, %v7533
  %v7535 = vrot.slane %v7286, 5
  %v7536 = vrot.slane %v7535, 4
  %v7537 = vrot.slane %v5650, 5
  %v7538 = vsel %vm7359, %v7536, %v7537
  %v7539 = vrot.slane %v7537, 4
  %v7540 = vrot.slane %v5689, 5
  %v7541 = vsel %vm7359, %v7539, %v7540
  %v7542 = vrot.slane %v7287, 5
  %v7543 = vrot.slane %v7542, 4
  %v7544 = vrot.slane %v5652, 5
  %v7545 = vsel %vm7359, %v7543, %v7544
  %v7546 = vrot.slane %v7544, 4
  %v7547 = vrot.slane %v5690, 5
  %v7548 = vsel %vm7359, %v7546, %v7547
  %v7549 = vrot.slane %v7288, 5
  %v7550 = vrot.slane %v7549, 4
  %v7551 = vrot.slane %v5654, 5
  %v7552 = vsel %vm7359, %v7550, %v7551
  %v7553 = vrot.slane %v7551, 4
  %v7554 = vrot.slane %v5691, 5
  %v7555 = vsel %vm7359, %v7553, %v7554
  %v7556 = vrot.slane %v7289, 5
  %v7557 = vrot.slane %v7556, 4
  %v7558 = vrot.slane %v5656, 5
  %v7559 = vsel %vm7359, %v7557, %v7558
  %v7560 = vrot.slane %v7558, 4
  %v7561 = vrot.slane %v5692, 5
  %v7562 = vsel %vm7359, %v7560, %v7561
  %v7563 = vrot.slane %v7290, 5
  %v7564 = vrot.slane %v7563, 4
  %v7565 = vrot.slane %v5658, 5
  %v7566 = vsel %vm7359, %v7564, %v7565
  %v7567 = vrot.slane %v7565, 4
  %v7568 = vrot.slane %v5693, 5
  %v7569 = vsel %vm7359, %v7567, %v7568
  %v7570 = vrot.slane %v7291, 5
  %v7571 = vrot.slane %v7570, 4
  %v7572 = vrot.slane %v5660, 5
  %v7573 = vsel %vm7359, %v7571, %v7572
  %v7574 = vrot.slane %v7572, 4
  %v7575 = vrot.slane %v5694, 5
  %v7576 = vsel %vm7359, %v7574, %v7575
  %v7577 = vrot.slane %v7292, 5
  %v7578 = vrot.slane %v7577, 4
  %v7579 = vrot.slane %v5662, 5
  %v7580 = vsel %vm7359, %v7578, %v7579
  %v7581 = vrot.slane %v7579, 4
  %v7582 = vrot.slane %v5695, 5
  %v7583 = vsel %vm7359, %v7581, %v7582
  %s7584 = scalar_lea.vmem %s4, 4
  %v7585 = vld [vmem:[%s7584] sm:$0x3]
  %v7586 = vunpack.c.l.b16 %v7363
  %v7587 = vunpack.c.l.b16 %v7366
  %v7588 = vunpack.c.l.b16 %v7370
  %v7589 = vunpack.c.l.b16 %v7373
  %v7590 = vunpack.c.l.b16 %v7377
  %v7591 = vunpack.c.l.b16 %v7380
  %v7592 = vunpack.c.l.b16 %v7384
  %v7593 = vunpack.c.l.b16 %v7387
  %v7594 = vunpack.c.l.b16 %v7391
  %v7595 = vunpack.c.l.b16 %v7394
  %v7596 = vunpack.c.l.b16 %v7398
  %v7597 = vunpack.c.l.b16 %v7401
  %v7598 = vunpack.c.l.b16 %v7405
  %v7599 = vunpack.c.l.b16 %v7408
  %v7600 = vunpack.c.l.b16 %v7412
  %v7601 = vunpack.c.l.b16 %v7415
  %v7602 = vunpack.c.l.b16 %v7419
  %v7603 = vunpack.c.l.b16 %v7422
  %v7604 = vunpack.c.l.b16 %v7426
  %v7605 = vunpack.c.l.b16 %v7429
  %v7606 = vunpack.c.l.b16 %v7433
  %v7607 = vunpack.c.l.b16 %v7436
  %v7608 = vunpack.c.l.b16 %v7440
  %v7609 = vunpack.c.l.b16 %v7443
  %v7610 = vunpack.c.l.b16 %v7447
  %v7611 = vunpack.c.l.b16 %v7450
  %v7612 = vunpack.c.l.b16 %v7454
  %v7613 = vunpack.c.l.b16 %v7457
  %v7614 = vunpack.c.l.b16 %v7461
  %v7615 = vunpack.c.l.b16 %v7464
  %v7616 = vunpack.c.l.b16 %v7468
  %v7617 = vunpack.c.l.b16 %v7471
  %v7618 = vunpack.c.l.b16 %v7475
  %v7619 = vunpack.c.l.b16 %v7478
  %v7620 = vunpack.c.l.b16 %v7482
  %v7621 = vunpack.c.l.b16 %v7485
  %v7622 = vunpack.c.l.b16 %v7489
  %v7623 = vunpack.c.l.b16 %v7492
  %v7624 = vunpack.c.l.b16 %v7496
  %v7625 = vunpack.c.l.b16 %v7499
  %v7626 = vunpack.c.l.b16 %v7503
  %v7627 = vunpack.c.l.b16 %v7506
  %v7628 = vunpack.c.l.b16 %v7510
  %v7629 = vunpack.c.l.b16 %v7513
  %v7630 = vunpack.c.l.b16 %v7517
  %v7631 = vunpack.c.l.b16 %v7520
  %v7632 = vunpack.c.l.b16 %v7524
  %v7633 = vunpack.c.l.b16 %v7527
  %v7634 = vunpack.c.l.b16 %v7531
  %v7635 = vunpack.c.l.b16 %v7534
  %v7636 = vunpack.c.l.b16 %v7538
  %v7637 = vunpack.c.l.b16 %v7541
  %v7638 = vunpack.c.l.b16 %v7545
  %v7639 = vunpack.c.l.b16 %v7548
  %v7640 = vunpack.c.l.b16 %v7552
  %v7641 = vunpack.c.l.b16 %v7555
  %v7642 = vunpack.c.l.b16 %v7559
  %v7643 = vunpack.c.l.b16 %v7562
  %v7644 = vunpack.c.l.b16 %v7566
  %v7645 = vunpack.c.l.b16 %v7569
  %v7646 = vunpack.c.l.b16 %v7573
  %v7647 = vunpack.c.l.b16 %v7576
  %v7648 = vunpack.c.l.b16 %v7580
  %v7649 = vunpack.c.l.b16 %v7583
  %v7650 = vpack.c.b16 %v7587, %v7586
  %v7651 = vpack.c.b16 %v7589, %v7588
  %v7652 = vpack.c.b16 %v7591, %v7590
  %v7653 = vpack.c.b16 %v7593, %v7592
  %v7654 = vpack.c.b16 %v7595, %v7594
  %v7655 = vpack.c.b16 %v7597, %v7596
  %v7656 = vpack.c.b16 %v7599, %v7598
  %v7657 = vpack.c.b16 %v7601, %v7600
  %v7658 = vpack.c.b16 %v7603, %v7602
  %v7659 = vpack.c.b16 %v7605, %v7604
  %v7660 = vpack.c.b16 %v7607, %v7606
  %v7661 = vpack.c.b16 %v7609, %v7608
  %v7662 = vpack.c.b16 %v7611, %v7610
  %v7663 = vpack.c.b16 %v7613, %v7612
  %v7664 = vpack.c.b16 %v7615, %v7614
  %v7665 = vpack.c.b16 %v7617, %v7616
  %v7666 = vpack.c.b16 %v7619, %v7618
  %v7667 = vpack.c.b16 %v7621, %v7620
  %v7668 = vpack.c.b16 %v7623, %v7622
  %v7669 = vpack.c.b16 %v7625, %v7624
  %v7670 = vpack.c.b16 %v7627, %v7626
  %v7671 = vpack.c.b16 %v7629, %v7628
  %v7672 = vpack.c.b16 %v7631, %v7630
  %v7673 = vpack.c.b16 %v7633, %v7632
  %v7674 = vpack.c.b16 %v7635, %v7634
  %v7675 = vpack.c.b16 %v7637, %v7636
  %v7676 = vpack.c.b16 %v7639, %v7638
  %v7677 = vpack.c.b16 %v7641, %v7640
  %v7678 = vpack.c.b16 %v7643, %v7642
  %v7679 = vpack.c.b16 %v7645, %v7644
  %v7680 = vpack.c.b16 %v7647, %v7646
  %v7681 = vpack.c.b16 %v7649, %v7648
  %v7683 = vsel %vm439, %v7650, 0
  %v7686 = vsel %vm439, %v7651, 0
  %v7689 = vsel %vm439, %v7652, 0
  %v7692 = vsel %vm439, %v7653, 0
  %v7695 = vsel %vm439, %v7654, 0
  %v7698 = vsel %vm439, %v7655, 0
  %v7701 = vsel %vm439, %v7656, 0
  %v7704 = vsel %vm439, %v7657, 0
  %v7707 = vsel %vm439, %v7658, 0
  %v7710 = vsel %vm439, %v7659, 0
  %v7713 = vsel %vm439, %v7660, 0
  %v7716 = vsel %vm439, %v7661, 0
  %v7719 = vsel %vm439, %v7662, 0
  %v7722 = vsel %vm439, %v7663, 0
  %v7725 = vsel %vm439, %v7664, 0
  %v7728 = vsel %vm439, %v7665, 0
  %v7731 = vsel %vm439, %v7666, 0
  %v7734 = vsel %vm439, %v7667, 0
  %v7737 = vsel %vm439, %v7668, 0
  %v7740 = vsel %vm439, %v7669, 0
  %v7743 = vsel %vm439, %v7670, 0
  %v7746 = vsel %vm439, %v7671, 0
  %v7749 = vsel %vm439, %v7672, 0
  %v7752 = vsel %vm439, %v7673, 0
  %v7755 = vsel %vm439, %v7674, 0
  %v7758 = vsel %vm439, %v7675, 0
  %v7761 = vsel %vm439, %v7676, 0
  %v7764 = vsel %vm439, %v7677, 0
  %v7767 = vsel %vm439, %v7678, 0
  %v7770 = vsel %vm439, %v7679, 0
  %v7773 = vsel %vm439, %v7680, 0
  %v7776 = vsel %vm439, %v7681, 0
  %v7779 = vsel %vm536, %v7585, 0
  %7781 = vmatpush.bf16.msra.mxu0 0
  %7782 = vmatpush.bf16.msra.mxu0 0
  %7783 = vmatpush.bf16.msra.mxu0 0
  %7784 = vmatpush.bf16.msra.mxu0 0
  %7785 = vmatpush.bf16.msra.mxu0 0
  %7786 = vmatpush.bf16.msra.mxu0 0
  %7787 = vmatpush.bf16.msra.mxu0 0
  %7788 = vmatpush.bf16.msra.mxu0 %v7779
  %7789 = vmatmul.bf16.gmra.mxu0 %v7683
  %v7790 = vpop.f32.mrf.mxu0
  %v7791 = vadd.f32 0.0, %v7790
  %v7792 = vpop.f32.mrf.mxu0
  %v7793 = vadd.f32 0.0, %v7792
  %7794 = vmatmul.bf16.gmra.mxu0 %v7686
  %v7795 = vpop.f32.mrf.mxu0
  %v7796 = vadd.f32 0.0, %v7795
  %v7797 = vpop.f32.mrf.mxu0
  %v7798 = vadd.f32 0.0, %v7797
  %7799 = vmatmul.bf16.gmra.mxu0 %v7689
  %v7800 = vpop.f32.mrf.mxu0
  %v7801 = vadd.f32 0.0, %v7800
  %v7802 = vpop.f32.mrf.mxu0
  %v7803 = vadd.f32 0.0, %v7802
  %7804 = vmatmul.bf16.gmra.mxu0 %v7692
  %v7805 = vpop.f32.mrf.mxu0
  %v7806 = vadd.f32 0.0, %v7805
  %v7807 = vpop.f32.mrf.mxu0
  %v7808 = vadd.f32 0.0, %v7807
  %7809 = vmatmul.bf16.gmra.mxu0 %v7695
  %v7810 = vpop.f32.mrf.mxu0
  %v7811 = vadd.f32 0.0, %v7810
  %v7812 = vpop.f32.mrf.mxu0
  %v7813 = vadd.f32 0.0, %v7812
  %7814 = vmatmul.bf16.gmra.mxu0 %v7698
  %v7815 = vpop.f32.mrf.mxu0
  %v7816 = vadd.f32 0.0, %v7815
  %v7817 = vpop.f32.mrf.mxu0
  %v7818 = vadd.f32 0.0, %v7817
  %7819 = vmatmul.bf16.gmra.mxu0 %v7701
  %v7820 = vpop.f32.mrf.mxu0
  %v7821 = vadd.f32 0.0, %v7820
  %v7822 = vpop.f32.mrf.mxu0
  %v7823 = vadd.f32 0.0, %v7822
  %7824 = vmatmul.bf16.gmra.mxu0 %v7704
  %v7825 = vpop.f32.mrf.mxu0
  %v7826 = vadd.f32 0.0, %v7825
  %v7827 = vpop.f32.mrf.mxu0
  %v7828 = vadd.f32 0.0, %v7827
  %7829 = vmatmul.bf16.gmra.mxu0 %v7707
  %v7830 = vpop.f32.mrf.mxu0
  %v7831 = vadd.f32 0.0, %v7830
  %v7832 = vpop.f32.mrf.mxu0
  %v7833 = vadd.f32 0.0, %v7832
  %7834 = vmatmul.bf16.gmra.mxu0 %v7710
  %v7835 = vpop.f32.mrf.mxu0
  %v7836 = vadd.f32 0.0, %v7835
  %v7837 = vpop.f32.mrf.mxu0
  %v7838 = vadd.f32 0.0, %v7837
  %7839 = vmatmul.bf16.gmra.mxu0 %v7713
  %v7840 = vpop.f32.mrf.mxu0
  %v7841 = vadd.f32 0.0, %v7840
  %v7842 = vpop.f32.mrf.mxu0
  %v7843 = vadd.f32 0.0, %v7842
  %7844 = vmatmul.bf16.gmra.mxu0 %v7716
  %v7845 = vpop.f32.mrf.mxu0
  %v7846 = vadd.f32 0.0, %v7845
  %v7847 = vpop.f32.mrf.mxu0
  %v7848 = vadd.f32 0.0, %v7847
  %7849 = vmatmul.bf16.gmra.mxu0 %v7719
  %v7850 = vpop.f32.mrf.mxu0
  %v7851 = vadd.f32 0.0, %v7850
  %v7852 = vpop.f32.mrf.mxu0
  %v7853 = vadd.f32 0.0, %v7852
  %7854 = vmatmul.bf16.gmra.mxu0 %v7722
  %v7855 = vpop.f32.mrf.mxu0
  %v7856 = vadd.f32 0.0, %v7855
  %v7857 = vpop.f32.mrf.mxu0
  %v7858 = vadd.f32 0.0, %v7857
  %7859 = vmatmul.bf16.gmra.mxu0 %v7725
  %v7860 = vpop.f32.mrf.mxu0
  %v7861 = vadd.f32 0.0, %v7860
  %v7862 = vpop.f32.mrf.mxu0
  %v7863 = vadd.f32 0.0, %v7862
  %7864 = vmatmul.bf16.gmra.mxu0 %v7728
  %v7865 = vpop.f32.mrf.mxu0
  %v7866 = vadd.f32 0.0, %v7865
  %v7867 = vpop.f32.mrf.mxu0
  %v7868 = vadd.f32 0.0, %v7867
  %7869 = vmatmul.bf16.gmra.mxu0 %v7731
  %v7870 = vpop.f32.mrf.mxu0
  %v7871 = vadd.f32 0.0, %v7870
  %v7872 = vpop.f32.mrf.mxu0
  %v7873 = vadd.f32 0.0, %v7872
  %7874 = vmatmul.bf16.gmra.mxu0 %v7734
  %v7875 = vpop.f32.mrf.mxu0
  %v7876 = vadd.f32 0.0, %v7875
  %v7877 = vpop.f32.mrf.mxu0
  %v7878 = vadd.f32 0.0, %v7877
  %7879 = vmatmul.bf16.gmra.mxu0 %v7737
  %v7880 = vpop.f32.mrf.mxu0
  %v7881 = vadd.f32 0.0, %v7880
  %v7882 = vpop.f32.mrf.mxu0
  %v7883 = vadd.f32 0.0, %v7882
  %7884 = vmatmul.bf16.gmra.mxu0 %v7740
  %v7885 = vpop.f32.mrf.mxu0
  %v7886 = vadd.f32 0.0, %v7885
  %v7887 = vpop.f32.mrf.mxu0
  %v7888 = vadd.f32 0.0, %v7887
  %7889 = vmatmul.bf16.gmra.mxu0 %v7743
  %v7890 = vpop.f32.mrf.mxu0
  %v7891 = vadd.f32 0.0, %v7890
  %v7892 = vpop.f32.mrf.mxu0
  %v7893 = vadd.f32 0.0, %v7892
  %7894 = vmatmul.bf16.gmra.mxu0 %v7746
  %v7895 = vpop.f32.mrf.mxu0
  %v7896 = vadd.f32 0.0, %v7895
  %v7897 = vpop.f32.mrf.mxu0
  %v7898 = vadd.f32 0.0, %v7897
  %7899 = vmatmul.bf16.gmra.mxu0 %v7749
  %v7900 = vpop.f32.mrf.mxu0
  %v7901 = vadd.f32 0.0, %v7900
  %v7902 = vpop.f32.mrf.mxu0
  %v7903 = vadd.f32 0.0, %v7902
  %7904 = vmatmul.bf16.gmra.mxu0 %v7752
  %v7905 = vpop.f32.mrf.mxu0
  %v7906 = vadd.f32 0.0, %v7905
  %v7907 = vpop.f32.mrf.mxu0
  %v7908 = vadd.f32 0.0, %v7907
  %7909 = vmatmul.bf16.gmra.mxu0 %v7755
  %v7910 = vpop.f32.mrf.mxu0
  %v7911 = vadd.f32 0.0, %v7910
  %v7912 = vpop.f32.mrf.mxu0
  %v7913 = vadd.f32 0.0, %v7912
  %7914 = vmatmul.bf16.gmra.mxu0 %v7758
  %v7915 = vpop.f32.mrf.mxu0
  %v7916 = vadd.f32 0.0, %v7915
  %v7917 = vpop.f32.mrf.mxu0
  %v7918 = vadd.f32 0.0, %v7917
  %7919 = vmatmul.bf16.gmra.mxu0 %v7761
  %v7920 = vpop.f32.mrf.mxu0
  %v7921 = vadd.f32 0.0, %v7920
  %v7922 = vpop.f32.mrf.mxu0
  %v7923 = vadd.f32 0.0, %v7922
  %7924 = vmatmul.bf16.gmra.mxu0 %v7764
  %v7925 = vpop.f32.mrf.mxu0
  %v7926 = vadd.f32 0.0, %v7925
  %v7927 = vpop.f32.mrf.mxu0
  %v7928 = vadd.f32 0.0, %v7927
  %7929 = vmatmul.bf16.gmra.mxu0 %v7767
  %v7930 = vpop.f32.mrf.mxu0
  %v7931 = vadd.f32 0.0, %v7930
  %v7932 = vpop.f32.mrf.mxu0
  %v7933 = vadd.f32 0.0, %v7932
  %7934 = vmatmul.bf16.gmra.mxu0 %v7770
  %v7935 = vpop.f32.mrf.mxu0
  %v7936 = vadd.f32 0.0, %v7935
  %v7937 = vpop.f32.mrf.mxu0
  %v7938 = vadd.f32 0.0, %v7937
  %7939 = vmatmul.bf16.gmra.mxu0 %v7773
  %v7940 = vpop.f32.mrf.mxu0
  %v7941 = vadd.f32 0.0, %v7940
  %v7942 = vpop.f32.mrf.mxu0
  %v7943 = vadd.f32 0.0, %v7942
  %7944 = vmatmul.bf16.gmra.mxu0 %v7776
  %v7945 = vpop.f32.mrf.mxu0
  %v7946 = vadd.f32 0.0, %v7945
  %v7947 = vpop.f32.mrf.mxu0
  %v7948 = vadd.f32 0.0, %v7947
  %7949 = vdwg.mxu0
  %v7950 = vadd.f32 %v7102, %v7791
  %v7951 = vadd.f32 %v7104, %v7793
  %v7952 = vadd.f32 %v7107, %v7796
  %v7953 = vadd.f32 %v7109, %v7798
  %v7954 = vadd.f32 %v7112, %v7801
  %v7955 = vadd.f32 %v7114, %v7803
  %v7956 = vadd.f32 %v7117, %v7806
  %v7957 = vadd.f32 %v7119, %v7808
  %v7958 = vadd.f32 %v7122, %v7811
  %v7959 = vadd.f32 %v7124, %v7813
  %v7960 = vadd.f32 %v7127, %v7816
  %v7961 = vadd.f32 %v7129, %v7818
  %v7962 = vadd.f32 %v7132, %v7821
  %v7963 = vadd.f32 %v7134, %v7823
  %v7964 = vadd.f32 %v7137, %v7826
  %v7965 = vadd.f32 %v7139, %v7828
  %v7966 = vadd.f32 %v7142, %v7831
  %v7967 = vadd.f32 %v7144, %v7833
  %v7968 = vadd.f32 %v7147, %v7836
  %v7969 = vadd.f32 %v7149, %v7838
  %v7970 = vadd.f32 %v7152, %v7841
  %v7971 = vadd.f32 %v7154, %v7843
  %v7972 = vadd.f32 %v7157, %v7846
  %v7973 = vadd.f32 %v7159, %v7848
  %v7974 = vadd.f32 %v7162, %v7851
  %v7975 = vadd.f32 %v7164, %v7853
  %v7976 = vadd.f32 %v7167, %v7856
  %v7977 = vadd.f32 %v7169, %v7858
  %v7978 = vadd.f32 %v7172, %v7861
  %v7979 = vadd.f32 %v7174, %v7863
  %v7980 = vadd.f32 %v7177, %v7866
  %v7981 = vadd.f32 %v7179, %v7868
  %v7982 = vadd.f32 %v7182, %v7871
  %v7983 = vadd.f32 %v7184, %v7873
  %v7984 = vadd.f32 %v7187, %v7876
  %v7985 = vadd.f32 %v7189, %v7878
  %v7986 = vadd.f32 %v7192, %v7881
  %v7987 = vadd.f32 %v7194, %v7883
  %v7988 = vadd.f32 %v7197, %v7886
  %v7989 = vadd.f32 %v7199, %v7888
  %v7990 = vadd.f32 %v7202, %v7891
  %v7991 = vadd.f32 %v7204, %v7893
  %v7992 = vadd.f32 %v7207, %v7896
  %v7993 = vadd.f32 %v7209, %v7898
  %v7994 = vadd.f32 %v7212, %v7901
  %v7995 = vadd.f32 %v7214, %v7903
  %v7996 = vadd.f32 %v7217, %v7906
  %v7997 = vadd.f32 %v7219, %v7908
  %v7998 = vadd.f32 %v7222, %v7911
  %v7999 = vadd.f32 %v7224, %v7913
  %v8000 = vadd.f32 %v7227, %v7916
  %v8001 = vadd.f32 %v7229, %v7918
  %v8002 = vadd.f32 %v7232, %v7921
  %v8003 = vadd.f32 %v7234, %v7923
  %v8004 = vadd.f32 %v7237, %v7926
  %v8005 = vadd.f32 %v7239, %v7928
  %v8006 = vadd.f32 %v7242, %v7931
  %v8007 = vadd.f32 %v7244, %v7933
  %v8008 = vadd.f32 %v7247, %v7936
  %v8009 = vadd.f32 %v7249, %v7938
  %v8010 = vadd.f32 %v7252, %v7941
  %v8011 = vadd.f32 %v7254, %v7943
  %v8012 = vadd.f32 %v7257, %v7946
  %v8013 = vadd.f32 %v7259, %v7948
  %v8014 = vld [vmem:[%s46] sm:$0xf]
  %v8015 = vld [vmem:[%s46 + $0x4] sm:$0xf]
  %v8016 = vld [vmem:[%s46 + $0xc] sm:$0xf]
  %v8017 = vld [vmem:[%s46 + $0x10] sm:$0xf]
  %v8018 = vld [vmem:[%s46 + $0x18] sm:$0xf]
  %v8019 = vld [vmem:[%s46 + $0x1c] sm:$0xf]
  %v8020 = vld [vmem:[%s46 + $0x24] sm:$0xf]
  %v8021 = vld [vmem:[%s46 + $0x28] sm:$0xf]
  %v8022 = vld [vmem:[%s46 + $0x30] sm:$0xf]
  %v8023 = vld [vmem:[%s46 + $0x34] sm:$0xf]
  %v8024 = vld [vmem:[%s46 + $0x3c] sm:$0xf]
  %v8025 = vld [vmem:[%s46 + $0x40] sm:$0xf]
  %v8026 = vld [vmem:[%s46 + $0x48] sm:$0xf]
  %v8027 = vld [vmem:[%s46 + $0x4c] sm:$0xf]
  %v8028 = vld [vmem:[%s46 + $0x54] sm:$0xf]
  %v8029 = vld [vmem:[%s46 + $0x58] sm:$0xf]
  %v8030 = vld [vmem:[%s46 + $0x60] sm:$0xf]
  %v8031 = vld [vmem:[%s46 + $0x64] sm:$0xf]
  %v8032 = vld [vmem:[%s46 + $0x6c] sm:$0xf]
  %v8033 = vld [vmem:[%s46 + $0x70] sm:$0xf]
  %v8034 = vld [vmem:[%s46 + $0x78] sm:$0xf]
  %v8035 = vld [vmem:[%s46 + $0x7c] sm:$0xf]
  %v8036 = vld [vmem:[%s46 + $0x84] sm:$0xf]
  %v8037 = vld [vmem:[%s46 + $0x88] sm:$0xf]
  %v8038 = vld [vmem:[%s46 + $0x90] sm:$0xf]
  %v8039 = vld [vmem:[%s46 + $0x94] sm:$0xf]
  %v8040 = vld [vmem:[%s46 + $0x9c] sm:$0xf]
  %v8041 = vld [vmem:[%s46 + $0xa0] sm:$0xf]
  %v8042 = vld [vmem:[%s46 + $0xa8] sm:$0xf]
  %v8043 = vld [vmem:[%s46 + $0xac] sm:$0xf]
  %v8044 = vld [vmem:[%s46 + $0xb4] sm:$0xf]
  %v8045 = vld [vmem:[%s46 + $0xb8] sm:$0xf]
  %v8046 = vld [vmem:[%s46 + $0xd8] sm:$0xf]
  %v8047 = vld [vmem:[%s46 + $0xdc] sm:$0xf]
  %v8048 = vld [vmem:[%s46 + $0xe4] sm:$0xf]
  %v8049 = vld [vmem:[%s46 + $0xe8] sm:$0xf]
  %v8050 = vld [vmem:[%s46 + $0xf0] sm:$0xf]
  %v8051 = vld [vmem:[%s46 + $0xf4] sm:$0xf]
  %v8052 = vld [vmem:[%s46 + $0xfc] sm:$0xf]
  %v8053 = vld [vmem:[%s46 + $0x100] sm:$0xf]
  %v8054 = vld [vmem:[%s46 + $0x108] sm:$0xf]
  %v8055 = vld [vmem:[%s46 + $0x10c] sm:$0xf]
  %v8056 = vld [vmem:[%s46 + $0x114] sm:$0xf]
  %v8057 = vld [vmem:[%s46 + $0x118] sm:$0xf]
  %v8058 = vld [vmem:[%s46 + $0x120] sm:$0xf]
  %v8059 = vld [vmem:[%s46 + $0x124] sm:$0xf]
  %v8060 = vld [vmem:[%s46 + $0x12c] sm:$0xf]
  %v8061 = vld [vmem:[%s46 + $0x130] sm:$0xf]
  %v8062 = vld [vmem:[%s46 + $0x138] sm:$0xf]
  %v8063 = vld [vmem:[%s46 + $0x13c] sm:$0xf]
  %v8064 = vld [vmem:[%s46 + $0x144] sm:$0xf]
  %v8065 = vld [vmem:[%s46 + $0x148] sm:$0xf]
  %v8066 = vld [vmem:[%s46 + $0x150] sm:$0xf]
  %v8067 = vld [vmem:[%s46 + $0x154] sm:$0xf]
  %v8068 = vld [vmem:[%s46 + $0x15c] sm:$0xf]
  %v8069 = vld [vmem:[%s46 + $0x160] sm:$0xf]
  %v8070 = vld [vmem:[%s46 + $0x168] sm:$0xf]
  %v8071 = vld [vmem:[%s46 + $0x16c] sm:$0xf]
  %v8072 = vld [vmem:[%s46 + $0x174] sm:$0xf]
  %v8073 = vld [vmem:[%s46 + $0x178] sm:$0xf]
  %v8074 = vld [vmem:[%s46 + $0x180] sm:$0xf]
  %v8075 = vld [vmem:[%s46 + $0x184] sm:$0xf]
  %v8076 = vld [vmem:[%s46 + $0x18c] sm:$0xf]
  %v8077 = vld [vmem:[%s46 + $0x190] sm:$0xf]
  %s8078 = scalar_lea.vmem %s4, 6
  %v8079 = vld [vmem:[%s8078] sm:$0x3]
  %v8144 = vunpack.c.l.b16 %v8014
  %v8145 = vunpack.c.l.b16 %v8015
  %v8146 = vunpack.c.l.b16 %v8016
  %v8147 = vunpack.c.l.b16 %v8017
  %v8148 = vunpack.c.l.b16 %v8018
  %v8149 = vunpack.c.l.b16 %v8019
  %v8150 = vunpack.c.l.b16 %v8020
  %v8151 = vunpack.c.l.b16 %v8021
  %v8152 = vunpack.c.l.b16 %v8022
  %v8153 = vunpack.c.l.b16 %v8023
  %v8154 = vunpack.c.l.b16 %v8024
  %v8155 = vunpack.c.l.b16 %v8025
  %v8156 = vunpack.c.l.b16 %v8026
  %v8157 = vunpack.c.l.b16 %v8027
  %v8158 = vunpack.c.l.b16 %v8028
  %v8159 = vunpack.c.l.b16 %v8029
  %v8160 = vunpack.c.l.b16 %v8030
  %v8161 = vunpack.c.l.b16 %v8031
  %v8162 = vunpack.c.l.b16 %v8032
  %v8163 = vunpack.c.l.b16 %v8033
  %v8164 = vunpack.c.l.b16 %v8034
  %v8165 = vunpack.c.l.b16 %v8035
  %v8166 = vunpack.c.l.b16 %v8036
  %v8167 = vunpack.c.l.b16 %v8037
  %v8168 = vunpack.c.l.b16 %v8038
  %v8169 = vunpack.c.l.b16 %v8039
  %v8170 = vunpack.c.l.b16 %v8040
  %v8171 = vunpack.c.l.b16 %v8041
  %v8172 = vunpack.c.l.b16 %v8042
  %v8173 = vunpack.c.l.b16 %v8043
  %v8174 = vunpack.c.l.b16 %v8044
  %v8175 = vunpack.c.l.b16 %v8045
  %v8176 = vunpack.c.l.b16 %v8046
  %v8177 = vunpack.c.l.b16 %v8047
  %v8178 = vunpack.c.l.b16 %v8048
  %v8179 = vunpack.c.l.b16 %v8049
  %v8180 = vunpack.c.l.b16 %v8050
  %v8181 = vunpack.c.l.b16 %v8051
  %v8182 = vunpack.c.l.b16 %v8052
  %v8183 = vunpack.c.l.b16 %v8053
  %v8184 = vunpack.c.l.b16 %v8054
  %v8185 = vunpack.c.l.b16 %v8055
  %v8186 = vunpack.c.l.b16 %v8056
  %v8187 = vunpack.c.l.b16 %v8057
  %v8188 = vunpack.c.l.b16 %v8058
  %v8189 = vunpack.c.l.b16 %v8059
  %v8190 = vunpack.c.l.b16 %v8060
  %v8191 = vunpack.c.l.b16 %v8061
  %v8192 = vunpack.c.l.b16 %v8062
  %v8193 = vunpack.c.l.b16 %v8063
  %v8194 = vunpack.c.l.b16 %v8064
  %v8195 = vunpack.c.l.b16 %v8065
  %v8196 = vunpack.c.l.b16 %v8066
  %v8197 = vunpack.c.l.b16 %v8067
  %v8198 = vunpack.c.l.b16 %v8068
  %v8199 = vunpack.c.l.b16 %v8069
  %v8200 = vunpack.c.l.b16 %v8070
  %v8201 = vunpack.c.l.b16 %v8071
  %v8202 = vunpack.c.l.b16 %v8072
  %v8203 = vunpack.c.l.b16 %v8073
  %v8204 = vunpack.c.l.b16 %v8074
  %v8205 = vunpack.c.l.b16 %v8075
  %v8206 = vunpack.c.l.b16 %v8076
  %v8207 = vunpack.c.l.b16 %v8077
  %v8208 = vpack.c.b16 %v8145, %v8144
  %v8209 = vpack.c.b16 %v8147, %v8146
  %v8210 = vpack.c.b16 %v8149, %v8148
  %v8211 = vpack.c.b16 %v8151, %v8150
  %v8212 = vpack.c.b16 %v8153, %v8152
  %v8213 = vpack.c.b16 %v8155, %v8154
  %v8214 = vpack.c.b16 %v8157, %v8156
  %v8215 = vpack.c.b16 %v8159, %v8158
  %v8216 = vpack.c.b16 %v8161, %v8160
  %v8217 = vpack.c.b16 %v8163, %v8162
  %v8218 = vpack.c.b16 %v8165, %v8164
  %v8219 = vpack.c.b16 %v8167, %v8166
  %v8220 = vpack.c.b16 %v8169, %v8168
  %v8221 = vpack.c.b16 %v8171, %v8170
  %v8222 = vpack.c.b16 %v8173, %v8172
  %v8223 = vpack.c.b16 %v8175, %v8174
  %v8224 = vpack.c.b16 %v8177, %v8176
  %v8225 = vpack.c.b16 %v8179, %v8178
  %v8226 = vpack.c.b16 %v8181, %v8180
  %v8227 = vpack.c.b16 %v8183, %v8182
  %v8228 = vpack.c.b16 %v8185, %v8184
  %v8229 = vpack.c.b16 %v8187, %v8186
  %v8230 = vpack.c.b16 %v8189, %v8188
  %v8231 = vpack.c.b16 %v8191, %v8190
  %v8232 = vpack.c.b16 %v8193, %v8192
  %v8233 = vpack.c.b16 %v8195, %v8194
  %v8234 = vpack.c.b16 %v8197, %v8196
  %v8235 = vpack.c.b16 %v8199, %v8198
  %v8236 = vpack.c.b16 %v8201, %v8200
  %v8237 = vpack.c.b16 %v8203, %v8202
  %v8238 = vpack.c.b16 %v8205, %v8204
  %v8239 = vpack.c.b16 %v8207, %v8206
  %v8241 = vsel %vm439, %v8208, 0
  %v8244 = vsel %vm439, %v8209, 0
  %v8247 = vsel %vm439, %v8210, 0
  %v8250 = vsel %vm439, %v8211, 0
  %v8253 = vsel %vm439, %v8212, 0
  %v8256 = vsel %vm439, %v8213, 0
  %v8259 = vsel %vm439, %v8214, 0
  %v8262 = vsel %vm439, %v8215, 0
  %v8265 = vsel %vm439, %v8216, 0
  %v8268 = vsel %vm439, %v8217, 0
  %v8271 = vsel %vm439, %v8218, 0
  %v8274 = vsel %vm439, %v8219, 0
  %v8277 = vsel %vm439, %v8220, 0
  %v8280 = vsel %vm439, %v8221, 0
  %v8283 = vsel %vm439, %v8222, 0
  %v8286 = vsel %vm439, %v8223, 0
  %v8289 = vsel %vm439, %v8224, 0
  %v8292 = vsel %vm439, %v8225, 0
  %v8295 = vsel %vm439, %v8226, 0
  %v8298 = vsel %vm439, %v8227, 0
  %v8301 = vsel %vm439, %v8228, 0
  %v8304 = vsel %vm439, %v8229, 0
  %v8307 = vsel %vm439, %v8230, 0
  %v8310 = vsel %vm439, %v8231, 0
  %v8313 = vsel %vm439, %v8232, 0
  %v8316 = vsel %vm439, %v8233, 0
  %v8319 = vsel %vm439, %v8234, 0
  %v8322 = vsel %vm439, %v8235, 0
  %v8325 = vsel %vm439, %v8236, 0
  %v8328 = vsel %vm439, %v8237, 0
  %v8331 = vsel %vm439, %v8238, 0
  %v8334 = vsel %vm439, %v8239, 0
  %v8337 = vsel %vm536, %v8079, 0
  %8339 = vmatpush.bf16.msra.mxu0 0
  %8340 = vmatpush.bf16.msra.mxu0 0
  %8341 = vmatpush.bf16.msra.mxu0 0
  %8342 = vmatpush.bf16.msra.mxu0 0
  %8343 = vmatpush.bf16.msra.mxu0 0
  %8344 = vmatpush.bf16.msra.mxu0 0
  %8345 = vmatpush.bf16.msra.mxu0 0
  %8346 = vmatpush.bf16.msra.mxu0 %v8337
  %8347 = vmatmul.bf16.gmra.mxu0 %v8241
  %v8348 = vpop.f32.mrf.mxu0
  %v8349 = vadd.f32 0.0, %v8348
  %v8350 = vpop.f32.mrf.mxu0
  %v8351 = vadd.f32 0.0, %v8350
  %8352 = vmatmul.bf16.gmra.mxu0 %v8244
  %v8353 = vpop.f32.mrf.mxu0
  %v8354 = vadd.f32 0.0, %v8353
  %v8355 = vpop.f32.mrf.mxu0
  %v8356 = vadd.f32 0.0, %v8355
  %8357 = vmatmul.bf16.gmra.mxu0 %v8247
  %v8358 = vpop.f32.mrf.mxu0
  %v8359 = vadd.f32 0.0, %v8358
  %v8360 = vpop.f32.mrf.mxu0
  %v8361 = vadd.f32 0.0, %v8360
  %8362 = vmatmul.bf16.gmra.mxu0 %v8250
  %v8363 = vpop.f32.mrf.mxu0
  %v8364 = vadd.f32 0.0, %v8363
  %v8365 = vpop.f32.mrf.mxu0
  %v8366 = vadd.f32 0.0, %v8365
  %8367 = vmatmul.bf16.gmra.mxu0 %v8253
  %v8368 = vpop.f32.mrf.mxu0
  %v8369 = vadd.f32 0.0, %v8368
  %v8370 = vpop.f32.mrf.mxu0
  %v8371 = vadd.f32 0.0, %v8370
  %8372 = vmatmul.bf16.gmra.mxu0 %v8256
  %v8373 = vpop.f32.mrf.mxu0
  %v8374 = vadd.f32 0.0, %v8373
  %v8375 = vpop.f32.mrf.mxu0
  %v8376 = vadd.f32 0.0, %v8375
  %8377 = vmatmul.bf16.gmra.mxu0 %v8259
  %v8378 = vpop.f32.mrf.mxu0
  %v8379 = vadd.f32 0.0, %v8378
  %v8380 = vpop.f32.mrf.mxu0
  %v8381 = vadd.f32 0.0, %v8380
  %8382 = vmatmul.bf16.gmra.mxu0 %v8262
  %v8383 = vpop.f32.mrf.mxu0
  %v8384 = vadd.f32 0.0, %v8383
  %v8385 = vpop.f32.mrf.mxu0
  %v8386 = vadd.f32 0.0, %v8385
  %8387 = vmatmul.bf16.gmra.mxu0 %v8265
  %v8388 = vpop.f32.mrf.mxu0
  %v8389 = vadd.f32 0.0, %v8388
  %v8390 = vpop.f32.mrf.mxu0
  %v8391 = vadd.f32 0.0, %v8390
  %8392 = vmatmul.bf16.gmra.mxu0 %v8268
  %v8393 = vpop.f32.mrf.mxu0
  %v8394 = vadd.f32 0.0, %v8393
  %v8395 = vpop.f32.mrf.mxu0
  %v8396 = vadd.f32 0.0, %v8395
  %8397 = vmatmul.bf16.gmra.mxu0 %v8271
  %v8398 = vpop.f32.mrf.mxu0
  %v8399 = vadd.f32 0.0, %v8398
  %v8400 = vpop.f32.mrf.mxu0
  %v8401 = vadd.f32 0.0, %v8400
  %8402 = vmatmul.bf16.gmra.mxu0 %v8274
  %v8403 = vpop.f32.mrf.mxu0
  %v8404 = vadd.f32 0.0, %v8403
  %v8405 = vpop.f32.mrf.mxu0
  %v8406 = vadd.f32 0.0, %v8405
  %8407 = vmatmul.bf16.gmra.mxu0 %v8277
  %v8408 = vpop.f32.mrf.mxu0
  %v8409 = vadd.f32 0.0, %v8408
  %v8410 = vpop.f32.mrf.mxu0
  %v8411 = vadd.f32 0.0, %v8410
  %8412 = vmatmul.bf16.gmra.mxu0 %v8280
  %v8413 = vpop.f32.mrf.mxu0
  %v8414 = vadd.f32 0.0, %v8413
  %v8415 = vpop.f32.mrf.mxu0
  %v8416 = vadd.f32 0.0, %v8415
  %8417 = vmatmul.bf16.gmra.mxu0 %v8283
  %v8418 = vpop.f32.mrf.mxu0
  %v8419 = vadd.f32 0.0, %v8418
  %v8420 = vpop.f32.mrf.mxu0
  %v8421 = vadd.f32 0.0, %v8420
  %8422 = vmatmul.bf16.gmra.mxu0 %v8286
  %v8423 = vpop.f32.mrf.mxu0
  %v8424 = vadd.f32 0.0, %v8423
  %v8425 = vpop.f32.mrf.mxu0
  %v8426 = vadd.f32 0.0, %v8425
  %8427 = vmatmul.bf16.gmra.mxu0 %v8289
  %v8428 = vpop.f32.mrf.mxu0
  %v8429 = vadd.f32 0.0, %v8428
  %v8430 = vpop.f32.mrf.mxu0
  %v8431 = vadd.f32 0.0, %v8430
  %8432 = vmatmul.bf16.gmra.mxu0 %v8292
  %v8433 = vpop.f32.mrf.mxu0
  %v8434 = vadd.f32 0.0, %v8433
  %v8435 = vpop.f32.mrf.mxu0
  %v8436 = vadd.f32 0.0, %v8435
  %8437 = vmatmul.bf16.gmra.mxu0 %v8295
  %v8438 = vpop.f32.mrf.mxu0
  %v8439 = vadd.f32 0.0, %v8438
  %v8440 = vpop.f32.mrf.mxu0
  %v8441 = vadd.f32 0.0, %v8440
  %8442 = vmatmul.bf16.gmra.mxu0 %v8298
  %v8443 = vpop.f32.mrf.mxu0
  %v8444 = vadd.f32 0.0, %v8443
  %v8445 = vpop.f32.mrf.mxu0
  %v8446 = vadd.f32 0.0, %v8445
  %8447 = vmatmul.bf16.gmra.mxu0 %v8301
  %v8448 = vpop.f32.mrf.mxu0
  %v8449 = vadd.f32 0.0, %v8448
  %v8450 = vpop.f32.mrf.mxu0
  %v8451 = vadd.f32 0.0, %v8450
  %8452 = vmatmul.bf16.gmra.mxu0 %v8304
  %v8453 = vpop.f32.mrf.mxu0
  %v8454 = vadd.f32 0.0, %v8453
  %v8455 = vpop.f32.mrf.mxu0
  %v8456 = vadd.f32 0.0, %v8455
  %8457 = vmatmul.bf16.gmra.mxu0 %v8307
  %v8458 = vpop.f32.mrf.mxu0
  %v8459 = vadd.f32 0.0, %v8458
  %v8460 = vpop.f32.mrf.mxu0
  %v8461 = vadd.f32 0.0, %v8460
  %8462 = vmatmul.bf16.gmra.mxu0 %v8310
  %v8463 = vpop.f32.mrf.mxu0
  %v8464 = vadd.f32 0.0, %v8463
  %v8465 = vpop.f32.mrf.mxu0
  %v8466 = vadd.f32 0.0, %v8465
  %8467 = vmatmul.bf16.gmra.mxu0 %v8313
  %v8468 = vpop.f32.mrf.mxu0
  %v8469 = vadd.f32 0.0, %v8468
  %v8470 = vpop.f32.mrf.mxu0
  %v8471 = vadd.f32 0.0, %v8470
  %8472 = vmatmul.bf16.gmra.mxu0 %v8316
  %v8473 = vpop.f32.mrf.mxu0
  %v8474 = vadd.f32 0.0, %v8473
  %v8475 = vpop.f32.mrf.mxu0
  %v8476 = vadd.f32 0.0, %v8475
  %8477 = vmatmul.bf16.gmra.mxu0 %v8319
  %v8478 = vpop.f32.mrf.mxu0
  %v8479 = vadd.f32 0.0, %v8478
  %v8480 = vpop.f32.mrf.mxu0
  %v8481 = vadd.f32 0.0, %v8480
  %8482 = vmatmul.bf16.gmra.mxu0 %v8322
  %v8483 = vpop.f32.mrf.mxu0
  %v8484 = vadd.f32 0.0, %v8483
  %v8485 = vpop.f32.mrf.mxu0
  %v8486 = vadd.f32 0.0, %v8485
  %8487 = vmatmul.bf16.gmra.mxu0 %v8325
  %v8488 = vpop.f32.mrf.mxu0
  %v8489 = vadd.f32 0.0, %v8488
  %v8490 = vpop.f32.mrf.mxu0
  %v8491 = vadd.f32 0.0, %v8490
  %8492 = vmatmul.bf16.gmra.mxu0 %v8328
  %v8493 = vpop.f32.mrf.mxu0
  %v8494 = vadd.f32 0.0, %v8493
  %v8495 = vpop.f32.mrf.mxu0
  %v8496 = vadd.f32 0.0, %v8495
  %8497 = vmatmul.bf16.gmra.mxu0 %v8331
  %v8498 = vpop.f32.mrf.mxu0
  %v8499 = vadd.f32 0.0, %v8498
  %v8500 = vpop.f32.mrf.mxu0
  %v8501 = vadd.f32 0.0, %v8500
  %8502 = vmatmul.bf16.gmra.mxu0 %v8334
  %v8503 = vpop.f32.mrf.mxu0
  %v8504 = vadd.f32 0.0, %v8503
  %v8505 = vpop.f32.mrf.mxu0
  %v8506 = vadd.f32 0.0, %v8505
  %8507 = vdwg.mxu0
  %v8508 = vadd.f32 %v7950, %v8349
  %v8509 = vadd.f32 %v7951, %v8351
  %v8510 = vadd.f32 %v7952, %v8354
  %v8511 = vadd.f32 %v7953, %v8356
  %v8512 = vadd.f32 %v7954, %v8359
  %v8513 = vadd.f32 %v7955, %v8361
  %v8514 = vadd.f32 %v7956, %v8364
  %v8515 = vadd.f32 %v7957, %v8366
  %v8516 = vadd.f32 %v7958, %v8369
  %v8517 = vadd.f32 %v7959, %v8371
  %v8518 = vadd.f32 %v7960, %v8374
  %v8519 = vadd.f32 %v7961, %v8376
  %v8520 = vadd.f32 %v7962, %v8379
  %v8521 = vadd.f32 %v7963, %v8381
  %v8522 = vadd.f32 %v7964, %v8384
  %v8523 = vadd.f32 %v7965, %v8386
  %v8524 = vadd.f32 %v7966, %v8389
  %v8525 = vadd.f32 %v7967, %v8391
  %v8526 = vadd.f32 %v7968, %v8394
  %v8527 = vadd.f32 %v7969, %v8396
  %v8528 = vadd.f32 %v7970, %v8399
  %v8529 = vadd.f32 %v7971, %v8401
  %v8530 = vadd.f32 %v7972, %v8404
  %v8531 = vadd.f32 %v7973, %v8406
  %v8532 = vadd.f32 %v7974, %v8409
  %v8533 = vadd.f32 %v7975, %v8411
  %v8534 = vadd.f32 %v7976, %v8414
  %v8535 = vadd.f32 %v7977, %v8416
  %v8536 = vadd.f32 %v7978, %v8419
  %v8537 = vadd.f32 %v7979, %v8421
  %v8538 = vadd.f32 %v7980, %v8424
  %v8539 = vadd.f32 %v7981, %v8426
  %v8540 = vadd.f32 %v7982, %v8429
  %v8541 = vadd.f32 %v7983, %v8431
  %v8542 = vadd.f32 %v7984, %v8434
  %v8543 = vadd.f32 %v7985, %v8436
  %v8544 = vadd.f32 %v7986, %v8439
  %v8545 = vadd.f32 %v7987, %v8441
  %v8546 = vadd.f32 %v7988, %v8444
  %v8547 = vadd.f32 %v7989, %v8446
  %v8548 = vadd.f32 %v7990, %v8449
  %v8549 = vadd.f32 %v7991, %v8451
  %v8550 = vadd.f32 %v7992, %v8454
  %v8551 = vadd.f32 %v7993, %v8456
  %v8552 = vadd.f32 %v7994, %v8459
  %v8553 = vadd.f32 %v7995, %v8461
  %v8554 = vadd.f32 %v7996, %v8464
  %v8555 = vadd.f32 %v7997, %v8466
  %v8556 = vadd.f32 %v7998, %v8469
  %v8557 = vadd.f32 %v7999, %v8471
  %v8558 = vadd.f32 %v8000, %v8474
  %v8559 = vadd.f32 %v8001, %v8476
  %v8560 = vadd.f32 %v8002, %v8479
  %v8561 = vadd.f32 %v8003, %v8481
  %v8562 = vadd.f32 %v8004, %v8484
  %v8563 = vadd.f32 %v8005, %v8486
  %v8564 = vadd.f32 %v8006, %v8489
  %v8565 = vadd.f32 %v8007, %v8491
  %v8566 = vadd.f32 %v8008, %v8494
  %v8567 = vadd.f32 %v8009, %v8496
  %v8568 = vadd.f32 %v8010, %v8499
  %v8569 = vadd.f32 %v8011, %v8501
  %v8570 = vadd.f32 %v8012, %v8504
  %v8571 = vadd.f32 %v8013, %v8506
  %v8572 = vld [vmem:[%s46] sm:$0xf]
  %v8573 = vld [vmem:[%s46 + $0x4] sm:$0xf]
  %v8574 = vld [vmem:[%s46 + $0x8] sm:$0x1]
  %v8575 = vld [vmem:[%s46 + $0xc] sm:$0xf]
  %v8576 = vld [vmem:[%s46 + $0x10] sm:$0xf]
  %v8577 = vld [vmem:[%s46 + $0x14] sm:$0x1]
  %v8578 = vld [vmem:[%s46 + $0x18] sm:$0xf]
  %v8579 = vld [vmem:[%s46 + $0x1c] sm:$0xf]
  %v8580 = vld [vmem:[%s46 + $0x20] sm:$0x1]
  %v8581 = vld [vmem:[%s46 + $0x24] sm:$0xf]
  %v8582 = vld [vmem:[%s46 + $0x28] sm:$0xf]
  %v8583 = vld [vmem:[%s46 + $0x2c] sm:$0x1]
  %v8584 = vld [vmem:[%s46 + $0x30] sm:$0xf]
  %v8585 = vld [vmem:[%s46 + $0x34] sm:$0xf]
  %v8586 = vld [vmem:[%s46 + $0x38] sm:$0x1]
  %v8587 = vld [vmem:[%s46 + $0x3c] sm:$0xf]
  %v8588 = vld [vmem:[%s46 + $0x40] sm:$0xf]
  %v8589 = vld [vmem:[%s46 + $0x44] sm:$0x1]
  %v8590 = vld [vmem:[%s46 + $0x48] sm:$0xf]
  %v8591 = vld [vmem:[%s46 + $0x4c] sm:$0xf]
  %v8592 = vld [vmem:[%s46 + $0x50] sm:$0x1]
  %v8593 = vld [vmem:[%s46 + $0x54] sm:$0xf]
  %v8594 = vld [vmem:[%s46 + $0x58] sm:$0xf]
  %v8595 = vld [vmem:[%s46 + $0x5c] sm:$0x1]
  %v8596 = vld [vmem:[%s46 + $0x60] sm:$0xf]
  %v8597 = vld [vmem:[%s46 + $0x64] sm:$0xf]
  %v8598 = vld [vmem:[%s46 + $0x68] sm:$0x1]
  %v8599 = vld [vmem:[%s46 + $0x6c] sm:$0xf]
  %v8600 = vld [vmem:[%s46 + $0x70] sm:$0xf]
  %v8601 = vld [vmem:[%s46 + $0x74] sm:$0x1]
  %v8602 = vld [vmem:[%s46 + $0x78] sm:$0xf]
  %v8603 = vld [vmem:[%s46 + $0x7c] sm:$0xf]
  %v8604 = vld [vmem:[%s46 + $0x80] sm:$0x1]
  %v8605 = vld [vmem:[%s46 + $0x84] sm:$0xf]
  %v8606 = vld [vmem:[%s46 + $0x88] sm:$0xf]
  %v8607 = vld [vmem:[%s46 + $0x8c] sm:$0x1]
  %v8608 = vld [vmem:[%s46 + $0x90] sm:$0xf]
  %v8609 = vld [vmem:[%s46 + $0x94] sm:$0xf]
  %v8610 = vld [vmem:[%s46 + $0x98] sm:$0x1]
  %v8611 = vld [vmem:[%s46 + $0x9c] sm:$0xf]
  %v8612 = vld [vmem:[%s46 + $0xa0] sm:$0xf]
  %v8613 = vld [vmem:[%s46 + $0xa4] sm:$0x1]
  %v8614 = vld [vmem:[%s46 + $0xa8] sm:$0xf]
  %v8615 = vld [vmem:[%s46 + $0xac] sm:$0xf]
  %v8616 = vld [vmem:[%s46 + $0xb0] sm:$0x1]
  %v8617 = vld [vmem:[%s46 + $0xb4] sm:$0xf]
  %v8618 = vld [vmem:[%s46 + $0xb8] sm:$0xf]
  %v8619 = vld [vmem:[%s46 + $0xbc] sm:$0x1]
  %v8620 = vld [vmem:[%s46 + $0xd8] sm:$0xf]
  %v8621 = vld [vmem:[%s46 + $0xdc] sm:$0xf]
  %v8622 = vld [vmem:[%s46 + $0xe0] sm:$0x1]
  %v8623 = vld [vmem:[%s46 + $0xe4] sm:$0xf]
  %v8624 = vld [vmem:[%s46 + $0xe8] sm:$0xf]
  %v8625 = vld [vmem:[%s46 + $0xec] sm:$0x1]
  %v8626 = vld [vmem:[%s46 + $0xf0] sm:$0xf]
  %v8627 = vld [vmem:[%s46 + $0xf4] sm:$0xf]
  %v8628 = vld [vmem:[%s46 + $0xf8] sm:$0x1]
  %v8629 = vld [vmem:[%s46 + $0xfc] sm:$0xf]
  %v8630 = vld [vmem:[%s46 + $0x100] sm:$0xf]
  %v8631 = vld [vmem:[%s46 + $0x104] sm:$0x1]
  %v8632 = vld [vmem:[%s46 + $0x108] sm:$0xf]
  %v8633 = vld [vmem:[%s46 + $0x10c] sm:$0xf]
  %v8634 = vld [vmem:[%s46 + $0x110] sm:$0x1]
  %v8635 = vld [vmem:[%s46 + $0x114] sm:$0xf]
  %v8636 = vld [vmem:[%s46 + $0x118] sm:$0xf]
  %v8637 = vld [vmem:[%s46 + $0x11c] sm:$0x1]
  %v8638 = vld [vmem:[%s46 + $0x120] sm:$0xf]
  %v8639 = vld [vmem:[%s46 + $0x124] sm:$0xf]
  %v8640 = vld [vmem:[%s46 + $0x128] sm:$0x1]
  %v8641 = vld [vmem:[%s46 + $0x12c] sm:$0xf]
  %v8642 = vld [vmem:[%s46 + $0x130] sm:$0xf]
  %v8643 = vld [vmem:[%s46 + $0x134] sm:$0x1]
  %v8644 = vld [vmem:[%s46 + $0x138] sm:$0xf]
  %v8645 = vld [vmem:[%s46 + $0x13c] sm:$0xf]
  %v8646 = vld [vmem:[%s46 + $0x140] sm:$0x1]
  %v8647 = vld [vmem:[%s46 + $0x144] sm:$0xf]
  %v8648 = vld [vmem:[%s46 + $0x148] sm:$0xf]
  %v8649 = vld [vmem:[%s46 + $0x14c] sm:$0x1]
  %v8650 = vld [vmem:[%s46 + $0x150] sm:$0xf]
  %v8651 = vld [vmem:[%s46 + $0x154] sm:$0xf]
  %v8652 = vld [vmem:[%s46 + $0x158] sm:$0x1]
  %v8653 = vld [vmem:[%s46 + $0x15c] sm:$0xf]
  %v8654 = vld [vmem:[%s46 + $0x160] sm:$0xf]
  %v8655 = vld [vmem:[%s46 + $0x164] sm:$0x1]
  %v8656 = vld [vmem:[%s46 + $0x168] sm:$0xf]
  %v8657 = vld [vmem:[%s46 + $0x16c] sm:$0xf]
  %v8658 = vld [vmem:[%s46 + $0x170] sm:$0x1]
  %v8659 = vld [vmem:[%s46 + $0x174] sm:$0xf]
  %v8660 = vld [vmem:[%s46 + $0x178] sm:$0xf]
  %v8661 = vld [vmem:[%s46 + $0x17c] sm:$0x1]
  %v8662 = vld [vmem:[%s46 + $0x180] sm:$0xf]
  %v8663 = vld [vmem:[%s46 + $0x184] sm:$0xf]
  %v8664 = vld [vmem:[%s46 + $0x188] sm:$0x1]
  %v8665 = vld [vmem:[%s46 + $0x18c] sm:$0xf]
  %v8666 = vld [vmem:[%s46 + $0x190] sm:$0xf]
  %v8667 = vld [vmem:[%s46 + $0x194] sm:$0x1]
  %v8669 = vshrl.u32 %v8572, 16
  %v8671 = vrot.slane %v8669, 4
  %v8672 = vshll.u32 %v8572, 16
  %v8674 = vrot.slane %v8672, 5
  %v8675 = vor.u32 %v8671, %v8674
  %v8676 = vrot.slane %v8675, 4
  %v8678 = vshll.u32 %v8573, 16
  %v8680 = vrot.slane %v8678, 5
  %v8681 = vsel %vm5698, %v8676, %v8680
  %v8682 = vshrl.u32 %v8573, 16
  %v8684 = vrot.slane %v8682, 4
  %v8685 = vor.u32 %v8684, %v8680
  %v8686 = vrot.slane %v8685, 4
  %v8688 = vshll.u32 %v8574, 16
  %v8690 = vrot.slane %v8688, 5
  %v8691 = vsel %vm5698, %v8686, %v8690
  %v8693 = vshrl.u32 %v8575, 16
  %v8695 = vrot.slane %v8693, 4
  %v8696 = vshll.u32 %v8575, 16
  %v8698 = vrot.slane %v8696, 5
  %v8699 = vor.u32 %v8695, %v8698
  %v8700 = vrot.slane %v8699, 4
  %v8702 = vshll.u32 %v8576, 16
  %v8704 = vrot.slane %v8702, 5
  %v8705 = vsel %vm5698, %v8700, %v8704
  %v8706 = vshrl.u32 %v8576, 16
  %v8708 = vrot.slane %v8706, 4
  %v8709 = vor.u32 %v8708, %v8704
  %v8710 = vrot.slane %v8709, 4
  %v8712 = vshll.u32 %v8577, 16
  %v8714 = vrot.slane %v8712, 5
  %v8715 = vsel %vm5698, %v8710, %v8714
  %v8717 = vshrl.u32 %v8578, 16
  %v8719 = vrot.slane %v8717, 4
  %v8720 = vshll.u32 %v8578, 16
  %v8722 = vrot.slane %v8720, 5
  %v8723 = vor.u32 %v8719, %v8722
  %v8724 = vrot.slane %v8723, 4
  %v8726 = vshll.u32 %v8579, 16
  %v8728 = vrot.slane %v8726, 5
  %v8729 = vsel %vm5698, %v8724, %v8728
  %v8730 = vshrl.u32 %v8579, 16
  %v8732 = vrot.slane %v8730, 4
  %v8733 = vor.u32 %v8732, %v8728
  %v8734 = vrot.slane %v8733, 4
  %v8736 = vshll.u32 %v8580, 16
  %v8738 = vrot.slane %v8736, 5
  %v8739 = vsel %vm5698, %v8734, %v8738
  %v8741 = vshrl.u32 %v8581, 16
  %v8743 = vrot.slane %v8741, 4
  %v8744 = vshll.u32 %v8581, 16
  %v8746 = vrot.slane %v8744, 5
  %v8747 = vor.u32 %v8743, %v8746
  %v8748 = vrot.slane %v8747, 4
  %v8750 = vshll.u32 %v8582, 16
  %v8752 = vrot.slane %v8750, 5
  %v8753 = vsel %vm5698, %v8748, %v8752
  %v8754 = vshrl.u32 %v8582, 16
  %v8756 = vrot.slane %v8754, 4
  %v8757 = vor.u32 %v8756, %v8752
  %v8758 = vrot.slane %v8757, 4
  %v8760 = vshll.u32 %v8583, 16
  %v8762 = vrot.slane %v8760, 5
  %v8763 = vsel %vm5698, %v8758, %v8762
  %v8765 = vshrl.u32 %v8584, 16
  %v8767 = vrot.slane %v8765, 4
  %v8768 = vshll.u32 %v8584, 16
  %v8770 = vrot.slane %v8768, 5
  %v8771 = vor.u32 %v8767, %v8770
  %v8772 = vrot.slane %v8771, 4
  %v8774 = vshll.u32 %v8585, 16
  %v8776 = vrot.slane %v8774, 5
  %v8777 = vsel %vm5698, %v8772, %v8776
  %v8778 = vshrl.u32 %v8585, 16
  %v8780 = vrot.slane %v8778, 4
  %v8781 = vor.u32 %v8780, %v8776
  %v8782 = vrot.slane %v8781, 4
  %v8784 = vshll.u32 %v8586, 16
  %v8786 = vrot.slane %v8784, 5
  %v8787 = vsel %vm5698, %v8782, %v8786
  %v8789 = vshrl.u32 %v8587, 16
  %v8791 = vrot.slane %v8789, 4
  %v8792 = vshll.u32 %v8587, 16
  %v8794 = vrot.slane %v8792, 5
  %v8795 = vor.u32 %v8791, %v8794
  %v8796 = vrot.slane %v8795, 4
  %v8798 = vshll.u32 %v8588, 16
  %v8800 = vrot.slane %v8798, 5
  %v8801 = vsel %vm5698, %v8796, %v8800
  %v8802 = vshrl.u32 %v8588, 16
  %v8804 = vrot.slane %v8802, 4
  %v8805 = vor.u32 %v8804, %v8800
  %v8806 = vrot.slane %v8805, 4
  %v8808 = vshll.u32 %v8589, 16
  %v8810 = vrot.slane %v8808, 5
  %v8811 = vsel %vm5698, %v8806, %v8810
  %v8813 = vshrl.u32 %v8590, 16
  %v8815 = vrot.slane %v8813, 4
  %v8816 = vshll.u32 %v8590, 16
  %v8818 = vrot.slane %v8816, 5
  %v8819 = vor.u32 %v8815, %v8818
  %v8820 = vrot.slane %v8819, 4
  %v8822 = vshll.u32 %v8591, 16
  %v8824 = vrot.slane %v8822, 5
  %v8825 = vsel %vm5698, %v8820, %v8824
  %v8826 = vshrl.u32 %v8591, 16
  %v8828 = vrot.slane %v8826, 4
  %v8829 = vor.u32 %v8828, %v8824
  %v8830 = vrot.slane %v8829, 4
  %v8832 = vshll.u32 %v8592, 16
  %v8834 = vrot.slane %v8832, 5
  %v8835 = vsel %vm5698, %v8830, %v8834
  %v8837 = vshrl.u32 %v8593, 16
  %v8839 = vrot.slane %v8837, 4
  %v8840 = vshll.u32 %v8593, 16
  %v8842 = vrot.slane %v8840, 5
  %v8843 = vor.u32 %v8839, %v8842
  %v8844 = vrot.slane %v8843, 4
  %v8846 = vshll.u32 %v8594, 16
  %v8848 = vrot.slane %v8846, 5
  %v8849 = vsel %vm5698, %v8844, %v8848
  %v8850 = vshrl.u32 %v8594, 16
  %v8852 = vrot.slane %v8850, 4
  %v8853 = vor.u32 %v8852, %v8848
  %v8854 = vrot.slane %v8853, 4
  %v8856 = vshll.u32 %v8595, 16
  %v8858 = vrot.slane %v8856, 5
  %v8859 = vsel %vm5698, %v8854, %v8858
  %v8861 = vshrl.u32 %v8596, 16
  %v8863 = vrot.slane %v8861, 4
  %v8864 = vshll.u32 %v8596, 16
  %v8866 = vrot.slane %v8864, 5
  %v8867 = vor.u32 %v8863, %v8866
  %v8868 = vrot.slane %v8867, 4
  %v8870 = vshll.u32 %v8597, 16
  %v8872 = vrot.slane %v8870, 5
  %v8873 = vsel %vm5698, %v8868, %v8872
  %v8874 = vshrl.u32 %v8597, 16
  %v8876 = vrot.slane %v8874, 4
  %v8877 = vor.u32 %v8876, %v8872
  %v8878 = vrot.slane %v8877, 4
  %v8880 = vshll.u32 %v8598, 16
  %v8882 = vrot.slane %v8880, 5
  %v8883 = vsel %vm5698, %v8878, %v8882
  %v8885 = vshrl.u32 %v8599, 16
  %v8887 = vrot.slane %v8885, 4
  %v8888 = vshll.u32 %v8599, 16
  %v8890 = vrot.slane %v8888, 5
  %v8891 = vor.u32 %v8887, %v8890
  %v8892 = vrot.slane %v8891, 4
  %v8894 = vshll.u32 %v8600, 16
  %v8896 = vrot.slane %v8894, 5
  %v8897 = vsel %vm5698, %v8892, %v8896
  %v8898 = vshrl.u32 %v8600, 16
  %v8900 = vrot.slane %v8898, 4
  %v8901 = vor.u32 %v8900, %v8896
  %v8902 = vrot.slane %v8901, 4
  %v8904 = vshll.u32 %v8601, 16
  %v8906 = vrot.slane %v8904, 5
  %v8907 = vsel %vm5698, %v8902, %v8906
  %v8909 = vshrl.u32 %v8602, 16
  %v8911 = vrot.slane %v8909, 4
  %v8912 = vshll.u32 %v8602, 16
  %v8914 = vrot.slane %v8912, 5
  %v8915 = vor.u32 %v8911, %v8914
  %v8916 = vrot.slane %v8915, 4
  %v8918 = vshll.u32 %v8603, 16
  %v8920 = vrot.slane %v8918, 5
  %v8921 = vsel %vm5698, %v8916, %v8920
  %v8922 = vshrl.u32 %v8603, 16
  %v8924 = vrot.slane %v8922, 4
  %v8925 = vor.u32 %v8924, %v8920
  %v8926 = vrot.slane %v8925, 4
  %v8928 = vshll.u32 %v8604, 16
  %v8930 = vrot.slane %v8928, 5
  %v8931 = vsel %vm5698, %v8926, %v8930
  %v8933 = vshrl.u32 %v8605, 16
  %v8935 = vrot.slane %v8933, 4
  %v8936 = vshll.u32 %v8605, 16
  %v8938 = vrot.slane %v8936, 5
  %v8939 = vor.u32 %v8935, %v8938
  %v8940 = vrot.slane %v8939, 4
  %v8942 = vshll.u32 %v8606, 16
  %v8944 = vrot.slane %v8942, 5
  %v8945 = vsel %vm5698, %v8940, %v8944
  %v8946 = vshrl.u32 %v8606, 16
  %v8948 = vrot.slane %v8946, 4
  %v8949 = vor.u32 %v8948, %v8944
  %v8950 = vrot.slane %v8949, 4
  %v8952 = vshll.u32 %v8607, 16
  %v8954 = vrot.slane %v8952, 5
  %v8955 = vsel %vm5698, %v8950, %v8954
  %v8957 = vshrl.u32 %v8608, 16
  %v8959 = vrot.slane %v8957, 4
  %v8960 = vshll.u32 %v8608, 16
  %v8962 = vrot.slane %v8960, 5
  %v8963 = vor.u32 %v8959, %v8962
  %v8964 = vrot.slane %v8963, 4
  %v8966 = vshll.u32 %v8609, 16
  %v8968 = vrot.slane %v8966, 5
  %v8969 = vsel %vm5698, %v8964, %v8968
  %v8970 = vshrl.u32 %v8609, 16
  %v8972 = vrot.slane %v8970, 4
  %v8973 = vor.u32 %v8972, %v8968
  %v8974 = vrot.slane %v8973, 4
  %v8976 = vshll.u32 %v8610, 16
  %v8978 = vrot.slane %v8976, 5
  %v8979 = vsel %vm5698, %v8974, %v8978
  %v8981 = vshrl.u32 %v8611, 16
  %v8983 = vrot.slane %v8981, 4
  %v8984 = vshll.u32 %v8611, 16
  %v8986 = vrot.slane %v8984, 5
  %v8987 = vor.u32 %v8983, %v8986
  %v8988 = vrot.slane %v8987, 4
  %v8990 = vshll.u32 %v8612, 16
  %v8992 = vrot.slane %v8990, 5
  %v8993 = vsel %vm5698, %v8988, %v8992
  %v8994 = vshrl.u32 %v8612, 16
  %v8996 = vrot.slane %v8994, 4
  %v8997 = vor.u32 %v8996, %v8992
  %v8998 = vrot.slane %v8997, 4
  %v9000 = vshll.u32 %v8613, 16
  %v9002 = vrot.slane %v9000, 5
  %v9003 = vsel %vm5698, %v8998, %v9002
  %v9005 = vshrl.u32 %v8614, 16
  %v9007 = vrot.slane %v9005, 4
  %v9008 = vshll.u32 %v8614, 16
  %v9010 = vrot.slane %v9008, 5
  %v9011 = vor.u32 %v9007, %v9010
  %v9012 = vrot.slane %v9011, 4
  %v9014 = vshll.u32 %v8615, 16
  %v9016 = vrot.slane %v9014, 5
  %v9017 = vsel %vm5698, %v9012, %v9016
  %v9018 = vshrl.u32 %v8615, 16
  %v9020 = vrot.slane %v9018, 4
  %v9021 = vor.u32 %v9020, %v9016
  %v9022 = vrot.slane %v9021, 4
  %v9024 = vshll.u32 %v8616, 16
  %v9026 = vrot.slane %v9024, 5
  %v9027 = vsel %vm5698, %v9022, %v9026
  %v9029 = vshrl.u32 %v8617, 16
  %v9031 = vrot.slane %v9029, 4
  %v9032 = vshll.u32 %v8617, 16
  %v9034 = vrot.slane %v9032, 5
  %v9035 = vor.u32 %v9031, %v9034
  %v9036 = vrot.slane %v9035, 4
  %v9038 = vshll.u32 %v8618, 16
  %v9040 = vrot.slane %v9038, 5
  %v9041 = vsel %vm5698, %v9036, %v9040
  %v9042 = vshrl.u32 %v8618, 16
  %v9044 = vrot.slane %v9042, 4
  %v9045 = vor.u32 %v9044, %v9040
  %v9046 = vrot.slane %v9045, 4
  %v9048 = vshll.u32 %v8619, 16
  %v9050 = vrot.slane %v9048, 5
  %v9051 = vsel %vm5698, %v9046, %v9050
  %v9053 = vshrl.u32 %v8620, 16
  %v9055 = vrot.slane %v9053, 4
  %v9056 = vshll.u32 %v8620, 16
  %v9058 = vrot.slane %v9056, 5
  %v9059 = vor.u32 %v9055, %v9058
  %v9060 = vrot.slane %v9059, 4
  %v9062 = vshll.u32 %v8621, 16
  %v9064 = vrot.slane %v9062, 5
  %v9065 = vsel %vm5698, %v9060, %v9064
  %v9066 = vshrl.u32 %v8621, 16
  %v9068 = vrot.slane %v9066, 4
  %v9069 = vor.u32 %v9068, %v9064
  %v9070 = vrot.slane %v9069, 4
  %v9072 = vshll.u32 %v8622, 16
  %v9074 = vrot.slane %v9072, 5
  %v9075 = vsel %vm5698, %v9070, %v9074
  %v9077 = vshrl.u32 %v8623, 16
  %v9079 = vrot.slane %v9077, 4
  %v9080 = vshll.u32 %v8623, 16
  %v9082 = vrot.slane %v9080, 5
  %v9083 = vor.u32 %v9079, %v9082
  %v9084 = vrot.slane %v9083, 4
  %v9086 = vshll.u32 %v8624, 16
  %v9088 = vrot.slane %v9086, 5
  %v9089 = vsel %vm5698, %v9084, %v9088
  %v9090 = vshrl.u32 %v8624, 16
  %v9092 = vrot.slane %v9090, 4
  %v9093 = vor.u32 %v9092, %v9088
  %v9094 = vrot.slane %v9093, 4
  %v9096 = vshll.u32 %v8625, 16
  %v9098 = vrot.slane %v9096, 5
  %v9099 = vsel %vm5698, %v9094, %v9098
  %v9101 = vshrl.u32 %v8626, 16
  %v9103 = vrot.slane %v9101, 4
  %v9104 = vshll.u32 %v8626, 16
  %v9106 = vrot.slane %v9104, 5
  %v9107 = vor.u32 %v9103, %v9106
  %v9108 = vrot.slane %v9107, 4
  %v9110 = vshll.u32 %v8627, 16
  %v9112 = vrot.slane %v9110, 5
  %v9113 = vsel %vm5698, %v9108, %v9112
  %v9114 = vshrl.u32 %v8627, 16
  %v9116 = vrot.slane %v9114, 4
  %v9117 = vor.u32 %v9116, %v9112
  %v9118 = vrot.slane %v9117, 4
  %v9120 = vshll.u32 %v8628, 16
  %v9122 = vrot.slane %v9120, 5
  %v9123 = vsel %vm5698, %v9118, %v9122
  %v9125 = vshrl.u32 %v8629, 16
  %v9127 = vrot.slane %v9125, 4
  %v9128 = vshll.u32 %v8629, 16
  %v9130 = vrot.slane %v9128, 5
  %v9131 = vor.u32 %v9127, %v9130
  %v9132 = vrot.slane %v9131, 4
  %v9134 = vshll.u32 %v8630, 16
  %v9136 = vrot.slane %v9134, 5
  %v9137 = vsel %vm5698, %v9132, %v9136
  %v9138 = vshrl.u32 %v8630, 16
  %v9140 = vrot.slane %v9138, 4
  %v9141 = vor.u32 %v9140, %v9136
  %v9142 = vrot.slane %v9141, 4
  %v9144 = vshll.u32 %v8631, 16
  %v9146 = vrot.slane %v9144, 5
  %v9147 = vsel %vm5698, %v9142, %v9146
  %v9149 = vshrl.u32 %v8632, 16
  %v9151 = vrot.slane %v9149, 4
  %v9152 = vshll.u32 %v8632, 16
  %v9154 = vrot.slane %v9152, 5
  %v9155 = vor.u32 %v9151, %v9154
  %v9156 = vrot.slane %v9155, 4
  %v9158 = vshll.u32 %v8633, 16
  %v9160 = vrot.slane %v9158, 5
  %v9161 = vsel %vm5698, %v9156, %v9160
  %v9162 = vshrl.u32 %v8633, 16
  %v9164 = vrot.slane %v9162, 4
  %v9165 = vor.u32 %v9164, %v9160
  %v9166 = vrot.slane %v9165, 4
  %v9168 = vshll.u32 %v8634, 16
  %v9170 = vrot.slane %v9168, 5
  %v9171 = vsel %vm5698, %v9166, %v9170
  %v9173 = vshrl.u32 %v8635, 16
  %v9175 = vrot.slane %v9173, 4
  %v9176 = vshll.u32 %v8635, 16
  %v9178 = vrot.slane %v9176, 5
  %v9179 = vor.u32 %v9175, %v9178
  %v9180 = vrot.slane %v9179, 4
  %v9182 = vshll.u32 %v8636, 16
  %v9184 = vrot.slane %v9182, 5
  %v9185 = vsel %vm5698, %v9180, %v9184
  %v9186 = vshrl.u32 %v8636, 16
  %v9188 = vrot.slane %v9186, 4
  %v9189 = vor.u32 %v9188, %v9184
  %v9190 = vrot.slane %v9189, 4
  %v9192 = vshll.u32 %v8637, 16
  %v9194 = vrot.slane %v9192, 5
  %v9195 = vsel %vm5698, %v9190, %v9194
  %v9197 = vshrl.u32 %v8638, 16
  %v9199 = vrot.slane %v9197, 4
  %v9200 = vshll.u32 %v8638, 16
  %v9202 = vrot.slane %v9200, 5
  %v9203 = vor.u32 %v9199, %v9202
  %v9204 = vrot.slane %v9203, 4
  %v9206 = vshll.u32 %v8639, 16
  %v9208 = vrot.slane %v9206, 5
  %v9209 = vsel %vm5698, %v9204, %v9208
  %v9210 = vshrl.u32 %v8639, 16
  %v9212 = vrot.slane %v9210, 4
  %v9213 = vor.u32 %v9212, %v9208
  %v9214 = vrot.slane %v9213, 4
  %v9216 = vshll.u32 %v8640, 16
  %v9218 = vrot.slane %v9216, 5
  %v9219 = vsel %vm5698, %v9214, %v9218
  %v9221 = vshrl.u32 %v8641, 16
  %v9223 = vrot.slane %v9221, 4
  %v9224 = vshll.u32 %v8641, 16
  %v9226 = vrot.slane %v9224, 5
  %v9227 = vor.u32 %v9223, %v9226
  %v9228 = vrot.slane %v9227, 4
  %v9230 = vshll.u32 %v8642, 16
  %v9232 = vrot.slane %v9230, 5
  %v9233 = vsel %vm5698, %v9228, %v9232
  %v9234 = vshrl.u32 %v8642, 16
  %v9236 = vrot.slane %v9234, 4
  %v9237 = vor.u32 %v9236, %v9232
  %v9238 = vrot.slane %v9237, 4
  %v9240 = vshll.u32 %v8643, 16
  %v9242 = vrot.slane %v9240, 5
  %v9243 = vsel %vm5698, %v9238, %v9242
  %v9245 = vshrl.u32 %v8644, 16
  %v9247 = vrot.slane %v9245, 4
  %v9248 = vshll.u32 %v8644, 16
  %v9250 = vrot.slane %v9248, 5
  %v9251 = vor.u32 %v9247, %v9250
  %v9252 = vrot.slane %v9251, 4
  %v9254 = vshll.u32 %v8645, 16
  %v9256 = vrot.slane %v9254, 5
  %v9257 = vsel %vm5698, %v9252, %v9256
  %v9258 = vshrl.u32 %v8645, 16
  %v9260 = vrot.slane %v9258, 4
  %v9261 = vor.u32 %v9260, %v9256
  %v9262 = vrot.slane %v9261, 4
  %v9264 = vshll.u32 %v8646, 16
  %v9266 = vrot.slane %v9264, 5
  %v9267 = vsel %vm5698, %v9262, %v9266
  %v9269 = vshrl.u32 %v8647, 16
  %v9271 = vrot.slane %v9269, 4
  %v9272 = vshll.u32 %v8647, 16
  %v9274 = vrot.slane %v9272, 5
  %v9275 = vor.u32 %v9271, %v9274
  %v9276 = vrot.slane %v9275, 4
  %v9278 = vshll.u32 %v8648, 16
  %v9280 = vrot.slane %v9278, 5
  %v9281 = vsel %vm5698, %v9276, %v9280
  %v9282 = vshrl.u32 %v8648, 16
  %v9284 = vrot.slane %v9282, 4
  %v9285 = vor.u32 %v9284, %v9280
  %v9286 = vrot.slane %v9285, 4
  %v9288 = vshll.u32 %v8649, 16
  %v9290 = vrot.slane %v9288, 5
  %v9291 = vsel %vm5698, %v9286, %v9290
  %v9293 = vshrl.u32 %v8650, 16
  %v9295 = vrot.slane %v9293, 4
  %v9296 = vshll.u32 %v8650, 16
  %v9298 = vrot.slane %v9296, 5
  %v9299 = vor.u32 %v9295, %v9298
  %v9300 = vrot.slane %v9299, 4
  %v9302 = vshll.u32 %v8651, 16
  %v9304 = vrot.slane %v9302, 5
  %v9305 = vsel %vm5698, %v9300, %v9304
  %v9306 = vshrl.u32 %v8651, 16
  %v9308 = vrot.slane %v9306, 4
  %v9309 = vor.u32 %v9308, %v9304
  %v9310 = vrot.slane %v9309, 4
  %v9312 = vshll.u32 %v8652, 16
  %v9314 = vrot.slane %v9312, 5
  %v9315 = vsel %vm5698, %v9310, %v9314
  %v9317 = vshrl.u32 %v8653, 16
  %v9319 = vrot.slane %v9317, 4
  %v9320 = vshll.u32 %v8653, 16
  %v9322 = vrot.slane %v9320, 5
  %v9323 = vor.u32 %v9319, %v9322
  %v9324 = vrot.slane %v9323, 4
  %v9326 = vshll.u32 %v8654, 16
  %v9328 = vrot.slane %v9326, 5
  %v9329 = vsel %vm5698, %v9324, %v9328
  %v9330 = vshrl.u32 %v8654, 16
  %v9332 = vrot.slane %v9330, 4
  %v9333 = vor.u32 %v9332, %v9328
  %v9334 = vrot.slane %v9333, 4
  %v9336 = vshll.u32 %v8655, 16
  %v9338 = vrot.slane %v9336, 5
  %v9339 = vsel %vm5698, %v9334, %v9338
  %v9341 = vshrl.u32 %v8656, 16
  %v9343 = vrot.slane %v9341, 4
  %v9344 = vshll.u32 %v8656, 16
  %v9346 = vrot.slane %v9344, 5
  %v9347 = vor.u32 %v9343, %v9346
  %v9348 = vrot.slane %v9347, 4
  %v9350 = vshll.u32 %v8657, 16
  %v9352 = vrot.slane %v9350, 5
  %v9353 = vsel %vm5698, %v9348, %v9352
  %v9354 = vshrl.u32 %v8657, 16
  %v9356 = vrot.slane %v9354, 4
  %v9357 = vor.u32 %v9356, %v9352
  %v9358 = vrot.slane %v9357, 4
  %v9360 = vshll.u32 %v8658, 16
  %v9362 = vrot.slane %v9360, 5
  %v9363 = vsel %vm5698, %v9358, %v9362
  %v9365 = vshrl.u32 %v8659, 16
  %v9367 = vrot.slane %v9365, 4
  %v9368 = vshll.u32 %v8659, 16
  %v9370 = vrot.slane %v9368, 5
  %v9371 = vor.u32 %v9367, %v9370
  %v9372 = vrot.slane %v9371, 4
  %v9374 = vshll.u32 %v8660, 16
  %v9376 = vrot.slane %v9374, 5
  %v9377 = vsel %vm5698, %v9372, %v9376
  %v9378 = vshrl.u32 %v8660, 16
  %v9380 = vrot.slane %v9378, 4
  %v9381 = vor.u32 %v9380, %v9376
  %v9382 = vrot.slane %v9381, 4
  %v9384 = vshll.u32 %v8661, 16
  %v9386 = vrot.slane %v9384, 5
  %v9387 = vsel %vm5698, %v9382, %v9386
  %v9389 = vshrl.u32 %v8662, 16
  %v9391 = vrot.slane %v9389, 4
  %v9392 = vshll.u32 %v8662, 16
  %v9394 = vrot.slane %v9392, 5
  %v9395 = vor.u32 %v9391, %v9394
  %v9396 = vrot.slane %v9395, 4
  %v9398 = vshll.u32 %v8663, 16
  %v9400 = vrot.slane %v9398, 5
  %v9401 = vsel %vm5698, %v9396, %v9400
  %v9402 = vshrl.u32 %v8663, 16
  %v9404 = vrot.slane %v9402, 4
  %v9405 = vor.u32 %v9404, %v9400
  %v9406 = vrot.slane %v9405, 4
  %v9408 = vshll.u32 %v8664, 16
  %v9410 = vrot.slane %v9408, 5
  %v9411 = vsel %vm5698, %v9406, %v9410
  %v9413 = vshrl.u32 %v8665, 16
  %v9415 = vrot.slane %v9413, 4
  %v9416 = vshll.u32 %v8665, 16
  %v9418 = vrot.slane %v9416, 5
  %v9419 = vor.u32 %v9415, %v9418
  %v9420 = vrot.slane %v9419, 4
  %v9422 = vshll.u32 %v8666, 16
  %v9424 = vrot.slane %v9422, 5
  %v9425 = vsel %vm5698, %v9420, %v9424
  %v9426 = vshrl.u32 %v8666, 16
  %v9428 = vrot.slane %v9426, 4
  %v9429 = vor.u32 %v9428, %v9424
  %v9430 = vrot.slane %v9429, 4
  %v9432 = vshll.u32 %v8667, 16
  %v9434 = vrot.slane %v9432, 5
  %v9435 = vsel %vm5698, %v9430, %v9434
  %s9436 = scalar_lea.vmem %s4, 8
  %v9437 = vld [vmem:[%s9436] sm:$0x3]
  %v9438 = vunpack.c.l.b16 %v8681
  %v9439 = vunpack.c.l.b16 %v8691
  %v9440 = vunpack.c.l.b16 %v8705
  %v9441 = vunpack.c.l.b16 %v8715
  %v9442 = vunpack.c.l.b16 %v8729
  %v9443 = vunpack.c.l.b16 %v8739
  %v9444 = vunpack.c.l.b16 %v8753
  %v9445 = vunpack.c.l.b16 %v8763
  %v9446 = vunpack.c.l.b16 %v8777
  %v9447 = vunpack.c.l.b16 %v8787
  %v9448 = vunpack.c.l.b16 %v8801
  %v9449 = vunpack.c.l.b16 %v8811
  %v9450 = vunpack.c.l.b16 %v8825
  %v9451 = vunpack.c.l.b16 %v8835
  %v9452 = vunpack.c.l.b16 %v8849
  %v9453 = vunpack.c.l.b16 %v8859
  %v9454 = vunpack.c.l.b16 %v8873
  %v9455 = vunpack.c.l.b16 %v8883
  %v9456 = vunpack.c.l.b16 %v8897
  %v9457 = vunpack.c.l.b16 %v8907
  %v9458 = vunpack.c.l.b16 %v8921
  %v9459 = vunpack.c.l.b16 %v8931
  %v9460 = vunpack.c.l.b16 %v8945
  %v9461 = vunpack.c.l.b16 %v8955
  %v9462 = vunpack.c.l.b16 %v8969
  %v9463 = vunpack.c.l.b16 %v8979
  %v9464 = vunpack.c.l.b16 %v8993
  %v9465 = vunpack.c.l.b16 %v9003
  %v9466 = vunpack.c.l.b16 %v9017
  %v9467 = vunpack.c.l.b16 %v9027
  %v9468 = vunpack.c.l.b16 %v9041
  %v9469 = vunpack.c.l.b16 %v9051
  %v9470 = vunpack.c.l.b16 %v9065
  %v9471 = vunpack.c.l.b16 %v9075
  %v9472 = vunpack.c.l.b16 %v9089
  %v9473 = vunpack.c.l.b16 %v9099
  %v9474 = vunpack.c.l.b16 %v9113
  %v9475 = vunpack.c.l.b16 %v9123
  %v9476 = vunpack.c.l.b16 %v9137
  %v9477 = vunpack.c.l.b16 %v9147
  %v9478 = vunpack.c.l.b16 %v9161
  %v9479 = vunpack.c.l.b16 %v9171
  %v9480 = vunpack.c.l.b16 %v9185
  %v9481 = vunpack.c.l.b16 %v9195
  %v9482 = vunpack.c.l.b16 %v9209
  %v9483 = vunpack.c.l.b16 %v9219
  %v9484 = vunpack.c.l.b16 %v9233
  %v9485 = vunpack.c.l.b16 %v9243
  %v9486 = vunpack.c.l.b16 %v9257
  %v9487 = vunpack.c.l.b16 %v9267
  %v9488 = vunpack.c.l.b16 %v9281
  %v9489 = vunpack.c.l.b16 %v9291
  %v9490 = vunpack.c.l.b16 %v9305
  %v9491 = vunpack.c.l.b16 %v9315
  %v9492 = vunpack.c.l.b16 %v9329
  %v9493 = vunpack.c.l.b16 %v9339
  %v9494 = vunpack.c.l.b16 %v9353
  %v9495 = vunpack.c.l.b16 %v9363
  %v9496 = vunpack.c.l.b16 %v9377
  %v9497 = vunpack.c.l.b16 %v9387
  %v9498 = vunpack.c.l.b16 %v9401
  %v9499 = vunpack.c.l.b16 %v9411
  %v9500 = vunpack.c.l.b16 %v9425
  %v9501 = vunpack.c.l.b16 %v9435
  %v9502 = vpack.c.b16 %v9439, %v9438
  %v9503 = vpack.c.b16 %v9441, %v9440
  %v9504 = vpack.c.b16 %v9443, %v9442
  %v9505 = vpack.c.b16 %v9445, %v9444
  %v9506 = vpack.c.b16 %v9447, %v9446
  %v9507 = vpack.c.b16 %v9449, %v9448
  %v9508 = vpack.c.b16 %v9451, %v9450
  %v9509 = vpack.c.b16 %v9453, %v9452
  %v9510 = vpack.c.b16 %v9455, %v9454
  %v9511 = vpack.c.b16 %v9457, %v9456
  %v9512 = vpack.c.b16 %v9459, %v9458
  %v9513 = vpack.c.b16 %v9461, %v9460
  %v9514 = vpack.c.b16 %v9463, %v9462
  %v9515 = vpack.c.b16 %v9465, %v9464
  %v9516 = vpack.c.b16 %v9467, %v9466
  %v9517 = vpack.c.b16 %v9469, %v9468
  %v9518 = vpack.c.b16 %v9471, %v9470
  %v9519 = vpack.c.b16 %v9473, %v9472
  %v9520 = vpack.c.b16 %v9475, %v9474
  %v9521 = vpack.c.b16 %v9477, %v9476
  %v9522 = vpack.c.b16 %v9479, %v9478
  %v9523 = vpack.c.b16 %v9481, %v9480
  %v9524 = vpack.c.b16 %v9483, %v9482
  %v9525 = vpack.c.b16 %v9485, %v9484
  %v9526 = vpack.c.b16 %v9487, %v9486
  %v9527 = vpack.c.b16 %v9489, %v9488
  %v9528 = vpack.c.b16 %v9491, %v9490
  %v9529 = vpack.c.b16 %v9493, %v9492
  %v9530 = vpack.c.b16 %v9495, %v9494
  %v9531 = vpack.c.b16 %v9497, %v9496
  %v9532 = vpack.c.b16 %v9499, %v9498
  %v9533 = vpack.c.b16 %v9501, %v9500
  %v9535 = vsel %vm439, %v9502, 0
  %v9538 = vsel %vm439, %v9503, 0
  %v9541 = vsel %vm439, %v9504, 0
  %v9544 = vsel %vm439, %v9505, 0
  %v9547 = vsel %vm439, %v9506, 0
  %v9550 = vsel %vm439, %v9507, 0
  %v9553 = vsel %vm439, %v9508, 0
  %v9556 = vsel %vm439, %v9509, 0
  %v9559 = vsel %vm439, %v9510, 0
  %v9562 = vsel %vm439, %v9511, 0
  %v9565 = vsel %vm439, %v9512, 0
  %v9568 = vsel %vm439, %v9513, 0
  %v9571 = vsel %vm439, %v9514, 0
  %v9574 = vsel %vm439, %v9515, 0
  %v9577 = vsel %vm439, %v9516, 0
  %v9580 = vsel %vm439, %v9517, 0
  %v9583 = vsel %vm439, %v9518, 0
  %v9586 = vsel %vm439, %v9519, 0
  %v9589 = vsel %vm439, %v9520, 0
  %v9592 = vsel %vm439, %v9521, 0
  %v9595 = vsel %vm439, %v9522, 0
  %v9598 = vsel %vm439, %v9523, 0
  %v9601 = vsel %vm439, %v9524, 0
  %v9604 = vsel %vm439, %v9525, 0
  %v9607 = vsel %vm439, %v9526, 0
  %v9610 = vsel %vm439, %v9527, 0
  %v9613 = vsel %vm439, %v9528, 0
  %v9616 = vsel %vm439, %v9529, 0
  %v9619 = vsel %vm439, %v9530, 0
  %v9622 = vsel %vm439, %v9531, 0
  %v9625 = vsel %vm439, %v9532, 0
  %v9628 = vsel %vm439, %v9533, 0
  %v9631 = vsel %vm536, %v9437, 0
  %9633 = vmatpush.bf16.msra.mxu0 0
  %9634 = vmatpush.bf16.msra.mxu0 0
  %9635 = vmatpush.bf16.msra.mxu0 0
  %9636 = vmatpush.bf16.msra.mxu0 0
  %9637 = vmatpush.bf16.msra.mxu0 0
  %9638 = vmatpush.bf16.msra.mxu0 0
  %9639 = vmatpush.bf16.msra.mxu0 0
  %9640 = vmatpush.bf16.msra.mxu0 %v9631
  %9641 = vmatmul.bf16.gmra.mxu0 %v9535
  %v9642 = vpop.f32.mrf.mxu0
  %v9643 = vadd.f32 0.0, %v9642
  %v9644 = vpop.f32.mrf.mxu0
  %v9645 = vadd.f32 0.0, %v9644
  %9646 = vmatmul.bf16.gmra.mxu0 %v9538
  %v9647 = vpop.f32.mrf.mxu0
  %v9648 = vadd.f32 0.0, %v9647
  %v9649 = vpop.f32.mrf.mxu0
  %v9650 = vadd.f32 0.0, %v9649
  %9651 = vmatmul.bf16.gmra.mxu0 %v9541
  %v9652 = vpop.f32.mrf.mxu0
  %v9653 = vadd.f32 0.0, %v9652
  %v9654 = vpop.f32.mrf.mxu0
  %v9655 = vadd.f32 0.0, %v9654
  %9656 = vmatmul.bf16.gmra.mxu0 %v9544
  %v9657 = vpop.f32.mrf.mxu0
  %v9658 = vadd.f32 0.0, %v9657
  %v9659 = vpop.f32.mrf.mxu0
  %v9660 = vadd.f32 0.0, %v9659
  %9661 = vmatmul.bf16.gmra.mxu0 %v9547
  %v9662 = vpop.f32.mrf.mxu0
  %v9663 = vadd.f32 0.0, %v9662
  %v9664 = vpop.f32.mrf.mxu0
  %v9665 = vadd.f32 0.0, %v9664
  %9666 = vmatmul.bf16.gmra.mxu0 %v9550
  %v9667 = vpop.f32.mrf.mxu0
  %v9668 = vadd.f32 0.0, %v9667
  %v9669 = vpop.f32.mrf.mxu0
  %v9670 = vadd.f32 0.0, %v9669
  %9671 = vmatmul.bf16.gmra.mxu0 %v9553
  %v9672 = vpop.f32.mrf.mxu0
  %v9673 = vadd.f32 0.0, %v9672
  %v9674 = vpop.f32.mrf.mxu0
  %v9675 = vadd.f32 0.0, %v9674
  %9676 = vmatmul.bf16.gmra.mxu0 %v9556
  %v9677 = vpop.f32.mrf.mxu0
  %v9678 = vadd.f32 0.0, %v9677
  %v9679 = vpop.f32.mrf.mxu0
  %v9680 = vadd.f32 0.0, %v9679
  %9681 = vmatmul.bf16.gmra.mxu0 %v9559
  %v9682 = vpop.f32.mrf.mxu0
  %v9683 = vadd.f32 0.0, %v9682
  %v9684 = vpop.f32.mrf.mxu0
  %v9685 = vadd.f32 0.0, %v9684
  %9686 = vmatmul.bf16.gmra.mxu0 %v9562
  %v9687 = vpop.f32.mrf.mxu0
  %v9688 = vadd.f32 0.0, %v9687
  %v9689 = vpop.f32.mrf.mxu0
  %v9690 = vadd.f32 0.0, %v9689
  %9691 = vmatmul.bf16.gmra.mxu0 %v9565
  %v9692 = vpop.f32.mrf.mxu0
  %v9693 = vadd.f32 0.0, %v9692
  %v9694 = vpop.f32.mrf.mxu0
  %v9695 = vadd.f32 0.0, %v9694
  %9696 = vmatmul.bf16.gmra.mxu0 %v9568
  %v9697 = vpop.f32.mrf.mxu0
  %v9698 = vadd.f32 0.0, %v9697
  %v9699 = vpop.f32.mrf.mxu0
  %v9700 = vadd.f32 0.0, %v9699
  %9701 = vmatmul.bf16.gmra.mxu0 %v9571
  %v9702 = vpop.f32.mrf.mxu0
  %v9703 = vadd.f32 0.0, %v9702
  %v9704 = vpop.f32.mrf.mxu0
  %v9705 = vadd.f32 0.0, %v9704
  %9706 = vmatmul.bf16.gmra.mxu0 %v9574
  %v9707 = vpop.f32.mrf.mxu0
  %v9708 = vadd.f32 0.0, %v9707
  %v9709 = vpop.f32.mrf.mxu0
  %v9710 = vadd.f32 0.0, %v9709
  %9711 = vmatmul.bf16.gmra.mxu0 %v9577
  %v9712 = vpop.f32.mrf.mxu0
  %v9713 = vadd.f32 0.0, %v9712
  %v9714 = vpop.f32.mrf.mxu0
  %v9715 = vadd.f32 0.0, %v9714
  %9716 = vmatmul.bf16.gmra.mxu0 %v9580
  %v9717 = vpop.f32.mrf.mxu0
  %v9718 = vadd.f32 0.0, %v9717
  %v9719 = vpop.f32.mrf.mxu0
  %v9720 = vadd.f32 0.0, %v9719
  %9721 = vmatmul.bf16.gmra.mxu0 %v9583
  %v9722 = vpop.f32.mrf.mxu0
  %v9723 = vadd.f32 0.0, %v9722
  %v9724 = vpop.f32.mrf.mxu0
  %v9725 = vadd.f32 0.0, %v9724
  %9726 = vmatmul.bf16.gmra.mxu0 %v9586
  %v9727 = vpop.f32.mrf.mxu0
  %v9728 = vadd.f32 0.0, %v9727
  %v9729 = vpop.f32.mrf.mxu0
  %v9730 = vadd.f32 0.0, %v9729
  %9731 = vmatmul.bf16.gmra.mxu0 %v9589
  %v9732 = vpop.f32.mrf.mxu0
  %v9733 = vadd.f32 0.0, %v9732
  %v9734 = vpop.f32.mrf.mxu0
  %v9735 = vadd.f32 0.0, %v9734
  %9736 = vmatmul.bf16.gmra.mxu0 %v9592
  %v9737 = vpop.f32.mrf.mxu0
  %v9738 = vadd.f32 0.0, %v9737
  %v9739 = vpop.f32.mrf.mxu0
  %v9740 = vadd.f32 0.0, %v9739
  %9741 = vmatmul.bf16.gmra.mxu0 %v9595
  %v9742 = vpop.f32.mrf.mxu0
  %v9743 = vadd.f32 0.0, %v9742
  %v9744 = vpop.f32.mrf.mxu0
  %v9745 = vadd.f32 0.0, %v9744
  %9746 = vmatmul.bf16.gmra.mxu0 %v9598
  %v9747 = vpop.f32.mrf.mxu0
  %v9748 = vadd.f32 0.0, %v9747
  %v9749 = vpop.f32.mrf.mxu0
  %v9750 = vadd.f32 0.0, %v9749
  %9751 = vmatmul.bf16.gmra.mxu0 %v9601
  %v9752 = vpop.f32.mrf.mxu0
  %v9753 = vadd.f32 0.0, %v9752
  %v9754 = vpop.f32.mrf.mxu0
  %v9755 = vadd.f32 0.0, %v9754
  %9756 = vmatmul.bf16.gmra.mxu0 %v9604
  %v9757 = vpop.f32.mrf.mxu0
  %v9758 = vadd.f32 0.0, %v9757
  %v9759 = vpop.f32.mrf.mxu0
  %v9760 = vadd.f32 0.0, %v9759
  %9761 = vmatmul.bf16.gmra.mxu0 %v9607
  %v9762 = vpop.f32.mrf.mxu0
  %v9763 = vadd.f32 0.0, %v9762
  %v9764 = vpop.f32.mrf.mxu0
  %v9765 = vadd.f32 0.0, %v9764
  %9766 = vmatmul.bf16.gmra.mxu0 %v9610
  %v9767 = vpop.f32.mrf.mxu0
  %v9768 = vadd.f32 0.0, %v9767
  %v9769 = vpop.f32.mrf.mxu0
  %v9770 = vadd.f32 0.0, %v9769
  %9771 = vmatmul.bf16.gmra.mxu0 %v9613
  %v9772 = vpop.f32.mrf.mxu0
  %v9773 = vadd.f32 0.0, %v9772
  %v9774 = vpop.f32.mrf.mxu0
  %v9775 = vadd.f32 0.0, %v9774
  %9776 = vmatmul.bf16.gmra.mxu0 %v9616
  %v9777 = vpop.f32.mrf.mxu0
  %v9778 = vadd.f32 0.0, %v9777
  %v9779 = vpop.f32.mrf.mxu0
  %v9780 = vadd.f32 0.0, %v9779
  %9781 = vmatmul.bf16.gmra.mxu0 %v9619
  %v9782 = vpop.f32.mrf.mxu0
  %v9783 = vadd.f32 0.0, %v9782
  %v9784 = vpop.f32.mrf.mxu0
  %v9785 = vadd.f32 0.0, %v9784
  %9786 = vmatmul.bf16.gmra.mxu0 %v9622
  %v9787 = vpop.f32.mrf.mxu0
  %v9788 = vadd.f32 0.0, %v9787
  %v9789 = vpop.f32.mrf.mxu0
  %v9790 = vadd.f32 0.0, %v9789
  %9791 = vmatmul.bf16.gmra.mxu0 %v9625
  %v9792 = vpop.f32.mrf.mxu0
  %v9793 = vadd.f32 0.0, %v9792
  %v9794 = vpop.f32.mrf.mxu0
  %v9795 = vadd.f32 0.0, %v9794
  %9796 = vmatmul.bf16.gmra.mxu0 %v9628
  %v9797 = vpop.f32.mrf.mxu0
  %v9798 = vadd.f32 0.0, %v9797
  %v9799 = vpop.f32.mrf.mxu0
  %v9800 = vadd.f32 0.0, %v9799
  %9801 = vdwg.mxu0
  %v9802 = vadd.f32 %v8508, %v9643
  %v9803 = vadd.f32 %v8509, %v9645
  %v9804 = vadd.f32 %v8510, %v9648
  %v9805 = vadd.f32 %v8511, %v9650
  %v9806 = vadd.f32 %v8512, %v9653
  %v9807 = vadd.f32 %v8513, %v9655
  %v9808 = vadd.f32 %v8514, %v9658
  %v9809 = vadd.f32 %v8515, %v9660
  %v9810 = vadd.f32 %v8516, %v9663
  %v9811 = vadd.f32 %v8517, %v9665
  %v9812 = vadd.f32 %v8518, %v9668
  %v9813 = vadd.f32 %v8519, %v9670
  %v9814 = vadd.f32 %v8520, %v9673
  %v9815 = vadd.f32 %v8521, %v9675
  %v9816 = vadd.f32 %v8522, %v9678
  %v9817 = vadd.f32 %v8523, %v9680
  %v9818 = vadd.f32 %v8524, %v9683
  %v9819 = vadd.f32 %v8525, %v9685
  %v9820 = vadd.f32 %v8526, %v9688
  %v9821 = vadd.f32 %v8527, %v9690
  %v9822 = vadd.f32 %v8528, %v9693
  %v9823 = vadd.f32 %v8529, %v9695
  %v9824 = vadd.f32 %v8530, %v9698
  %v9825 = vadd.f32 %v8531, %v9700
  %v9826 = vadd.f32 %v8532, %v9703
  %v9827 = vadd.f32 %v8533, %v9705
  %v9828 = vadd.f32 %v8534, %v9708
  %v9829 = vadd.f32 %v8535, %v9710
  %v9830 = vadd.f32 %v8536, %v9713
  %v9831 = vadd.f32 %v8537, %v9715
  %v9832 = vadd.f32 %v8538, %v9718
  %v9833 = vadd.f32 %v8539, %v9720
  %v9834 = vadd.f32 %v8540, %v9723
  %v9835 = vadd.f32 %v8541, %v9725
  %v9836 = vadd.f32 %v8542, %v9728
  %v9837 = vadd.f32 %v8543, %v9730
  %v9838 = vadd.f32 %v8544, %v9733
  %v9839 = vadd.f32 %v8545, %v9735
  %v9840 = vadd.f32 %v8546, %v9738
  %v9841 = vadd.f32 %v8547, %v9740
  %v9842 = vadd.f32 %v8548, %v9743
  %v9843 = vadd.f32 %v8549, %v9745
  %v9844 = vadd.f32 %v8550, %v9748
  %v9845 = vadd.f32 %v8551, %v9750
  %v9846 = vadd.f32 %v8552, %v9753
  %v9847 = vadd.f32 %v8553, %v9755
  %v9848 = vadd.f32 %v8554, %v9758
  %v9849 = vadd.f32 %v8555, %v9760
  %v9850 = vadd.f32 %v8556, %v9763
  %v9851 = vadd.f32 %v8557, %v9765
  %v9852 = vadd.f32 %v8558, %v9768
  %v9853 = vadd.f32 %v8559, %v9770
  %v9854 = vadd.f32 %v8560, %v9773
  %v9855 = vadd.f32 %v8561, %v9775
  %v9856 = vadd.f32 %v8562, %v9778
  %v9857 = vadd.f32 %v8563, %v9780
  %v9858 = vadd.f32 %v8564, %v9783
  %v9859 = vadd.f32 %v8565, %v9785
  %v9860 = vadd.f32 %v8566, %v9788
  %v9861 = vadd.f32 %v8567, %v9790
  %v9862 = vadd.f32 %v8568, %v9793
  %v9863 = vadd.f32 %v8569, %v9795
  %v9864 = vadd.f32 %v8570, %v9798
  %v9865 = vadd.f32 %v8571, %v9800
  %v9866 = vld [vmem:[%s46] sm:$0xe]
  %v9867 = vld [vmem:[%s46 + $0xc] sm:$0xe]
  %v9868 = vld [vmem:[%s46 + $0x18] sm:$0xe]
  %v9869 = vld [vmem:[%s46 + $0x24] sm:$0xe]
  %v9870 = vld [vmem:[%s46 + $0x30] sm:$0xe]
  %v9871 = vld [vmem:[%s46 + $0x3c] sm:$0xe]
  %v9872 = vld [vmem:[%s46 + $0x48] sm:$0xe]
  %v9873 = vld [vmem:[%s46 + $0x54] sm:$0xe]
  %v9874 = vld [vmem:[%s46 + $0x60] sm:$0xe]
  %v9875 = vld [vmem:[%s46 + $0x6c] sm:$0xe]
  %v9876 = vld [vmem:[%s46 + $0x78] sm:$0xe]
  %v9877 = vld [vmem:[%s46 + $0x84] sm:$0xe]
  %v9878 = vld [vmem:[%s46 + $0x90] sm:$0xe]
  %v9879 = vld [vmem:[%s46 + $0x9c] sm:$0xe]
  %v9880 = vld [vmem:[%s46 + $0xa8] sm:$0xe]
  %v9881 = vld [vmem:[%s46 + $0xb4] sm:$0xe]
  %v9882 = vld [vmem:[%s46 + $0xd8] sm:$0xe]
  %v9883 = vld [vmem:[%s46 + $0xe4] sm:$0xe]
  %v9884 = vld [vmem:[%s46 + $0xf0] sm:$0xe]
  %v9885 = vld [vmem:[%s46 + $0xfc] sm:$0xe]
  %v9886 = vld [vmem:[%s46 + $0x108] sm:$0xe]
  %v9887 = vld [vmem:[%s46 + $0x114] sm:$0xe]
  %v9888 = vld [vmem:[%s46 + $0x120] sm:$0xe]
  %v9889 = vld [vmem:[%s46 + $0x12c] sm:$0xe]
  %v9890 = vld [vmem:[%s46 + $0x138] sm:$0xe]
  %v9891 = vld [vmem:[%s46 + $0x144] sm:$0xe]
  %v9892 = vld [vmem:[%s46 + $0x150] sm:$0xe]
  %v9893 = vld [vmem:[%s46 + $0x15c] sm:$0xe]
  %v9894 = vld [vmem:[%s46 + $0x168] sm:$0xe]
  %v9895 = vld [vmem:[%s46 + $0x174] sm:$0xe]
  %v9896 = vld [vmem:[%s46 + $0x180] sm:$0xe]
  %v9897 = vld [vmem:[%s46 + $0x18c] sm:$0xe]
  %v9994 = vrot.slane %v9866, 5
  %v9995 = vrot.slane %v9994, 4
  %v9996 = vrot.slane %v8573, 5
  %v9997 = vsel %vm7359, %v9995, %v9996
  %v9998 = vrot.slane %v9996, 4
  %v9999 = vrot.slane %v8574, 5
  %v10000 = vsel %vm7359, %v9998, %v9999
  %v10001 = vrot.slane %v9867, 5
  %v10002 = vrot.slane %v10001, 4
  %v10003 = vrot.slane %v8576, 5
  %v10004 = vsel %vm7359, %v10002, %v10003
  %v10005 = vrot.slane %v10003, 4
  %v10006 = vrot.slane %v8577, 5
  %v10007 = vsel %vm7359, %v10005, %v10006
  %v10008 = vrot.slane %v9868, 5
  %v10009 = vrot.slane %v10008, 4
  %v10010 = vrot.slane %v8579, 5
  %v10011 = vsel %vm7359, %v10009, %v10010
  %v10012 = vrot.slane %v10010, 4
  %v10013 = vrot.slane %v8580, 5
  %v10014 = vsel %vm7359, %v10012, %v10013
  %v10015 = vrot.slane %v9869, 5
  %v10016 = vrot.slane %v10015, 4
  %v10017 = vrot.slane %v8582, 5
  %v10018 = vsel %vm7359, %v10016, %v10017
  %v10019 = vrot.slane %v10017, 4
  %v10020 = vrot.slane %v8583, 5
  %v10021 = vsel %vm7359, %v10019, %v10020
  %v10022 = vrot.slane %v9870, 5
  %v10023 = vrot.slane %v10022, 4
  %v10024 = vrot.slane %v8585, 5
  %v10025 = vsel %vm7359, %v10023, %v10024
  %v10026 = vrot.slane %v10024, 4
  %v10027 = vrot.slane %v8586, 5
  %v10028 = vsel %vm7359, %v10026, %v10027
  %v10029 = vrot.slane %v9871, 5
  %v10030 = vrot.slane %v10029, 4
  %v10031 = vrot.slane %v8588, 5
  %v10032 = vsel %vm7359, %v10030, %v10031
  %v10033 = vrot.slane %v10031, 4
  %v10034 = vrot.slane %v8589, 5
  %v10035 = vsel %vm7359, %v10033, %v10034
  %v10036 = vrot.slane %v9872, 5
  %v10037 = vrot.slane %v10036, 4
  %v10038 = vrot.slane %v8591, 5
  %v10039 = vsel %vm7359, %v10037, %v10038
  %v10040 = vrot.slane %v10038, 4
  %v10041 = vrot.slane %v8592, 5
  %v10042 = vsel %vm7359, %v10040, %v10041
  %v10043 = vrot.slane %v9873, 5
  %v10044 = vrot.slane %v10043, 4
  %v10045 = vrot.slane %v8594, 5
  %v10046 = vsel %vm7359, %v10044, %v10045
  %v10047 = vrot.slane %v10045, 4
  %v10048 = vrot.slane %v8595, 5
  %v10049 = vsel %vm7359, %v10047, %v10048
  %v10050 = vrot.slane %v9874, 5
  %v10051 = vrot.slane %v10050, 4
  %v10052 = vrot.slane %v8597, 5
  %v10053 = vsel %vm7359, %v10051, %v10052
  %v10054 = vrot.slane %v10052, 4
  %v10055 = vrot.slane %v8598, 5
  %v10056 = vsel %vm7359, %v10054, %v10055
  %v10057 = vrot.slane %v9875, 5
  %v10058 = vrot.slane %v10057, 4
  %v10059 = vrot.slane %v8600, 5
  %v10060 = vsel %vm7359, %v10058, %v10059
  %v10061 = vrot.slane %v10059, 4
  %v10062 = vrot.slane %v8601, 5
  %v10063 = vsel %vm7359, %v10061, %v10062
  %v10064 = vrot.slane %v9876, 5
  %v10065 = vrot.slane %v10064, 4
  %v10066 = vrot.slane %v8603, 5
  %v10067 = vsel %vm7359, %v10065, %v10066
  %v10068 = vrot.slane %v10066, 4
  %v10069 = vrot.slane %v8604, 5
  %v10070 = vsel %vm7359, %v10068, %v10069
  %v10071 = vrot.slane %v9877, 5
  %v10072 = vrot.slane %v10071, 4
  %v10073 = vrot.slane %v8606, 5
  %v10074 = vsel %vm7359, %v10072, %v10073
  %v10075 = vrot.slane %v10073, 4
  %v10076 = vrot.slane %v8607, 5
  %v10077 = vsel %vm7359, %v10075, %v10076
  %v10078 = vrot.slane %v9878, 5
  %v10079 = vrot.slane %v10078, 4
  %v10080 = vrot.slane %v8609, 5
  %v10081 = vsel %vm7359, %v10079, %v10080
  %v10082 = vrot.slane %v10080, 4
  %v10083 = vrot.slane %v8610, 5
  %v10084 = vsel %vm7359, %v10082, %v10083
  %v10085 = vrot.slane %v9879, 5
  %v10086 = vrot.slane %v10085, 4
  %v10087 = vrot.slane %v8612, 5
  %v10088 = vsel %vm7359, %v10086, %v10087
  %v10089 = vrot.slane %v10087, 4
  %v10090 = vrot.slane %v8613, 5
  %v10091 = vsel %vm7359, %v10089, %v10090
  %v10092 = vrot.slane %v9880, 5
  %v10093 = vrot.slane %v10092, 4
  %v10094 = vrot.slane %v8615, 5
  %v10095 = vsel %vm7359, %v10093, %v10094
  %v10096 = vrot.slane %v10094, 4
  %v10097 = vrot.slane %v8616, 5
  %v10098 = vsel %vm7359, %v10096, %v10097
  %v10099 = vrot.slane %v9881, 5
  %v10100 = vrot.slane %v10099, 4
  %v10101 = vrot.slane %v8618, 5
  %v10102 = vsel %vm7359, %v10100, %v10101
  %v10103 = vrot.slane %v10101, 4
  %v10104 = vrot.slane %v8619, 5
  %v10105 = vsel %vm7359, %v10103, %v10104
  %v10106 = vrot.slane %v9882, 5
  %v10107 = vrot.slane %v10106, 4
  %v10108 = vrot.slane %v8621, 5
  %v10109 = vsel %vm7359, %v10107, %v10108
  %v10110 = vrot.slane %v10108, 4
  %v10111 = vrot.slane %v8622, 5
  %v10112 = vsel %vm7359, %v10110, %v10111
  %v10113 = vrot.slane %v9883, 5
  %v10114 = vrot.slane %v10113, 4
  %v10115 = vrot.slane %v8624, 5
  %v10116 = vsel %vm7359, %v10114, %v10115
  %v10117 = vrot.slane %v10115, 4
  %v10118 = vrot.slane %v8625, 5
  %v10119 = vsel %vm7359, %v10117, %v10118
  %v10120 = vrot.slane %v9884, 5
  %v10121 = vrot.slane %v10120, 4
  %v10122 = vrot.slane %v8627, 5
  %v10123 = vsel %vm7359, %v10121, %v10122
  %v10124 = vrot.slane %v10122, 4
  %v10125 = vrot.slane %v8628, 5
  %v10126 = vsel %vm7359, %v10124, %v10125
  %v10127 = vrot.slane %v9885, 5
  %v10128 = vrot.slane %v10127, 4
  %v10129 = vrot.slane %v8630, 5
  %v10130 = vsel %vm7359, %v10128, %v10129
  %v10131 = vrot.slane %v10129, 4
  %v10132 = vrot.slane %v8631, 5
  %v10133 = vsel %vm7359, %v10131, %v10132
  %v10134 = vrot.slane %v9886, 5
  %v10135 = vrot.slane %v10134, 4
  %v10136 = vrot.slane %v8633, 5
  %v10137 = vsel %vm7359, %v10135, %v10136
  %v10138 = vrot.slane %v10136, 4
  %v10139 = vrot.slane %v8634, 5
  %v10140 = vsel %vm7359, %v10138, %v10139
  %v10141 = vrot.slane %v9887, 5
  %v10142 = vrot.slane %v10141, 4
  %v10143 = vrot.slane %v8636, 5
  %v10144 = vsel %vm7359, %v10142, %v10143
  %v10145 = vrot.slane %v10143, 4
  %v10146 = vrot.slane %v8637, 5
  %v10147 = vsel %vm7359, %v10145, %v10146
  %v10148 = vrot.slane %v9888, 5
  %v10149 = vrot.slane %v10148, 4
  %v10150 = vrot.slane %v8639, 5
  %v10151 = vsel %vm7359, %v10149, %v10150
  %v10152 = vrot.slane %v10150, 4
  %v10153 = vrot.slane %v8640, 5
  %v10154 = vsel %vm7359, %v10152, %v10153
  %v10155 = vrot.slane %v9889, 5
  %v10156 = vrot.slane %v10155, 4
  %v10157 = vrot.slane %v8642, 5
  %v10158 = vsel %vm7359, %v10156, %v10157
  %v10159 = vrot.slane %v10157, 4
  %v10160 = vrot.slane %v8643, 5
  %v10161 = vsel %vm7359, %v10159, %v10160
  %v10162 = vrot.slane %v9890, 5
  %v10163 = vrot.slane %v10162, 4
  %v10164 = vrot.slane %v8645, 5
  %v10165 = vsel %vm7359, %v10163, %v10164
  %v10166 = vrot.slane %v10164, 4
  %v10167 = vrot.slane %v8646, 5
  %v10168 = vsel %vm7359, %v10166, %v10167
  %v10169 = vrot.slane %v9891, 5
  %v10170 = vrot.slane %v10169, 4
  %v10171 = vrot.slane %v8648, 5
  %v10172 = vsel %vm7359, %v10170, %v10171
  %v10173 = vrot.slane %v10171, 4
  %v10174 = vrot.slane %v8649, 5
  %v10175 = vsel %vm7359, %v10173, %v10174
  %v10176 = vrot.slane %v9892, 5
  %v10177 = vrot.slane %v10176, 4
  %v10178 = vrot.slane %v8651, 5
  %v10179 = vsel %vm7359, %v10177, %v10178
  %v10180 = vrot.slane %v10178, 4
  %v10181 = vrot.slane %v8652, 5
  %v10182 = vsel %vm7359, %v10180, %v10181
  %v10183 = vrot.slane %v9893, 5
  %v10184 = vrot.slane %v10183, 4
  %v10185 = vrot.slane %v8654, 5
  %v10186 = vsel %vm7359, %v10184, %v10185
  %v10187 = vrot.slane %v10185, 4
  %v10188 = vrot.slane %v8655, 5
  %v10189 = vsel %vm7359, %v10187, %v10188
  %v10190 = vrot.slane %v9894, 5
  %v10191 = vrot.slane %v10190, 4
  %v10192 = vrot.slane %v8657, 5
  %v10193 = vsel %vm7359, %v10191, %v10192
  %v10194 = vrot.slane %v10192, 4
  %v10195 = vrot.slane %v8658, 5
  %v10196 = vsel %vm7359, %v10194, %v10195
  %v10197 = vrot.slane %v9895, 5
  %v10198 = vrot.slane %v10197, 4
  %v10199 = vrot.slane %v8660, 5
  %v10200 = vsel %vm7359, %v10198, %v10199
  %v10201 = vrot.slane %v10199, 4
  %v10202 = vrot.slane %v8661, 5
  %v10203 = vsel %vm7359, %v10201, %v10202
  %v10204 = vrot.slane %v9896, 5
  %v10205 = vrot.slane %v10204, 4
  %v10206 = vrot.slane %v8663, 5
  %v10207 = vsel %vm7359, %v10205, %v10206
  %v10208 = vrot.slane %v10206, 4
  %v10209 = vrot.slane %v8664, 5
  %v10210 = vsel %vm7359, %v10208, %v10209
  %v10211 = vrot.slane %v9897, 5
  %v10212 = vrot.slane %v10211, 4
  %v10213 = vrot.slane %v8666, 5
  %v10214 = vsel %vm7359, %v10212, %v10213
  %v10215 = vrot.slane %v10213, 4
  %v10216 = vrot.slane %v8667, 5
  %v10217 = vsel %vm7359, %v10215, %v10216
  %s10218 = scalar_lea.vmem %s4, 10
  %v10219 = vld [vmem:[%s10218] sm:$0x3]
  %v10220 = vunpack.c.l.b16 %v9997
  %v10221 = vunpack.c.l.b16 %v10000
  %v10222 = vunpack.c.l.b16 %v10004
  %v10223 = vunpack.c.l.b16 %v10007
  %v10224 = vunpack.c.l.b16 %v10011
  %v10225 = vunpack.c.l.b16 %v10014
  %v10226 = vunpack.c.l.b16 %v10018
  %v10227 = vunpack.c.l.b16 %v10021
  %v10228 = vunpack.c.l.b16 %v10025
  %v10229 = vunpack.c.l.b16 %v10028
  %v10230 = vunpack.c.l.b16 %v10032
  %v10231 = vunpack.c.l.b16 %v10035
  %v10232 = vunpack.c.l.b16 %v10039
  %v10233 = vunpack.c.l.b16 %v10042
  %v10234 = vunpack.c.l.b16 %v10046
  %v10235 = vunpack.c.l.b16 %v10049
  %v10236 = vunpack.c.l.b16 %v10053
  %v10237 = vunpack.c.l.b16 %v10056
  %v10238 = vunpack.c.l.b16 %v10060
  %v10239 = vunpack.c.l.b16 %v10063
  %v10240 = vunpack.c.l.b16 %v10067
  %v10241 = vunpack.c.l.b16 %v10070
  %v10242 = vunpack.c.l.b16 %v10074
  %v10243 = vunpack.c.l.b16 %v10077
  %v10244 = vunpack.c.l.b16 %v10081
  %v10245 = vunpack.c.l.b16 %v10084
  %v10246 = vunpack.c.l.b16 %v10088
  %v10247 = vunpack.c.l.b16 %v10091
  %v10248 = vunpack.c.l.b16 %v10095
  %v10249 = vunpack.c.l.b16 %v10098
  %v10250 = vunpack.c.l.b16 %v10102
  %v10251 = vunpack.c.l.b16 %v10105
  %v10252 = vunpack.c.l.b16 %v10109
  %v10253 = vunpack.c.l.b16 %v10112
  %v10254 = vunpack.c.l.b16 %v10116
  %v10255 = vunpack.c.l.b16 %v10119
  %v10256 = vunpack.c.l.b16 %v10123
  %v10257 = vunpack.c.l.b16 %v10126
  %v10258 = vunpack.c.l.b16 %v10130
  %v10259 = vunpack.c.l.b16 %v10133
  %v10260 = vunpack.c.l.b16 %v10137
  %v10261 = vunpack.c.l.b16 %v10140
  %v10262 = vunpack.c.l.b16 %v10144
  %v10263 = vunpack.c.l.b16 %v10147
  %v10264 = vunpack.c.l.b16 %v10151
  %v10265 = vunpack.c.l.b16 %v10154
  %v10266 = vunpack.c.l.b16 %v10158
  %v10267 = vunpack.c.l.b16 %v10161
  %v10268 = vunpack.c.l.b16 %v10165
  %v10269 = vunpack.c.l.b16 %v10168
  %v10270 = vunpack.c.l.b16 %v10172
  %v10271 = vunpack.c.l.b16 %v10175
  %v10272 = vunpack.c.l.b16 %v10179
  %v10273 = vunpack.c.l.b16 %v10182
  %v10274 = vunpack.c.l.b16 %v10186
  %v10275 = vunpack.c.l.b16 %v10189
  %v10276 = vunpack.c.l.b16 %v10193
  %v10277 = vunpack.c.l.b16 %v10196
  %v10278 = vunpack.c.l.b16 %v10200
  %v10279 = vunpack.c.l.b16 %v10203
  %v10280 = vunpack.c.l.b16 %v10207
  %v10281 = vunpack.c.l.b16 %v10210
  %v10282 = vunpack.c.l.b16 %v10214
  %v10283 = vunpack.c.l.b16 %v10217
  %v10284 = vpack.c.b16 %v10221, %v10220
  %v10285 = vpack.c.b16 %v10223, %v10222
  %v10286 = vpack.c.b16 %v10225, %v10224
  %v10287 = vpack.c.b16 %v10227, %v10226
  %v10288 = vpack.c.b16 %v10229, %v10228
  %v10289 = vpack.c.b16 %v10231, %v10230
  %v10290 = vpack.c.b16 %v10233, %v10232
  %v10291 = vpack.c.b16 %v10235, %v10234
  %v10292 = vpack.c.b16 %v10237, %v10236
  %v10293 = vpack.c.b16 %v10239, %v10238
  %v10294 = vpack.c.b16 %v10241, %v10240
  %v10295 = vpack.c.b16 %v10243, %v10242
  %v10296 = vpack.c.b16 %v10245, %v10244
  %v10297 = vpack.c.b16 %v10247, %v10246
  %v10298 = vpack.c.b16 %v10249, %v10248
  %v10299 = vpack.c.b16 %v10251, %v10250
  %v10300 = vpack.c.b16 %v10253, %v10252
  %v10301 = vpack.c.b16 %v10255, %v10254
  %v10302 = vpack.c.b16 %v10257, %v10256
  %v10303 = vpack.c.b16 %v10259, %v10258
  %v10304 = vpack.c.b16 %v10261, %v10260
  %v10305 = vpack.c.b16 %v10263, %v10262
  %v10306 = vpack.c.b16 %v10265, %v10264
  %v10307 = vpack.c.b16 %v10267, %v10266
  %v10308 = vpack.c.b16 %v10269, %v10268
  %v10309 = vpack.c.b16 %v10271, %v10270
  %v10310 = vpack.c.b16 %v10273, %v10272
  %v10311 = vpack.c.b16 %v10275, %v10274
  %v10312 = vpack.c.b16 %v10277, %v10276
  %v10313 = vpack.c.b16 %v10279, %v10278
  %v10314 = vpack.c.b16 %v10281, %v10280
  %v10315 = vpack.c.b16 %v10283, %v10282
  %v10317 = vsel %vm439, %v10284, 0
  %v10320 = vsel %vm439, %v10285, 0
  %v10323 = vsel %vm439, %v10286, 0
  %v10326 = vsel %vm439, %v10287, 0
  %v10329 = vsel %vm439, %v10288, 0
  %v10332 = vsel %vm439, %v10289, 0
  %v10335 = vsel %vm439, %v10290, 0
  %v10338 = vsel %vm439, %v10291, 0
  %v10341 = vsel %vm439, %v10292, 0
  %v10344 = vsel %vm439, %v10293, 0
  %v10347 = vsel %vm439, %v10294, 0
  %v10350 = vsel %vm439, %v10295, 0
  %v10353 = vsel %vm439, %v10296, 0
  %v10356 = vsel %vm439, %v10297, 0
  %v10359 = vsel %vm439, %v10298, 0
  %v10362 = vsel %vm439, %v10299, 0
  %v10365 = vsel %vm439, %v10300, 0
  %v10368 = vsel %vm439, %v10301, 0
  %v10371 = vsel %vm439, %v10302, 0
  %v10374 = vsel %vm439, %v10303, 0
  %v10377 = vsel %vm439, %v10304, 0
  %v10380 = vsel %vm439, %v10305, 0
  %v10383 = vsel %vm439, %v10306, 0
  %v10386 = vsel %vm439, %v10307, 0
  %v10389 = vsel %vm439, %v10308, 0
  %v10392 = vsel %vm439, %v10309, 0
  %v10395 = vsel %vm439, %v10310, 0
  %v10398 = vsel %vm439, %v10311, 0
  %v10401 = vsel %vm439, %v10312, 0
  %v10404 = vsel %vm439, %v10313, 0
  %v10407 = vsel %vm439, %v10314, 0
  %v10410 = vsel %vm439, %v10315, 0
  %v10413 = vsel %vm536, %v10219, 0
  %10415 = vmatpush.bf16.msra.mxu0 0
  %10416 = vmatpush.bf16.msra.mxu0 0
  %10417 = vmatpush.bf16.msra.mxu0 0
  %10418 = vmatpush.bf16.msra.mxu0 0
  %10419 = vmatpush.bf16.msra.mxu0 0
  %10420 = vmatpush.bf16.msra.mxu0 0
  %10421 = vmatpush.bf16.msra.mxu0 0
  %10422 = vmatpush.bf16.msra.mxu0 %v10413
  %10423 = vmatmul.bf16.gmra.mxu0 %v10317
  %v10424 = vpop.f32.mrf.mxu0
  %v10425 = vadd.f32 0.0, %v10424
  %v10426 = vpop.f32.mrf.mxu0
  %v10427 = vadd.f32 0.0, %v10426
  %10428 = vmatmul.bf16.gmra.mxu0 %v10320
  %v10429 = vpop.f32.mrf.mxu0
  %v10430 = vadd.f32 0.0, %v10429
  %v10431 = vpop.f32.mrf.mxu0
  %v10432 = vadd.f32 0.0, %v10431
  %10433 = vmatmul.bf16.gmra.mxu0 %v10323
  %v10434 = vpop.f32.mrf.mxu0
  %v10435 = vadd.f32 0.0, %v10434
  %v10436 = vpop.f32.mrf.mxu0
  %v10437 = vadd.f32 0.0, %v10436
  %10438 = vmatmul.bf16.gmra.mxu0 %v10326
  %v10439 = vpop.f32.mrf.mxu0
  %v10440 = vadd.f32 0.0, %v10439
  %v10441 = vpop.f32.mrf.mxu0
  %v10442 = vadd.f32 0.0, %v10441
  %10443 = vmatmul.bf16.gmra.mxu0 %v10329
  %v10444 = vpop.f32.mrf.mxu0
  %v10445 = vadd.f32 0.0, %v10444
  %v10446 = vpop.f32.mrf.mxu0
  %v10447 = vadd.f32 0.0, %v10446
  %10448 = vmatmul.bf16.gmra.mxu0 %v10332
  %v10449 = vpop.f32.mrf.mxu0
  %v10450 = vadd.f32 0.0, %v10449
  %v10451 = vpop.f32.mrf.mxu0
  %v10452 = vadd.f32 0.0, %v10451
  %10453 = vmatmul.bf16.gmra.mxu0 %v10335
  %v10454 = vpop.f32.mrf.mxu0
  %v10455 = vadd.f32 0.0, %v10454
  %v10456 = vpop.f32.mrf.mxu0
  %v10457 = vadd.f32 0.0, %v10456
  %10458 = vmatmul.bf16.gmra.mxu0 %v10338
  %v10459 = vpop.f32.mrf.mxu0
  %v10460 = vadd.f32 0.0, %v10459
  %v10461 = vpop.f32.mrf.mxu0
  %v10462 = vadd.f32 0.0, %v10461
  %10463 = vmatmul.bf16.gmra.mxu0 %v10341
  %v10464 = vpop.f32.mrf.mxu0
  %v10465 = vadd.f32 0.0, %v10464
  %v10466 = vpop.f32.mrf.mxu0
  %v10467 = vadd.f32 0.0, %v10466
  %10468 = vmatmul.bf16.gmra.mxu0 %v10344
  %v10469 = vpop.f32.mrf.mxu0
  %v10470 = vadd.f32 0.0, %v10469
  %v10471 = vpop.f32.mrf.mxu0
  %v10472 = vadd.f32 0.0, %v10471
  %10473 = vmatmul.bf16.gmra.mxu0 %v10347
  %v10474 = vpop.f32.mrf.mxu0
  %v10475 = vadd.f32 0.0, %v10474
  %v10476 = vpop.f32.mrf.mxu0
  %v10477 = vadd.f32 0.0, %v10476
  %10478 = vmatmul.bf16.gmra.mxu0 %v10350
  %v10479 = vpop.f32.mrf.mxu0
  %v10480 = vadd.f32 0.0, %v10479
  %v10481 = vpop.f32.mrf.mxu0
  %v10482 = vadd.f32 0.0, %v10481
  %10483 = vmatmul.bf16.gmra.mxu0 %v10353
  %v10484 = vpop.f32.mrf.mxu0
  %v10485 = vadd.f32 0.0, %v10484
  %v10486 = vpop.f32.mrf.mxu0
  %v10487 = vadd.f32 0.0, %v10486
  %10488 = vmatmul.bf16.gmra.mxu0 %v10356
  %v10489 = vpop.f32.mrf.mxu0
  %v10490 = vadd.f32 0.0, %v10489
  %v10491 = vpop.f32.mrf.mxu0
  %v10492 = vadd.f32 0.0, %v10491
  %10493 = vmatmul.bf16.gmra.mxu0 %v10359
  %v10494 = vpop.f32.mrf.mxu0
  %v10495 = vadd.f32 0.0, %v10494
  %v10496 = vpop.f32.mrf.mxu0
  %v10497 = vadd.f32 0.0, %v10496
  %10498 = vmatmul.bf16.gmra.mxu0 %v10362
  %v10499 = vpop.f32.mrf.mxu0
  %v10500 = vadd.f32 0.0, %v10499
  %v10501 = vpop.f32.mrf.mxu0
  %v10502 = vadd.f32 0.0, %v10501
  %10503 = vmatmul.bf16.gmra.mxu0 %v10365
  %v10504 = vpop.f32.mrf.mxu0
  %v10505 = vadd.f32 0.0, %v10504
  %v10506 = vpop.f32.mrf.mxu0
  %v10507 = vadd.f32 0.0, %v10506
  %10508 = vmatmul.bf16.gmra.mxu0 %v10368
  %v10509 = vpop.f32.mrf.mxu0
  %v10510 = vadd.f32 0.0, %v10509
  %v10511 = vpop.f32.mrf.mxu0
  %v10512 = vadd.f32 0.0, %v10511
  %10513 = vmatmul.bf16.gmra.mxu0 %v10371
  %v10514 = vpop.f32.mrf.mxu0
  %v10515 = vadd.f32 0.0, %v10514
  %v10516 = vpop.f32.mrf.mxu0
  %v10517 = vadd.f32 0.0, %v10516
  %10518 = vmatmul.bf16.gmra.mxu0 %v10374
  %v10519 = vpop.f32.mrf.mxu0
  %v10520 = vadd.f32 0.0, %v10519
  %v10521 = vpop.f32.mrf.mxu0
  %v10522 = vadd.f32 0.0, %v10521
  %10523 = vmatmul.bf16.gmra.mxu0 %v10377
  %v10524 = vpop.f32.mrf.mxu0
  %v10525 = vadd.f32 0.0, %v10524
  %v10526 = vpop.f32.mrf.mxu0
  %v10527 = vadd.f32 0.0, %v10526
  %10528 = vmatmul.bf16.gmra.mxu0 %v10380
  %v10529 = vpop.f32.mrf.mxu0
  %v10530 = vadd.f32 0.0, %v10529
  %v10531 = vpop.f32.mrf.mxu0
  %v10532 = vadd.f32 0.0, %v10531
  %10533 = vmatmul.bf16.gmra.mxu0 %v10383
  %v10534 = vpop.f32.mrf.mxu0
  %v10535 = vadd.f32 0.0, %v10534
  %v10536 = vpop.f32.mrf.mxu0
  %v10537 = vadd.f32 0.0, %v10536
  %10538 = vmatmul.bf16.gmra.mxu0 %v10386
  %v10539 = vpop.f32.mrf.mxu0
  %v10540 = vadd.f32 0.0, %v10539
  %v10541 = vpop.f32.mrf.mxu0
  %v10542 = vadd.f32 0.0, %v10541
  %10543 = vmatmul.bf16.gmra.mxu0 %v10389
  %v10544 = vpop.f32.mrf.mxu0
  %v10545 = vadd.f32 0.0, %v10544
  %v10546 = vpop.f32.mrf.mxu0
  %v10547 = vadd.f32 0.0, %v10546
  %10548 = vmatmul.bf16.gmra.mxu0 %v10392
  %v10549 = vpop.f32.mrf.mxu0
  %v10550 = vadd.f32 0.0, %v10549
  %v10551 = vpop.f32.mrf.mxu0
  %v10552 = vadd.f32 0.0, %v10551
  %10553 = vmatmul.bf16.gmra.mxu0 %v10395
  %v10554 = vpop.f32.mrf.mxu0
  %v10555 = vadd.f32 0.0, %v10554
  %v10556 = vpop.f32.mrf.mxu0
  %v10557 = vadd.f32 0.0, %v10556
  %10558 = vmatmul.bf16.gmra.mxu0 %v10398
  %v10559 = vpop.f32.mrf.mxu0
  %v10560 = vadd.f32 0.0, %v10559
  %v10561 = vpop.f32.mrf.mxu0
  %v10562 = vadd.f32 0.0, %v10561
  %10563 = vmatmul.bf16.gmra.mxu0 %v10401
  %v10564 = vpop.f32.mrf.mxu0
  %v10565 = vadd.f32 0.0, %v10564
  %v10566 = vpop.f32.mrf.mxu0
  %v10567 = vadd.f32 0.0, %v10566
  %10568 = vmatmul.bf16.gmra.mxu0 %v10404
  %v10569 = vpop.f32.mrf.mxu0
  %v10570 = vadd.f32 0.0, %v10569
  %v10571 = vpop.f32.mrf.mxu0
  %v10572 = vadd.f32 0.0, %v10571
  %10573 = vmatmul.bf16.gmra.mxu0 %v10407
  %v10574 = vpop.f32.mrf.mxu0
  %v10575 = vadd.f32 0.0, %v10574
  %v10576 = vpop.f32.mrf.mxu0
  %v10577 = vadd.f32 0.0, %v10576
  %10578 = vmatmul.bf16.gmra.mxu0 %v10410
  %v10579 = vpop.f32.mrf.mxu0
  %v10580 = vadd.f32 0.0, %v10579
  %v10581 = vpop.f32.mrf.mxu0
  %v10582 = vadd.f32 0.0, %v10581
  %10583 = vdwg.mxu0
  %v10584 = vadd.f32 %v9802, %v10425
  %v10585 = vadd.f32 %v9803, %v10427
  %v10586 = vadd.f32 %v9804, %v10430
  %v10587 = vadd.f32 %v9805, %v10432
  %v10588 = vadd.f32 %v9806, %v10435
  %v10589 = vadd.f32 %v9807, %v10437
  %v10590 = vadd.f32 %v9808, %v10440
  %v10591 = vadd.f32 %v9809, %v10442
  %v10592 = vadd.f32 %v9810, %v10445
  %v10593 = vadd.f32 %v9811, %v10447
  %v10594 = vadd.f32 %v9812, %v10450
  %v10595 = vadd.f32 %v9813, %v10452
  %v10596 = vadd.f32 %v9814, %v10455
  %v10597 = vadd.f32 %v9815, %v10457
  %v10598 = vadd.f32 %v9816, %v10460
  %v10599 = vadd.f32 %v9817, %v10462
  %v10600 = vadd.f32 %v9818, %v10465
  %v10601 = vadd.f32 %v9819, %v10467
  %v10602 = vadd.f32 %v9820, %v10470
  %v10603 = vadd.f32 %v9821, %v10472
  %v10604 = vadd.f32 %v9822, %v10475
  %v10605 = vadd.f32 %v9823, %v10477
  %v10606 = vadd.f32 %v9824, %v10480
  %v10607 = vadd.f32 %v9825, %v10482
  %v10608 = vadd.f32 %v9826, %v10485
  %v10609 = vadd.f32 %v9827, %v10487
  %v10610 = vadd.f32 %v9828, %v10490
  %v10611 = vadd.f32 %v9829, %v10492
  %v10612 = vadd.f32 %v9830, %v10495
  %v10613 = vadd.f32 %v9831, %v10497
  %v10614 = vadd.f32 %v9832, %v10500
  %v10615 = vadd.f32 %v9833, %v10502
  %v10616 = vadd.f32 %v9834, %v10505
  %v10617 = vadd.f32 %v9835, %v10507
  %v10618 = vadd.f32 %v9836, %v10510
  %v10619 = vadd.f32 %v9837, %v10512
  %v10620 = vadd.f32 %v9838, %v10515
  %v10621 = vadd.f32 %v9839, %v10517
  %v10622 = vadd.f32 %v9840, %v10520
  %v10623 = vadd.f32 %v9841, %v10522
  %v10624 = vadd.f32 %v9842, %v10525
  %v10625 = vadd.f32 %v9843, %v10527
  %v10626 = vadd.f32 %v9844, %v10530
  %v10627 = vadd.f32 %v9845, %v10532
  %v10628 = vadd.f32 %v9846, %v10535
  %v10629 = vadd.f32 %v9847, %v10537
  %v10630 = vadd.f32 %v9848, %v10540
  %v10631 = vadd.f32 %v9849, %v10542
  %v10632 = vadd.f32 %v9850, %v10545
  %v10633 = vadd.f32 %v9851, %v10547
  %v10634 = vadd.f32 %v9852, %v10550
  %v10635 = vadd.f32 %v9853, %v10552
  %v10636 = vadd.f32 %v9854, %v10555
  %v10637 = vadd.f32 %v9855, %v10557
  %v10638 = vadd.f32 %v9856, %v10560
  %v10639 = vadd.f32 %v9857, %v10562
  %v10640 = vadd.f32 %v9858, %v10565
  %v10641 = vadd.f32 %v9859, %v10567
  %v10642 = vadd.f32 %v9860, %v10570
  %v10643 = vadd.f32 %v9861, %v10572
  %v10644 = vadd.f32 %v9862, %v10575
  %v10645 = vadd.f32 %v9863, %v10577
  %v10646 = vadd.f32 %v9864, %v10580
  %v10647 = vadd.f32 %v9865, %v10582
  %s10648 = scalar_lea.vmem [#allocation2], 24
  %v10649 = vld [vmem:[%s10648] sm:$0xf]
  %v10650 = vld [vmem:[%s10648 + $0x4] sm:$0xf]
  %v10651 = vld [vmem:[%s10648 + $0xc] sm:$0xf]
  %v10652 = vld [vmem:[%s10648 + $0x10] sm:$0xf]
  %v10653 = vld [vmem:[%s10648 + $0x18] sm:$0xf]
  %v10654 = vld [vmem:[%s10648 + $0x1c] sm:$0xf]
  %v10655 = vld [vmem:[%s10648 + $0x24] sm:$0xf]
  %v10656 = vld [vmem:[%s10648 + $0x28] sm:$0xf]
  %v10657 = vld [vmem:[%s10648 + $0x30] sm:$0xf]
  %v10658 = vld [vmem:[%s10648 + $0x34] sm:$0xf]
  %v10659 = vld [vmem:[%s10648 + $0x3c] sm:$0xf]
  %v10660 = vld [vmem:[%s10648 + $0x40] sm:$0xf]
  %v10661 = vld [vmem:[%s10648 + $0x48] sm:$0xf]
  %v10662 = vld [vmem:[%s10648 + $0x4c] sm:$0xf]
  %v10663 = vld [vmem:[%s10648 + $0x54] sm:$0xf]
  %v10664 = vld [vmem:[%s10648 + $0x58] sm:$0xf]
  %v10665 = vld [vmem:[%s10648 + $0x60] sm:$0xf]
  %v10666 = vld [vmem:[%s10648 + $0x64] sm:$0xf]
  %v10667 = vld [vmem:[%s10648 + $0x6c] sm:$0xf]
  %v10668 = vld [vmem:[%s10648 + $0x70] sm:$0xf]
  %v10669 = vld [vmem:[%s10648 + $0x78] sm:$0xf]
  %v10670 = vld [vmem:[%s10648 + $0x7c] sm:$0xf]
  %v10671 = vld [vmem:[%s10648 + $0x84] sm:$0xf]
  %v10672 = vld [vmem:[%s10648 + $0x88] sm:$0xf]
  %v10673 = vld [vmem:[%s10648 + $0x90] sm:$0xf]
  %v10674 = vld [vmem:[%s10648 + $0x94] sm:$0xf]
  %v10675 = vld [vmem:[%s10648 + $0x9c] sm:$0xf]
  %v10676 = vld [vmem:[%s10648 + $0xa0] sm:$0xf]
  %v10677 = vld [vmem:[%s10648 + $0xa8] sm:$0xf]
  %v10678 = vld [vmem:[%s10648 + $0xac] sm:$0xf]
  %v10679 = vld [vmem:[%s10648 + $0xb4] sm:$0xf]
  %v10680 = vld [vmem:[%s10648 + $0xb8] sm:$0xf]
  %v10681 = vld [vmem:[%s10648 + $0xd8] sm:$0xf]
  %v10682 = vld [vmem:[%s10648 + $0xdc] sm:$0xf]
  %v10683 = vld [vmem:[%s10648 + $0xe4] sm:$0xf]
  %v10684 = vld [vmem:[%s10648 + $0xe8] sm:$0xf]
  %v10685 = vld [vmem:[%s10648 + $0xf0] sm:$0xf]
  %v10686 = vld [vmem:[%s10648 + $0xf4] sm:$0xf]
  %v10687 = vld [vmem:[%s10648 + $0xfc] sm:$0xf]
  %v10688 = vld [vmem:[%s10648 + $0x100] sm:$0xf]
  %v10689 = vld [vmem:[%s10648 + $0x108] sm:$0xf]
  %v10690 = vld [vmem:[%s10648 + $0x10c] sm:$0xf]
  %v10691 = vld [vmem:[%s10648 + $0x114] sm:$0xf]
  %v10692 = vld [vmem:[%s10648 + $0x118] sm:$0xf]
  %v10693 = vld [vmem:[%s10648 + $0x120] sm:$0xf]
  %v10694 = vld [vmem:[%s10648 + $0x124] sm:$0xf]
  %v10695 = vld [vmem:[%s10648 + $0x12c] sm:$0xf]
  %v10696 = vld [vmem:[%s10648 + $0x130] sm:$0xf]
  %v10697 = vld [vmem:[%s10648 + $0x138] sm:$0xf]
  %v10698 = vld [vmem:[%s10648 + $0x13c] sm:$0xf]
  %v10699 = vld [vmem:[%s10648 + $0x144] sm:$0xf]
  %v10700 = vld [vmem:[%s10648 + $0x148] sm:$0xf]
  %v10701 = vld [vmem:[%s10648 + $0x150] sm:$0xf]
  %v10702 = vld [vmem:[%s10648 + $0x154] sm:$0xf]
  %v10703 = vld [vmem:[%s10648 + $0x15c] sm:$0xf]
  %v10704 = vld [vmem:[%s10648 + $0x160] sm:$0xf]
  %v10705 = vld [vmem:[%s10648 + $0x168] sm:$0xf]
  %v10706 = vld [vmem:[%s10648 + $0x16c] sm:$0xf]
  %v10707 = vld [vmem:[%s10648 + $0x174] sm:$0xf]
  %v10708 = vld [vmem:[%s10648 + $0x178] sm:$0xf]
  %v10709 = vld [vmem:[%s10648 + $0x180] sm:$0xf]
  %v10710 = vld [vmem:[%s10648 + $0x184] sm:$0xf]
  %v10711 = vld [vmem:[%s10648 + $0x18c] sm:$0xf]
  %v10712 = vld [vmem:[%s10648 + $0x190] sm:$0xf]
  %s10713 = scalar_lea.vmem %s4, 12
  %v10714 = vld [vmem:[%s10713] sm:$0x3]
  %v10779 = vunpack.c.l.b16 %v10649
  %v10780 = vunpack.c.l.b16 %v10650
  %v10781 = vunpack.c.l.b16 %v10651
  %v10782 = vunpack.c.l.b16 %v10652
  %v10783 = vunpack.c.l.b16 %v10653
  %v10784 = vunpack.c.l.b16 %v10654
  %v10785 = vunpack.c.l.b16 %v10655
  %v10786 = vunpack.c.l.b16 %v10656
  %v10787 = vunpack.c.l.b16 %v10657
  %v10788 = vunpack.c.l.b16 %v10658
  %v10789 = vunpack.c.l.b16 %v10659
  %v10790 = vunpack.c.l.b16 %v10660
  %v10791 = vunpack.c.l.b16 %v10661
  %v10792 = vunpack.c.l.b16 %v10662
  %v10793 = vunpack.c.l.b16 %v10663
  %v10794 = vunpack.c.l.b16 %v10664
  %v10795 = vunpack.c.l.b16 %v10665
  %v10796 = vunpack.c.l.b16 %v10666
  %v10797 = vunpack.c.l.b16 %v10667
  %v10798 = vunpack.c.l.b16 %v10668
  %v10799 = vunpack.c.l.b16 %v10669
  %v10800 = vunpack.c.l.b16 %v10670
  %v10801 = vunpack.c.l.b16 %v10671
  %v10802 = vunpack.c.l.b16 %v10672
  %v10803 = vunpack.c.l.b16 %v10673
  %v10804 = vunpack.c.l.b16 %v10674
  %v10805 = vunpack.c.l.b16 %v10675
  %v10806 = vunpack.c.l.b16 %v10676
  %v10807 = vunpack.c.l.b16 %v10677
  %v10808 = vunpack.c.l.b16 %v10678
  %v10809 = vunpack.c.l.b16 %v10679
  %v10810 = vunpack.c.l.b16 %v10680
  %v10811 = vunpack.c.l.b16 %v10681
  %v10812 = vunpack.c.l.b16 %v10682
  %v10813 = vunpack.c.l.b16 %v10683
  %v10814 = vunpack.c.l.b16 %v10684
  %v10815 = vunpack.c.l.b16 %v10685
  %v10816 = vunpack.c.l.b16 %v10686
  %v10817 = vunpack.c.l.b16 %v10687
  %v10818 = vunpack.c.l.b16 %v10688
  %v10819 = vunpack.c.l.b16 %v10689
  %v10820 = vunpack.c.l.b16 %v10690
  %v10821 = vunpack.c.l.b16 %v10691
  %v10822 = vunpack.c.l.b16 %v10692
  %v10823 = vunpack.c.l.b16 %v10693
  %v10824 = vunpack.c.l.b16 %v10694
  %v10825 = vunpack.c.l.b16 %v10695
  %v10826 = vunpack.c.l.b16 %v10696
  %v10827 = vunpack.c.l.b16 %v10697
  %v10828 = vunpack.c.l.b16 %v10698
  %v10829 = vunpack.c.l.b16 %v10699
  %v10830 = vunpack.c.l.b16 %v10700
  %v10831 = vunpack.c.l.b16 %v10701
  %v10832 = vunpack.c.l.b16 %v10702
  %v10833 = vunpack.c.l.b16 %v10703
  %v10834 = vunpack.c.l.b16 %v10704
  %v10835 = vunpack.c.l.b16 %v10705
  %v10836 = vunpack.c.l.b16 %v10706
  %v10837 = vunpack.c.l.b16 %v10707
  %v10838 = vunpack.c.l.b16 %v10708
  %v10839 = vunpack.c.l.b16 %v10709
  %v10840 = vunpack.c.l.b16 %v10710
  %v10841 = vunpack.c.l.b16 %v10711
  %v10842 = vunpack.c.l.b16 %v10712
  %v10843 = vpack.c.b16 %v10780, %v10779
  %v10844 = vpack.c.b16 %v10782, %v10781
  %v10845 = vpack.c.b16 %v10784, %v10783
  %v10846 = vpack.c.b16 %v10786, %v10785
  %v10847 = vpack.c.b16 %v10788, %v10787
  %v10848 = vpack.c.b16 %v10790, %v10789
  %v10849 = vpack.c.b16 %v10792, %v10791
  %v10850 = vpack.c.b16 %v10794, %v10793
  %v10851 = vpack.c.b16 %v10796, %v10795
  %v10852 = vpack.c.b16 %v10798, %v10797
  %v10853 = vpack.c.b16 %v10800, %v10799
  %v10854 = vpack.c.b16 %v10802, %v10801
  %v10855 = vpack.c.b16 %v10804, %v10803
  %v10856 = vpack.c.b16 %v10806, %v10805
  %v10857 = vpack.c.b16 %v10808, %v10807
  %v10858 = vpack.c.b16 %v10810, %v10809
  %v10859 = vpack.c.b16 %v10812, %v10811
  %v10860 = vpack.c.b16 %v10814, %v10813
  %v10861 = vpack.c.b16 %v10816, %v10815
  %v10862 = vpack.c.b16 %v10818, %v10817
  %v10863 = vpack.c.b16 %v10820, %v10819
  %v10864 = vpack.c.b16 %v10822, %v10821
  %v10865 = vpack.c.b16 %v10824, %v10823
  %v10866 = vpack.c.b16 %v10826, %v10825
  %v10867 = vpack.c.b16 %v10828, %v10827
  %v10868 = vpack.c.b16 %v10830, %v10829
  %v10869 = vpack.c.b16 %v10832, %v10831
  %v10870 = vpack.c.b16 %v10834, %v10833
  %v10871 = vpack.c.b16 %v10836, %v10835
  %v10872 = vpack.c.b16 %v10838, %v10837
  %v10873 = vpack.c.b16 %v10840, %v10839
  %v10874 = vpack.c.b16 %v10842, %v10841
  %v10876 = vsel %vm439, %v10843, 0
  %v10879 = vsel %vm439, %v10844, 0
  %v10882 = vsel %vm439, %v10845, 0
  %v10885 = vsel %vm439, %v10846, 0
  %v10888 = vsel %vm439, %v10847, 0
  %v10891 = vsel %vm439, %v10848, 0
  %v10894 = vsel %vm439, %v10849, 0
  %v10897 = vsel %vm439, %v10850, 0
  %v10900 = vsel %vm439, %v10851, 0
  %v10903 = vsel %vm439, %v10852, 0
  %v10906 = vsel %vm439, %v10853, 0
  %v10909 = vsel %vm439, %v10854, 0
  %v10912 = vsel %vm439, %v10855, 0
  %v10915 = vsel %vm439, %v10856, 0
  %v10918 = vsel %vm439, %v10857, 0
  %v10921 = vsel %vm439, %v10858, 0
  %v10924 = vsel %vm439, %v10859, 0
  %v10927 = vsel %vm439, %v10860, 0
  %v10930 = vsel %vm439, %v10861, 0
  %v10933 = vsel %vm439, %v10862, 0
  %v10936 = vsel %vm439, %v10863, 0
  %v10939 = vsel %vm439, %v10864, 0
  %v10942 = vsel %vm439, %v10865, 0
  %v10945 = vsel %vm439, %v10866, 0
  %v10948 = vsel %vm439, %v10867, 0
  %v10951 = vsel %vm439, %v10868, 0
  %v10954 = vsel %vm439, %v10869, 0
  %v10957 = vsel %vm439, %v10870, 0
  %v10960 = vsel %vm439, %v10871, 0
  %v10963 = vsel %vm439, %v10872, 0
  %v10966 = vsel %vm439, %v10873, 0
  %v10969 = vsel %vm439, %v10874, 0
  %v10972 = vsel %vm536, %v10714, 0
  %10974 = vmatpush.bf16.msra.mxu0 0
  %10975 = vmatpush.bf16.msra.mxu0 0
  %10976 = vmatpush.bf16.msra.mxu0 0
  %10977 = vmatpush.bf16.msra.mxu0 0
  %10978 = vmatpush.bf16.msra.mxu0 0
  %10979 = vmatpush.bf16.msra.mxu0 0
  %10980 = vmatpush.bf16.msra.mxu0 0
  %10981 = vmatpush.bf16.msra.mxu0 %v10972
  %10982 = vmatmul.bf16.gmra.mxu0 %v10876
  %v10983 = vpop.f32.mrf.mxu0
  %v10984 = vadd.f32 0.0, %v10983
  %v10985 = vpop.f32.mrf.mxu0
  %v10986 = vadd.f32 0.0, %v10985
  %10987 = vmatmul.bf16.gmra.mxu0 %v10879
  %v10988 = vpop.f32.mrf.mxu0
  %v10989 = vadd.f32 0.0, %v10988
  %v10990 = vpop.f32.mrf.mxu0
  %v10991 = vadd.f32 0.0, %v10990
  %10992 = vmatmul.bf16.gmra.mxu0 %v10882
  %v10993 = vpop.f32.mrf.mxu0
  %v10994 = vadd.f32 0.0, %v10993
  %v10995 = vpop.f32.mrf.mxu0
  %v10996 = vadd.f32 0.0, %v10995
  %10997 = vmatmul.bf16.gmra.mxu0 %v10885
  %v10998 = vpop.f32.mrf.mxu0
  %v10999 = vadd.f32 0.0, %v10998
  %v11000 = vpop.f32.mrf.mxu0
  %v11001 = vadd.f32 0.0, %v11000
  %11002 = vmatmul.bf16.gmra.mxu0 %v10888
  %v11003 = vpop.f32.mrf.mxu0
  %v11004 = vadd.f32 0.0, %v11003
  %v11005 = vpop.f32.mrf.mxu0
  %v11006 = vadd.f32 0.0, %v11005
  %11007 = vmatmul.bf16.gmra.mxu0 %v10891
  %v11008 = vpop.f32.mrf.mxu0
  %v11009 = vadd.f32 0.0, %v11008
  %v11010 = vpop.f32.mrf.mxu0
  %v11011 = vadd.f32 0.0, %v11010
  %11012 = vmatmul.bf16.gmra.mxu0 %v10894
  %v11013 = vpop.f32.mrf.mxu0
  %v11014 = vadd.f32 0.0, %v11013
  %v11015 = vpop.f32.mrf.mxu0
  %v11016 = vadd.f32 0.0, %v11015
  %11017 = vmatmul.bf16.gmra.mxu0 %v10897
  %v11018 = vpop.f32.mrf.mxu0
  %v11019 = vadd.f32 0.0, %v11018
  %v11020 = vpop.f32.mrf.mxu0
  %v11021 = vadd.f32 0.0, %v11020
  %11022 = vmatmul.bf16.gmra.mxu0 %v10900
  %v11023 = vpop.f32.mrf.mxu0
  %v11024 = vadd.f32 0.0, %v11023
  %v11025 = vpop.f32.mrf.mxu0
  %v11026 = vadd.f32 0.0, %v11025
  %11027 = vmatmul.bf16.gmra.mxu0 %v10903
  %v11028 = vpop.f32.mrf.mxu0
  %v11029 = vadd.f32 0.0, %v11028
  %v11030 = vpop.f32.mrf.mxu0
  %v11031 = vadd.f32 0.0, %v11030
  %11032 = vmatmul.bf16.gmra.mxu0 %v10906
  %v11033 = vpop.f32.mrf.mxu0
  %v11034 = vadd.f32 0.0, %v11033
  %v11035 = vpop.f32.mrf.mxu0
  %v11036 = vadd.f32 0.0, %v11035
  %11037 = vmatmul.bf16.gmra.mxu0 %v10909
  %v11038 = vpop.f32.mrf.mxu0
  %v11039 = vadd.f32 0.0, %v11038
  %v11040 = vpop.f32.mrf.mxu0
  %v11041 = vadd.f32 0.0, %v11040
  %11042 = vmatmul.bf16.gmra.mxu0 %v10912
  %v11043 = vpop.f32.mrf.mxu0
  %v11044 = vadd.f32 0.0, %v11043
  %v11045 = vpop.f32.mrf.mxu0
  %v11046 = vadd.f32 0.0, %v11045
  %11047 = vmatmul.bf16.gmra.mxu0 %v10915
  %v11048 = vpop.f32.mrf.mxu0
  %v11049 = vadd.f32 0.0, %v11048
  %v11050 = vpop.f32.mrf.mxu0
  %v11051 = vadd.f32 0.0, %v11050
  %11052 = vmatmul.bf16.gmra.mxu0 %v10918
  %v11053 = vpop.f32.mrf.mxu0
  %v11054 = vadd.f32 0.0, %v11053
  %v11055 = vpop.f32.mrf.mxu0
  %v11056 = vadd.f32 0.0, %v11055
  %11057 = vmatmul.bf16.gmra.mxu0 %v10921
  %v11058 = vpop.f32.mrf.mxu0
  %v11059 = vadd.f32 0.0, %v11058
  %v11060 = vpop.f32.mrf.mxu0
  %v11061 = vadd.f32 0.0, %v11060
  %11062 = vmatmul.bf16.gmra.mxu0 %v10924
  %v11063 = vpop.f32.mrf.mxu0
  %v11064 = vadd.f32 0.0, %v11063
  %v11065 = vpop.f32.mrf.mxu0
  %v11066 = vadd.f32 0.0, %v11065
  %11067 = vmatmul.bf16.gmra.mxu0 %v10927
  %v11068 = vpop.f32.mrf.mxu0
  %v11069 = vadd.f32 0.0, %v11068
  %v11070 = vpop.f32.mrf.mxu0
  %v11071 = vadd.f32 0.0, %v11070
  %11072 = vmatmul.bf16.gmra.mxu0 %v10930
  %v11073 = vpop.f32.mrf.mxu0
  %v11074 = vadd.f32 0.0, %v11073
  %v11075 = vpop.f32.mrf.mxu0
  %v11076 = vadd.f32 0.0, %v11075
  %11077 = vmatmul.bf16.gmra.mxu0 %v10933
  %v11078 = vpop.f32.mrf.mxu0
  %v11079 = vadd.f32 0.0, %v11078
  %v11080 = vpop.f32.mrf.mxu0
  %v11081 = vadd.f32 0.0, %v11080
  %11082 = vmatmul.bf16.gmra.mxu0 %v10936
  %v11083 = vpop.f32.mrf.mxu0
  %v11084 = vadd.f32 0.0, %v11083
  %v11085 = vpop.f32.mrf.mxu0
  %v11086 = vadd.f32 0.0, %v11085
  %11087 = vmatmul.bf16.gmra.mxu0 %v10939
  %v11088 = vpop.f32.mrf.mxu0
  %v11089 = vadd.f32 0.0, %v11088
  %v11090 = vpop.f32.mrf.mxu0
  %v11091 = vadd.f32 0.0, %v11090
  %11092 = vmatmul.bf16.gmra.mxu0 %v10942
  %v11093 = vpop.f32.mrf.mxu0
  %v11094 = vadd.f32 0.0, %v11093
  %v11095 = vpop.f32.mrf.mxu0
  %v11096 = vadd.f32 0.0, %v11095
  %11097 = vmatmul.bf16.gmra.mxu0 %v10945
  %v11098 = vpop.f32.mrf.mxu0
  %v11099 = vadd.f32 0.0, %v11098
  %v11100 = vpop.f32.mrf.mxu0
  %v11101 = vadd.f32 0.0, %v11100
  %11102 = vmatmul.bf16.gmra.mxu0 %v10948
  %v11103 = vpop.f32.mrf.mxu0
  %v11104 = vadd.f32 0.0, %v11103
  %v11105 = vpop.f32.mrf.mxu0
  %v11106 = vadd.f32 0.0, %v11105
  %11107 = vmatmul.bf16.gmra.mxu0 %v10951
  %v11108 = vpop.f32.mrf.mxu0
  %v11109 = vadd.f32 0.0, %v11108
  %v11110 = vpop.f32.mrf.mxu0
  %v11111 = vadd.f32 0.0, %v11110
  %11112 = vmatmul.bf16.gmra.mxu0 %v10954
  %v11113 = vpop.f32.mrf.mxu0
  %v11114 = vadd.f32 0.0, %v11113
  %v11115 = vpop.f32.mrf.mxu0
  %v11116 = vadd.f32 0.0, %v11115
  %11117 = vmatmul.bf16.gmra.mxu0 %v10957
  %v11118 = vpop.f32.mrf.mxu0
  %v11119 = vadd.f32 0.0, %v11118
  %v11120 = vpop.f32.mrf.mxu0
  %v11121 = vadd.f32 0.0, %v11120
  %11122 = vmatmul.bf16.gmra.mxu0 %v10960
  %v11123 = vpop.f32.mrf.mxu0
  %v11124 = vadd.f32 0.0, %v11123
  %v11125 = vpop.f32.mrf.mxu0
  %v11126 = vadd.f32 0.0, %v11125
  %11127 = vmatmul.bf16.gmra.mxu0 %v10963
  %v11128 = vpop.f32.mrf.mxu0
  %v11129 = vadd.f32 0.0, %v11128
  %v11130 = vpop.f32.mrf.mxu0
  %v11131 = vadd.f32 0.0, %v11130
  %11132 = vmatmul.bf16.gmra.mxu0 %v10966
  %v11133 = vpop.f32.mrf.mxu0
  %v11134 = vadd.f32 0.0, %v11133
  %v11135 = vpop.f32.mrf.mxu0
  %v11136 = vadd.f32 0.0, %v11135
  %11137 = vmatmul.bf16.gmra.mxu0 %v10969
  %v11138 = vpop.f32.mrf.mxu0
  %v11139 = vadd.f32 0.0, %v11138
  %v11140 = vpop.f32.mrf.mxu0
  %v11141 = vadd.f32 0.0, %v11140
  %11142 = vdwg.mxu0
  %v11143 = vadd.f32 %v10584, %v10984
  %v11144 = vadd.f32 %v10585, %v10986
  %v11145 = vadd.f32 %v10586, %v10989
  %v11146 = vadd.f32 %v10587, %v10991
  %v11147 = vadd.f32 %v10588, %v10994
  %v11148 = vadd.f32 %v10589, %v10996
  %v11149 = vadd.f32 %v10590, %v10999
  %v11150 = vadd.f32 %v10591, %v11001
  %v11151 = vadd.f32 %v10592, %v11004
  %v11152 = vadd.f32 %v10593, %v11006
  %v11153 = vadd.f32 %v10594, %v11009
  %v11154 = vadd.f32 %v10595, %v11011
  %v11155 = vadd.f32 %v10596, %v11014
  %v11156 = vadd.f32 %v10597, %v11016
  %v11157 = vadd.f32 %v10598, %v11019
  %v11158 = vadd.f32 %v10599, %v11021
  %v11159 = vadd.f32 %v10600, %v11024
  %v11160 = vadd.f32 %v10601, %v11026
  %v11161 = vadd.f32 %v10602, %v11029
  %v11162 = vadd.f32 %v10603, %v11031
  %v11163 = vadd.f32 %v10604, %v11034
  %v11164 = vadd.f32 %v10605, %v11036
  %v11165 = vadd.f32 %v10606, %v11039
  %v11166 = vadd.f32 %v10607, %v11041
  %v11167 = vadd.f32 %v10608, %v11044
  %v11168 = vadd.f32 %v10609, %v11046
  %v11169 = vadd.f32 %v10610, %v11049
  %v11170 = vadd.f32 %v10611, %v11051
  %v11171 = vadd.f32 %v10612, %v11054
  %v11172 = vadd.f32 %v10613, %v11056
  %v11173 = vadd.f32 %v10614, %v11059
  %v11174 = vadd.f32 %v10615, %v11061
  %v11175 = vadd.f32 %v10616, %v11064
  %v11176 = vadd.f32 %v10617, %v11066
  %v11177 = vadd.f32 %v10618, %v11069
  %v11178 = vadd.f32 %v10619, %v11071
  %v11179 = vadd.f32 %v10620, %v11074
  %v11180 = vadd.f32 %v10621, %v11076
  %v11181 = vadd.f32 %v10622, %v11079
  %v11182 = vadd.f32 %v10623, %v11081
  %v11183 = vadd.f32 %v10624, %v11084
  %v11184 = vadd.f32 %v10625, %v11086
  %v11185 = vadd.f32 %v10626, %v11089
  %v11186 = vadd.f32 %v10627, %v11091
  %v11187 = vadd.f32 %v10628, %v11094
  %v11188 = vadd.f32 %v10629, %v11096
  %v11189 = vadd.f32 %v10630, %v11099
  %v11190 = vadd.f32 %v10631, %v11101
  %v11191 = vadd.f32 %v10632, %v11104
  %v11192 = vadd.f32 %v10633, %v11106
  %v11193 = vadd.f32 %v10634, %v11109
  %v11194 = vadd.f32 %v10635, %v11111
  %v11195 = vadd.f32 %v10636, %v11114
  %v11196 = vadd.f32 %v10637, %v11116
  %v11197 = vadd.f32 %v10638, %v11119
  %v11198 = vadd.f32 %v10639, %v11121
  %v11199 = vadd.f32 %v10640, %v11124
  %v11200 = vadd.f32 %v10641, %v11126
  %v11201 = vadd.f32 %v10642, %v11129
  %v11202 = vadd.f32 %v10643, %v11131
  %v11203 = vadd.f32 %v10644, %v11134
  %v11204 = vadd.f32 %v10645, %v11136
  %v11205 = vadd.f32 %v10646, %v11139
  %v11206 = vadd.f32 %v10647, %v11141
  %v11207 = vld [vmem:[%s10648] sm:$0xf]
  %v11208 = vld [vmem:[%s10648 + $0x4] sm:$0xf]
  %v11209 = vld [vmem:[%s10648 + $0x8] sm:$0x1]
  %v11210 = vld [vmem:[%s10648 + $0xc] sm:$0xf]
  %v11211 = vld [vmem:[%s10648 + $0x10] sm:$0xf]
  %v11212 = vld [vmem:[%s10648 + $0x14] sm:$0x1]
  %v11213 = vld [vmem:[%s10648 + $0x18] sm:$0xf]
  %v11214 = vld [vmem:[%s10648 + $0x1c] sm:$0xf]
  %v11215 = vld [vmem:[%s10648 + $0x20] sm:$0x1]
  %v11216 = vld [vmem:[%s10648 + $0x24] sm:$0xf]
  %v11217 = vld [vmem:[%s10648 + $0x28] sm:$0xf]
  %v11218 = vld [vmem:[%s10648 + $0x2c] sm:$0x1]
  %v11219 = vld [vmem:[%s10648 + $0x30] sm:$0xf]
  %v11220 = vld [vmem:[%s10648 + $0x34] sm:$0xf]
  %v11221 = vld [vmem:[%s10648 + $0x38] sm:$0x1]
  %v11222 = vld [vmem:[%s10648 + $0x3c] sm:$0xf]
  %v11223 = vld [vmem:[%s10648 + $0x40] sm:$0xf]
  %v11224 = vld [vmem:[%s10648 + $0x44] sm:$0x1]
  %v11225 = vld [vmem:[%s10648 + $0x48] sm:$0xf]
  %v11226 = vld [vmem:[%s10648 + $0x4c] sm:$0xf]
  %v11227 = vld [vmem:[%s10648 + $0x50] sm:$0x1]
  %v11228 = vld [vmem:[%s10648 + $0x54] sm:$0xf]
  %v11229 = vld [vmem:[%s10648 + $0x58] sm:$0xf]
  %v11230 = vld [vmem:[%s10648 + $0x5c] sm:$0x1]
  %v11231 = vld [vmem:[%s10648 + $0x60] sm:$0xf]
  %v11232 = vld [vmem:[%s10648 + $0x64] sm:$0xf]
  %v11233 = vld [vmem:[%s10648 + $0x68] sm:$0x1]
  %v11234 = vld [vmem:[%s10648 + $0x6c] sm:$0xf]
  %v11235 = vld [vmem:[%s10648 + $0x70] sm:$0xf]
  %v11236 = vld [vmem:[%s10648 + $0x74] sm:$0x1]
  %v11237 = vld [vmem:[%s10648 + $0x78] sm:$0xf]
  %v11238 = vld [vmem:[%s10648 + $0x7c] sm:$0xf]
  %v11239 = vld [vmem:[%s10648 + $0x80] sm:$0x1]
  %v11240 = vld [vmem:[%s10648 + $0x84] sm:$0xf]
  %v11241 = vld [vmem:[%s10648 + $0x88] sm:$0xf]
  %v11242 = vld [vmem:[%s10648 + $0x8c] sm:$0x1]
  %v11243 = vld [vmem:[%s10648 + $0x90] sm:$0xf]
  %v11244 = vld [vmem:[%s10648 + $0x94] sm:$0xf]
  %v11245 = vld [vmem:[%s10648 + $0x98] sm:$0x1]
  %v11246 = vld [vmem:[%s10648 + $0x9c] sm:$0xf]
  %v11247 = vld [vmem:[%s10648 + $0xa0] sm:$0xf]
  %v11248 = vld [vmem:[%s10648 + $0xa4] sm:$0x1]
  %v11249 = vld [vmem:[%s10648 + $0xa8] sm:$0xf]
  %v11250 = vld [vmem:[%s10648 + $0xac] sm:$0xf]
  %v11251 = vld [vmem:[%s10648 + $0xb0] sm:$0x1]
  %v11252 = vld [vmem:[%s10648 + $0xb4] sm:$0xf]
  %v11253 = vld [vmem:[%s10648 + $0xb8] sm:$0xf]
  %v11254 = vld [vmem:[%s10648 + $0xbc] sm:$0x1]
  %v11255 = vld [vmem:[%s10648 + $0xd8] sm:$0xf]
  %v11256 = vld [vmem:[%s10648 + $0xdc] sm:$0xf]
  %v11257 = vld [vmem:[%s10648 + $0xe0] sm:$0x1]
  %v11258 = vld [vmem:[%s10648 + $0xe4] sm:$0xf]
  %v11259 = vld [vmem:[%s10648 + $0xe8] sm:$0xf]
  %v11260 = vld [vmem:[%s10648 + $0xec] sm:$0x1]
  %v11261 = vld [vmem:[%s10648 + $0xf0] sm:$0xf]
  %v11262 = vld [vmem:[%s10648 + $0xf4] sm:$0xf]
  %v11263 = vld [vmem:[%s10648 + $0xf8] sm:$0x1]
  %v11264 = vld [vmem:[%s10648 + $0xfc] sm:$0xf]
  %v11265 = vld [vmem:[%s10648 + $0x100] sm:$0xf]
  %v11266 = vld [vmem:[%s10648 + $0x104] sm:$0x1]
  %v11267 = vld [vmem:[%s10648 + $0x108] sm:$0xf]
  %v11268 = vld [vmem:[%s10648 + $0x10c] sm:$0xf]
  %v11269 = vld [vmem:[%s10648 + $0x110] sm:$0x1]
  %v11270 = vld [vmem:[%s10648 + $0x114] sm:$0xf]
  %v11271 = vld [vmem:[%s10648 + $0x118] sm:$0xf]
  %v11272 = vld [vmem:[%s10648 + $0x11c] sm:$0x1]
  %v11273 = vld [vmem:[%s10648 + $0x120] sm:$0xf]
  %v11274 = vld [vmem:[%s10648 + $0x124] sm:$0xf]
  %v11275 = vld [vmem:[%s10648 + $0x128] sm:$0x1]
  %v11276 = vld [vmem:[%s10648 + $0x12c] sm:$0xf]
  %v11277 = vld [vmem:[%s10648 + $0x130] sm:$0xf]
  %v11278 = vld [vmem:[%s10648 + $0x134] sm:$0x1]
  %v11279 = vld [vmem:[%s10648 + $0x138] sm:$0xf]
  %v11280 = vld [vmem:[%s10648 + $0x13c] sm:$0xf]
  %v11281 = vld [vmem:[%s10648 + $0x140] sm:$0x1]
  %v11282 = vld [vmem:[%s10648 + $0x144] sm:$0xf]
  %v11283 = vld [vmem:[%s10648 + $0x148] sm:$0xf]
  %v11284 = vld [vmem:[%s10648 + $0x14c] sm:$0x1]
  %v11285 = vld [vmem:[%s10648 + $0x150] sm:$0xf]
  %v11286 = vld [vmem:[%s10648 + $0x154] sm:$0xf]
  %v11287 = vld [vmem:[%s10648 + $0x158] sm:$0x1]
  %v11288 = vld [vmem:[%s10648 + $0x15c] sm:$0xf]
  %v11289 = vld [vmem:[%s10648 + $0x160] sm:$0xf]
  %v11290 = vld [vmem:[%s10648 + $0x164] sm:$0x1]
  %v11291 = vld [vmem:[%s10648 + $0x168] sm:$0xf]
  %v11292 = vld [vmem:[%s10648 + $0x16c] sm:$0xf]
  %v11293 = vld [vmem:[%s10648 + $0x170] sm:$0x1]
  %v11294 = vld [vmem:[%s10648 + $0x174] sm:$0xf]
  %v11295 = vld [vmem:[%s10648 + $0x178] sm:$0xf]
  %v11296 = vld [vmem:[%s10648 + $0x17c] sm:$0x1]
  %v11297 = vld [vmem:[%s10648 + $0x180] sm:$0xf]
  %v11298 = vld [vmem:[%s10648 + $0x184] sm:$0xf]
  %v11299 = vld [vmem:[%s10648 + $0x188] sm:$0x1]
  %v11300 = vld [vmem:[%s10648 + $0x18c] sm:$0xf]
  %v11301 = vld [vmem:[%s10648 + $0x190] sm:$0xf]
  %v11302 = vld [vmem:[%s10648 + $0x194] sm:$0x1]
  %v11304 = vshrl.u32 %v11207, 16
  %v11306 = vrot.slane %v11304, 4
  %v11307 = vshll.u32 %v11207, 16
  %v11309 = vrot.slane %v11307, 5
  %v11310 = vor.u32 %v11306, %v11309
  %v11311 = vrot.slane %v11310, 4
  %v11313 = vshll.u32 %v11208, 16
  %v11315 = vrot.slane %v11313, 5
  %v11316 = vsel %vm5698, %v11311, %v11315
  %v11317 = vshrl.u32 %v11208, 16
  %v11319 = vrot.slane %v11317, 4
  %v11320 = vor.u32 %v11319, %v11315
  %v11321 = vrot.slane %v11320, 4
  %v11323 = vshll.u32 %v11209, 16
  %v11325 = vrot.slane %v11323, 5
  %v11326 = vsel %vm5698, %v11321, %v11325
  %v11328 = vshrl.u32 %v11210, 16
  %v11330 = vrot.slane %v11328, 4
  %v11331 = vshll.u32 %v11210, 16
  %v11333 = vrot.slane %v11331, 5
  %v11334 = vor.u32 %v11330, %v11333
  %v11335 = vrot.slane %v11334, 4
  %v11337 = vshll.u32 %v11211, 16
  %v11339 = vrot.slane %v11337, 5
  %v11340 = vsel %vm5698, %v11335, %v11339
  %v11341 = vshrl.u32 %v11211, 16
  %v11343 = vrot.slane %v11341, 4
  %v11344 = vor.u32 %v11343, %v11339
  %v11345 = vrot.slane %v11344, 4
  %v11347 = vshll.u32 %v11212, 16
  %v11349 = vrot.slane %v11347, 5
  %v11350 = vsel %vm5698, %v11345, %v11349
  %v11352 = vshrl.u32 %v11213, 16
  %v11354 = vrot.slane %v11352, 4
  %v11355 = vshll.u32 %v11213, 16
  %v11357 = vrot.slane %v11355, 5
  %v11358 = vor.u32 %v11354, %v11357
  %v11359 = vrot.slane %v11358, 4
  %v11361 = vshll.u32 %v11214, 16
  %v11363 = vrot.slane %v11361, 5
  %v11364 = vsel %vm5698, %v11359, %v11363
  %v11365 = vshrl.u32 %v11214, 16
  %v11367 = vrot.slane %v11365, 4
  %v11368 = vor.u32 %v11367, %v11363
  %v11369 = vrot.slane %v11368, 4
  %v11371 = vshll.u32 %v11215, 16
  %v11373 = vrot.slane %v11371, 5
  %v11374 = vsel %vm5698, %v11369, %v11373
  %v11376 = vshrl.u32 %v11216, 16
  %v11378 = vrot.slane %v11376, 4
  %v11379 = vshll.u32 %v11216, 16
  %v11381 = vrot.slane %v11379, 5
  %v11382 = vor.u32 %v11378, %v11381
  %v11383 = vrot.slane %v11382, 4
  %v11385 = vshll.u32 %v11217, 16
  %v11387 = vrot.slane %v11385, 5
  %v11388 = vsel %vm5698, %v11383, %v11387
  %v11389 = vshrl.u32 %v11217, 16
  %v11391 = vrot.slane %v11389, 4
  %v11392 = vor.u32 %v11391, %v11387
  %v11393 = vrot.slane %v11392, 4
  %v11395 = vshll.u32 %v11218, 16
  %v11397 = vrot.slane %v11395, 5
  %v11398 = vsel %vm5698, %v11393, %v11397
  %v11400 = vshrl.u32 %v11219, 16
  %v11402 = vrot.slane %v11400, 4
  %v11403 = vshll.u32 %v11219, 16
  %v11405 = vrot.slane %v11403, 5
  %v11406 = vor.u32 %v11402, %v11405
  %v11407 = vrot.slane %v11406, 4
  %v11409 = vshll.u32 %v11220, 16
  %v11411 = vrot.slane %v11409, 5
  %v11412 = vsel %vm5698, %v11407, %v11411
  %v11413 = vshrl.u32 %v11220, 16
  %v11415 = vrot.slane %v11413, 4
  %v11416 = vor.u32 %v11415, %v11411
  %v11417 = vrot.slane %v11416, 4
  %v11419 = vshll.u32 %v11221, 16
  %v11421 = vrot.slane %v11419, 5
  %v11422 = vsel %vm5698, %v11417, %v11421
  %v11424 = vshrl.u32 %v11222, 16
  %v11426 = vrot.slane %v11424, 4
  %v11427 = vshll.u32 %v11222, 16
  %v11429 = vrot.slane %v11427, 5
  %v11430 = vor.u32 %v11426, %v11429
  %v11431 = vrot.slane %v11430, 4
  %v11433 = vshll.u32 %v11223, 16
  %v11435 = vrot.slane %v11433, 5
  %v11436 = vsel %vm5698, %v11431, %v11435
  %v11437 = vshrl.u32 %v11223, 16
  %v11439 = vrot.slane %v11437, 4
  %v11440 = vor.u32 %v11439, %v11435
  %v11441 = vrot.slane %v11440, 4
  %v11443 = vshll.u32 %v11224, 16
  %v11445 = vrot.slane %v11443, 5
  %v11446 = vsel %vm5698, %v11441, %v11445
  %v11448 = vshrl.u32 %v11225, 16
  %v11450 = vrot.slane %v11448, 4
  %v11451 = vshll.u32 %v11225, 16
  %v11453 = vrot.slane %v11451, 5
  %v11454 = vor.u32 %v11450, %v11453
  %v11455 = vrot.slane %v11454, 4
  %v11457 = vshll.u32 %v11226, 16
  %v11459 = vrot.slane %v11457, 5
  %v11460 = vsel %vm5698, %v11455, %v11459
  %v11461 = vshrl.u32 %v11226, 16
  %v11463 = vrot.slane %v11461, 4
  %v11464 = vor.u32 %v11463, %v11459
  %v11465 = vrot.slane %v11464, 4
  %v11467 = vshll.u32 %v11227, 16
  %v11469 = vrot.slane %v11467, 5
  %v11470 = vsel %vm5698, %v11465, %v11469
  %v11472 = vshrl.u32 %v11228, 16
  %v11474 = vrot.slane %v11472, 4
  %v11475 = vshll.u32 %v11228, 16
  %v11477 = vrot.slane %v11475, 5
  %v11478 = vor.u32 %v11474, %v11477
  %v11479 = vrot.slane %v11478, 4
  %v11481 = vshll.u32 %v11229, 16
  %v11483 = vrot.slane %v11481, 5
  %v11484 = vsel %vm5698, %v11479, %v11483
  %v11485 = vshrl.u32 %v11229, 16
  %v11487 = vrot.slane %v11485, 4
  %v11488 = vor.u32 %v11487, %v11483
  %v11489 = vrot.slane %v11488, 4
  %v11491 = vshll.u32 %v11230, 16
  %v11493 = vrot.slane %v11491, 5
  %v11494 = vsel %vm5698, %v11489, %v11493
  %v11496 = vshrl.u32 %v11231, 16
  %v11498 = vrot.slane %v11496, 4
  %v11499 = vshll.u32 %v11231, 16
  %v11501 = vrot.slane %v11499, 5
  %v11502 = vor.u32 %v11498, %v11501
  %v11503 = vrot.slane %v11502, 4
  %v11505 = vshll.u32 %v11232, 16
  %v11507 = vrot.slane %v11505, 5
  %v11508 = vsel %vm5698, %v11503, %v11507
  %v11509 = vshrl.u32 %v11232, 16
  %v11511 = vrot.slane %v11509, 4
  %v11512 = vor.u32 %v11511, %v11507
  %v11513 = vrot.slane %v11512, 4
  %v11515 = vshll.u32 %v11233, 16
  %v11517 = vrot.slane %v11515, 5
  %v11518 = vsel %vm5698, %v11513, %v11517
  %v11520 = vshrl.u32 %v11234, 16
  %v11522 = vrot.slane %v11520, 4
  %v11523 = vshll.u32 %v11234, 16
  %v11525 = vrot.slane %v11523, 5
  %v11526 = vor.u32 %v11522, %v11525
  %v11527 = vrot.slane %v11526, 4
  %v11529 = vshll.u32 %v11235, 16
  %v11531 = vrot.slane %v11529, 5
  %v11532 = vsel %vm5698, %v11527, %v11531
  %v11533 = vshrl.u32 %v11235, 16
  %v11535 = vrot.slane %v11533, 4
  %v11536 = vor.u32 %v11535, %v11531
  %v11537 = vrot.slane %v11536, 4
  %v11539 = vshll.u32 %v11236, 16
  %v11541 = vrot.slane %v11539, 5
  %v11542 = vsel %vm5698, %v11537, %v11541
  %v11544 = vshrl.u32 %v11237, 16
  %v11546 = vrot.slane %v11544, 4
  %v11547 = vshll.u32 %v11237, 16
  %v11549 = vrot.slane %v11547, 5
  %v11550 = vor.u32 %v11546, %v11549
  %v11551 = vrot.slane %v11550, 4
  %v11553 = vshll.u32 %v11238, 16
  %v11555 = vrot.slane %v11553, 5
  %v11556 = vsel %vm5698, %v11551, %v11555
  %v11557 = vshrl.u32 %v11238, 16
  %v11559 = vrot.slane %v11557, 4
  %v11560 = vor.u32 %v11559, %v11555
  %v11561 = vrot.slane %v11560, 4
  %v11563 = vshll.u32 %v11239, 16
  %v11565 = vrot.slane %v11563, 5
  %v11566 = vsel %vm5698, %v11561, %v11565
  %v11568 = vshrl.u32 %v11240, 16
  %v11570 = vrot.slane %v11568, 4
  %v11571 = vshll.u32 %v11240, 16
  %v11573 = vrot.slane %v11571, 5
  %v11574 = vor.u32 %v11570, %v11573
  %v11575 = vrot.slane %v11574, 4
  %v11577 = vshll.u32 %v11241, 16
  %v11579 = vrot.slane %v11577, 5
  %v11580 = vsel %vm5698, %v11575, %v11579
  %v11581 = vshrl.u32 %v11241, 16
  %v11583 = vrot.slane %v11581, 4
  %v11584 = vor.u32 %v11583, %v11579
  %v11585 = vrot.slane %v11584, 4
  %v11587 = vshll.u32 %v11242, 16
  %v11589 = vrot.slane %v11587, 5
  %v11590 = vsel %vm5698, %v11585, %v11589
  %v11592 = vshrl.u32 %v11243, 16
  %v11594 = vrot.slane %v11592, 4
  %v11595 = vshll.u32 %v11243, 16
  %v11597 = vrot.slane %v11595, 5
  %v11598 = vor.u32 %v11594, %v11597
  %v11599 = vrot.slane %v11598, 4
  %v11601 = vshll.u32 %v11244, 16
  %v11603 = vrot.slane %v11601, 5
  %v11604 = vsel %vm5698, %v11599, %v11603
  %v11605 = vshrl.u32 %v11244, 16
  %v11607 = vrot.slane %v11605, 4
  %v11608 = vor.u32 %v11607, %v11603
  %v11609 = vrot.slane %v11608, 4
  %v11611 = vshll.u32 %v11245, 16
  %v11613 = vrot.slane %v11611, 5
  %v11614 = vsel %vm5698, %v11609, %v11613
  %v11616 = vshrl.u32 %v11246, 16
  %v11618 = vrot.slane %v11616, 4
  %v11619 = vshll.u32 %v11246, 16
  %v11621 = vrot.slane %v11619, 5
  %v11622 = vor.u32 %v11618, %v11621
  %v11623 = vrot.slane %v11622, 4
  %v11625 = vshll.u32 %v11247, 16
  %v11627 = vrot.slane %v11625, 5
  %v11628 = vsel %vm5698, %v11623, %v11627
  %v11629 = vshrl.u32 %v11247, 16
  %v11631 = vrot.slane %v11629, 4
  %v11632 = vor.u32 %v11631, %v11627
  %v11633 = vrot.slane %v11632, 4
  %v11635 = vshll.u32 %v11248, 16
  %v11637 = vrot.slane %v11635, 5
  %v11638 = vsel %vm5698, %v11633, %v11637
  %v11640 = vshrl.u32 %v11249, 16
  %v11642 = vrot.slane %v11640, 4
  %v11643 = vshll.u32 %v11249, 16
  %v11645 = vrot.slane %v11643, 5
  %v11646 = vor.u32 %v11642, %v11645
  %v11647 = vrot.slane %v11646, 4
  %v11649 = vshll.u32 %v11250, 16
  %v11651 = vrot.slane %v11649, 5
  %v11652 = vsel %vm5698, %v11647, %v11651
  %v11653 = vshrl.u32 %v11250, 16
  %v11655 = vrot.slane %v11653, 4
  %v11656 = vor.u32 %v11655, %v11651
  %v11657 = vrot.slane %v11656, 4
  %v11659 = vshll.u32 %v11251, 16
  %v11661 = vrot.slane %v11659, 5
  %v11662 = vsel %vm5698, %v11657, %v11661
  %v11664 = vshrl.u32 %v11252, 16
  %v11666 = vrot.slane %v11664, 4
  %v11667 = vshll.u32 %v11252, 16
  %v11669 = vrot.slane %v11667, 5
  %v11670 = vor.u32 %v11666, %v11669
  %v11671 = vrot.slane %v11670, 4
  %v11673 = vshll.u32 %v11253, 16
  %v11675 = vrot.slane %v11673, 5
  %v11676 = vsel %vm5698, %v11671, %v11675
  %v11677 = vshrl.u32 %v11253, 16
  %v11679 = vrot.slane %v11677, 4
  %v11680 = vor.u32 %v11679, %v11675
  %v11681 = vrot.slane %v11680, 4
  %v11683 = vshll.u32 %v11254, 16
  %v11685 = vrot.slane %v11683, 5
  %v11686 = vsel %vm5698, %v11681, %v11685
  %v11688 = vshrl.u32 %v11255, 16
  %v11690 = vrot.slane %v11688, 4
  %v11691 = vshll.u32 %v11255, 16
  %v11693 = vrot.slane %v11691, 5
  %v11694 = vor.u32 %v11690, %v11693
  %v11695 = vrot.slane %v11694, 4
  %v11697 = vshll.u32 %v11256, 16
  %v11699 = vrot.slane %v11697, 5
  %v11700 = vsel %vm5698, %v11695, %v11699
  %v11701 = vshrl.u32 %v11256, 16
  %v11703 = vrot.slane %v11701, 4
  %v11704 = vor.u32 %v11703, %v11699
  %v11705 = vrot.slane %v11704, 4
  %v11707 = vshll.u32 %v11257, 16
  %v11709 = vrot.slane %v11707, 5
  %v11710 = vsel %vm5698, %v11705, %v11709
  %v11712 = vshrl.u32 %v11258, 16
  %v11714 = vrot.slane %v11712, 4
  %v11715 = vshll.u32 %v11258, 16
  %v11717 = vrot.slane %v11715, 5
  %v11718 = vor.u32 %v11714, %v11717
  %v11719 = vrot.slane %v11718, 4
  %v11721 = vshll.u32 %v11259, 16
  %v11723 = vrot.slane %v11721, 5
  %v11724 = vsel %vm5698, %v11719, %v11723
  %v11725 = vshrl.u32 %v11259, 16
  %v11727 = vrot.slane %v11725, 4
  %v11728 = vor.u32 %v11727, %v11723
  %v11729 = vrot.slane %v11728, 4
  %v11731 = vshll.u32 %v11260, 16
  %v11733 = vrot.slane %v11731, 5
  %v11734 = vsel %vm5698, %v11729, %v11733
  %v11736 = vshrl.u32 %v11261, 16
  %v11738 = vrot.slane %v11736, 4
  %v11739 = vshll.u32 %v11261, 16
  %v11741 = vrot.slane %v11739, 5
  %v11742 = vor.u32 %v11738, %v11741
  %v11743 = vrot.slane %v11742, 4
  %v11745 = vshll.u32 %v11262, 16
  %v11747 = vrot.slane %v11745, 5
  %v11748 = vsel %vm5698, %v11743, %v11747
  %v11749 = vshrl.u32 %v11262, 16
  %v11751 = vrot.slane %v11749, 4
  %v11752 = vor.u32 %v11751, %v11747
  %v11753 = vrot.slane %v11752, 4
  %v11755 = vshll.u32 %v11263, 16
  %v11757 = vrot.slane %v11755, 5
  %v11758 = vsel %vm5698, %v11753, %v11757
  %v11760 = vshrl.u32 %v11264, 16
  %v11762 = vrot.slane %v11760, 4
  %v11763 = vshll.u32 %v11264, 16
  %v11765 = vrot.slane %v11763, 5
  %v11766 = vor.u32 %v11762, %v11765
  %v11767 = vrot.slane %v11766, 4
  %v11769 = vshll.u32 %v11265, 16
  %v11771 = vrot.slane %v11769, 5
  %v11772 = vsel %vm5698, %v11767, %v11771
  %v11773 = vshrl.u32 %v11265, 16
  %v11775 = vrot.slane %v11773, 4
  %v11776 = vor.u32 %v11775, %v11771
  %v11777 = vrot.slane %v11776, 4
  %v11779 = vshll.u32 %v11266, 16
  %v11781 = vrot.slane %v11779, 5
  %v11782 = vsel %vm5698, %v11777, %v11781
  %v11784 = vshrl.u32 %v11267, 16
  %v11786 = vrot.slane %v11784, 4
  %v11787 = vshll.u32 %v11267, 16
  %v11789 = vrot.slane %v11787, 5
  %v11790 = vor.u32 %v11786, %v11789
  %v11791 = vrot.slane %v11790, 4
  %v11793 = vshll.u32 %v11268, 16
  %v11795 = vrot.slane %v11793, 5
  %v11796 = vsel %vm5698, %v11791, %v11795
  %v11797 = vshrl.u32 %v11268, 16
  %v11799 = vrot.slane %v11797, 4
  %v11800 = vor.u32 %v11799, %v11795
  %v11801 = vrot.slane %v11800, 4
  %v11803 = vshll.u32 %v11269, 16
  %v11805 = vrot.slane %v11803, 5
  %v11806 = vsel %vm5698, %v11801, %v11805
  %v11808 = vshrl.u32 %v11270, 16
  %v11810 = vrot.slane %v11808, 4
  %v11811 = vshll.u32 %v11270, 16
  %v11813 = vrot.slane %v11811, 5
  %v11814 = vor.u32 %v11810, %v11813
  %v11815 = vrot.slane %v11814, 4
  %v11817 = vshll.u32 %v11271, 16
  %v11819 = vrot.slane %v11817, 5
  %v11820 = vsel %vm5698, %v11815, %v11819
  %v11821 = vshrl.u32 %v11271, 16
  %v11823 = vrot.slane %v11821, 4
  %v11824 = vor.u32 %v11823, %v11819
  %v11825 = vrot.slane %v11824, 4
  %v11827 = vshll.u32 %v11272, 16
  %v11829 = vrot.slane %v11827, 5
  %v11830 = vsel %vm5698, %v11825, %v11829
  %v11832 = vshrl.u32 %v11273, 16
  %v11834 = vrot.slane %v11832, 4
  %v11835 = vshll.u32 %v11273, 16
  %v11837 = vrot.slane %v11835, 5
  %v11838 = vor.u32 %v11834, %v11837
  %v11839 = vrot.slane %v11838, 4
  %v11841 = vshll.u32 %v11274, 16
  %v11843 = vrot.slane %v11841, 5
  %v11844 = vsel %vm5698, %v11839, %v11843
  %v11845 = vshrl.u32 %v11274, 16
  %v11847 = vrot.slane %v11845, 4
  %v11848 = vor.u32 %v11847, %v11843
  %v11849 = vrot.slane %v11848, 4
  %v11851 = vshll.u32 %v11275, 16
  %v11853 = vrot.slane %v11851, 5
  %v11854 = vsel %vm5698, %v11849, %v11853
  %v11856 = vshrl.u32 %v11276, 16
  %v11858 = vrot.slane %v11856, 4
  %v11859 = vshll.u32 %v11276, 16
  %v11861 = vrot.slane %v11859, 5
  %v11862 = vor.u32 %v11858, %v11861
  %v11863 = vrot.slane %v11862, 4
  %v11865 = vshll.u32 %v11277, 16
  %v11867 = vrot.slane %v11865, 5
  %v11868 = vsel %vm5698, %v11863, %v11867
  %v11869 = vshrl.u32 %v11277, 16
  %v11871 = vrot.slane %v11869, 4
  %v11872 = vor.u32 %v11871, %v11867
  %v11873 = vrot.slane %v11872, 4
  %v11875 = vshll.u32 %v11278, 16
  %v11877 = vrot.slane %v11875, 5
  %v11878 = vsel %vm5698, %v11873, %v11877
  %v11880 = vshrl.u32 %v11279, 16
  %v11882 = vrot.slane %v11880, 4
  %v11883 = vshll.u32 %v11279, 16
  %v11885 = vrot.slane %v11883, 5
  %v11886 = vor.u32 %v11882, %v11885
  %v11887 = vrot.slane %v11886, 4
  %v11889 = vshll.u32 %v11280, 16
  %v11891 = vrot.slane %v11889, 5
  %v11892 = vsel %vm5698, %v11887, %v11891
  %v11893 = vshrl.u32 %v11280, 16
  %v11895 = vrot.slane %v11893, 4
  %v11896 = vor.u32 %v11895, %v11891
  %v11897 = vrot.slane %v11896, 4
  %v11899 = vshll.u32 %v11281, 16
  %v11901 = vrot.slane %v11899, 5
  %v11902 = vsel %vm5698, %v11897, %v11901
  %v11904 = vshrl.u32 %v11282, 16
  %v11906 = vrot.slane %v11904, 4
  %v11907 = vshll.u32 %v11282, 16
  %v11909 = vrot.slane %v11907, 5
  %v11910 = vor.u32 %v11906, %v11909
  %v11911 = vrot.slane %v11910, 4
  %v11913 = vshll.u32 %v11283, 16
  %v11915 = vrot.slane %v11913, 5
  %v11916 = vsel %vm5698, %v11911, %v11915
  %v11917 = vshrl.u32 %v11283, 16
  %v11919 = vrot.slane %v11917, 4
  %v11920 = vor.u32 %v11919, %v11915
  %v11921 = vrot.slane %v11920, 4
  %v11923 = vshll.u32 %v11284, 16
  %v11925 = vrot.slane %v11923, 5
  %v11926 = vsel %vm5698, %v11921, %v11925
  %v11928 = vshrl.u32 %v11285, 16
  %v11930 = vrot.slane %v11928, 4
  %v11931 = vshll.u32 %v11285, 16
  %v11933 = vrot.slane %v11931, 5
  %v11934 = vor.u32 %v11930, %v11933
  %v11935 = vrot.slane %v11934, 4
  %v11937 = vshll.u32 %v11286, 16
  %v11939 = vrot.slane %v11937, 5
  %v11940 = vsel %vm5698, %v11935, %v11939
  %v11941 = vshrl.u32 %v11286, 16
  %v11943 = vrot.slane %v11941, 4
  %v11944 = vor.u32 %v11943, %v11939
  %v11945 = vrot.slane %v11944, 4
  %v11947 = vshll.u32 %v11287, 16
  %v11949 = vrot.slane %v11947, 5
  %v11950 = vsel %vm5698, %v11945, %v11949
  %v11952 = vshrl.u32 %v11288, 16
  %v11954 = vrot.slane %v11952, 4
  %v11955 = vshll.u32 %v11288, 16
  %v11957 = vrot.slane %v11955, 5
  %v11958 = vor.u32 %v11954, %v11957
  %v11959 = vrot.slane %v11958, 4
  %v11961 = vshll.u32 %v11289, 16
  %v11963 = vrot.slane %v11961, 5
  %v11964 = vsel %vm5698, %v11959, %v11963
  %v11965 = vshrl.u32 %v11289, 16
  %v11967 = vrot.slane %v11965, 4
  %v11968 = vor.u32 %v11967, %v11963
  %v11969 = vrot.slane %v11968, 4
  %v11971 = vshll.u32 %v11290, 16
  %v11973 = vrot.slane %v11971, 5
  %v11974 = vsel %vm5698, %v11969, %v11973
  %v11976 = vshrl.u32 %v11291, 16
  %v11978 = vrot.slane %v11976, 4
  %v11979 = vshll.u32 %v11291, 16
  %v11981 = vrot.slane %v11979, 5
  %v11982 = vor.u32 %v11978, %v11981
  %v11983 = vrot.slane %v11982, 4
  %v11985 = vshll.u32 %v11292, 16
  %v11987 = vrot.slane %v11985, 5
  %v11988 = vsel %vm5698, %v11983, %v11987
  %v11989 = vshrl.u32 %v11292, 16
  %v11991 = vrot.slane %v11989, 4
  %v11992 = vor.u32 %v11991, %v11987
  %v11993 = vrot.slane %v11992, 4
  %v11995 = vshll.u32 %v11293, 16
  %v11997 = vrot.slane %v11995, 5
  %v11998 = vsel %vm5698, %v11993, %v11997
  %v12000 = vshrl.u32 %v11294, 16
  %v12002 = vrot.slane %v12000, 4
  %v12003 = vshll.u32 %v11294, 16
  %v12005 = vrot.slane %v12003, 5
  %v12006 = vor.u32 %v12002, %v12005
  %v12007 = vrot.slane %v12006, 4
  %v12009 = vshll.u32 %v11295, 16
  %v12011 = vrot.slane %v12009, 5
  %v12012 = vsel %vm5698, %v12007, %v12011
  %v12013 = vshrl.u32 %v11295, 16
  %v12015 = vrot.slane %v12013, 4
  %v12016 = vor.u32 %v12015, %v12011
  %v12017 = vrot.slane %v12016, 4
  %v12019 = vshll.u32 %v11296, 16
  %v12021 = vrot.slane %v12019, 5
  %v12022 = vsel %vm5698, %v12017, %v12021
  %v12024 = vshrl.u32 %v11297, 16
  %v12026 = vrot.slane %v12024, 4
  %v12027 = vshll.u32 %v11297, 16
  %v12029 = vrot.slane %v12027, 5
  %v12030 = vor.u32 %v12026, %v12029
  %v12031 = vrot.slane %v12030, 4
  %v12033 = vshll.u32 %v11298, 16
  %v12035 = vrot.slane %v12033, 5
  %v12036 = vsel %vm5698, %v12031, %v12035
  %v12037 = vshrl.u32 %v11298, 16
  %v12039 = vrot.slane %v12037, 4
  %v12040 = vor.u32 %v12039, %v12035
  %v12041 = vrot.slane %v12040, 4
  %v12043 = vshll.u32 %v11299, 16
  %v12045 = vrot.slane %v12043, 5
  %v12046 = vsel %vm5698, %v12041, %v12045
  %v12048 = vshrl.u32 %v11300, 16
  %v12050 = vrot.slane %v12048, 4
  %v12051 = vshll.u32 %v11300, 16
  %v12053 = vrot.slane %v12051, 5
  %v12054 = vor.u32 %v12050, %v12053
  %v12055 = vrot.slane %v12054, 4
  %v12057 = vshll.u32 %v11301, 16
  %v12059 = vrot.slane %v12057, 5
  %v12060 = vsel %vm5698, %v12055, %v12059
  %v12061 = vshrl.u32 %v11301, 16
  %v12063 = vrot.slane %v12061, 4
  %v12064 = vor.u32 %v12063, %v12059
  %v12065 = vrot.slane %v12064, 4
  %v12067 = vshll.u32 %v11302, 16
  %v12069 = vrot.slane %v12067, 5
  %v12070 = vsel %vm5698, %v12065, %v12069
  %s12071 = scalar_lea.vmem %s4, 14
  %v12072 = vld [vmem:[%s12071] sm:$0x3]
  %v12073 = vunpack.c.l.b16 %v11316
  %v12074 = vunpack.c.l.b16 %v11326
  %v12075 = vunpack.c.l.b16 %v11340
  %v12076 = vunpack.c.l.b16 %v11350
  %v12077 = vunpack.c.l.b16 %v11364
  %v12078 = vunpack.c.l.b16 %v11374
  %v12079 = vunpack.c.l.b16 %v11388
  %v12080 = vunpack.c.l.b16 %v11398
  %v12081 = vunpack.c.l.b16 %v11412
  %v12082 = vunpack.c.l.b16 %v11422
  %v12083 = vunpack.c.l.b16 %v11436
  %v12084 = vunpack.c.l.b16 %v11446
  %v12085 = vunpack.c.l.b16 %v11460
  %v12086 = vunpack.c.l.b16 %v11470
  %v12087 = vunpack.c.l.b16 %v11484
  %v12088 = vunpack.c.l.b16 %v11494
  %v12089 = vunpack.c.l.b16 %v11508
  %v12090 = vunpack.c.l.b16 %v11518
  %v12091 = vunpack.c.l.b16 %v11532
  %v12092 = vunpack.c.l.b16 %v11542
  %v12093 = vunpack.c.l.b16 %v11556
  %v12094 = vunpack.c.l.b16 %v11566
  %v12095 = vunpack.c.l.b16 %v11580
  %v12096 = vunpack.c.l.b16 %v11590
  %v12097 = vunpack.c.l.b16 %v11604
  %v12098 = vunpack.c.l.b16 %v11614
  %v12099 = vunpack.c.l.b16 %v11628
  %v12100 = vunpack.c.l.b16 %v11638
  %v12101 = vunpack.c.l.b16 %v11652
  %v12102 = vunpack.c.l.b16 %v11662
  %v12103 = vunpack.c.l.b16 %v11676
  %v12104 = vunpack.c.l.b16 %v11686
  %v12105 = vunpack.c.l.b16 %v11700
  %v12106 = vunpack.c.l.b16 %v11710
  %v12107 = vunpack.c.l.b16 %v11724
  %v12108 = vunpack.c.l.b16 %v11734
  %v12109 = vunpack.c.l.b16 %v11748
  %v12110 = vunpack.c.l.b16 %v11758
  %v12111 = vunpack.c.l.b16 %v11772
  %v12112 = vunpack.c.l.b16 %v11782
  %v12113 = vunpack.c.l.b16 %v11796
  %v12114 = vunpack.c.l.b16 %v11806
  %v12115 = vunpack.c.l.b16 %v11820
  %v12116 = vunpack.c.l.b16 %v11830
  %v12117 = vunpack.c.l.b16 %v11844
  %v12118 = vunpack.c.l.b16 %v11854
  %v12119 = vunpack.c.l.b16 %v11868
  %v12120 = vunpack.c.l.b16 %v11878
  %v12121 = vunpack.c.l.b16 %v11892
  %v12122 = vunpack.c.l.b16 %v11902
  %v12123 = vunpack.c.l.b16 %v11916
  %v12124 = vunpack.c.l.b16 %v11926
  %v12125 = vunpack.c.l.b16 %v11940
  %v12126 = vunpack.c.l.b16 %v11950
  %v12127 = vunpack.c.l.b16 %v11964
  %v12128 = vunpack.c.l.b16 %v11974
  %v12129 = vunpack.c.l.b16 %v11988
  %v12130 = vunpack.c.l.b16 %v11998
  %v12131 = vunpack.c.l.b16 %v12012
  %v12132 = vunpack.c.l.b16 %v12022
  %v12133 = vunpack.c.l.b16 %v12036
  %v12134 = vunpack.c.l.b16 %v12046
  %v12135 = vunpack.c.l.b16 %v12060
  %v12136 = vunpack.c.l.b16 %v12070
  %v12137 = vpack.c.b16 %v12074, %v12073
  %v12138 = vpack.c.b16 %v12076, %v12075
  %v12139 = vpack.c.b16 %v12078, %v12077
  %v12140 = vpack.c.b16 %v12080, %v12079
  %v12141 = vpack.c.b16 %v12082, %v12081
  %v12142 = vpack.c.b16 %v12084, %v12083
  %v12143 = vpack.c.b16 %v12086, %v12085
  %v12144 = vpack.c.b16 %v12088, %v12087
  %v12145 = vpack.c.b16 %v12090, %v12089
  %v12146 = vpack.c.b16 %v12092, %v12091
  %v12147 = vpack.c.b16 %v12094, %v12093
  %v12148 = vpack.c.b16 %v12096, %v12095
  %v12149 = vpack.c.b16 %v12098, %v12097
  %v12150 = vpack.c.b16 %v12100, %v12099
  %v12151 = vpack.c.b16 %v12102, %v12101
  %v12152 = vpack.c.b16 %v12104, %v12103
  %v12153 = vpack.c.b16 %v12106, %v12105
  %v12154 = vpack.c.b16 %v12108, %v12107
  %v12155 = vpack.c.b16 %v12110, %v12109
  %v12156 = vpack.c.b16 %v12112, %v12111
  %v12157 = vpack.c.b16 %v12114, %v12113
  %v12158 = vpack.c.b16 %v12116, %v12115
  %v12159 = vpack.c.b16 %v12118, %v12117
  %v12160 = vpack.c.b16 %v12120, %v12119
  %v12161 = vpack.c.b16 %v12122, %v12121
  %v12162 = vpack.c.b16 %v12124, %v12123
  %v12163 = vpack.c.b16 %v12126, %v12125
  %v12164 = vpack.c.b16 %v12128, %v12127
  %v12165 = vpack.c.b16 %v12130, %v12129
  %v12166 = vpack.c.b16 %v12132, %v12131
  %v12167 = vpack.c.b16 %v12134, %v12133
  %v12168 = vpack.c.b16 %v12136, %v12135
  %v12170 = vsel %vm439, %v12137, 0
  %v12173 = vsel %vm439, %v12138, 0
  %v12176 = vsel %vm439, %v12139, 0
  %v12179 = vsel %vm439, %v12140, 0
  %v12182 = vsel %vm439, %v12141, 0
  %v12185 = vsel %vm439, %v12142, 0
  %v12188 = vsel %vm439, %v12143, 0
  %v12191 = vsel %vm439, %v12144, 0
  %v12194 = vsel %vm439, %v12145, 0
  %v12197 = vsel %vm439, %v12146, 0
  %v12200 = vsel %vm439, %v12147, 0
  %v12203 = vsel %vm439, %v12148, 0
  %v12206 = vsel %vm439, %v12149, 0
  %v12209 = vsel %vm439, %v12150, 0
  %v12212 = vsel %vm439, %v12151, 0
  %v12215 = vsel %vm439, %v12152, 0
  %v12218 = vsel %vm439, %v12153, 0
  %v12221 = vsel %vm439, %v12154, 0
  %v12224 = vsel %vm439, %v12155, 0
  %v12227 = vsel %vm439, %v12156, 0
  %v12230 = vsel %vm439, %v12157, 0
  %v12233 = vsel %vm439, %v12158, 0
  %v12236 = vsel %vm439, %v12159, 0
  %v12239 = vsel %vm439, %v12160, 0
  %v12242 = vsel %vm439, %v12161, 0
  %v12245 = vsel %vm439, %v12162, 0
  %v12248 = vsel %vm439, %v12163, 0
  %v12251 = vsel %vm439, %v12164, 0
  %v12254 = vsel %vm439, %v12165, 0
  %v12257 = vsel %vm439, %v12166, 0
  %v12260 = vsel %vm439, %v12167, 0
  %v12263 = vsel %vm439, %v12168, 0
  %v12266 = vsel %vm536, %v12072, 0
  %12268 = vmatpush.bf16.msra.mxu0 0
  %12269 = vmatpush.bf16.msra.mxu0 0
  %12270 = vmatpush.bf16.msra.mxu0 0
  %12271 = vmatpush.bf16.msra.mxu0 0
  %12272 = vmatpush.bf16.msra.mxu0 0
  %12273 = vmatpush.bf16.msra.mxu0 0
  %12274 = vmatpush.bf16.msra.mxu0 0
  %12275 = vmatpush.bf16.msra.mxu0 %v12266
  %12276 = vmatmul.bf16.gmra.mxu0 %v12170
  %v12277 = vpop.f32.mrf.mxu0
  %v12278 = vadd.f32 0.0, %v12277
  %v12279 = vpop.f32.mrf.mxu0
  %v12280 = vadd.f32 0.0, %v12279
  %12281 = vmatmul.bf16.gmra.mxu0 %v12173
  %v12282 = vpop.f32.mrf.mxu0
  %v12283 = vadd.f32 0.0, %v12282
  %v12284 = vpop.f32.mrf.mxu0
  %v12285 = vadd.f32 0.0, %v12284
  %12286 = vmatmul.bf16.gmra.mxu0 %v12176
  %v12287 = vpop.f32.mrf.mxu0
  %v12288 = vadd.f32 0.0, %v12287
  %v12289 = vpop.f32.mrf.mxu0
  %v12290 = vadd.f32 0.0, %v12289
  %12291 = vmatmul.bf16.gmra.mxu0 %v12179
  %v12292 = vpop.f32.mrf.mxu0
  %v12293 = vadd.f32 0.0, %v12292
  %v12294 = vpop.f32.mrf.mxu0
  %v12295 = vadd.f32 0.0, %v12294
  %12296 = vmatmul.bf16.gmra.mxu0 %v12182
  %v12297 = vpop.f32.mrf.mxu0
  %v12298 = vadd.f32 0.0, %v12297
  %v12299 = vpop.f32.mrf.mxu0
  %v12300 = vadd.f32 0.0, %v12299
  %12301 = vmatmul.bf16.gmra.mxu0 %v12185
  %v12302 = vpop.f32.mrf.mxu0
  %v12303 = vadd.f32 0.0, %v12302
  %v12304 = vpop.f32.mrf.mxu0
  %v12305 = vadd.f32 0.0, %v12304
  %12306 = vmatmul.bf16.gmra.mxu0 %v12188
  %v12307 = vpop.f32.mrf.mxu0
  %v12308 = vadd.f32 0.0, %v12307
  %v12309 = vpop.f32.mrf.mxu0
  %v12310 = vadd.f32 0.0, %v12309
  %12311 = vmatmul.bf16.gmra.mxu0 %v12191
  %v12312 = vpop.f32.mrf.mxu0
  %v12313 = vadd.f32 0.0, %v12312
  %v12314 = vpop.f32.mrf.mxu0
  %v12315 = vadd.f32 0.0, %v12314
  %12316 = vmatmul.bf16.gmra.mxu0 %v12194
  %v12317 = vpop.f32.mrf.mxu0
  %v12318 = vadd.f32 0.0, %v12317
  %v12319 = vpop.f32.mrf.mxu0
  %v12320 = vadd.f32 0.0, %v12319
  %12321 = vmatmul.bf16.gmra.mxu0 %v12197
  %v12322 = vpop.f32.mrf.mxu0
  %v12323 = vadd.f32 0.0, %v12322
  %v12324 = vpop.f32.mrf.mxu0
  %v12325 = vadd.f32 0.0, %v12324
  %12326 = vmatmul.bf16.gmra.mxu0 %v12200
  %v12327 = vpop.f32.mrf.mxu0
  %v12328 = vadd.f32 0.0, %v12327
  %v12329 = vpop.f32.mrf.mxu0
  %v12330 = vadd.f32 0.0, %v12329
  %12331 = vmatmul.bf16.gmra.mxu0 %v12203
  %v12332 = vpop.f32.mrf.mxu0
  %v12333 = vadd.f32 0.0, %v12332
  %v12334 = vpop.f32.mrf.mxu0
  %v12335 = vadd.f32 0.0, %v12334
  %12336 = vmatmul.bf16.gmra.mxu0 %v12206
  %v12337 = vpop.f32.mrf.mxu0
  %v12338 = vadd.f32 0.0, %v12337
  %v12339 = vpop.f32.mrf.mxu0
  %v12340 = vadd.f32 0.0, %v12339
  %12341 = vmatmul.bf16.gmra.mxu0 %v12209
  %v12342 = vpop.f32.mrf.mxu0
  %v12343 = vadd.f32 0.0, %v12342
  %v12344 = vpop.f32.mrf.mxu0
  %v12345 = vadd.f32 0.0, %v12344
  %12346 = vmatmul.bf16.gmra.mxu0 %v12212
  %v12347 = vpop.f32.mrf.mxu0
  %v12348 = vadd.f32 0.0, %v12347
  %v12349 = vpop.f32.mrf.mxu0
  %v12350 = vadd.f32 0.0, %v12349
  %12351 = vmatmul.bf16.gmra.mxu0 %v12215
  %v12352 = vpop.f32.mrf.mxu0
  %v12353 = vadd.f32 0.0, %v12352
  %v12354 = vpop.f32.mrf.mxu0
  %v12355 = vadd.f32 0.0, %v12354
  %12356 = vmatmul.bf16.gmra.mxu0 %v12218
  %v12357 = vpop.f32.mrf.mxu0
  %v12358 = vadd.f32 0.0, %v12357
  %v12359 = vpop.f32.mrf.mxu0
  %v12360 = vadd.f32 0.0, %v12359
  %12361 = vmatmul.bf16.gmra.mxu0 %v12221
  %v12362 = vpop.f32.mrf.mxu0
  %v12363 = vadd.f32 0.0, %v12362
  %v12364 = vpop.f32.mrf.mxu0
  %v12365 = vadd.f32 0.0, %v12364
  %12366 = vmatmul.bf16.gmra.mxu0 %v12224
  %v12367 = vpop.f32.mrf.mxu0
  %v12368 = vadd.f32 0.0, %v12367
  %v12369 = vpop.f32.mrf.mxu0
  %v12370 = vadd.f32 0.0, %v12369
  %12371 = vmatmul.bf16.gmra.mxu0 %v12227
  %v12372 = vpop.f32.mrf.mxu0
  %v12373 = vadd.f32 0.0, %v12372
  %v12374 = vpop.f32.mrf.mxu0
  %v12375 = vadd.f32 0.0, %v12374
  %12376 = vmatmul.bf16.gmra.mxu0 %v12230
  %v12377 = vpop.f32.mrf.mxu0
  %v12378 = vadd.f32 0.0, %v12377
  %v12379 = vpop.f32.mrf.mxu0
  %v12380 = vadd.f32 0.0, %v12379
  %12381 = vmatmul.bf16.gmra.mxu0 %v12233
  %v12382 = vpop.f32.mrf.mxu0
  %v12383 = vadd.f32 0.0, %v12382
  %v12384 = vpop.f32.mrf.mxu0
  %v12385 = vadd.f32 0.0, %v12384
  %12386 = vmatmul.bf16.gmra.mxu0 %v12236
  %v12387 = vpop.f32.mrf.mxu0
  %v12388 = vadd.f32 0.0, %v12387
  %v12389 = vpop.f32.mrf.mxu0
  %v12390 = vadd.f32 0.0, %v12389
  %12391 = vmatmul.bf16.gmra.mxu0 %v12239
  %v12392 = vpop.f32.mrf.mxu0
  %v12393 = vadd.f32 0.0, %v12392
  %v12394 = vpop.f32.mrf.mxu0
  %v12395 = vadd.f32 0.0, %v12394
  %12396 = vmatmul.bf16.gmra.mxu0 %v12242
  %v12397 = vpop.f32.mrf.mxu0
  %v12398 = vadd.f32 0.0, %v12397
  %v12399 = vpop.f32.mrf.mxu0
  %v12400 = vadd.f32 0.0, %v12399
  %12401 = vmatmul.bf16.gmra.mxu0 %v12245
  %v12402 = vpop.f32.mrf.mxu0
  %v12403 = vadd.f32 0.0, %v12402
  %v12404 = vpop.f32.mrf.mxu0
  %v12405 = vadd.f32 0.0, %v12404
  %12406 = vmatmul.bf16.gmra.mxu0 %v12248
  %v12407 = vpop.f32.mrf.mxu0
  %v12408 = vadd.f32 0.0, %v12407
  %v12409 = vpop.f32.mrf.mxu0
  %v12410 = vadd.f32 0.0, %v12409
  %12411 = vmatmul.bf16.gmra.mxu0 %v12251
  %v12412 = vpop.f32.mrf.mxu0
  %v12413 = vadd.f32 0.0, %v12412
  %v12414 = vpop.f32.mrf.mxu0
  %v12415 = vadd.f32 0.0, %v12414
  %12416 = vmatmul.bf16.gmra.mxu0 %v12254
  %v12417 = vpop.f32.mrf.mxu0
  %v12418 = vadd.f32 0.0, %v12417
  %v12419 = vpop.f32.mrf.mxu0
  %v12420 = vadd.f32 0.0, %v12419
  %12421 = vmatmul.bf16.gmra.mxu0 %v12257
  %v12422 = vpop.f32.mrf.mxu0
  %v12423 = vadd.f32 0.0, %v12422
  %v12424 = vpop.f32.mrf.mxu0
  %v12425 = vadd.f32 0.0, %v12424
  %12426 = vmatmul.bf16.gmra.mxu0 %v12260
  %v12427 = vpop.f32.mrf.mxu0
  %v12428 = vadd.f32 0.0, %v12427
  %v12429 = vpop.f32.mrf.mxu0
  %v12430 = vadd.f32 0.0, %v12429
  %12431 = vmatmul.bf16.gmra.mxu0 %v12263
  %v12432 = vpop.f32.mrf.mxu0
  %v12433 = vadd.f32 0.0, %v12432
  %v12434 = vpop.f32.mrf.mxu0
  %v12435 = vadd.f32 0.0, %v12434
  %12436 = vdwg.mxu0
  %v12437 = vadd.f32 %v11143, %v12278
  %v12438 = vadd.f32 %v11144, %v12280
  %v12439 = vadd.f32 %v11145, %v12283
  %v12440 = vadd.f32 %v11146, %v12285
  %v12441 = vadd.f32 %v11147, %v12288
  %v12442 = vadd.f32 %v11148, %v12290
  %v12443 = vadd.f32 %v11149, %v12293
  %v12444 = vadd.f32 %v11150, %v12295
  %v12445 = vadd.f32 %v11151, %v12298
  %v12446 = vadd.f32 %v11152, %v12300
  %v12447 = vadd.f32 %v11153, %v12303
  %v12448 = vadd.f32 %v11154, %v12305
  %v12449 = vadd.f32 %v11155, %v12308
  %v12450 = vadd.f32 %v11156, %v12310
  %v12451 = vadd.f32 %v11157, %v12313
  %v12452 = vadd.f32 %v11158, %v12315
  %v12453 = vadd.f32 %v11159, %v12318
  %v12454 = vadd.f32 %v11160, %v12320
  %v12455 = vadd.f32 %v11161, %v12323
  %v12456 = vadd.f32 %v11162, %v12325
  %v12457 = vadd.f32 %v11163, %v12328
  %v12458 = vadd.f32 %v11164, %v12330
  %v12459 = vadd.f32 %v11165, %v12333
  %v12460 = vadd.f32 %v11166, %v12335
  %v12461 = vadd.f32 %v11167, %v12338
  %v12462 = vadd.f32 %v11168, %v12340
  %v12463 = vadd.f32 %v11169, %v12343
  %v12464 = vadd.f32 %v11170, %v12345
  %v12465 = vadd.f32 %v11171, %v12348
  %v12466 = vadd.f32 %v11172, %v12350
  %v12467 = vadd.f32 %v11173, %v12353
  %v12468 = vadd.f32 %v11174, %v12355
  %v12469 = vadd.f32 %v11175, %v12358
  %v12470 = vadd.f32 %v11176, %v12360
  %v12471 = vadd.f32 %v11177, %v12363
  %v12472 = vadd.f32 %v11178, %v12365
  %v12473 = vadd.f32 %v11179, %v12368
  %v12474 = vadd.f32 %v11180, %v12370
  %v12475 = vadd.f32 %v11181, %v12373
  %v12476 = vadd.f32 %v11182, %v12375
  %v12477 = vadd.f32 %v11183, %v12378
  %v12478 = vadd.f32 %v11184, %v12380
  %v12479 = vadd.f32 %v11185, %v12383
  %v12480 = vadd.f32 %v11186, %v12385
  %v12481 = vadd.f32 %v11187, %v12388
  %v12482 = vadd.f32 %v11188, %v12390
  %v12483 = vadd.f32 %v11189, %v12393
  %v12484 = vadd.f32 %v11190, %v12395
  %v12485 = vadd.f32 %v11191, %v12398
  %v12486 = vadd.f32 %v11192, %v12400
  %v12487 = vadd.f32 %v11193, %v12403
  %v12488 = vadd.f32 %v11194, %v12405
  %v12489 = vadd.f32 %v11195, %v12408
  %v12490 = vadd.f32 %v11196, %v12410
  %v12491 = vadd.f32 %v11197, %v12413
  %v12492 = vadd.f32 %v11198, %v12415
  %v12493 = vadd.f32 %v11199, %v12418
  %v12494 = vadd.f32 %v11200, %v12420
  %v12495 = vadd.f32 %v11201, %v12423
  %v12496 = vadd.f32 %v11202, %v12425
  %v12497 = vadd.f32 %v11203, %v12428
  %v12498 = vadd.f32 %v11204, %v12430
  %v12499 = vadd.f32 %v11205, %v12433
  %v12500 = vadd.f32 %v11206, %v12435
  %v12501 = vld [vmem:[%s10648] sm:$0xe]
  %v12502 = vld [vmem:[%s10648 + $0xc] sm:$0xe]
  %v12503 = vld [vmem:[%s10648 + $0x18] sm:$0xe]
  %v12504 = vld [vmem:[%s10648 + $0x24] sm:$0xe]
  %v12505 = vld [vmem:[%s10648 + $0x30] sm:$0xe]
  %v12506 = vld [vmem:[%s10648 + $0x3c] sm:$0xe]
  %v12507 = vld [vmem:[%s10648 + $0x48] sm:$0xe]
  %v12508 = vld [vmem:[%s10648 + $0x54] sm:$0xe]
  %v12509 = vld [vmem:[%s10648 + $0x60] sm:$0xe]
  %v12510 = vld [vmem:[%s10648 + $0x6c] sm:$0xe]
  %v12511 = vld [vmem:[%s10648 + $0x78] sm:$0xe]
  %v12512 = vld [vmem:[%s10648 + $0x84] sm:$0xe]
  %v12513 = vld [vmem:[%s10648 + $0x90] sm:$0xe]
  %v12514 = vld [vmem:[%s10648 + $0x9c] sm:$0xe]
  %v12515 = vld [vmem:[%s10648 + $0xa8] sm:$0xe]
  %v12516 = vld [vmem:[%s10648 + $0xb4] sm:$0xe]
  %v12517 = vld [vmem:[%s10648 + $0xd8] sm:$0xe]
  %v12518 = vld [vmem:[%s10648 + $0xe4] sm:$0xe]
  %v12519 = vld [vmem:[%s10648 + $0xf0] sm:$0xe]
  %v12520 = vld [vmem:[%s10648 + $0xfc] sm:$0xe]
  %v12521 = vld [vmem:[%s10648 + $0x108] sm:$0xe]
  %v12522 = vld [vmem:[%s10648 + $0x114] sm:$0xe]
  %v12523 = vld [vmem:[%s10648 + $0x120] sm:$0xe]
  %v12524 = vld [vmem:[%s10648 + $0x12c] sm:$0xe]
  %v12525 = vld [vmem:[%s10648 + $0x138] sm:$0xe]
  %v12526 = vld [vmem:[%s10648 + $0x144] sm:$0xe]
  %v12527 = vld [vmem:[%s10648 + $0x150] sm:$0xe]
  %v12528 = vld [vmem:[%s10648 + $0x15c] sm:$0xe]
  %v12529 = vld [vmem:[%s10648 + $0x168] sm:$0xe]
  %v12530 = vld [vmem:[%s10648 + $0x174] sm:$0xe]
  %v12531 = vld [vmem:[%s10648 + $0x180] sm:$0xe]
  %v12532 = vld [vmem:[%s10648 + $0x18c] sm:$0xe]
  %v12629 = vrot.slane %v12501, 5
  %v12630 = vrot.slane %v12629, 4
  %v12631 = vrot.slane %v11208, 5
  %v12632 = vsel %vm7359, %v12630, %v12631
  %v12633 = vrot.slane %v12631, 4
  %v12634 = vrot.slane %v11209, 5
  %v12635 = vsel %vm7359, %v12633, %v12634
  %v12636 = vrot.slane %v12502, 5
  %v12637 = vrot.slane %v12636, 4
  %v12638 = vrot.slane %v11211, 5
  %v12639 = vsel %vm7359, %v12637, %v12638
  %v12640 = vrot.slane %v12638, 4
  %v12641 = vrot.slane %v11212, 5
  %v12642 = vsel %vm7359, %v12640, %v12641
  %v12643 = vrot.slane %v12503, 5
  %v12644 = vrot.slane %v12643, 4
  %v12645 = vrot.slane %v11214, 5
  %v12646 = vsel %vm7359, %v12644, %v12645
  %v12647 = vrot.slane %v12645, 4
  %v12648 = vrot.slane %v11215, 5
  %v12649 = vsel %vm7359, %v12647, %v12648
  %v12650 = vrot.slane %v12504, 5
  %v12651 = vrot.slane %v12650, 4
  %v12652 = vrot.slane %v11217, 5
  %v12653 = vsel %vm7359, %v12651, %v12652
  %v12654 = vrot.slane %v12652, 4
  %v12655 = vrot.slane %v11218, 5
  %v12656 = vsel %vm7359, %v12654, %v12655
  %v12657 = vrot.slane %v12505, 5
  %v12658 = vrot.slane %v12657, 4
  %v12659 = vrot.slane %v11220, 5
  %v12660 = vsel %vm7359, %v12658, %v12659
  %v12661 = vrot.slane %v12659, 4
  %v12662 = vrot.slane %v11221, 5
  %v12663 = vsel %vm7359, %v12661, %v12662
  %v12664 = vrot.slane %v12506, 5
  %v12665 = vrot.slane %v12664, 4
  %v12666 = vrot.slane %v11223, 5
  %v12667 = vsel %vm7359, %v12665, %v12666
  %v12668 = vrot.slane %v12666, 4
  %v12669 = vrot.slane %v11224, 5
  %v12670 = vsel %vm7359, %v12668, %v12669
  %v12671 = vrot.slane %v12507, 5
  %v12672 = vrot.slane %v12671, 4
  %v12673 = vrot.slane %v11226, 5
  %v12674 = vsel %vm7359, %v12672, %v12673
  %v12675 = vrot.slane %v12673, 4
  %v12676 = vrot.slane %v11227, 5
  %v12677 = vsel %vm7359, %v12675, %v12676
  %v12678 = vrot.slane %v12508, 5
  %v12679 = vrot.slane %v12678, 4
  %v12680 = vrot.slane %v11229, 5
  %v12681 = vsel %vm7359, %v12679, %v12680
  %v12682 = vrot.slane %v12680, 4
  %v12683 = vrot.slane %v11230, 5
  %v12684 = vsel %vm7359, %v12682, %v12683
  %v12685 = vrot.slane %v12509, 5
  %v12686 = vrot.slane %v12685, 4
  %v12687 = vrot.slane %v11232, 5
  %v12688 = vsel %vm7359, %v12686, %v12687
  %v12689 = vrot.slane %v12687, 4
  %v12690 = vrot.slane %v11233, 5
  %v12691 = vsel %vm7359, %v12689, %v12690
  %v12692 = vrot.slane %v12510, 5
  %v12693 = vrot.slane %v12692, 4
  %v12694 = vrot.slane %v11235, 5
  %v12695 = vsel %vm7359, %v12693, %v12694
  %v12696 = vrot.slane %v12694, 4
  %v12697 = vrot.slane %v11236, 5
  %v12698 = vsel %vm7359, %v12696, %v12697
  %v12699 = vrot.slane %v12511, 5
  %v12700 = vrot.slane %v12699, 4
  %v12701 = vrot.slane %v11238, 5
  %v12702 = vsel %vm7359, %v12700, %v12701
  %v12703 = vrot.slane %v12701, 4
  %v12704 = vrot.slane %v11239, 5
  %v12705 = vsel %vm7359, %v12703, %v12704
  %v12706 = vrot.slane %v12512, 5
  %v12707 = vrot.slane %v12706, 4
  %v12708 = vrot.slane %v11241, 5
  %v12709 = vsel %vm7359, %v12707, %v12708
  %v12710 = vrot.slane %v12708, 4
  %v12711 = vrot.slane %v11242, 5
  %v12712 = vsel %vm7359, %v12710, %v12711
  %v12713 = vrot.slane %v12513, 5
  %v12714 = vrot.slane %v12713, 4
  %v12715 = vrot.slane %v11244, 5
  %v12716 = vsel %vm7359, %v12714, %v12715
  %v12717 = vrot.slane %v12715, 4
  %v12718 = vrot.slane %v11245, 5
  %v12719 = vsel %vm7359, %v12717, %v12718
  %v12720 = vrot.slane %v12514, 5
  %v12721 = vrot.slane %v12720, 4
  %v12722 = vrot.slane %v11247, 5
  %v12723 = vsel %vm7359, %v12721, %v12722
  %v12724 = vrot.slane %v12722, 4
  %v12725 = vrot.slane %v11248, 5
  %v12726 = vsel %vm7359, %v12724, %v12725
  %v12727 = vrot.slane %v12515, 5
  %v12728 = vrot.slane %v12727, 4
  %v12729 = vrot.slane %v11250, 5
  %v12730 = vsel %vm7359, %v12728, %v12729
  %v12731 = vrot.slane %v12729, 4
  %v12732 = vrot.slane %v11251, 5
  %v12733 = vsel %vm7359, %v12731, %v12732
  %v12734 = vrot.slane %v12516, 5
  %v12735 = vrot.slane %v12734, 4
  %v12736 = vrot.slane %v11253, 5
  %v12737 = vsel %vm7359, %v12735, %v12736
  %v12738 = vrot.slane %v12736, 4
  %v12739 = vrot.slane %v11254, 5
  %v12740 = vsel %vm7359, %v12738, %v12739
  %v12741 = vrot.slane %v12517, 5
  %v12742 = vrot.slane %v12741, 4
  %v12743 = vrot.slane %v11256, 5
  %v12744 = vsel %vm7359, %v12742, %v12743
  %v12745 = vrot.slane %v12743, 4
  %v12746 = vrot.slane %v11257, 5
  %v12747 = vsel %vm7359, %v12745, %v12746
  %v12748 = vrot.slane %v12518, 5
  %v12749 = vrot.slane %v12748, 4
  %v12750 = vrot.slane %v11259, 5
  %v12751 = vsel %vm7359, %v12749, %v12750
  %v12752 = vrot.slane %v12750, 4
  %v12753 = vrot.slane %v11260, 5
  %v12754 = vsel %vm7359, %v12752, %v12753
  %v12755 = vrot.slane %v12519, 5
  %v12756 = vrot.slane %v12755, 4
  %v12757 = vrot.slane %v11262, 5
  %v12758 = vsel %vm7359, %v12756, %v12757
  %v12759 = vrot.slane %v12757, 4
  %v12760 = vrot.slane %v11263, 5
  %v12761 = vsel %vm7359, %v12759, %v12760
  %v12762 = vrot.slane %v12520, 5
  %v12763 = vrot.slane %v12762, 4
  %v12764 = vrot.slane %v11265, 5
  %v12765 = vsel %vm7359, %v12763, %v12764
  %v12766 = vrot.slane %v12764, 4
  %v12767 = vrot.slane %v11266, 5
  %v12768 = vsel %vm7359, %v12766, %v12767
  %v12769 = vrot.slane %v12521, 5
  %v12770 = vrot.slane %v12769, 4
  %v12771 = vrot.slane %v11268, 5
  %v12772 = vsel %vm7359, %v12770, %v12771
  %v12773 = vrot.slane %v12771, 4
  %v12774 = vrot.slane %v11269, 5
  %v12775 = vsel %vm7359, %v12773, %v12774
  %v12776 = vrot.slane %v12522, 5
  %v12777 = vrot.slane %v12776, 4
  %v12778 = vrot.slane %v11271, 5
  %v12779 = vsel %vm7359, %v12777, %v12778
  %v12780 = vrot.slane %v12778, 4
  %v12781 = vrot.slane %v11272, 5
  %v12782 = vsel %vm7359, %v12780, %v12781
  %v12783 = vrot.slane %v12523, 5
  %v12784 = vrot.slane %v12783, 4
  %v12785 = vrot.slane %v11274, 5
  %v12786 = vsel %vm7359, %v12784, %v12785
  %v12787 = vrot.slane %v12785, 4
  %v12788 = vrot.slane %v11275, 5
  %v12789 = vsel %vm7359, %v12787, %v12788
  %v12790 = vrot.slane %v12524, 5
  %v12791 = vrot.slane %v12790, 4
  %v12792 = vrot.slane %v11277, 5
  %v12793 = vsel %vm7359, %v12791, %v12792
  %v12794 = vrot.slane %v12792, 4
  %v12795 = vrot.slane %v11278, 5
  %v12796 = vsel %vm7359, %v12794, %v12795
  %v12797 = vrot.slane %v12525, 5
  %v12798 = vrot.slane %v12797, 4
  %v12799 = vrot.slane %v11280, 5
  %v12800 = vsel %vm7359, %v12798, %v12799
  %v12801 = vrot.slane %v12799, 4
  %v12802 = vrot.slane %v11281, 5
  %v12803 = vsel %vm7359, %v12801, %v12802
  %v12804 = vrot.slane %v12526, 5
  %v12805 = vrot.slane %v12804, 4
  %v12806 = vrot.slane %v11283, 5
  %v12807 = vsel %vm7359, %v12805, %v12806
  %v12808 = vrot.slane %v12806, 4
  %v12809 = vrot.slane %v11284, 5
  %v12810 = vsel %vm7359, %v12808, %v12809
  %v12811 = vrot.slane %v12527, 5
  %v12812 = vrot.slane %v12811, 4
  %v12813 = vrot.slane %v11286, 5
  %v12814 = vsel %vm7359, %v12812, %v12813
  %v12815 = vrot.slane %v12813, 4
  %v12816 = vrot.slane %v11287, 5
  %v12817 = vsel %vm7359, %v12815, %v12816
  %v12818 = vrot.slane %v12528, 5
  %v12819 = vrot.slane %v12818, 4
  %v12820 = vrot.slane %v11289, 5
  %v12821 = vsel %vm7359, %v12819, %v12820
  %v12822 = vrot.slane %v12820, 4
  %v12823 = vrot.slane %v11290, 5
  %v12824 = vsel %vm7359, %v12822, %v12823
  %v12825 = vrot.slane %v12529, 5
  %v12826 = vrot.slane %v12825, 4
  %v12827 = vrot.slane %v11292, 5
  %v12828 = vsel %vm7359, %v12826, %v12827
  %v12829 = vrot.slane %v12827, 4
  %v12830 = vrot.slane %v11293, 5
  %v12831 = vsel %vm7359, %v12829, %v12830
  %v12832 = vrot.slane %v12530, 5
  %v12833 = vrot.slane %v12832, 4
  %v12834 = vrot.slane %v11295, 5
  %v12835 = vsel %vm7359, %v12833, %v12834
  %v12836 = vrot.slane %v12834, 4
  %v12837 = vrot.slane %v11296, 5
  %v12838 = vsel %vm7359, %v12836, %v12837
  %v12839 = vrot.slane %v12531, 5
  %v12840 = vrot.slane %v12839, 4
  %v12841 = vrot.slane %v11298, 5
  %v12842 = vsel %vm7359, %v12840, %v12841
  %v12843 = vrot.slane %v12841, 4
  %v12844 = vrot.slane %v11299, 5
  %v12845 = vsel %vm7359, %v12843, %v12844
  %v12846 = vrot.slane %v12532, 5
  %v12847 = vrot.slane %v12846, 4
  %v12848 = vrot.slane %v11301, 5
  %v12849 = vsel %vm7359, %v12847, %v12848
  %v12850 = vrot.slane %v12848, 4
  %v12851 = vrot.slane %v11302, 5
  %v12852 = vsel %vm7359, %v12850, %v12851
  %s12853 = scalar_lea.vmem %s4, 16
  %v12854 = vld [vmem:[%s12853] sm:$0x3]
  %v12855 = vunpack.c.l.b16 %v12632
  %v12856 = vunpack.c.l.b16 %v12635
  %v12857 = vunpack.c.l.b16 %v12639
  %v12858 = vunpack.c.l.b16 %v12642
  %v12859 = vunpack.c.l.b16 %v12646
  %v12860 = vunpack.c.l.b16 %v12649
  %v12861 = vunpack.c.l.b16 %v12653
  %v12862 = vunpack.c.l.b16 %v12656
  %v12863 = vunpack.c.l.b16 %v12660
  %v12864 = vunpack.c.l.b16 %v12663
  %v12865 = vunpack.c.l.b16 %v12667
  %v12866 = vunpack.c.l.b16 %v12670
  %v12867 = vunpack.c.l.b16 %v12674
  %v12868 = vunpack.c.l.b16 %v12677
  %v12869 = vunpack.c.l.b16 %v12681
  %v12870 = vunpack.c.l.b16 %v12684
  %v12871 = vunpack.c.l.b16 %v12688
  %v12872 = vunpack.c.l.b16 %v12691
  %v12873 = vunpack.c.l.b16 %v12695
  %v12874 = vunpack.c.l.b16 %v12698
  %v12875 = vunpack.c.l.b16 %v12702
  %v12876 = vunpack.c.l.b16 %v12705
  %v12877 = vunpack.c.l.b16 %v12709
  %v12878 = vunpack.c.l.b16 %v12712
  %v12879 = vunpack.c.l.b16 %v12716
  %v12880 = vunpack.c.l.b16 %v12719
  %v12881 = vunpack.c.l.b16 %v12723
  %v12882 = vunpack.c.l.b16 %v12726
  %v12883 = vunpack.c.l.b16 %v12730
  %v12884 = vunpack.c.l.b16 %v12733
  %v12885 = vunpack.c.l.b16 %v12737
  %v12886 = vunpack.c.l.b16 %v12740
  %v12887 = vunpack.c.l.b16 %v12744
  %v12888 = vunpack.c.l.b16 %v12747
  %v12889 = vunpack.c.l.b16 %v12751
  %v12890 = vunpack.c.l.b16 %v12754
  %v12891 = vunpack.c.l.b16 %v12758
  %v12892 = vunpack.c.l.b16 %v12761
  %v12893 = vunpack.c.l.b16 %v12765
  %v12894 = vunpack.c.l.b16 %v12768
  %v12895 = vunpack.c.l.b16 %v12772
  %v12896 = vunpack.c.l.b16 %v12775
  %v12897 = vunpack.c.l.b16 %v12779
  %v12898 = vunpack.c.l.b16 %v12782
  %v12899 = vunpack.c.l.b16 %v12786
  %v12900 = vunpack.c.l.b16 %v12789
  %v12901 = vunpack.c.l.b16 %v12793
  %v12902 = vunpack.c.l.b16 %v12796
  %v12903 = vunpack.c.l.b16 %v12800
  %v12904 = vunpack.c.l.b16 %v12803
  %v12905 = vunpack.c.l.b16 %v12807
  %v12906 = vunpack.c.l.b16 %v12810
  %v12907 = vunpack.c.l.b16 %v12814
  %v12908 = vunpack.c.l.b16 %v12817
  %v12909 = vunpack.c.l.b16 %v12821
  %v12910 = vunpack.c.l.b16 %v12824
  %v12911 = vunpack.c.l.b16 %v12828
  %v12912 = vunpack.c.l.b16 %v12831
  %v12913 = vunpack.c.l.b16 %v12835
  %v12914 = vunpack.c.l.b16 %v12838
  %v12915 = vunpack.c.l.b16 %v12842
  %v12916 = vunpack.c.l.b16 %v12845
  %v12917 = vunpack.c.l.b16 %v12849
  %v12918 = vunpack.c.l.b16 %v12852
  %v12919 = vpack.c.b16 %v12856, %v12855
  %v12920 = vpack.c.b16 %v12858, %v12857
  %v12921 = vpack.c.b16 %v12860, %v12859
  %v12922 = vpack.c.b16 %v12862, %v12861
  %v12923 = vpack.c.b16 %v12864, %v12863
  %v12924 = vpack.c.b16 %v12866, %v12865
  %v12925 = vpack.c.b16 %v12868, %v12867
  %v12926 = vpack.c.b16 %v12870, %v12869
  %v12927 = vpack.c.b16 %v12872, %v12871
  %v12928 = vpack.c.b16 %v12874, %v12873
  %v12929 = vpack.c.b16 %v12876, %v12875
  %v12930 = vpack.c.b16 %v12878, %v12877
  %v12931 = vpack.c.b16 %v12880, %v12879
  %v12932 = vpack.c.b16 %v12882, %v12881
  %v12933 = vpack.c.b16 %v12884, %v12883
  %v12934 = vpack.c.b16 %v12886, %v12885
  %v12935 = vpack.c.b16 %v12888, %v12887
  %v12936 = vpack.c.b16 %v12890, %v12889
  %v12937 = vpack.c.b16 %v12892, %v12891
  %v12938 = vpack.c.b16 %v12894, %v12893
  %v12939 = vpack.c.b16 %v12896, %v12895
  %v12940 = vpack.c.b16 %v12898, %v12897
  %v12941 = vpack.c.b16 %v12900, %v12899
  %v12942 = vpack.c.b16 %v12902, %v12901
  %v12943 = vpack.c.b16 %v12904, %v12903
  %v12944 = vpack.c.b16 %v12906, %v12905
  %v12945 = vpack.c.b16 %v12908, %v12907
  %v12946 = vpack.c.b16 %v12910, %v12909
  %v12947 = vpack.c.b16 %v12912, %v12911
  %v12948 = vpack.c.b16 %v12914, %v12913
  %v12949 = vpack.c.b16 %v12916, %v12915
  %v12950 = vpack.c.b16 %v12918, %v12917
  %v12952 = vsel %vm439, %v12919, 0
  %v12955 = vsel %vm439, %v12920, 0
  %v12958 = vsel %vm439, %v12921, 0
  %v12961 = vsel %vm439, %v12922, 0
  %v12964 = vsel %vm439, %v12923, 0
  %v12967 = vsel %vm439, %v12924, 0
  %v12970 = vsel %vm439, %v12925, 0
  %v12973 = vsel %vm439, %v12926, 0
  %v12976 = vsel %vm439, %v12927, 0
  %v12979 = vsel %vm439, %v12928, 0
  %v12982 = vsel %vm439, %v12929, 0
  %v12985 = vsel %vm439, %v12930, 0
  %v12988 = vsel %vm439, %v12931, 0
  %v12991 = vsel %vm439, %v12932, 0
  %v12994 = vsel %vm439, %v12933, 0
  %v12997 = vsel %vm439, %v12934, 0
  %v13000 = vsel %vm439, %v12935, 0
  %v13003 = vsel %vm439, %v12936, 0
  %v13006 = vsel %vm439, %v12937, 0
  %v13009 = vsel %vm439, %v12938, 0
  %v13012 = vsel %vm439, %v12939, 0
  %v13015 = vsel %vm439, %v12940, 0
  %v13018 = vsel %vm439, %v12941, 0
  %v13021 = vsel %vm439, %v12942, 0
  %v13024 = vsel %vm439, %v12943, 0
  %v13027 = vsel %vm439, %v12944, 0
  %v13030 = vsel %vm439, %v12945, 0
  %v13033 = vsel %vm439, %v12946, 0
  %v13036 = vsel %vm439, %v12947, 0
  %v13039 = vsel %vm439, %v12948, 0
  %v13042 = vsel %vm439, %v12949, 0
  %v13045 = vsel %vm439, %v12950, 0
  %v13048 = vsel %vm536, %v12854, 0
  %13050 = vmatpush.bf16.msra.mxu0 0
  %13051 = vmatpush.bf16.msra.mxu0 0
  %13052 = vmatpush.bf16.msra.mxu0 0
  %13053 = vmatpush.bf16.msra.mxu0 0
  %13054 = vmatpush.bf16.msra.mxu0 0
  %13055 = vmatpush.bf16.msra.mxu0 0
  %13056 = vmatpush.bf16.msra.mxu0 0
  %13057 = vmatpush.bf16.msra.mxu0 %v13048
  %13058 = vmatmul.bf16.gmra.mxu0 %v12952
  %v13059 = vpop.f32.mrf.mxu0
  %v13060 = vadd.f32 0.0, %v13059
  %v13061 = vpop.f32.mrf.mxu0
  %v13062 = vadd.f32 0.0, %v13061
  %13063 = vmatmul.bf16.gmra.mxu0 %v12955
  %v13064 = vpop.f32.mrf.mxu0
  %v13065 = vadd.f32 0.0, %v13064
  %v13066 = vpop.f32.mrf.mxu0
  %v13067 = vadd.f32 0.0, %v13066
  %13068 = vmatmul.bf16.gmra.mxu0 %v12958
  %v13069 = vpop.f32.mrf.mxu0
  %v13070 = vadd.f32 0.0, %v13069
  %v13071 = vpop.f32.mrf.mxu0
  %v13072 = vadd.f32 0.0, %v13071
  %13073 = vmatmul.bf16.gmra.mxu0 %v12961
  %v13074 = vpop.f32.mrf.mxu0
  %v13075 = vadd.f32 0.0, %v13074
  %v13076 = vpop.f32.mrf.mxu0
  %v13077 = vadd.f32 0.0, %v13076
  %13078 = vmatmul.bf16.gmra.mxu0 %v12964
  %v13079 = vpop.f32.mrf.mxu0
  %v13080 = vadd.f32 0.0, %v13079
  %v13081 = vpop.f32.mrf.mxu0
  %v13082 = vadd.f32 0.0, %v13081
  %13083 = vmatmul.bf16.gmra.mxu0 %v12967
  %v13084 = vpop.f32.mrf.mxu0
  %v13085 = vadd.f32 0.0, %v13084
  %v13086 = vpop.f32.mrf.mxu0
  %v13087 = vadd.f32 0.0, %v13086
  %13088 = vmatmul.bf16.gmra.mxu0 %v12970
  %v13089 = vpop.f32.mrf.mxu0
  %v13090 = vadd.f32 0.0, %v13089
  %v13091 = vpop.f32.mrf.mxu0
  %v13092 = vadd.f32 0.0, %v13091
  %13093 = vmatmul.bf16.gmra.mxu0 %v12973
  %v13094 = vpop.f32.mrf.mxu0
  %v13095 = vadd.f32 0.0, %v13094
  %v13096 = vpop.f32.mrf.mxu0
  %v13097 = vadd.f32 0.0, %v13096
  %13098 = vmatmul.bf16.gmra.mxu0 %v12976
  %v13099 = vpop.f32.mrf.mxu0
  %v13100 = vadd.f32 0.0, %v13099
  %v13101 = vpop.f32.mrf.mxu0
  %v13102 = vadd.f32 0.0, %v13101
  %13103 = vmatmul.bf16.gmra.mxu0 %v12979
  %v13104 = vpop.f32.mrf.mxu0
  %v13105 = vadd.f32 0.0, %v13104
  %v13106 = vpop.f32.mrf.mxu0
  %v13107 = vadd.f32 0.0, %v13106
  %13108 = vmatmul.bf16.gmra.mxu0 %v12982
  %v13109 = vpop.f32.mrf.mxu0
  %v13110 = vadd.f32 0.0, %v13109
  %v13111 = vpop.f32.mrf.mxu0
  %v13112 = vadd.f32 0.0, %v13111
  %13113 = vmatmul.bf16.gmra.mxu0 %v12985
  %v13114 = vpop.f32.mrf.mxu0
  %v13115 = vadd.f32 0.0, %v13114
  %v13116 = vpop.f32.mrf.mxu0
  %v13117 = vadd.f32 0.0, %v13116
  %13118 = vmatmul.bf16.gmra.mxu0 %v12988
  %v13119 = vpop.f32.mrf.mxu0
  %v13120 = vadd.f32 0.0, %v13119
  %v13121 = vpop.f32.mrf.mxu0
  %v13122 = vadd.f32 0.0, %v13121
  %13123 = vmatmul.bf16.gmra.mxu0 %v12991
  %v13124 = vpop.f32.mrf.mxu0
  %v13125 = vadd.f32 0.0, %v13124
  %v13126 = vpop.f32.mrf.mxu0
  %v13127 = vadd.f32 0.0, %v13126
  %13128 = vmatmul.bf16.gmra.mxu0 %v12994
  %v13129 = vpop.f32.mrf.mxu0
  %v13130 = vadd.f32 0.0, %v13129
  %v13131 = vpop.f32.mrf.mxu0
  %v13132 = vadd.f32 0.0, %v13131
  %13133 = vmatmul.bf16.gmra.mxu0 %v12997
  %v13134 = vpop.f32.mrf.mxu0
  %v13135 = vadd.f32 0.0, %v13134
  %v13136 = vpop.f32.mrf.mxu0
  %v13137 = vadd.f32 0.0, %v13136
  %13138 = vmatmul.bf16.gmra.mxu0 %v13000
  %v13139 = vpop.f32.mrf.mxu0
  %v13140 = vadd.f32 0.0, %v13139
  %v13141 = vpop.f32.mrf.mxu0
  %v13142 = vadd.f32 0.0, %v13141
  %13143 = vmatmul.bf16.gmra.mxu0 %v13003
  %v13144 = vpop.f32.mrf.mxu0
  %v13145 = vadd.f32 0.0, %v13144
  %v13146 = vpop.f32.mrf.mxu0
  %v13147 = vadd.f32 0.0, %v13146
  %13148 = vmatmul.bf16.gmra.mxu0 %v13006
  %v13149 = vpop.f32.mrf.mxu0
  %v13150 = vadd.f32 0.0, %v13149
  %v13151 = vpop.f32.mrf.mxu0
  %v13152 = vadd.f32 0.0, %v13151
  %13153 = vmatmul.bf16.gmra.mxu0 %v13009
  %v13154 = vpop.f32.mrf.mxu0
  %v13155 = vadd.f32 0.0, %v13154
  %v13156 = vpop.f32.mrf.mxu0
  %v13157 = vadd.f32 0.0, %v13156
  %13158 = vmatmul.bf16.gmra.mxu0 %v13012
  %v13159 = vpop.f32.mrf.mxu0
  %v13160 = vadd.f32 0.0, %v13159
  %v13161 = vpop.f32.mrf.mxu0
  %v13162 = vadd.f32 0.0, %v13161
  %13163 = vmatmul.bf16.gmra.mxu0 %v13015
  %v13164 = vpop.f32.mrf.mxu0
  %v13165 = vadd.f32 0.0, %v13164
  %v13166 = vpop.f32.mrf.mxu0
  %v13167 = vadd.f32 0.0, %v13166
  %13168 = vmatmul.bf16.gmra.mxu0 %v13018
  %v13169 = vpop.f32.mrf.mxu0
  %v13170 = vadd.f32 0.0, %v13169
  %v13171 = vpop.f32.mrf.mxu0
  %v13172 = vadd.f32 0.0, %v13171
  %13173 = vmatmul.bf16.gmra.mxu0 %v13021
  %v13174 = vpop.f32.mrf.mxu0
  %v13175 = vadd.f32 0.0, %v13174
  %v13176 = vpop.f32.mrf.mxu0
  %v13177 = vadd.f32 0.0, %v13176
  %13178 = vmatmul.bf16.gmra.mxu0 %v13024
  %v13179 = vpop.f32.mrf.mxu0
  %v13180 = vadd.f32 0.0, %v13179
  %v13181 = vpop.f32.mrf.mxu0
  %v13182 = vadd.f32 0.0, %v13181
  %13183 = vmatmul.bf16.gmra.mxu0 %v13027
  %v13184 = vpop.f32.mrf.mxu0
  %v13185 = vadd.f32 0.0, %v13184
  %v13186 = vpop.f32.mrf.mxu0
  %v13187 = vadd.f32 0.0, %v13186
  %13188 = vmatmul.bf16.gmra.mxu0 %v13030
  %v13189 = vpop.f32.mrf.mxu0
  %v13190 = vadd.f32 0.0, %v13189
  %v13191 = vpop.f32.mrf.mxu0
  %v13192 = vadd.f32 0.0, %v13191
  %13193 = vmatmul.bf16.gmra.mxu0 %v13033
  %v13194 = vpop.f32.mrf.mxu0
  %v13195 = vadd.f32 0.0, %v13194
  %v13196 = vpop.f32.mrf.mxu0
  %v13197 = vadd.f32 0.0, %v13196
  %13198 = vmatmul.bf16.gmra.mxu0 %v13036
  %v13199 = vpop.f32.mrf.mxu0
  %v13200 = vadd.f32 0.0, %v13199
  %v13201 = vpop.f32.mrf.mxu0
  %v13202 = vadd.f32 0.0, %v13201
  %13203 = vmatmul.bf16.gmra.mxu0 %v13039
  %v13204 = vpop.f32.mrf.mxu0
  %v13205 = vadd.f32 0.0, %v13204
  %v13206 = vpop.f32.mrf.mxu0
  %v13207 = vadd.f32 0.0, %v13206
  %13208 = vmatmul.bf16.gmra.mxu0 %v13042
  %v13209 = vpop.f32.mrf.mxu0
  %v13210 = vadd.f32 0.0, %v13209
  %v13211 = vpop.f32.mrf.mxu0
  %v13212 = vadd.f32 0.0, %v13211
  %13213 = vmatmul.bf16.gmra.mxu0 %v13045
  %v13214 = vpop.f32.mrf.mxu0
  %v13215 = vadd.f32 0.0, %v13214
  %v13216 = vpop.f32.mrf.mxu0
  %v13217 = vadd.f32 0.0, %v13216
  %13218 = vdwg.mxu0
  %v13219 = vadd.f32 %v12437, %v13060
  %v13220 = vadd.f32 %v12438, %v13062
  %v13221 = vadd.f32 %v12439, %v13065
  %v13222 = vadd.f32 %v12440, %v13067
  %v13223 = vadd.f32 %v12441, %v13070
  %v13224 = vadd.f32 %v12442, %v13072
  %v13225 = vadd.f32 %v12443, %v13075
  %v13226 = vadd.f32 %v12444, %v13077
  %v13227 = vadd.f32 %v12445, %v13080
  %v13228 = vadd.f32 %v12446, %v13082
  %v13229 = vadd.f32 %v12447, %v13085
  %v13230 = vadd.f32 %v12448, %v13087
  %v13231 = vadd.f32 %v12449, %v13090
  %v13232 = vadd.f32 %v12450, %v13092
  %v13233 = vadd.f32 %v12451, %v13095
  %v13234 = vadd.f32 %v12452, %v13097
  %v13235 = vadd.f32 %v12453, %v13100
  %v13236 = vadd.f32 %v12454, %v13102
  %v13237 = vadd.f32 %v12455, %v13105
  %v13238 = vadd.f32 %v12456, %v13107
  %v13239 = vadd.f32 %v12457, %v13110
  %v13240 = vadd.f32 %v12458, %v13112
  %v13241 = vadd.f32 %v12459, %v13115
  %v13242 = vadd.f32 %v12460, %v13117
  %v13243 = vadd.f32 %v12461, %v13120
  %v13244 = vadd.f32 %v12462, %v13122
  %v13245 = vadd.f32 %v12463, %v13125
  %v13246 = vadd.f32 %v12464, %v13127
  %v13247 = vadd.f32 %v12465, %v13130
  %v13248 = vadd.f32 %v12466, %v13132
  %v13249 = vadd.f32 %v12467, %v13135
  %v13250 = vadd.f32 %v12468, %v13137
  %v13251 = vadd.f32 %v12469, %v13140
  %v13252 = vadd.f32 %v12470, %v13142
  %v13253 = vadd.f32 %v12471, %v13145
  %v13254 = vadd.f32 %v12472, %v13147
  %v13255 = vadd.f32 %v12473, %v13150
  %v13256 = vadd.f32 %v12474, %v13152
  %v13257 = vadd.f32 %v12475, %v13155
  %v13258 = vadd.f32 %v12476, %v13157
  %v13259 = vadd.f32 %v12477, %v13160
  %v13260 = vadd.f32 %v12478, %v13162
  %v13261 = vadd.f32 %v12479, %v13165
  %v13262 = vadd.f32 %v12480, %v13167
  %v13263 = vadd.f32 %v12481, %v13170
  %v13264 = vadd.f32 %v12482, %v13172
  %v13265 = vadd.f32 %v12483, %v13175
  %v13266 = vadd.f32 %v12484, %v13177
  %v13267 = vadd.f32 %v12485, %v13180
  %v13268 = vadd.f32 %v12486, %v13182
  %v13269 = vadd.f32 %v12487, %v13185
  %v13270 = vadd.f32 %v12488, %v13187
  %v13271 = vadd.f32 %v12489, %v13190
  %v13272 = vadd.f32 %v12490, %v13192
  %v13273 = vadd.f32 %v12491, %v13195
  %v13274 = vadd.f32 %v12492, %v13197
  %v13275 = vadd.f32 %v12493, %v13200
  %v13276 = vadd.f32 %v12494, %v13202
  %v13277 = vadd.f32 %v12495, %v13205
  %v13278 = vadd.f32 %v12496, %v13207
  %v13279 = vadd.f32 %v12497, %v13210
  %v13280 = vadd.f32 %v12498, %v13212
  %v13281 = vadd.f32 %v12499, %v13215
  %v13282 = vadd.f32 %v12500, %v13217
  %v13283 = vsel %vm439, %v13219, 0.0
  %v13284 = vsel %vm439, %v13220, 0.0
  %v13285 = vadd.f32 %v13283, %v13284
  %v13286 = vsel %vm439, %v13221, 0.0
  %v13287 = vadd.f32 %v13285, %v13286
  %v13288 = vsel %vm439, %v13222, 0.0
  %v13289 = vadd.f32 %v13287, %v13288
  %v13290 = vsel %vm439, %v13223, 0.0
  %v13291 = vadd.f32 %v13289, %v13290
  %v13292 = vsel %vm439, %v13224, 0.0
  %v13293 = vadd.f32 %v13291, %v13292
  %v13294 = vsel %vm439, %v13225, 0.0
  %v13295 = vadd.f32 %v13293, %v13294
  %v13296 = vsel %vm439, %v13226, 0.0
  %v13297 = vadd.f32 %v13295, %v13296
  %v13298 = vsel %vm439, %v13227, 0.0
  %v13299 = vadd.f32 %v13297, %v13298
  %v13300 = vsel %vm439, %v13228, 0.0
  %v13301 = vadd.f32 %v13299, %v13300
  %v13302 = vsel %vm439, %v13229, 0.0
  %v13303 = vadd.f32 %v13301, %v13302
  %v13304 = vsel %vm439, %v13230, 0.0
  %v13305 = vadd.f32 %v13303, %v13304
  %v13306 = vsel %vm439, %v13231, 0.0
  %v13307 = vadd.f32 %v13305, %v13306
  %v13308 = vsel %vm439, %v13232, 0.0
  %v13309 = vadd.f32 %v13307, %v13308
  %v13310 = vsel %vm439, %v13233, 0.0
  %v13311 = vadd.f32 %v13309, %v13310
  %v13312 = vsel %vm439, %v13234, 0.0
  %v13313 = vadd.f32 %v13311, %v13312
  %v13314 = vsel %vm439, %v13235, 0.0
  %v13315 = vadd.f32 %v13313, %v13314
  %v13316 = vsel %vm439, %v13236, 0.0
  %v13317 = vadd.f32 %v13315, %v13316
  %v13318 = vsel %vm439, %v13237, 0.0
  %v13319 = vadd.f32 %v13317, %v13318
  %v13320 = vsel %vm439, %v13238, 0.0
  %v13321 = vadd.f32 %v13319, %v13320
  %v13322 = vsel %vm439, %v13239, 0.0
  %v13323 = vadd.f32 %v13321, %v13322
  %v13324 = vsel %vm439, %v13240, 0.0
  %v13325 = vadd.f32 %v13323, %v13324
  %v13326 = vsel %vm439, %v13241, 0.0
  %v13327 = vadd.f32 %v13325, %v13326
  %v13328 = vsel %vm439, %v13242, 0.0
  %v13329 = vadd.f32 %v13327, %v13328
  %v13330 = vsel %vm439, %v13243, 0.0
  %v13331 = vadd.f32 %v13329, %v13330
  %v13332 = vsel %vm439, %v13244, 0.0
  %v13333 = vadd.f32 %v13331, %v13332
  %v13334 = vsel %vm439, %v13245, 0.0
  %v13335 = vadd.f32 %v13333, %v13334
  %v13336 = vsel %vm439, %v13246, 0.0
  %v13337 = vadd.f32 %v13335, %v13336
  %v13338 = vsel %vm439, %v13247, 0.0
  %v13339 = vadd.f32 %v13337, %v13338
  %v13340 = vsel %vm439, %v13248, 0.0
  %v13341 = vadd.f32 %v13339, %v13340
  %v13342 = vsel %vm439, %v13249, 0.0
  %v13343 = vadd.f32 %v13341, %v13342
  %v13344 = vsel %vm439, %v13250, 0.0
  %v13345 = vadd.f32 %v13343, %v13344
  %v13346 = vsel %vm439, %v13251, 0.0
  %v13347 = vadd.f32 %v13345, %v13346
  %v13348 = vsel %vm439, %v13252, 0.0
  %v13349 = vadd.f32 %v13347, %v13348
  %v13350 = vsel %vm439, %v13253, 0.0
  %v13351 = vadd.f32 %v13349, %v13350
  %v13352 = vsel %vm439, %v13254, 0.0
  %v13353 = vadd.f32 %v13351, %v13352
  %v13354 = vsel %vm439, %v13255, 0.0
  %v13355 = vadd.f32 %v13353, %v13354
  %v13356 = vsel %vm439, %v13256, 0.0
  %v13357 = vadd.f32 %v13355, %v13356
  %v13358 = vsel %vm439, %v13257, 0.0
  %v13359 = vadd.f32 %v13357, %v13358
  %v13360 = vsel %vm439, %v13258, 0.0
  %v13361 = vadd.f32 %v13359, %v13360
  %v13362 = vsel %vm439, %v13259, 0.0
  %v13363 = vadd.f32 %v13361, %v13362
  %v13364 = vsel %vm439, %v13260, 0.0
  %v13365 = vadd.f32 %v13363, %v13364
  %v13366 = vsel %vm439, %v13261, 0.0
  %v13367 = vadd.f32 %v13365, %v13366
  %v13368 = vsel %vm439, %v13262, 0.0
  %v13369 = vadd.f32 %v13367, %v13368
  %v13370 = vsel %vm439, %v13263, 0.0
  %v13371 = vadd.f32 %v13369, %v13370
  %v13372 = vsel %vm439, %v13264, 0.0
  %v13373 = vadd.f32 %v13371, %v13372
  %v13374 = vsel %vm439, %v13265, 0.0
  %v13375 = vadd.f32 %v13373, %v13374
  %v13376 = vsel %vm439, %v13266, 0.0
  %v13377 = vadd.f32 %v13375, %v13376
  %v13378 = vsel %vm439, %v13267, 0.0
  %v13379 = vadd.f32 %v13377, %v13378
  %v13380 = vsel %vm439, %v13268, 0.0
  %v13381 = vadd.f32 %v13379, %v13380
  %v13382 = vsel %vm439, %v13269, 0.0
  %v13383 = vadd.f32 %v13381, %v13382
  %v13384 = vsel %vm439, %v13270, 0.0
  %v13385 = vadd.f32 %v13383, %v13384
  %v13386 = vsel %vm439, %v13271, 0.0
  %v13387 = vadd.f32 %v13385, %v13386
  %v13388 = vsel %vm439, %v13272, 0.0
  %v13389 = vadd.f32 %v13387, %v13388
  %v13390 = vsel %vm439, %v13273, 0.0
  %v13391 = vadd.f32 %v13389, %v13390
  %v13392 = vsel %vm439, %v13274, 0.0
  %v13393 = vadd.f32 %v13391, %v13392
  %v13394 = vsel %vm439, %v13275, 0.0
  %v13395 = vadd.f32 %v13393, %v13394
  %v13396 = vsel %vm439, %v13276, 0.0
  %v13397 = vadd.f32 %v13395, %v13396
  %v13398 = vsel %vm439, %v13277, 0.0
  %v13399 = vadd.f32 %v13397, %v13398
  %v13400 = vsel %vm439, %v13278, 0.0
  %v13401 = vadd.f32 %v13399, %v13400
  %v13402 = vsel %vm439, %v13279, 0.0
  %v13403 = vadd.f32 %v13401, %v13402
  %v13404 = vsel %vm439, %v13280, 0.0
  %v13405 = vadd.f32 %v13403, %v13404
  %v13406 = vsel %vm439, %v13281, 0.0
  %v13407 = vadd.f32 %v13405, %v13406
  %v13408 = vsel %vm439, %v13282, 0.0
  %v13409 = vadd.f32 %v13407, %v13408
  %v13410 = vrot.slane %v13409, 4
  %v13411 = vadd.f32 %v13409, %v13410
  %v13412 = vrot.slane %v13411, 2
  %v13413 = vadd.f32 %v13411, %v13412
  %v13414 = vrot.slane %v13413, 1
  %v13415 = vadd.f32 %v13413, %v13414
  %v13416 = vmul.f32 %v13219, %v13219
  %v13417 = vmul.f32 %v13220, %v13220
  %v13418 = vmul.f32 %v13221, %v13221
  %v13419 = vmul.f32 %v13222, %v13222
  %v13420 = vmul.f32 %v13223, %v13223
  %v13421 = vmul.f32 %v13224, %v13224
  %v13422 = vmul.f32 %v13225, %v13225
  %v13423 = vmul.f32 %v13226, %v13226
  %v13424 = vmul.f32 %v13227, %v13227
  %v13425 = vmul.f32 %v13228, %v13228
  %v13426 = vmul.f32 %v13229, %v13229
  %v13427 = vmul.f32 %v13230, %v13230
  %v13428 = vmul.f32 %v13231, %v13231
  %v13429 = vmul.f32 %v13232, %v13232
  %v13430 = vmul.f32 %v13233, %v13233
  %v13431 = vmul.f32 %v13234, %v13234
  %v13432 = vmul.f32 %v13235, %v13235
  %v13433 = vmul.f32 %v13236, %v13236
  %v13434 = vmul.f32 %v13237, %v13237
  %v13435 = vmul.f32 %v13238, %v13238
  %v13436 = vmul.f32 %v13239, %v13239
  %v13437 = vmul.f32 %v13240, %v13240
  %v13438 = vmul.f32 %v13241, %v13241
  %v13439 = vmul.f32 %v13242, %v13242
  %v13440 = vmul.f32 %v13243, %v13243
  %v13441 = vmul.f32 %v13244, %v13244
  %v13442 = vmul.f32 %v13245, %v13245
  %v13443 = vmul.f32 %v13246, %v13246
  %v13444 = vmul.f32 %v13247, %v13247
  %v13445 = vmul.f32 %v13248, %v13248
  %v13446 = vmul.f32 %v13249, %v13249
  %v13447 = vmul.f32 %v13250, %v13250
  %v13448 = vmul.f32 %v13251, %v13251
  %v13449 = vmul.f32 %v13252, %v13252
  %v13450 = vmul.f32 %v13253, %v13253
  %v13451 = vmul.f32 %v13254, %v13254
  %v13452 = vmul.f32 %v13255, %v13255
  %v13453 = vmul.f32 %v13256, %v13256
  %v13454 = vmul.f32 %v13257, %v13257
  %v13455 = vmul.f32 %v13258, %v13258
  %v13456 = vmul.f32 %v13259, %v13259
  %v13457 = vmul.f32 %v13260, %v13260
  %v13458 = vmul.f32 %v13261, %v13261
  %v13459 = vmul.f32 %v13262, %v13262
  %v13460 = vmul.f32 %v13263, %v13263
  %v13461 = vmul.f32 %v13264, %v13264
  %v13462 = vmul.f32 %v13265, %v13265
  %v13463 = vmul.f32 %v13266, %v13266
  %v13464 = vmul.f32 %v13267, %v13267
  %v13465 = vmul.f32 %v13268, %v13268
  %v13466 = vmul.f32 %v13269, %v13269
  %v13467 = vmul.f32 %v13270, %v13270
  %v13468 = vmul.f32 %v13271, %v13271
  %v13469 = vmul.f32 %v13272, %v13272
  %v13470 = vmul.f32 %v13273, %v13273
  %v13471 = vmul.f32 %v13274, %v13274
  %v13472 = vmul.f32 %v13275, %v13275
  %v13473 = vmul.f32 %v13276, %v13276
  %v13474 = vmul.f32 %v13277, %v13277
  %v13475 = vmul.f32 %v13278, %v13278
  %v13476 = vmul.f32 %v13279, %v13279
  %v13477 = vmul.f32 %v13280, %v13280
  %v13478 = vmul.f32 %v13281, %v13281
  %v13479 = vmul.f32 %v13282, %v13282
  %v13480 = vsel %vm439, %v13416, 0.0
  %v13481 = vsel %vm439, %v13417, 0.0
  %v13482 = vadd.f32 %v13480, %v13481
  %v13483 = vsel %vm439, %v13418, 0.0
  %v13484 = vadd.f32 %v13482, %v13483
  %v13485 = vsel %vm439, %v13419, 0.0
  %v13486 = vadd.f32 %v13484, %v13485
  %v13487 = vsel %vm439, %v13420, 0.0
  %v13488 = vadd.f32 %v13486, %v13487
  %v13489 = vsel %vm439, %v13421, 0.0
  %v13490 = vadd.f32 %v13488, %v13489
  %v13491 = vsel %vm439, %v13422, 0.0
  %v13492 = vadd.f32 %v13490, %v13491
  %v13493 = vsel %vm439, %v13423, 0.0
  %v13494 = vadd.f32 %v13492, %v13493
  %v13495 = vsel %vm439, %v13424, 0.0
  %v13496 = vadd.f32 %v13494, %v13495
  %v13497 = vsel %vm439, %v13425, 0.0
  %v13498 = vadd.f32 %v13496, %v13497
  %v13499 = vsel %vm439, %v13426, 0.0
  %v13500 = vadd.f32 %v13498, %v13499
  %v13501 = vsel %vm439, %v13427, 0.0
  %v13502 = vadd.f32 %v13500, %v13501
  %v13503 = vsel %vm439, %v13428, 0.0
  %v13504 = vadd.f32 %v13502, %v13503
  %v13505 = vsel %vm439, %v13429, 0.0
  %v13506 = vadd.f32 %v13504, %v13505
  %v13507 = vsel %vm439, %v13430, 0.0
  %v13508 = vadd.f32 %v13506, %v13507
  %v13509 = vsel %vm439, %v13431, 0.0
  %v13510 = vadd.f32 %v13508, %v13509
  %v13511 = vsel %vm439, %v13432, 0.0
  %v13512 = vadd.f32 %v13510, %v13511
  %v13513 = vsel %vm439, %v13433, 0.0
  %v13514 = vadd.f32 %v13512, %v13513
  %v13515 = vsel %vm439, %v13434, 0.0
  %v13516 = vadd.f32 %v13514, %v13515
  %v13517 = vsel %vm439, %v13435, 0.0
  %v13518 = vadd.f32 %v13516, %v13517
  %v13519 = vsel %vm439, %v13436, 0.0
  %v13520 = vadd.f32 %v13518, %v13519
  %v13521 = vsel %vm439, %v13437, 0.0
  %v13522 = vadd.f32 %v13520, %v13521
  %v13523 = vsel %vm439, %v13438, 0.0
  %v13524 = vadd.f32 %v13522, %v13523
  %v13525 = vsel %vm439, %v13439, 0.0
  %v13526 = vadd.f32 %v13524, %v13525
  %v13527 = vsel %vm439, %v13440, 0.0
  %v13528 = vadd.f32 %v13526, %v13527
  %v13529 = vsel %vm439, %v13441, 0.0
  %v13530 = vadd.f32 %v13528, %v13529
  %v13531 = vsel %vm439, %v13442, 0.0
  %v13532 = vadd.f32 %v13530, %v13531
  %v13533 = vsel %vm439, %v13443, 0.0
  %v13534 = vadd.f32 %v13532, %v13533
  %v13535 = vsel %vm439, %v13444, 0.0
  %v13536 = vadd.f32 %v13534, %v13535
  %v13537 = vsel %vm439, %v13445, 0.0
  %v13538 = vadd.f32 %v13536, %v13537
  %v13539 = vsel %vm439, %v13446, 0.0
  %v13540 = vadd.f32 %v13538, %v13539
  %v13541 = vsel %vm439, %v13447, 0.0
  %v13542 = vadd.f32 %v13540, %v13541
  %v13543 = vsel %vm439, %v13448, 0.0
  %v13544 = vadd.f32 %v13542, %v13543
  %v13545 = vsel %vm439, %v13449, 0.0
  %v13546 = vadd.f32 %v13544, %v13545
  %v13547 = vsel %vm439, %v13450, 0.0
  %v13548 = vadd.f32 %v13546, %v13547
  %v13549 = vsel %vm439, %v13451, 0.0
  %v13550 = vadd.f32 %v13548, %v13549
  %v13551 = vsel %vm439, %v13452, 0.0
  %v13552 = vadd.f32 %v13550, %v13551
  %v13553 = vsel %vm439, %v13453, 0.0
  %v13554 = vadd.f32 %v13552, %v13553
  %v13555 = vsel %vm439, %v13454, 0.0
  %v13556 = vadd.f32 %v13554, %v13555
  %v13557 = vsel %vm439, %v13455, 0.0
  %v13558 = vadd.f32 %v13556, %v13557
  %v13559 = vsel %vm439, %v13456, 0.0
  %v13560 = vadd.f32 %v13558, %v13559
  %v13561 = vsel %vm439, %v13457, 0.0
  %v13562 = vadd.f32 %v13560, %v13561
  %v13563 = vsel %vm439, %v13458, 0.0
  %v13564 = vadd.f32 %v13562, %v13563
  %v13565 = vsel %vm439, %v13459, 0.0
  %v13566 = vadd.f32 %v13564, %v13565
  %v13567 = vsel %vm439, %v13460, 0.0
  %v13568 = vadd.f32 %v13566, %v13567
  %v13569 = vsel %vm439, %v13461, 0.0
  %v13570 = vadd.f32 %v13568, %v13569
  %v13571 = vsel %vm439, %v13462, 0.0
  %v13572 = vadd.f32 %v13570, %v13571
  %v13573 = vsel %vm439, %v13463, 0.0
  %v13574 = vadd.f32 %v13572, %v13573
  %v13575 = vsel %vm439, %v13464, 0.0
  %v13576 = vadd.f32 %v13574, %v13575
  %v13577 = vsel %vm439, %v13465, 0.0
  %v13578 = vadd.f32 %v13576, %v13577
  %v13579 = vsel %vm439, %v13466, 0.0
  %v13580 = vadd.f32 %v13578, %v13579
  %v13581 = vsel %vm439, %v13467, 0.0
  %v13582 = vadd.f32 %v13580, %v13581
  %v13583 = vsel %vm439, %v13468, 0.0
  %v13584 = vadd.f32 %v13582, %v13583
  %v13585 = vsel %vm439, %v13469, 0.0
  %v13586 = vadd.f32 %v13584, %v13585
  %v13587 = vsel %vm439, %v13470, 0.0
  %v13588 = vadd.f32 %v13586, %v13587
  %v13589 = vsel %vm439, %v13471, 0.0
  %v13590 = vadd.f32 %v13588, %v13589
  %v13591 = vsel %vm439, %v13472, 0.0
  %v13592 = vadd.f32 %v13590, %v13591
  %v13593 = vsel %vm439, %v13473, 0.0
  %v13594 = vadd.f32 %v13592, %v13593
  %v13595 = vsel %vm439, %v13474, 0.0
  %v13596 = vadd.f32 %v13594, %v13595
  %v13597 = vsel %vm439, %v13475, 0.0
  %v13598 = vadd.f32 %v13596, %v13597
  %v13599 = vsel %vm439, %v13476, 0.0
  %v13600 = vadd.f32 %v13598, %v13599
  %v13601 = vsel %vm439, %v13477, 0.0
  %v13602 = vadd.f32 %v13600, %v13601
  %v13603 = vsel %vm439, %v13478, 0.0
  %v13604 = vadd.f32 %v13602, %v13603
  %v13605 = vsel %vm439, %v13479, 0.0
  %v13606 = vadd.f32 %v13604, %v13605
  %v13607 = vrot.slane %v13606, 4
  %v13608 = vadd.f32 %v13606, %v13607
  %v13609 = vrot.slane %v13608, 2
  %v13610 = vadd.f32 %v13608, %v13609
  %v13611 = vrot.slane %v13610, 1
  %v13612 = vadd.f32 %v13610, %v13611
  %v13613 = vmul.f32 %v13415, 0.001953125
  %v13614 = vmul.f32 %v13612, 0.001953125
  %v13615 = vmul.f32 %v13613, %v13613
  %v13616 = vsub.f32 %v13614, %v13615
  %v13617 = vld [vmem:[%s5] sm:$0x1]
  %v13618 = vadd.f32 %v13616, 0.8
  %v13619 = vrsqrt.pop %v13618
  %v13620 = vmul.f32 %v13619, %v13618
  %v13621 = vmul.f32 %v13620, %v13619
  %v13622 = vmul.f32 0.5, %v13621
  %v13623 = vsub.f32 1.5, %v13622
  %v13624 = vmul.f32 %v13619, %v13623
  %vm13625 = vweird.f32 %v13618
  %vm13626 = vweird.f32 %v13619
  %vm13627 = vmor %vm13625, %vm13626
  %v13628 = vsel %vm13627, %v13619, %v13624
  %v13629 = vmul.f32 %v13617, %v13628
  %v13630 = vld [vmem:[%s6] sm:$0x1]
  %v13631 = vmul.f32 %v13613, %v13629
  %v13632 = vsub.f32 %v13630, %v13631
  %v13634 = vperm.slane %v13629, 0
  %v13636 = vmul.f32 %v13219, %v13634
  %v13637 = vmul.f32 %v13220, %v13634
  %v13638 = vmul.f32 %v13221, %v13634
  %v13639 = vmul.f32 %v13222, %v13634
  %v13640 = vmul.f32 %v13223, %v13634
  %v13641 = vmul.f32 %v13224, %v13634
  %v13642 = vmul.f32 %v13225, %v13634
  %v13643 = vmul.f32 %v13226, %v13634
  %v13644 = vmul.f32 %v13227, %v13634
  %v13645 = vmul.f32 %v13228, %v13634
  %v13646 = vmul.f32 %v13229, %v13634
  %v13647 = vmul.f32 %v13230, %v13634
  %v13648 = vmul.f32 %v13231, %v13634
  %v13649 = vmul.f32 %v13232, %v13634
  %v13650 = vmul.f32 %v13233, %v13634
  %v13651 = vmul.f32 %v13234, %v13634
  %v13652 = vmul.f32 %v13235, %v13634
  %v13653 = vmul.f32 %v13236, %v13634
  %v13654 = vmul.f32 %v13237, %v13634
  %v13655 = vmul.f32 %v13238, %v13634
  %v13656 = vmul.f32 %v13239, %v13634
  %v13657 = vmul.f32 %v13240, %v13634
  %v13658 = vmul.f32 %v13241, %v13634
  %v13659 = vmul.f32 %v13242, %v13634
  %v13660 = vmul.f32 %v13243, %v13634
  %v13661 = vmul.f32 %v13244, %v13634
  %v13662 = vmul.f32 %v13245, %v13634
  %v13663 = vmul.f32 %v13246, %v13634
  %v13664 = vmul.f32 %v13247, %v13634
  %v13665 = vmul.f32 %v13248, %v13634
  %v13666 = vmul.f32 %v13249, %v13634
  %v13667 = vmul.f32 %v13250, %v13634
  %v13668 = vmul.f32 %v13251, %v13634
  %v13669 = vmul.f32 %v13252, %v13634
  %v13670 = vmul.f32 %v13253, %v13634
  %v13671 = vmul.f32 %v13254, %v13634
  %v13672 = vmul.f32 %v13255, %v13634
  %v13673 = vmul.f32 %v13256, %v13634
  %v13674 = vmul.f32 %v13257, %v13634
  %v13675 = vmul.f32 %v13258, %v13634
  %v13676 = vmul.f32 %v13259, %v13634
  %v13677 = vmul.f32 %v13260, %v13634
  %v13678 = vmul.f32 %v13261, %v13634
  %v13679 = vmul.f32 %v13262, %v13634
  %v13680 = vmul.f32 %v13263, %v13634
  %v13681 = vmul.f32 %v13264, %v13634
  %v13682 = vmul.f32 %v13265, %v13634
  %v13683 = vmul.f32 %v13266, %v13634
  %v13684 = vmul.f32 %v13267, %v13634
  %v13685 = vmul.f32 %v13268, %v13634
  %v13686 = vmul.f32 %v13269, %v13634
  %v13687 = vmul.f32 %v13270, %v13634
  %v13688 = vmul.f32 %v13271, %v13634
  %v13689 = vmul.f32 %v13272, %v13634
  %v13690 = vmul.f32 %v13273, %v13634
  %v13691 = vmul.f32 %v13274, %v13634
  %v13692 = vmul.f32 %v13275, %v13634
  %v13693 = vmul.f32 %v13276, %v13634
  %v13694 = vmul.f32 %v13277, %v13634
  %v13695 = vmul.f32 %v13278, %v13634
  %v13696 = vmul.f32 %v13279, %v13634
  %v13697 = vmul.f32 %v13280, %v13634
  %v13698 = vmul.f32 %v13281, %v13634
  %v13699 = vmul.f32 %v13282, %v13634
  %v13701 = vperm.slane %v13632, 0
  %v13703 = vadd.f32 %v13636, %v13701
  %v13704 = vadd.f32 %v13637, %v13701
  %v13705 = vadd.f32 %v13638, %v13701
  %v13706 = vadd.f32 %v13639, %v13701
  %v13707 = vadd.f32 %v13640, %v13701
  %v13708 = vadd.f32 %v13641, %v13701
  %v13709 = vadd.f32 %v13642, %v13701
  %v13710 = vadd.f32 %v13643, %v13701
  %v13711 = vadd.f32 %v13644, %v13701
  %v13712 = vadd.f32 %v13645, %v13701
  %v13713 = vadd.f32 %v13646, %v13701
  %v13714 = vadd.f32 %v13647, %v13701
  %v13715 = vadd.f32 %v13648, %v13701
  %v13716 = vadd.f32 %v13649, %v13701
  %v13717 = vadd.f32 %v13650, %v13701
  %v13718 = vadd.f32 %v13651, %v13701
  %v13719 = vadd.f32 %v13652, %v13701
  %v13720 = vadd.f32 %v13653, %v13701
  %v13721 = vadd.f32 %v13654, %v13701
  %v13722 = vadd.f32 %v13655, %v13701
  %v13723 = vadd.f32 %v13656, %v13701
  %v13724 = vadd.f32 %v13657, %v13701
  %v13725 = vadd.f32 %v13658, %v13701
  %v13726 = vadd.f32 %v13659, %v13701
  %v13727 = vadd.f32 %v13660, %v13701
  %v13728 = vadd.f32 %v13661, %v13701
  %v13729 = vadd.f32 %v13662, %v13701
  %v13730 = vadd.f32 %v13663, %v13701
  %v13731 = vadd.f32 %v13664, %v13701
  %v13732 = vadd.f32 %v13665, %v13701
  %v13733 = vadd.f32 %v13666, %v13701
  %v13734 = vadd.f32 %v13667, %v13701
  %v13735 = vadd.f32 %v13668, %v13701
  %v13736 = vadd.f32 %v13669, %v13701
  %v13737 = vadd.f32 %v13670, %v13701
  %v13738 = vadd.f32 %v13671, %v13701
  %v13739 = vadd.f32 %v13672, %v13701
  %v13740 = vadd.f32 %v13673, %v13701
  %v13741 = vadd.f32 %v13674, %v13701
  %v13742 = vadd.f32 %v13675, %v13701
  %v13743 = vadd.f32 %v13676, %v13701
  %v13744 = vadd.f32 %v13677, %v13701
  %v13745 = vadd.f32 %v13678, %v13701
  %v13746 = vadd.f32 %v13679, %v13701
  %v13747 = vadd.f32 %v13680, %v13701
  %v13748 = vadd.f32 %v13681, %v13701
  %v13749 = vadd.f32 %v13682, %v13701
  %v13750 = vadd.f32 %v13683, %v13701
  %v13751 = vadd.f32 %v13684, %v13701
  %v13752 = vadd.f32 %v13685, %v13701
  %v13753 = vadd.f32 %v13686, %v13701
  %v13754 = vadd.f32 %v13687, %v13701
  %v13755 = vadd.f32 %v13688, %v13701
  %v13756 = vadd.f32 %v13689, %v13701
  %v13757 = vadd.f32 %v13690, %v13701
  %v13758 = vadd.f32 %v13691, %v13701
  %v13759 = vadd.f32 %v13692, %v13701
  %v13760 = vadd.f32 %v13693, %v13701
  %v13761 = vadd.f32 %v13694, %v13701
  %v13762 = vadd.f32 %v13695, %v13701
  %v13763 = vadd.f32 %v13696, %v13701
  %v13764 = vadd.f32 %v13697, %v13701
  %v13765 = vadd.f32 %v13698, %v13701
  %v13766 = vadd.f32 %v13699, %v13701
  %v13767 = vld [vmem:[%s1407 + $0x1] sm:$0xff]
  %v13768 = vld [vmem:[%s1407 + $0x9] sm:$0xff]
  %v13769 = vld [vmem:[%s1407 + $0x19] sm:$0xff]
  %v13770 = vld [vmem:[%s1407 + $0x21] sm:$0xff]
  %v13771 = vld [vmem:[%s1407 + $0x31] sm:$0xff]
  %v13772 = vld [vmem:[%s1407 + $0x39] sm:$0xff]
  %v13773 = vld [vmem:[%s1407 + $0x49] sm:$0xff]
  %v13774 = vld [vmem:[%s1407 + $0x51] sm:$0xff]
  %v13775 = vld [vmem:[%s1407 + $0x61] sm:$0xff]
  %v13776 = vld [vmem:[%s1407 + $0x69] sm:$0xff]
  %v13777 = vld [vmem:[%s1407 + $0x79] sm:$0xff]
  %v13778 = vld [vmem:[%s1407 + $0x81] sm:$0xff]
  %v13779 = vld [vmem:[%s1407 + $0x91] sm:$0xff]
  %v13780 = vld [vmem:[%s1407 + $0x99] sm:$0xff]
  %v13781 = vld [vmem:[%s1407 + $0xa9] sm:$0xff]
  %v13782 = vld [vmem:[%s1407 + $0xb1] sm:$0xff]
  %v13783 = vld [vmem:[%s1407 + $0xc1] sm:$0xff]
  %v13784 = vld [vmem:[%s1407 + $0xc9] sm:$0xff]
  %v13785 = vld [vmem:[%s1407 + $0xd9] sm:$0xff]
  %v13786 = vld [vmem:[%s1407 + $0xe1] sm:$0xff]
  %v13787 = vld [vmem:[%s1407 + $0xf1] sm:$0xff]
  %v13788 = vld [vmem:[%s1407 + $0xf9] sm:$0xff]
  %v13789 = vld [vmem:[%s1407 + $0x109] sm:$0xff]
  %v13790 = vld [vmem:[%s1407 + $0x111] sm:$0xff]
  %v13791 = vld [vmem:[%s1407 + $0x121] sm:$0xff]
  %v13792 = vld [vmem:[%s1407 + $0x129] sm:$0xff]
  %v13793 = vld [vmem:[%s1407 + $0x139] sm:$0xff]
  %v13794 = vld [vmem:[%s1407 + $0x141] sm:$0xff]
  %v13795 = vld [vmem:[%s1407 + $0x151] sm:$0xff]
  %v13796 = vld [vmem:[%s1407 + $0x159] sm:$0xff]
  %v13797 = vld [vmem:[%s1407 + $0x169] sm:$0xff]
  %v13798 = vld [vmem:[%s1407 + $0x171] sm:$0xff]
  %v13799 = vld [vmem:[%s1407 + $0x1b1] sm:$0xff]
  %v13800 = vld [vmem:[%s1407 + $0x1b9] sm:$0xff]
  %v13801 = vld [vmem:[%s1407 + $0x1c9] sm:$0xff]
  %v13802 = vld [vmem:[%s1407 + $0x1d1] sm:$0xff]
  %v13803 = vld [vmem:[%s1407 + $0x1e1] sm:$0xff]
  %v13804 = vld [vmem:[%s1407 + $0x1e9] sm:$0xff]
  %v13805 = vld [vmem:[%s1407 + $0x1f9] sm:$0xff]
  %v13806 = vld [vmem:[%s1407 + $0x201] sm:$0xff]
  %v13807 = vld [vmem:[%s1407 + $0x211] sm:$0xff]
  %v13808 = vld [vmem:[%s1407 + $0x219] sm:$0xff]
  %v13809 = vld [vmem:[%s1407 + $0x229] sm:$0xff]
  %v13810 = vld [vmem:[%s1407 + $0x231] sm:$0xff]
  %v13811 = vld [vmem:[%s1407 + $0x241] sm:$0xff]
  %v13812 = vld [vmem:[%s1407 + $0x249] sm:$0xff]
  %v13813 = vld [vmem:[%s1407 + $0x259] sm:$0xff]
  %v13814 = vld [vmem:[%s1407 + $0x261] sm:$0xff]
  %v13815 = vld [vmem:[%s1407 + $0x271] sm:$0xff]
  %v13816 = vld [vmem:[%s1407 + $0x279] sm:$0xff]
  %v13817 = vld [vmem:[%s1407 + $0x289] sm:$0xff]
  %v13818 = vld [vmem:[%s1407 + $0x291] sm:$0xff]
  %v13819 = vld [vmem:[%s1407 + $0x2a1] sm:$0xff]
  %v13820 = vld [vmem:[%s1407 + $0x2a9] sm:$0xff]
  %v13821 = vld [vmem:[%s1407 + $0x2b9] sm:$0xff]
  %v13822 = vld [vmem:[%s1407 + $0x2c1] sm:$0xff]
  %v13823 = vld [vmem:[%s1407 + $0x2d1] sm:$0xff]
  %v13824 = vld [vmem:[%s1407 + $0x2d9] sm:$0xff]
  %v13825 = vld [vmem:[%s1407 + $0x2e9] sm:$0xff]
  %v13826 = vld [vmem:[%s1407 + $0x2f1] sm:$0xff]
  %v13827 = vld [vmem:[%s1407 + $0x301] sm:$0xff]
  %v13828 = vld [vmem:[%s1407 + $0x309] sm:$0xff]
  %v13829 = vld [vmem:[%s1407 + $0x319] sm:$0xff]
  %v13830 = vld [vmem:[%s1407 + $0x321] sm:$0xff]
  %v13831 = vadd.f32 %v13767, %v13703
  %v13832 = vadd.f32 %v13768, %v13704
  %v13833 = vadd.f32 %v13769, %v13705
  %v13834 = vadd.f32 %v13770, %v13706
  %v13835 = vadd.f32 %v13771, %v13707
  %v13836 = vadd.f32 %v13772, %v13708
  %v13837 = vadd.f32 %v13773, %v13709
  %v13838 = vadd.f32 %v13774, %v13710
  %v13839 = vadd.f32 %v13775, %v13711
  %v13840 = vadd.f32 %v13776, %v13712
  %v13841 = vadd.f32 %v13777, %v13713
  %v13842 = vadd.f32 %v13778, %v13714
  %v13843 = vadd.f32 %v13779, %v13715
  %v13844 = vadd.f32 %v13780, %v13716
  %v13845 = vadd.f32 %v13781, %v13717
  %v13846 = vadd.f32 %v13782, %v13718
  %v13847 = vadd.f32 %v13783, %v13719
  %v13848 = vadd.f32 %v13784, %v13720
  %v13849 = vadd.f32 %v13785, %v13721
  %v13850 = vadd.f32 %v13786, %v13722
  %v13851 = vadd.f32 %v13787, %v13723
  %v13852 = vadd.f32 %v13788, %v13724
  %v13853 = vadd.f32 %v13789, %v13725
  %v13854 = vadd.f32 %v13790, %v13726
  %v13855 = vadd.f32 %v13791, %v13727
  %v13856 = vadd.f32 %v13792, %v13728
  %v13857 = vadd.f32 %v13793, %v13729
  %v13858 = vadd.f32 %v13794, %v13730
  %v13859 = vadd.f32 %v13795, %v13731
  %v13860 = vadd.f32 %v13796, %v13732
  %v13861 = vadd.f32 %v13797, %v13733
  %v13862 = vadd.f32 %v13798, %v13734
  %v13863 = vadd.f32 %v13799, %v13735
  %v13864 = vadd.f32 %v13800, %v13736
  %v13865 = vadd.f32 %v13801, %v13737
  %v13866 = vadd.f32 %v13802, %v13738
  %v13867 = vadd.f32 %v13803, %v13739
  %v13868 = vadd.f32 %v13804, %v13740
  %v13869 = vadd.f32 %v13805, %v13741
  %v13870 = vadd.f32 %v13806, %v13742
  %v13871 = vadd.f32 %v13807, %v13743
  %v13872 = vadd.f32 %v13808, %v13744
  %v13873 = vadd.f32 %v13809, %v13745
  %v13874 = vadd.f32 %v13810, %v13746
  %v13875 = vadd.f32 %v13811, %v13747
  %v13876 = vadd.f32 %v13812, %v13748
  %v13877 = vadd.f32 %v13813, %v13749
  %v13878 = vadd.f32 %v13814, %v13750
  %v13879 = vadd.f32 %v13815, %v13751
  %v13880 = vadd.f32 %v13816, %v13752
  %v13881 = vadd.f32 %v13817, %v13753
  %v13882 = vadd.f32 %v13818, %v13754
  %v13883 = vadd.f32 %v13819, %v13755
  %v13884 = vadd.f32 %v13820, %v13756
  %v13885 = vadd.f32 %v13821, %v13757
  %v13886 = vadd.f32 %v13822, %v13758
  %v13887 = vadd.f32 %v13823, %v13759
  %v13888 = vadd.f32 %v13824, %v13760
  %v13889 = vadd.f32 %v13825, %v13761
  %v13890 = vadd.f32 %v13826, %v13762
  %v13891 = vadd.f32 %v13827, %v13763
  %v13892 = vadd.f32 %v13828, %v13764
  %v13893 = vadd.f32 %v13829, %v13765
  %v13894 = vadd.f32 %v13830, %v13766
  %v13927 = vrot.slane %v13833, 7
  %vm13928 = vcmask 1041409
  %v13929 = vsel %vm13928, %v13927, %v13831
  %v13930 = vrot.slane %v13835, 6
  %vm13931 = vcmask 1042434
  %v13932 = vsel %vm13931, %v13930, %v13929
  %v13933 = vrot.slane %v13837, 5
  %vm13934 = vcmask 1043459
  %v13935 = vsel %vm13934, %v13933, %v13932
  %v13936 = vrot.slane %v13839, 4
  %vm13937 = vcmask 1044484
  %v13938 = vsel %vm13937, %v13936, %v13935
  %v13939 = vrot.slane %v13841, 3
  %vm13940 = vcmask 1045509
  %v13941 = vsel %vm13940, %v13939, %v13938
  %v13942 = vrot.slane %v13843, 2
  %vm13943 = vcmask 1046534
  %v13944 = vsel %vm13943, %v13942, %v13941
  %v13945 = vrot.slane %v13845, 1
  %vm13946 = vcmask 1047559
  %v13947 = vsel %vm13946, %v13945, %v13944
  %v13948 = vrot.slane %v13849, 7
  %v13949 = vsel %vm13928, %v13948, %v13847
  %v13950 = vrot.slane %v13851, 6
  %v13951 = vsel %vm13931, %v13950, %v13949
  %v13952 = vrot.slane %v13853, 5
  %v13953 = vsel %vm13934, %v13952, %v13951
  %v13954 = vrot.slane %v13855, 4
  %v13955 = vsel %vm13937, %v13954, %v13953
  %v13956 = vrot.slane %v13857, 3
  %v13957 = vsel %vm13940, %v13956, %v13955
  %v13958 = vrot.slane %v13859, 2
  %v13959 = vsel %vm13943, %v13958, %v13957
  %v13960 = vrot.slane %v13861, 1
  %v13961 = vsel %vm13946, %v13960, %v13959
  %v13962 = vrot.slane %v13865, 7
  %v13963 = vsel %vm13928, %v13962, %v13863
  %v13964 = vrot.slane %v13867, 6
  %v13965 = vsel %vm13931, %v13964, %v13963
  %v13966 = vrot.slane %v13869, 5
  %v13967 = vsel %vm13934, %v13966, %v13965
  %v13968 = vrot.slane %v13871, 4
  %v13969 = vsel %vm13937, %v13968, %v13967
  %v13970 = vrot.slane %v13873, 3
  %v13971 = vsel %vm13940, %v13970, %v13969
  %v13972 = vrot.slane %v13875, 2
  %v13973 = vsel %vm13943, %v13972, %v13971
  %v13974 = vrot.slane %v13877, 1
  %v13975 = vsel %vm13946, %v13974, %v13973
  %v13976 = vrot.slane %v13881, 7
  %v13977 = vsel %vm13928, %v13976, %v13879
  %v13978 = vrot.slane %v13883, 6
  %v13979 = vsel %vm13931, %v13978, %v13977
  %v13980 = vrot.slane %v13885, 5
  %v13981 = vsel %vm13934, %v13980, %v13979
  %v13982 = vrot.slane %v13887, 4
  %v13983 = vsel %vm13937, %v13982, %v13981
  %v13984 = vrot.slane %v13889, 3
  %v13985 = vsel %vm13940, %v13984, %v13983
  %v13986 = vrot.slane %v13891, 2
  %v13987 = vsel %vm13943, %v13986, %v13985
  %v13988 = vrot.slane %v13893, 1
  %v13989 = vsel %vm13946, %v13988, %v13987
  %13994 = vst.msk [vmem:[%s8] sm:$0xff] %vm439, %v13947
  %13995 = vst.msk [vmem:[%s8 + $0x8] sm:$0xff] %vm439, %v13961
  %13996 = vst.msk [vmem:[%s8 + $0x10] sm:$0xff] %vm439, %v13975
  %13997 = vst.msk [vmem:[%s8 + $0x18] sm:$0xff] %vm439, %v13989
  %v13998 = vsel %vm13931, %v13927, %v13831
  %v13999 = vsel %vm13934, %v13930, %v13998
  %v14000 = vsel %vm13937, %v13933, %v13999
  %v14001 = vsel %vm13940, %v13936, %v14000
  %v14002 = vsel %vm13943, %v13939, %v14001
  %v14003 = vsel %vm13946, %v13942, %v14002
  %v14004 = vsel %vm13928, %v13847, %v13945
  %v14005 = vsel %vm13931, %v13948, %v14004
  %v14006 = vsel %vm13934, %v13950, %v14005
  %v14007 = vsel %vm13937, %v13952, %v14006
  %v14008 = vsel %vm13940, %v13954, %v14007
  %v14009 = vsel %vm13943, %v13956, %v14008
  %v14010 = vsel %vm13946, %v13958, %v14009
  %v14011 = vsel %vm13928, %v13863, %v13960
  %v14012 = vsel %vm13931, %v13962, %v14011
  %v14013 = vsel %vm13934, %v13964, %v14012
  %v14014 = vsel %vm13937, %v13966, %v14013
  %v14015 = vsel %vm13940, %v13968, %v14014
  %v14016 = vsel %vm13943, %v13970, %v14015
  %v14017 = vsel %vm13946, %v13972, %v14016
  %v14018 = vsel %vm13928, %v13879, %v13974
  %v14019 = vsel %vm13931, %v13976, %v14018
  %v14020 = vsel %vm13934, %v13978, %v14019
  %v14021 = vsel %vm13937, %v13980, %v14020
  %v14022 = vsel %vm13940, %v13982, %v14021
  %v14023 = vsel %vm13943, %v13984, %v14022
  %v14024 = vsel %vm13946, %v13986, %v14023
  %14025 = vrot.lane.b32.xlu0 %v14003, 4
  %v14026 = vpop.permute.xlu0 %14025
  %14027 = vrot.lane.b32.xlu0 %v14010, 4
  %v14028 = vpop.permute.xlu0 %14027
  %14029 = vrot.lane.b32.xlu0 %v14017, 4
  %v14030 = vpop.permute.xlu0 %14029
  %14031 = vrot.lane.b32.xlu0 %v14024, 4
  %v14032 = vpop.permute.xlu0 %14031
  %14033 = vrot.lane.b32.xlu0 %v13988, 4
  %v14034 = vpop.permute.xlu0 %14033
  %vm14040 = vcmask 64545
  %14041 = vst.msk [vmem:[%s8 - $0x1] sm:$0xfe] %vm14040, %v14026
  %vm14042 = vcmask 64544
  %14043 = vst.msk [vmem:[%s8 + $0x7] sm:$0xff] %vm14042, %v14028
  %14044 = vst.msk [vmem:[%s8 + $0xf] sm:$0xff] %vm14042, %v14030
  %14045 = vst.msk [vmem:[%s8 + $0x17] sm:$0xff] %vm14042, %v14032
  %vm14046 = vcmask 57376
  %14047 = vst.msk [vmem:[%s8 + $0x1f] sm:$0x1] %vm14046, %v14034
  %v14048 = vsel %vm13934, %v13927, %v13831
  %v14049 = vsel %vm13937, %v13930, %v14048
  %v14050 = vsel %vm13940, %v13933, %v14049
  %v14051 = vsel %vm13943, %v13936, %v14050
  %v14052 = vsel %vm13946, %v13939, %v14051
  %v14053 = vsel %vm13928, %v13945, %v13942
  %v14054 = vsel %vm13931, %v13847, %v14053
  %v14055 = vsel %vm13934, %v13948, %v14054
  %v14056 = vsel %vm13937, %v13950, %v14055
  %v14057 = vsel %vm13940, %v13952, %v14056
  %v14058 = vsel %vm13943, %v13954, %v14057
  %v14059 = vsel %vm13946, %v13956, %v14058
  %v14060 = vsel %vm13928, %v13960, %v13958
  %v14061 = vsel %vm13931, %v13863, %v14060
  %v14062 = vsel %vm13934, %v13962, %v14061
  %v14063 = vsel %vm13937, %v13964, %v14062
  %v14064 = vsel %vm13940, %v13966, %v14063
  %v14065 = vsel %vm13943, %v13968, %v14064
  %v14066 = vsel %vm13946, %v13970, %v14065
  %v14067 = vsel %vm13928, %v13974, %v13972
  %v14068 = vsel %vm13931, %v13879, %v14067
  %v14069 = vsel %vm13934, %v13976, %v14068
  %v14070 = vsel %vm13937, %v13978, %v14069
  %v14071 = vsel %vm13940, %v13980, %v14070
  %v14072 = vsel %vm13943, %v13982, %v14071
  %v14073 = vsel %vm13946, %v13984, %v14072
  %v14074 = vsel %vm13928, %v13988, %v13986
  %14075 = vrot.lane.b32.xlu0 %v14052, 8
  %v14076 = vpop.permute.xlu0 %14075
  %14077 = vrot.lane.b32.xlu0 %v14059, 8
  %v14078 = vpop.permute.xlu0 %14077
  %14079 = vrot.lane.b32.xlu0 %v14066, 8
  %v14080 = vpop.permute.xlu0 %14079
  %14081 = vrot.lane.b32.xlu0 %v14073, 8
  %v14082 = vpop.permute.xlu0 %14081
  %14083 = vrot.lane.b32.xlu0 %v14074, 8
  %v14084 = vpop.permute.xlu0 %14083
  %vm14090 = vcmask 97346
  %14091 = vst.msk [vmem:[%s8 - $0x2] sm:$0xfc] %vm14090, %v14076
  %vm14092 = vcmask 97344
  %14093 = vst.msk [vmem:[%s8 + $0x6] sm:$0xff] %vm14092, %v14078
  %14094 = vst.msk [vmem:[%s8 + $0xe] sm:$0xff] %vm14092, %v14080
  %14095 = vst.msk [vmem:[%s8 + $0x16] sm:$0xff] %vm14092, %v14082
  %vm14096 = vcmask 91200
  %14097 = vst.msk [vmem:[%s8 + $0x1e] sm:$0x3] %vm14096, %v14084
  %v14098 = vsel %vm13937, %v13927, %v13831
  %v14099 = vsel %vm13940, %v13930, %v14098
  %v14100 = vsel %vm13943, %v13933, %v14099
  %v14101 = vsel %vm13946, %v13936, %v14100
  %v14102 = vsel %vm13928, %v13942, %v13939
  %v14103 = vsel %vm13931, %v13945, %v14102
  %v14104 = vsel %vm13934, %v13847, %v14103
  %v14105 = vsel %vm13937, %v13948, %v14104
  %v14106 = vsel %vm13940, %v13950, %v14105
  %v14107 = vsel %vm13943, %v13952, %v14106
  %v14108 = vsel %vm13946, %v13954, %v14107
  %v14109 = vsel %vm13928, %v13958, %v13956
  %v14110 = vsel %vm13931, %v13960, %v14109
  %v14111 = vsel %vm13934, %v13863, %v14110
  %v14112 = vsel %vm13937, %v13962, %v14111
  %v14113 = vsel %vm13940, %v13964, %v14112
  %v14114 = vsel %vm13943, %v13966, %v14113
  %v14115 = vsel %vm13946, %v13968, %v14114
  %v14116 = vsel %vm13928, %v13972, %v13970
  %v14117 = vsel %vm13931, %v13974, %v14116
  %v14118 = vsel %vm13934, %v13879, %v14117
  %v14119 = vsel %vm13937, %v13976, %v14118
  %v14120 = vsel %vm13940, %v13978, %v14119
  %v14121 = vsel %vm13943, %v13980, %v14120
  %v14122 = vsel %vm13946, %v13982, %v14121
  %v14123 = vsel %vm13928, %v13986, %v13984
  %v14124 = vsel %vm13931, %v13988, %v14123
  %14125 = vrot.lane.b32.xlu0 %v14101, 12
  %v14126 = vpop.permute.xlu0 %14125
  %14127 = vrot.lane.b32.xlu0 %v14108, 12
  %v14128 = vpop.permute.xlu0 %14127
  %14129 = vrot.lane.b32.xlu0 %v14115, 12
  %v14130 = vpop.permute.xlu0 %14129
  %14131 = vrot.lane.b32.xlu0 %v14122, 12
  %v14132 = vpop.permute.xlu0 %14131
  %14133 = vrot.lane.b32.xlu0 %v14124, 12
  %v14134 = vpop.permute.xlu0 %14133
  %vm14140 = vcmask 130147
  %14141 = vst.msk [vmem:[%s8 - $0x3] sm:$0xf8] %vm14140, %v14126
  %vm14142 = vcmask 130144
  %14143 = vst.msk [vmem:[%s8 + $0x5] sm:$0xff] %vm14142, %v14128
  %14144 = vst.msk [vmem:[%s8 + $0xd] sm:$0xff] %vm14142, %v14130
  %14145 = vst.msk [vmem:[%s8 + $0x15] sm:$0xff] %vm14142, %v14132
  %vm14146 = vcmask 125024
  %14147 = vst.msk [vmem:[%s8 + $0x1d] sm:$0x7] %vm14146, %v14134
  %v14148 = vsel %vm13940, %v13927, %v13831
  %v14149 = vsel %vm13943, %v13930, %v14148
  %v14150 = vsel %vm13946, %v13933, %v14149
  %v14151 = vsel %vm13928, %v13939, %v13936
  %v14152 = vsel %vm13931, %v13942, %v14151
  %v14153 = vsel %vm13934, %v13945, %v14152
  %v14154 = vsel %vm13937, %v13847, %v14153
  %v14155 = vsel %vm13940, %v13948, %v14154
  %v14156 = vsel %vm13943, %v13950, %v14155
  %v14157 = vsel %vm13946, %v13952, %v14156
  %v14158 = vsel %vm13928, %v13956, %v13954
  %v14159 = vsel %vm13931, %v13958, %v14158
  %v14160 = vsel %vm13934, %v13960, %v14159
  %v14161 = vsel %vm13937, %v13863, %v14160
  %v14162 = vsel %vm13940, %v13962, %v14161
  %v14163 = vsel %vm13943, %v13964, %v14162
  %v14164 = vsel %vm13946, %v13966, %v14163
  %v14165 = vsel %vm13928, %v13970, %v13968
  %v14166 = vsel %vm13931, %v13972, %v14165
  %v14167 = vsel %vm13934, %v13974, %v14166
  %v14168 = vsel %vm13937, %v13879, %v14167
  %v14169 = vsel %vm13940, %v13976, %v14168
  %v14170 = vsel %vm13943, %v13978, %v14169
  %v14171 = vsel %vm13946, %v13980, %v14170
  %v14172 = vsel %vm13928, %v13984, %v13982
  %v14173 = vsel %vm13931, %v13986, %v14172
  %v14174 = vsel %vm13934, %v13988, %v14173
  %14175 = vrot.lane.b32.xlu0 %v14150, 16
  %v14176 = vpop.permute.xlu0 %14175
  %14177 = vrot.lane.b32.xlu0 %v14157, 16
  %v14178 = vpop.permute.xlu0 %14177
  %14179 = vrot.lane.b32.xlu0 %v14164, 16
  %v14180 = vpop.permute.xlu0 %14179
  %14181 = vrot.lane.b32.xlu0 %v14171, 16
  %v14182 = vpop.permute.xlu0 %14181
  %14183 = vrot.lane.b32.xlu0 %v14174, 16
  %v14184 = vpop.permute.xlu0 %14183
  %vm14190 = vcmask 162948
  %14191 = vst.msk [vmem:[%s8 - $0x4] sm:$0xf0] %vm14190, %v14176
  %vm14192 = vcmask 162944
  %14193 = vst.msk [vmem:[%s8 + $0x4] sm:$0xff] %vm14192, %v14178
  %14194 = vst.msk [vmem:[%s8 + $0xc] sm:$0xff] %vm14192, %v14180
  %14195 = vst.msk [vmem:[%s8 + $0x14] sm:$0xff] %vm14192, %v14182
  %vm14196 = vcmask 158848
  %14197 = vst.msk [vmem:[%s8 + $0x1c] sm:$0xf] %vm14196, %v14184
  %v14198 = vsel %vm13943, %v13927, %v13831
  %v14199 = vsel %vm13946, %v13930, %v14198
  %v14200 = vsel %vm13928, %v13936, %v13933
  %v14201 = vsel %vm13931, %v13939, %v14200
  %v14202 = vsel %vm13934, %v13942, %v14201
  %v14203 = vsel %vm13937, %v13945, %v14202
  %v14204 = vsel %vm13940, %v13847, %v14203
  %v14205 = vsel %vm13943, %v13948, %v14204
  %v14206 = vsel %vm13946, %v13950, %v14205
  %v14207 = vsel %vm13928, %v13954, %v13952
  %v14208 = vsel %vm13931, %v13956, %v14207
  %v14209 = vsel %vm13934, %v13958, %v14208
  %v14210 = vsel %vm13937, %v13960, %v14209
  %v14211 = vsel %vm13940, %v13863, %v14210
  %v14212 = vsel %vm13943, %v13962, %v14211
  %v14213 = vsel %vm13946, %v13964, %v14212
  %v14214 = vsel %vm13928, %v13968, %v13966
  %v14215 = vsel %vm13931, %v13970, %v14214
  %v14216 = vsel %vm13934, %v13972, %v14215
  %v14217 = vsel %vm13937, %v13974, %v14216
  %v14218 = vsel %vm13940, %v13879, %v14217
  %v14219 = vsel %vm13943, %v13976, %v14218
  %v14220 = vsel %vm13946, %v13978, %v14219
  %v14221 = vsel %vm13928, %v13982, %v13980
  %v14222 = vsel %vm13931, %v13984, %v14221
  %v14223 = vsel %vm13934, %v13986, %v14222
  %v14224 = vsel %vm13937, %v13988, %v14223
  %14225 = vrot.lane.b32.xlu0 %v14199, 20
  %v14226 = vpop.permute.xlu0 %14225
  %14227 = vrot.lane.b32.xlu0 %v14206, 20
  %v14228 = vpop.permute.xlu0 %14227
  %14229 = vrot.lane.b32.xlu0 %v14213, 20
  %v14230 = vpop.permute.xlu0 %14229
  %14231 = vrot.lane.b32.xlu0 %v14220, 20
  %v14232 = vpop.permute.xlu0 %14231
  %14233 = vrot.lane.b32.xlu0 %v14224, 20
  %v14234 = vpop.permute.xlu0 %14233
  %vm14240 = vcmask 195749
  %14241 = vst.msk [vmem:[%s8 - $0x5] sm:$0xe0] %vm14240, %v14226
  %vm14242 = vcmask 195744
  %14243 = vst.msk [vmem:[%s8 + $0x3] sm:$0xff] %vm14242, %v14228
  %14244 = vst.msk [vmem:[%s8 + $0xb] sm:$0xff] %vm14242, %v14230
  %14245 = vst.msk [vmem:[%s8 + $0x13] sm:$0xff] %vm14242, %v14232
  %vm14246 = vcmask 192672
  %14247 = vst.msk [vmem:[%s8 + $0x1b] sm:$0x1f] %vm14246, %v14234
  %v14248 = vsel %vm13946, %v13927, %v13831
  %v14249 = vsel %vm13928, %v13933, %v13930
  %v14250 = vsel %vm13931, %v13936, %v14249
  %v14251 = vsel %vm13934, %v13939, %v14250
  %v14252 = vsel %vm13937, %v13942, %v14251
  %v14253 = vsel %vm13940, %v13945, %v14252
  %v14254 = vsel %vm13943, %v13847, %v14253
  %v14255 = vsel %vm13946, %v13948, %v14254
  %v14256 = vsel %vm13928, %v13952, %v13950
  %v14257 = vsel %vm13931, %v13954, %v14256
  %v14258 = vsel %vm13934, %v13956, %v14257
  %v14259 = vsel %vm13937, %v13958, %v14258
  %v14260 = vsel %vm13940, %v13960, %v14259
  %v14261 = vsel %vm13943, %v13863, %v14260
  %v14262 = vsel %vm13946, %v13962, %v14261
  %v14263 = vsel %vm13928, %v13966, %v13964
  %v14264 = vsel %vm13931, %v13968, %v14263
  %v14265 = vsel %vm13934, %v13970, %v14264
  %v14266 = vsel %vm13937, %v13972, %v14265
  %v14267 = vsel %vm13940, %v13974, %v14266
  %v14268 = vsel %vm13943, %v13879, %v14267
  %v14269 = vsel %vm13946, %v13976, %v14268
  %v14270 = vsel %vm13928, %v13980, %v13978
  %v14271 = vsel %vm13931, %v13982, %v14270
  %v14272 = vsel %vm13934, %v13984, %v14271
  %v14273 = vsel %vm13937, %v13986, %v14272
  %v14274 = vsel %vm13940, %v13988, %v14273
  %14275 = vrot.lane.b32.xlu0 %v14248, 24
  %v14276 = vpop.permute.xlu0 %14275
  %14277 = vrot.lane.b32.xlu0 %v14255, 24
  %v14278 = vpop.permute.xlu0 %14277
  %14279 = vrot.lane.b32.xlu0 %v14262, 24
  %v14280 = vpop.permute.xlu0 %14279
  %14281 = vrot.lane.b32.xlu0 %v14269, 24
  %v14282 = vpop.permute.xlu0 %14281
  %14283 = vrot.lane.b32.xlu0 %v14274, 24
  %v14284 = vpop.permute.xlu0 %14283
  %vm14290 = vcmask 228550
  %14291 = vst.msk [vmem:[%s8 - $0x6] sm:$0xc0] %vm14290, %v14276
  %vm14292 = vcmask 228544
  %14293 = vst.msk [vmem:[%s8 + $0x2] sm:$0xff] %vm14292, %v14278
  %14294 = vst.msk [vmem:[%s8 + $0xa] sm:$0xff] %vm14292, %v14280
  %14295 = vst.msk [vmem:[%s8 + $0x12] sm:$0xff] %vm14292, %v14282
  %vm14296 = vcmask 226496
  %14297 = vst.msk [vmem:[%s8 + $0x1a] sm:$0x3f] %vm14296, %v14284
  %v14298 = vsel %vm13928, %v13930, %v13927
  %v14299 = vsel %vm13931, %v13933, %v14298
  %v14300 = vsel %vm13934, %v13936, %v14299
  %v14301 = vsel %vm13937, %v13939, %v14300
  %v14302 = vsel %vm13940, %v13942, %v14301
  %v14303 = vsel %vm13943, %v13945, %v14302
  %v14304 = vsel %vm13946, %v13847, %v14303
  %v14305 = vsel %vm13928, %v13950, %v13948
  %v14306 = vsel %vm13931, %v13952, %v14305
  %v14307 = vsel %vm13934, %v13954, %v14306
  %v14308 = vsel %vm13937, %v13956, %v14307
  %v14309 = vsel %vm13940, %v13958, %v14308
  %v14310 = vsel %vm13943, %v13960, %v14309
  %v14311 = vsel %vm13946, %v13863, %v14310
  %v14312 = vsel %vm13928, %v13964, %v13962
  %v14313 = vsel %vm13931, %v13966, %v14312
  %v14314 = vsel %vm13934, %v13968, %v14313
  %v14315 = vsel %vm13937, %v13970, %v14314
  %v14316 = vsel %vm13940, %v13972, %v14315
  %v14317 = vsel %vm13943, %v13974, %v14316
  %v14318 = vsel %vm13946, %v13879, %v14317
  %v14319 = vsel %vm13928, %v13978, %v13976
  %v14320 = vsel %vm13931, %v13980, %v14319
  %v14321 = vsel %vm13934, %v13982, %v14320
  %v14322 = vsel %vm13937, %v13984, %v14321
  %v14323 = vsel %vm13940, %v13986, %v14322
  %v14324 = vsel %vm13943, %v13988, %v14323
  %14325 = vrot.lane.b32.xlu0 %v13831, 28
  %v14326 = vpop.permute.xlu0 %14325
  %14327 = vrot.lane.b32.xlu0 %v14304, 28
  %v14328 = vpop.permute.xlu0 %14327
  %14329 = vrot.lane.b32.xlu0 %v14311, 28
  %v14330 = vpop.permute.xlu0 %14329
  %14331 = vrot.lane.b32.xlu0 %v14318, 28
  %v14332 = vpop.permute.xlu0 %14331
  %14333 = vrot.lane.b32.xlu0 %v14324, 28
  %v14334 = vpop.permute.xlu0 %14333
  %vm14340 = vcmask 261351
  %14341 = vst.msk [vmem:[%s8 - $0x7] sm:$0x80] %vm14340, %v14326
  %vm14342 = vcmask 261344
  %14343 = vst.msk [vmem:[%s8 + $0x1] sm:$0xff] %vm14342, %v14328
  %14344 = vst.msk [vmem:[%s8 + $0x9] sm:$0xff] %vm14342, %v14330
  %14345 = vst.msk [vmem:[%s8 + $0x11] sm:$0xff] %vm14342, %v14332
  %vm14346 = vcmask 260320
  %14347 = vst.msk [vmem:[%s8 + $0x19] sm:$0x7f] %vm14346, %v14334
  %v14380 = vrot.slane %v13834, 7
  %v14381 = vsel %vm13928, %v14380, %v13832
  %v14382 = vrot.slane %v13836, 6
  %v14383 = vsel %vm13931, %v14382, %v14381
  %v14384 = vrot.slane %v13838, 5
  %v14385 = vsel %vm13934, %v14384, %v14383
  %v14386 = vrot.slane %v13840, 4
  %v14387 = vsel %vm13937, %v14386, %v14385
  %v14388 = vrot.slane %v13842, 3
  %v14389 = vsel %vm13940, %v14388, %v14387
  %v14390 = vrot.slane %v13844, 2
  %v14391 = vsel %vm13943, %v14390, %v14389
  %v14392 = vrot.slane %v13846, 1
  %v14393 = vsel %vm13946, %v14392, %v14391
  %v14394 = vrot.slane %v13850, 7
  %v14395 = vsel %vm13928, %v14394, %v13848
  %v14396 = vrot.slane %v13852, 6
  %v14397 = vsel %vm13931, %v14396, %v14395
  %v14398 = vrot.slane %v13854, 5
  %v14399 = vsel %vm13934, %v14398, %v14397
  %v14400 = vrot.slane %v13856, 4
  %v14401 = vsel %vm13937, %v14400, %v14399
  %v14402 = vrot.slane %v13858, 3
  %v14403 = vsel %vm13940, %v14402, %v14401
  %v14404 = vrot.slane %v13860, 2
  %v14405 = vsel %vm13943, %v14404, %v14403
  %v14406 = vrot.slane %v13862, 1
  %v14407 = vsel %vm13946, %v14406, %v14405
  %v14408 = vrot.slane %v13866, 7
  %v14409 = vsel %vm13928, %v14408, %v13864
  %v14410 = vrot.slane %v13868, 6
  %v14411 = vsel %vm13931, %v14410, %v14409
  %v14412 = vrot.slane %v13870, 5
  %v14413 = vsel %vm13934, %v14412, %v14411
  %v14414 = vrot.slane %v13872, 4
  %v14415 = vsel %vm13937, %v14414, %v14413
  %v14416 = vrot.slane %v13874, 3
  %v14417 = vsel %vm13940, %v14416, %v14415
  %v14418 = vrot.slane %v13876, 2
  %v14419 = vsel %vm13943, %v14418, %v14417
  %v14420 = vrot.slane %v13878, 1
  %v14421 = vsel %vm13946, %v14420, %v14419
  %v14422 = vrot.slane %v13882, 7
  %v14423 = vsel %vm13928, %v14422, %v13880
  %v14424 = vrot.slane %v13884, 6
  %v14425 = vsel %vm13931, %v14424, %v14423
  %v14426 = vrot.slane %v13886, 5
  %v14427 = vsel %vm13934, %v14426, %v14425
  %v14428 = vrot.slane %v13888, 4
  %v14429 = vsel %vm13937, %v14428, %v14427
  %v14430 = vrot.slane %v13890, 3
  %v14431 = vsel %vm13940, %v14430, %v14429
  %v14432 = vrot.slane %v13892, 2
  %v14433 = vsel %vm13943, %v14432, %v14431
  %v14434 = vrot.slane %v13894, 1
  %v14435 = vsel %vm13946, %v14434, %v14433
  %14436 = vrot.lane.b32.xlu0 %v14393, 32
  %v14437 = vpop.permute.xlu0 %14436
  %14438 = vrot.lane.b32.xlu0 %v14407, 32
  %v14439 = vpop.permute.xlu0 %14438
  %14440 = vrot.lane.b32.xlu0 %v14421, 32
  %v14441 = vpop.permute.xlu0 %14440
  %14442 = vrot.lane.b32.xlu0 %v14435, 32
  %v14443 = vpop.permute.xlu0 %14442
  %vm14448 = vcmask 294144
  %14449 = vst.msk [vmem:[%s8] sm:$0xff] %vm14448, %v14437
  %14450 = vst.msk [vmem:[%s8 + $0x8] sm:$0xff] %vm14448, %v14439
  %14451 = vst.msk [vmem:[%s8 + $0x10] sm:$0xff] %vm14448, %v14441
  %14452 = vst.msk [vmem:[%s8 + $0x18] sm:$0xff] %vm14448, %v14443
  %v14453 = vsel %vm13931, %v14380, %v13832
  %v14454 = vsel %vm13934, %v14382, %v14453
  %v14455 = vsel %vm13937, %v14384, %v14454
  %v14456 = vsel %vm13940, %v14386, %v14455
  %v14457 = vsel %vm13943, %v14388, %v14456
  %v14458 = vsel %vm13946, %v14390, %v14457
  %v14459 = vsel %vm13928, %v13848, %v14392
  %v14460 = vsel %vm13931, %v14394, %v14459
  %v14461 = vsel %vm13934, %v14396, %v14460
  %v14462 = vsel %vm13937, %v14398, %v14461
  %v14463 = vsel %vm13940, %v14400, %v14462
  %v14464 = vsel %vm13943, %v14402, %v14463
  %v14465 = vsel %vm13946, %v14404, %v14464
  %v14466 = vsel %vm13928, %v13864, %v14406
  %v14467 = vsel %vm13931, %v14408, %v14466
  %v14468 = vsel %vm13934, %v14410, %v14467
  %v14469 = vsel %vm13937, %v14412, %v14468
  %v14470 = vsel %vm13940, %v14414, %v14469
  %v14471 = vsel %vm13943, %v14416, %v14470
  %v14472 = vsel %vm13946, %v14418, %v14471
  %v14473 = vsel %vm13928, %v13880, %v14420
  %v14474 = vsel %vm13931, %v14422, %v14473
  %v14475 = vsel %vm13934, %v14424, %v14474
  %v14476 = vsel %vm13937, %v14426, %v14475
  %v14477 = vsel %vm13940, %v14428, %v14476
  %v14478 = vsel %vm13943, %v14430, %v14477
  %v14479 = vsel %vm13946, %v14432, %v14478
  %14480 = vrot.lane.b32.xlu0 %v14458, 36
  %v14481 = vpop.permute.xlu0 %14480
  %14482 = vrot.lane.b32.xlu0 %v14465, 36
  %v14483 = vpop.permute.xlu0 %14482
  %14484 = vrot.lane.b32.xlu0 %v14472, 36
  %v14485 = vpop.permute.xlu0 %14484
  %14486 = vrot.lane.b32.xlu0 %v14479, 36
  %v14487 = vpop.permute.xlu0 %14486
  %14488 = vrot.lane.b32.xlu0 %v14434, 36
  %v14489 = vpop.permute.xlu0 %14488
  %vm14495 = vcmask 326945
  %14496 = vst.msk [vmem:[%s8 - $0x1] sm:$0xfe] %vm14495, %v14481
  %vm14497 = vcmask 326944
  %14498 = vst.msk [vmem:[%s8 + $0x7] sm:$0xff] %vm14497, %v14483
  %14499 = vst.msk [vmem:[%s8 + $0xf] sm:$0xff] %vm14497, %v14485
  %14500 = vst.msk [vmem:[%s8 + $0x17] sm:$0xff] %vm14497, %v14487
  %vm14501 = vcmask 319776
  %14502 = vst.msk [vmem:[%s8 + $0x1f] sm:$0x1] %vm14501, %v14489
  %v14503 = vsel %vm13934, %v14380, %v13832
  %v14504 = vsel %vm13937, %v14382, %v14503
  %v14505 = vsel %vm13940, %v14384, %v14504
  %v14506 = vsel %vm13943, %v14386, %v14505
  %v14507 = vsel %vm13946, %v14388, %v14506
  %v14508 = vsel %vm13928, %v14392, %v14390
  %v14509 = vsel %vm13931, %v13848, %v14508
  %v14510 = vsel %vm13934, %v14394, %v14509
  %v14511 = vsel %vm13937, %v14396, %v14510
  %v14512 = vsel %vm13940, %v14398, %v14511
  %v14513 = vsel %vm13943, %v14400, %v14512
  %v14514 = vsel %vm13946, %v14402, %v14513
  %v14515 = vsel %vm13928, %v14406, %v14404
  %v14516 = vsel %vm13931, %v13864, %v14515
  %v14517 = vsel %vm13934, %v14408, %v14516
  %v14518 = vsel %vm13937, %v14410, %v14517
  %v14519 = vsel %vm13940, %v14412, %v14518
  %v14520 = vsel %vm13943, %v14414, %v14519
  %v14521 = vsel %vm13946, %v14416, %v14520
  %v14522 = vsel %vm13928, %v14420, %v14418
  %v14523 = vsel %vm13931, %v13880, %v14522
  %v14524 = vsel %vm13934, %v14422, %v14523
  %v14525 = vsel %vm13937, %v14424, %v14524
  %v14526 = vsel %vm13940, %v14426, %v14525
  %v14527 = vsel %vm13943, %v14428, %v14526
  %v14528 = vsel %vm13946, %v14430, %v14527
  %v14529 = vsel %vm13928, %v14434, %v14432
  %14530 = vrot.lane.b32.xlu0 %v14507, 40
  %v14531 = vpop.permute.xlu0 %14530
  %14532 = vrot.lane.b32.xlu0 %v14514, 40
  %v14533 = vpop.permute.xlu0 %14532
  %14534 = vrot.lane.b32.xlu0 %v14521, 40
  %v14535 = vpop.permute.xlu0 %14534
  %14536 = vrot.lane.b32.xlu0 %v14528, 40
  %v14537 = vpop.permute.xlu0 %14536
  %14538 = vrot.lane.b32.xlu0 %v14529, 40
  %v14539 = vpop.permute.xlu0 %14538
  %vm14545 = vcmask 359746
  %14546 = vst.msk [vmem:[%s8 - $0x2] sm:$0xfc] %vm14545, %v14531
  %vm14547 = vcmask 359744
  %14548 = vst.msk [vmem:[%s8 + $0x6] sm:$0xff] %vm14547, %v14533
  %14549 = vst.msk [vmem:[%s8 + $0xe] sm:$0xff] %vm14547, %v14535
  %14550 = vst.msk [vmem:[%s8 + $0x16] sm:$0xff] %vm14547, %v14537
  %vm14551 = vcmask 353600
  %14552 = vst.msk [vmem:[%s8 + $0x1e] sm:$0x3] %vm14551, %v14539
  %v14553 = vsel %vm13937, %v14380, %v13832
  %v14554 = vsel %vm13940, %v14382, %v14553
  %v14555 = vsel %vm13943, %v14384, %v14554
  %v14556 = vsel %vm13946, %v14386, %v14555
  %v14557 = vsel %vm13928, %v14390, %v14388
  %v14558 = vsel %vm13931, %v14392, %v14557
  %v14559 = vsel %vm13934, %v13848, %v14558
  %v14560 = vsel %vm13937, %v14394, %v14559
  %v14561 = vsel %vm13940, %v14396, %v14560
  %v14562 = vsel %vm13943, %v14398, %v14561
  %v14563 = vsel %vm13946, %v14400, %v14562
  %v14564 = vsel %vm13928, %v14404, %v14402
  %v14565 = vsel %vm13931, %v14406, %v14564
  %v14566 = vsel %vm13934, %v13864, %v14565
  %v14567 = vsel %vm13937, %v14408, %v14566
  %v14568 = vsel %vm13940, %v14410, %v14567
  %v14569 = vsel %vm13943, %v14412, %v14568
  %v14570 = vsel %vm13946, %v14414, %v14569
  %v14571 = vsel %vm13928, %v14418, %v14416
  %v14572 = vsel %vm13931, %v14420, %v14571
  %v14573 = vsel %vm13934, %v13880, %v14572
  %v14574 = vsel %vm13937, %v14422, %v14573
  %v14575 = vsel %vm13940, %v14424, %v14574
  %v14576 = vsel %vm13943, %v14426, %v14575
  %v14577 = vsel %vm13946, %v14428, %v14576
  %v14578 = vsel %vm13928, %v14432, %v14430
  %v14579 = vsel %vm13931, %v14434, %v14578
  %14580 = vrot.lane.b32.xlu0 %v14556, 44
  %v14581 = vpop.permute.xlu0 %14580
  %14582 = vrot.lane.b32.xlu0 %v14563, 44
  %v14583 = vpop.permute.xlu0 %14582
  %14584 = vrot.lane.b32.xlu0 %v14570, 44
  %v14585 = vpop.permute.xlu0 %14584
  %14586 = vrot.lane.b32.xlu0 %v14577, 44
  %v14587 = vpop.permute.xlu0 %14586
  %14588 = vrot.lane.b32.xlu0 %v14579, 44
  %v14589 = vpop.permute.xlu0 %14588
  %vm14595 = vcmask 392547
  %14596 = vst.msk [vmem:[%s8 - $0x3] sm:$0xf8] %vm14595, %v14581
  %vm14597 = vcmask 392544
  %14598 = vst.msk [vmem:[%s8 + $0x5] sm:$0xff] %vm14597, %v14583
  %14599 = vst.msk [vmem:[%s8 + $0xd] sm:$0xff] %vm14597, %v14585
  %14600 = vst.msk [vmem:[%s8 + $0x15] sm:$0xff] %vm14597, %v14587
  %vm14601 = vcmask 387424
  %14602 = vst.msk [vmem:[%s8 + $0x1d] sm:$0x7] %vm14601, %v14589
  %v14603 = vsel %vm13940, %v14380, %v13832
  %v14604 = vsel %vm13943, %v14382, %v14603
  %v14605 = vsel %vm13946, %v14384, %v14604
  %v14606 = vsel %vm13928, %v14388, %v14386
  %v14607 = vsel %vm13931, %v14390, %v14606
  %v14608 = vsel %vm13934, %v14392, %v14607
  %v14609 = vsel %vm13937, %v13848, %v14608
  %v14610 = vsel %vm13940, %v14394, %v14609
  %v14611 = vsel %vm13943, %v14396, %v14610
  %v14612 = vsel %vm13946, %v14398, %v14611
  %v14613 = vsel %vm13928, %v14402, %v14400
  %v14614 = vsel %vm13931, %v14404, %v14613
  %v14615 = vsel %vm13934, %v14406, %v14614
  %v14616 = vsel %vm13937, %v13864, %v14615
  %v14617 = vsel %vm13940, %v14408, %v14616
  %v14618 = vsel %vm13943, %v14410, %v14617
  %v14619 = vsel %vm13946, %v14412, %v14618
  %v14620 = vsel %vm13928, %v14416, %v14414
  %v14621 = vsel %vm13931, %v14418, %v14620
  %v14622 = vsel %vm13934, %v14420, %v14621
  %v14623 = vsel %vm13937, %v13880, %v14622
  %v14624 = vsel %vm13940, %v14422, %v14623
  %v14625 = vsel %vm13943, %v14424, %v14624
  %v14626 = vsel %vm13946, %v14426, %v14625
  %v14627 = vsel %vm13928, %v14430, %v14428
  %v14628 = vsel %vm13931, %v14432, %v14627
  %v14629 = vsel %vm13934, %v14434, %v14628
  %14630 = vrot.lane.b32.xlu0 %v14605, 48
  %v14631 = vpop.permute.xlu0 %14630
  %14632 = vrot.lane.b32.xlu0 %v14612, 48
  %v14633 = vpop.permute.xlu0 %14632
  %14634 = vrot.lane.b32.xlu0 %v14619, 48
  %v14635 = vpop.permute.xlu0 %14634
  %14636 = vrot.lane.b32.xlu0 %v14626, 48
  %v14637 = vpop.permute.xlu0 %14636
  %14638 = vrot.lane.b32.xlu0 %v14629, 48
  %v14639 = vpop.permute.xlu0 %14638
  %vm14645 = vcmask 425348
  %14646 = vst.msk [vmem:[%s8 - $0x4] sm:$0xf0] %vm14645, %v14631
  %vm14647 = vcmask 425344
  %14648 = vst.msk [vmem:[%s8 + $0x4] sm:$0xff] %vm14647, %v14633
  %14649 = vst.msk [vmem:[%s8 + $0xc] sm:$0xff] %vm14647, %v14635
  %14650 = vst.msk [vmem:[%s8 + $0x14] sm:$0xff] %vm14647, %v14637
  %vm14651 = vcmask 421248
  %14652 = vst.msk [vmem:[%s8 + $0x1c] sm:$0xf] %vm14651, %v14639
  %v14653 = vsel %vm13943, %v14380, %v13832
  %v14654 = vsel %vm13946, %v14382, %v14653
  %v14655 = vsel %vm13928, %v14386, %v14384
  %v14656 = vsel %vm13931, %v14388, %v14655
  %v14657 = vsel %vm13934, %v14390, %v14656
  %v14658 = vsel %vm13937, %v14392, %v14657
  %v14659 = vsel %vm13940, %v13848, %v14658
  %v14660 = vsel %vm13943, %v14394, %v14659
  %v14661 = vsel %vm13946, %v14396, %v14660
  %v14662 = vsel %vm13928, %v14400, %v14398
  %v14663 = vsel %vm13931, %v14402, %v14662
  %v14664 = vsel %vm13934, %v14404, %v14663
  %v14665 = vsel %vm13937, %v14406, %v14664
  %v14666 = vsel %vm13940, %v13864, %v14665
  %v14667 = vsel %vm13943, %v14408, %v14666
  %v14668 = vsel %vm13946, %v14410, %v14667
  %v14669 = vsel %vm13928, %v14414, %v14412
  %v14670 = vsel %vm13931, %v14416, %v14669
  %v14671 = vsel %vm13934, %v14418, %v14670
  %v14672 = vsel %vm13937, %v14420, %v14671
  %v14673 = vsel %vm13940, %v13880, %v14672
  %v14674 = vsel %vm13943, %v14422, %v14673
  %v14675 = vsel %vm13946, %v14424, %v14674
  %v14676 = vsel %vm13928, %v14428, %v14426
  %v14677 = vsel %vm13931, %v14430, %v14676
  %v14678 = vsel %vm13934, %v14432, %v14677
  %v14679 = vsel %vm13937, %v14434, %v14678
  %14680 = vrot.lane.b32.xlu0 %v14654, 52
  %v14681 = vpop.permute.xlu0 %14680
  %14682 = vrot.lane.b32.xlu0 %v14661, 52
  %v14683 = vpop.permute.xlu0 %14682
  %14684 = vrot.lane.b32.xlu0 %v14668, 52
  %v14685 = vpop.permute.xlu0 %14684
  %14686 = vrot.lane.b32.xlu0 %v14675, 52
  %v14687 = vpop.permute.xlu0 %14686
  %14688 = vrot.lane.b32.xlu0 %v14679, 52
  %v14689 = vpop.permute.xlu0 %14688
  %vm14695 = vcmask 458149
  %14696 = vst.msk [vmem:[%s8 - $0x5] sm:$0xe0] %vm14695, %v14681
  %vm14697 = vcmask 458144
  %14698 = vst.msk [vmem:[%s8 + $0x3] sm:$0xff] %vm14697, %v14683
  %14699 = vst.msk [vmem:[%s8 + $0xb] sm:$0xff] %vm14697, %v14685
  %14700 = vst.msk [vmem:[%s8 + $0x13] sm:$0xff] %vm14697, %v14687
  %vm14701 = vcmask 455072
  %14702 = vst.msk [vmem:[%s8 + $0x1b] sm:$0x1f] %vm14701, %v14689
  %v14703 = vsel %vm13946, %v14380, %v13832
  %v14704 = vsel %vm13928, %v14384, %v14382
  %v14705 = vsel %vm13931, %v14386, %v14704
  %v14706 = vsel %vm13934, %v14388, %v14705
  %v14707 = vsel %vm13937, %v14390, %v14706
  %v14708 = vsel %vm13940, %v14392, %v14707
  %v14709 = vsel %vm13943, %v13848, %v14708
  %v14710 = vsel %vm13946, %v14394, %v14709
  %v14711 = vsel %vm13928, %v14398, %v14396
  %v14712 = vsel %vm13931, %v14400, %v14711
  %v14713 = vsel %vm13934, %v14402, %v14712
  %v14714 = vsel %vm13937, %v14404, %v14713
  %v14715 = vsel %vm13940, %v14406, %v14714
  %v14716 = vsel %vm13943, %v13864, %v14715
  %v14717 = vsel %vm13946, %v14408, %v14716
  %v14718 = vsel %vm13928, %v14412, %v14410
  %v14719 = vsel %vm13931, %v14414, %v14718
  %v14720 = vsel %vm13934, %v14416, %v14719
  %v14721 = vsel %vm13937, %v14418, %v14720
  %v14722 = vsel %vm13940, %v14420, %v14721
  %v14723 = vsel %vm13943, %v13880, %v14722
  %v14724 = vsel %vm13946, %v14422, %v14723
  %v14725 = vsel %vm13928, %v14426, %v14424
  %v14726 = vsel %vm13931, %v14428, %v14725
  %v14727 = vsel %vm13934, %v14430, %v14726
  %v14728 = vsel %vm13937, %v14432, %v14727
  %v14729 = vsel %vm13940, %v14434, %v14728
  %14730 = vrot.lane.b32.xlu0 %v14703, 56
  %v14731 = vpop.permute.xlu0 %14730
  %14732 = vrot.lane.b32.xlu0 %v14710, 56
  %v14733 = vpop.permute.xlu0 %14732
  %14734 = vrot.lane.b32.xlu0 %v14717, 56
  %v14735 = vpop.permute.xlu0 %14734
  %14736 = vrot.lane.b32.xlu0 %v14724, 56
  %v14737 = vpop.permute.xlu0 %14736
  %14738 = vrot.lane.b32.xlu0 %v14729, 56
  %v14739 = vpop.permute.xlu0 %14738
  %vm14745 = vcmask 490950
  %14746 = vst.msk [vmem:[%s8 - $0x6] sm:$0xc0] %vm14745, %v14731
  %vm14747 = vcmask 490944
  %14748 = vst.msk [vmem:[%s8 + $0x2] sm:$0xff] %vm14747, %v14733
  %14749 = vst.msk [vmem:[%s8 + $0xa] sm:$0xff] %vm14747, %v14735
  %14750 = vst.msk [vmem:[%s8 + $0x12] sm:$0xff] %vm14747, %v14737
  %vm14751 = vcmask 488896
  %14752 = vst.msk [vmem:[%s8 + $0x1a] sm:$0x3f] %vm14751, %v14739
  %v14753 = vsel %vm13928, %v14382, %v14380
  %v14754 = vsel %vm13931, %v14384, %v14753
  %v14755 = vsel %vm13934, %v14386, %v14754
  %v14756 = vsel %vm13937, %v14388, %v14755
  %v14757 = vsel %vm13940, %v14390, %v14756
  %v14758 = vsel %vm13943, %v14392, %v14757
  %v14759 = vsel %vm13946, %v13848, %v14758
  %v14760 = vsel %vm13928, %v14396, %v14394
  %v14761 = vsel %vm13931, %v14398, %v14760
  %v14762 = vsel %vm13934, %v14400, %v14761
  %v14763 = vsel %vm13937, %v14402, %v14762
  %v14764 = vsel %vm13940, %v14404, %v14763
  %v14765 = vsel %vm13943, %v14406, %v14764
  %v14766 = vsel %vm13946, %v13864, %v14765
  %v14767 = vsel %vm13928, %v14410, %v14408
  %v14768 = vsel %vm13931, %v14412, %v14767
  %v14769 = vsel %vm13934, %v14414, %v14768
  %v14770 = vsel %vm13937, %v14416, %v14769
  %v14771 = vsel %vm13940, %v14418, %v14770
  %v14772 = vsel %vm13943, %v14420, %v14771
  %v14773 = vsel %vm13946, %v13880, %v14772
  %v14774 = vsel %vm13928, %v14424, %v14422
  %v14775 = vsel %vm13931, %v14426, %v14774
  %v14776 = vsel %vm13934, %v14428, %v14775
  %v14777 = vsel %vm13937, %v14430, %v14776
  %v14778 = vsel %vm13940, %v14432, %v14777
  %v14779 = vsel %vm13943, %v14434, %v14778
  %14780 = vrot.lane.b32.xlu0 %v13832, 60
  %v14781 = vpop.permute.xlu0 %14780
  %14782 = vrot.lane.b32.xlu0 %v14759, 60
  %v14783 = vpop.permute.xlu0 %14782
  %14784 = vrot.lane.b32.xlu0 %v14766, 60
  %v14785 = vpop.permute.xlu0 %14784
  %14786 = vrot.lane.b32.xlu0 %v14773, 60
  %v14787 = vpop.permute.xlu0 %14786
  %14788 = vrot.lane.b32.xlu0 %v14779, 60
  %v14789 = vpop.permute.xlu0 %14788
  %vm14795 = vcmask 523751
  %14796 = vst.msk [vmem:[%s8 - $0x7] sm:$0x80] %vm14795, %v14781
  %vm14797 = vcmask 523744
  %14798 = vst.msk [vmem:[%s8 + $0x1] sm:$0xff] %vm14797, %v14783
  %14799 = vst.msk [vmem:[%s8 + $0x9] sm:$0xff] %vm14797, %v14785
  %14800 = vst.msk [vmem:[%s8 + $0x11] sm:$0xff] %vm14797, %v14787
  %vm14801 = vcmask 522720
  %14802 = vst.msk [vmem:[%s8 + $0x19] sm:$0x7f] %vm14801, %v14789
  // Predicated region
  $region34: #{residual_block.1} parent=0 // pred_check
    _
  $region35: #{residual_block.1} parent=0 // pred_check_branch
    %14804 = sbr.rel (0) target = $region37
  $region36: #{residual_block.1} parent=0 // pred_region
    _
  $region37: #{residual_block.1} parent=0 // pred_fallthru
    _
  // Predicated region
  $region38: #{residual_block.1} parent=0 // pred_check
    _
  $region39: #{residual_block.1} parent=0 // pred_check_branch
    %14806 = sbr.rel (0) target = $region41
  $region40: #{residual_block.1} parent=0 // pred_region
    _
  $region41: #{residual_block.1} parent=0 // pred_fallthru
    _

</llo_original>
